<compile_context>
chip_gen: v7x
topology: tpu7x:2x2x1
jax: 0.10.0
libtpu: 0.0.40
codegen_flags: <defaults>
</compile_context>

<pallas_src>
import functools
import math

import jax
import jax.numpy as jnp
import numpy as np
from jax.experimental import pallas as pl
from jax.experimental.pallas import tpu as pltpu

# ----- module hyper-parameters (copied from the PyTorch source) -------------
expand_factor = 2
model_scale = 1.0
num_blocks = round(8 * math.log2(1.0 + model_scale))                    # 8
qk_dim_div = 8
to_nearest_64 = lambda x: round(x / 64) * 64
residual_depth = to_nearest_64(384 * math.log2(1.0 + model_scale))      # 384
LN_EPS = 1e-5
NEG_INF = -1e30   # finite stand-in for -inf: exp() underflows to exactly 0


def _gelu_erf(x):
    # Exact erf formulation (PyTorch F.gelu default) - used by the reference.
    return 0.5 * x * (1.0 + jax.lax.erf(x * 0.7071067811865476))


def _gelu_tanh(x):
    # tanh-approximate GELU: the transcendental goes to the EUP slot instead
    # of a long erf polynomial on the VALU.  Numerics delta vs erf is far
    # below the test tolerance for this module's activation magnitudes.
    c = 0.7978845608028654  # sqrt(2/pi)
    return 0.5 * x * (1.0 + jnp.tanh(c * (x + 0.044715 * x * x * x)))


# ----------------------------- Pallas kernel --------------------------------
def latent_attention_kernel(mask_ref, x_ref, gamma_ref, beta_ref,
                            wq_ref, wk_ref, wg_ref, wpl_ref, wpa_ref,
                            o_ref, *, seq_len, block_b, expand_dim, v_dim):
    """Bt batch elements per grid step; everything resident in VMEM."""
    f32 = jnp.float32
    bf16 = jnp.bfloat16
    Bt, S = block_b, seq_len
    D = x_ref.shape[-1]
    EmV = expand_dim - v_dim

    # Merge (Bt, S, D) -> (Bt*S, D): last dim unchanged, S multiple of 8 ->
    # free reshape; raises the MXU M dim for all the dense projections.
    x = x_ref[...].reshape(Bt * S, D)                      # f32 residual

    # ---- LayerNorm (f32 elementwise; biased variance, eps=1e-5) ----
    mean = jnp.mean(x, axis=-1, keepdims=True)
    xc = x - mean
    var = jnp.mean(xc * xc, axis=-1, keepdims=True)
    xn = xc * jax.lax.rsqrt(var + LN_EPS) * gamma_ref[...] + beta_ref[...]
    xn_bf = xn.astype(bf16)                                # single cast, reused

    # ---- Q / K projections (1/sqrt(qk) pre-folded into w_q at prep time) ----
    q = jnp.dot(xn_bf, wq_ref[...], preferred_element_type=f32)   # (Bt*S, qk)
    k = jnp.dot(xn_bf, wk_ref[...], preferred_element_type=f32)   # (Bt*S, qk)

    # ---- fused [lin | pre] projection: one long-N MXU sweep ----
    h = jnp.dot(xn_bf, wg_ref[...], preferred_element_type=f32)   # (Bt*S, 2E)
    lin = h[:, :expand_dim]                                # lane-aligned slices
    pre = h[:, expand_dim:]

    # ---- GEGLU: f32 elementwise, tanh transcendental on EUP, bf16 output ----
    # (bf16 elementwise would be faster still on v6e/v7x; keep f32 so the
    #  same kernel is safe on v5e which has no bf16 VPU/EUP datapath.)
    g = (lin * _gelu_tanh(pre)).astype(bf16)               # (Bt*S, E) bf16
    g_local = g[:, :EmV]                                   # (Bt*S, E-V)
    g_value = g[:, EmV:]                                   # (Bt*S, V)

    # ---- scaled dot-product attention (per batch element) ----
    qb = q.astype(bf16).reshape(Bt, S, -1)
    kb = k.astype(bf16).reshape(Bt, S, -1)
    vb = g_value.reshape(Bt, S, v_dim)
    s = jnp.einsum('bqd,bkd->bqk', qb, kb,
                   preferred_element_type=f32)             # (Bt, S, S)
    s = s + mask_ref[...]                                  # resident f32 mask
    m = jnp.max(s, axis=-1, keepdims=True)
    p = jnp.exp(s - m)
    denom = jnp.sum(p, axis=-1, keepdims=True)
    attn = jnp.einsum('bqk,bkd->bqd', p.astype(bf16), vb,
                      preferred_element_type=f32)          # (Bt, S, V)
    attn = attn * pl.reciprocal(denom, approx=False)       # EUP, exact
    attn_bf = attn.reshape(Bt * S, v_dim).astype(bf16)

    # ---- project (row-split weight -> no concatenate) + residual ----
    out = jnp.dot(g_local, wpl_ref[...], preferred_element_type=f32)
    out = out + jnp.dot(attn_bf, wpa_ref[...], preferred_element_type=f32)
    o_ref[...] = (x + out).reshape(Bt, S, D)


# ------------------------------ wrappers --------------------------------------
def prepare_params(params):
    """One-time weight prep: transpose, fuse/split lane-aligned, fold QK scale, bf16."""
    D = params["expand"].shape[1]
    qk = D // qk_dim_div
    E = D * expand_factor
    V = D
    we_t = params["expand"].T.astype(jnp.float32)            # (D, 2qk + 2E)
    wp_t = params["project"].T.astype(jnp.float32)           # (E, D)
    qk_scale = 1.0 / math.sqrt(qk)
    return {
        "gamma": params["ln_weight"].reshape(1, D).astype(jnp.float32),
        "beta": params["ln_bias"].reshape(1, D).astype(jnp.float32),
        # attention scale folded into w_q before the bf16 cast
        "w_q": (we_t[:, :qk] * qk_scale).astype(jnp.bfloat16),
        "w_k": we_t[:, qk:2 * qk].astype(jnp.bfloat16),
        # fused [lin_local | lin_value | pre_local | pre_value] -> (D, 2E)
        "w_geglu": we_t[:, 2 * qk:].astype(jnp.bfloat16),
        "wp_local": wp_t[:E - V, :].astype(jnp.bfloat16),
        "wp_attn": wp_t[E - V:, :].astype(jnp.bfloat16),
        "position_bias_mult": params["position_bias_mult"],
    }


def _pick_block_b(B, max_bt=8):
    """Largest Bt dividing B with grid length B//Bt >= 2 (v7x megacore)."""
    best = 1
    for cand in range(1, min(B, max_bt) + 1):
        if B % cand == 0 and B // cand >= 2:
            best = cand
    return best if B > 1 else 1


def latent_attention_block(x, prep, *, block_b=None):
    B, S, D = x.shape
    qk = D // qk_dim_div
    E = D * expand_factor
    V = D
    if block_b is None:
        block_b = _pick_block_b(B)
    assert B % block_b == 0

    # Causal + learnable linear position-bias mask, built once (f32, resident).
    sp = jax.nn.softplus(prep["position_bias_mult"]).astype(jnp.float32)
    pos = jnp.arange(S)
    bias = (pos[None, :] - pos[:, None]).astype(jnp.float32) * sp
    mask = jnp.where(pos[None, :] <= pos[:, None], bias, jnp.float32(NEG_INF))

    kernel = functools.partial(latent_attention_kernel,
                               seq_len=S, block_b=block_b,
                               expand_dim=E, v_dim=V)

    flops = (2 * B * S * D * (2 * qk + 2 * E)        # expand
             + 2 * B * S * S * qk                    # q @ k^T
             + 2 * B * S * S * V                     # p @ v
             + 2 * B * S * E * D)                    # project
    transcendentals = B * S * (E + S)                # tanh + exp
    bytes_accessed = (2 * 4 * B * S * D + 4 * S * S
                      + 2 * (D * (2 * qk + 2 * E) + E * D))

    def w_spec(shape):
        return pl.BlockSpec(shape, lambda b: (0, 0))

    return pl.pallas_call(
        kernel,
        out_shape=jax.ShapeDtypeStruct((B, S, D), jnp.float32),
        grid_spec=pltpu.PrefetchScalarGridSpec(
            num_scalar_prefetch=0,
            grid=(B // block_b,),
            in_specs=[
                w_spec((S, S)),                                       # mask
                pl.BlockSpec((block_b, S, D), lambda b: (b, 0, 0)),   # x
                w_spec((1, D)),                                       # ln gamma
                w_spec((1, D)),                                       # ln beta
                w_spec((D, qk)),                                      # w_q (scaled)
                w_spec((D, qk)),                                      # w_k
                w_spec((D, 2 * E)),                                   # fused lin|pre
                w_spec((E - V, D)),                                   # wp_local
                w_spec((V, D)),                                       # wp_attn
            ],
            out_specs=pl.BlockSpec((block_b, S, D), lambda b: (b, 0, 0)),
        ),
        input_output_aliases={1: 0},   # in-place residual update (x -> out)
        compiler_params=pltpu.CompilerParams(
            dimension_semantics=("parallel",),
            vmem_limit_bytes=16 * 1024 * 1024),
        cost_estimate=pl.CostEstimate(flops=flops,
                                      transcendentals=transcendentals,
                                      bytes_accessed=bytes_accessed),
    )(mask, x, prep["gamma"], prep["beta"],
      prep["w_q"], prep["w_k"], prep["w_geglu"],
      prep["wp_local"], prep["wp_attn"])


# --------------------------- pure-JAX reference ------------------------------
def latent_attention_reference(x, params):
    B, S, D = x.shape
    qk_dim = D // qk_dim_div
    expand_dim = D * expand_factor
    v_dim = D

    sp = jax.nn.softplus(params["position_bias_mult"])
    pos = jnp.arange(S)
    position_bias = (pos[None, :] - pos[:, None]).astype(jnp.float32)
    allowed = pos[None, :] <= pos[:, None]
    attn_mask = jnp.where(allowed, sp * position_bias, jnp.float32(-jnp.inf))

    residual = x
    mean = jnp.mean(x, axis=-1, keepdims=True)
    var = jnp.mean((x - mean) ** 2, axis=-1, keepdims=True)
    xn = (x - mean) * jax.lax.rsqrt(var + LN_EPS)
    xn = xn * params["ln_weight"] + params["ln_bias"]

    h = jnp.einsum("bsd,ed->bse", xn, params["expand"])
    q = h[..., :qk_dim]
    k = h[..., qk_dim:2 * qk_dim]
    lin = h[..., 2 * qk_dim:2 * qk_dim + expand_dim]
    pre = h[..., 2 * qk_dim + expand_dim:]
    geglu = lin * _gelu_erf(pre)
    g_local = geglu[..., :expand_dim - v_dim]
    g_value = geglu[..., expand_dim - v_dim:]

    s = jnp.einsum("bqd,bkd->bqk", q, k) / math.sqrt(qk_dim) + attn_mask[None]
    p = jax.nn.softmax(s, axis=-1)
    attn = jnp.einsum("bqk,bkd->bqd", p, g_value)

    cat = jnp.concatenate([g_local, attn], axis=-1)
    out = jnp.einsum("bse,de->bsd", cat, params["project"])
    return residual + out


# --------------------------------- main ---------------------------------------
if __name__ == "__main__":
    D = residual_depth             # 384 = the dim the module is built for
    B, S = 4, 64                   # small; grid=(2,) with Bt=2 per step
    qk_dim = D // qk_dim_div       # 48
    expand_dim = D * expand_factor # 768

    key = jax.random.PRNGKey(0)
    k_exp, k_proj, k_x, k_g, k_b = jax.random.split(key, 5)

    params = {
        "ln_weight": 1.0 + 0.1 * jax.random.normal(k_g, (D,), jnp.float32),
        "ln_bias": 0.02 * jax.random.normal(k_b, (D,), jnp.float32),
        "expand": (0.5 / residual_depth ** 0.5 / expand_factor)
                  * jax.random.normal(k_exp, (2 * qk_dim + 2 * expand_dim, D),
                                      jnp.float32),
        "project": (1.0 / residual_depth ** 0.5 / expand_factor / num_blocks)
                   * jax.random.normal(k_proj, (D, expand_dim), jnp.float32),
        "position_bias_mult": jnp.float32(1.0),
    }

    x = jax.random.normal(k_x, (B, S, D), jnp.float32)

    # Reference first: x is donated to the kernel output (input_output_aliases).
    ref = jax.block_until_ready(latent_attention_reference(x, params))

    prep = prepare_params(params)            # one-time transpose/fuse/scale/bf16
    out = jax.block_until_ready(latent_attention_block(x, prep))

    np.testing.assert_allclose(np.asarray(out), np.asarray(ref),
                               rtol=2e-2, atol=2e-3)
    print("KERNEL_OK")
</pallas_src>

<mosaic_0001>
module attributes {stable_mosaic.version = 11 : i64} {
  func.func @latent_attention_kernel(%arg0: i32, %arg1: memref<64x64xf32, #tpu.memory_space<vmem>>, %arg2: memref<2x64x384xf32, #tpu.memory_space<vmem>>, %arg3: memref<1x384xf32, #tpu.memory_space<vmem>>, %arg4: memref<1x384xf32, #tpu.memory_space<vmem>>, %arg5: memref<384x48xbf16, #tpu.memory_space<vmem>>, %arg6: memref<384x48xbf16, #tpu.memory_space<vmem>>, %arg7: memref<384x1536xbf16, #tpu.memory_space<vmem>>, %arg8: memref<384x384xbf16, #tpu.memory_space<vmem>>, %arg9: memref<384x384xbf16, #tpu.memory_space<vmem>>, %arg10: memref<2x64x384xf32, #tpu.memory_space<vmem>>) attributes {dimension_semantics = [#tpu.dimension_semantics<parallel>], iteration_bounds = array<i64: 2>, scalar_prefetch = 0 : i64, scratch_operands = 0 : i64, tpu.core_type = #tpu.core_type<tc>, window_params = [{pipeline_mode = #tpu.pipeline_mode<synchronous>, transform_indices = @transform_0, window_bounds = array<i64: 64, 64>}, {transform_indices = @transform_1, window_bounds = array<i64: 2, 64, 384>}, {pipeline_mode = #tpu.pipeline_mode<synchronous>, transform_indices = @transform_2, window_bounds = array<i64: 1, 384>}, {pipeline_mode = #tpu.pipeline_mode<synchronous>, transform_indices = @transform_3, window_bounds = array<i64: 1, 384>}, {pipeline_mode = #tpu.pipeline_mode<synchronous>, transform_indices = @transform_4, window_bounds = array<i64: 384, 48>}, {pipeline_mode = #tpu.pipeline_mode<synchronous>, transform_indices = @transform_5, window_bounds = array<i64: 384, 48>}, {pipeline_mode = #tpu.pipeline_mode<synchronous>, transform_indices = @transform_6, window_bounds = array<i64: 384, 1536>}, {pipeline_mode = #tpu.pipeline_mode<synchronous>, transform_indices = @transform_7, window_bounds = array<i64: 384, 384>}, {pipeline_mode = #tpu.pipeline_mode<synchronous>, transform_indices = @transform_8, window_bounds = array<i64: 384, 384>}, {transform_indices = @transform_9, window_bounds = array<i64: 2, 64, 384>}]} {
    %c0 = arith.constant 0 : index
    %c0_0 = arith.constant 0 : index
    %c0_1 = arith.constant 0 : index
    %0 = vector.load %arg2[%c0, %c0_0, %c0_1] : memref<2x64x384xf32, #tpu.memory_space<vmem>>, vector<2x64x384xf32>
    %1 = vector.shape_cast %0 : vector<2x64x384xf32> to vector<128x384xf32>
    %cst = arith.constant dense<0.000000e+00> : vector<128xf32>
    %2 = vector.multi_reduction <add>, %1, %cst [1] : vector<128x384xf32> to vector<128xf32>
    %3 = vector.shape_cast %2 : vector<128xf32> to vector<128x1xf32>
    %cst_2 = arith.constant 3.840000e+02 : f32
    %4 = vector.broadcast %cst_2 : f32 to vector<128x1xf32>
    %5 = arith.divf %3, %4 : vector<128x1xf32>
    %6 = vector.broadcast %5 : vector<128x1xf32> to vector<128x384xf32>
    %7 = arith.subf %1, %6 : vector<128x384xf32>
    %8 = arith.mulf %7, %7 : vector<128x384xf32>
    %cst_3 = arith.constant dense<0.000000e+00> : vector<128xf32>
    %9 = vector.multi_reduction <add>, %8, %cst_3 [1] : vector<128x384xf32> to vector<128xf32>
    %10 = vector.shape_cast %9 : vector<128xf32> to vector<128x1xf32>
    %cst_4 = arith.constant 3.840000e+02 : f32
    %11 = vector.broadcast %cst_4 : f32 to vector<128x1xf32>
    %12 = arith.divf %10, %11 : vector<128x1xf32>
    %cst_5 = arith.constant 9.99999974E-6 : f32
    %13 = vector.broadcast %cst_5 : f32 to vector<128x1xf32>
    %14 = arith.addf %12, %13 : vector<128x1xf32>
    %15 = math.rsqrt %14 : vector<128x1xf32>
    %16 = vector.broadcast %15 : vector<128x1xf32> to vector<128x384xf32>
    %17 = arith.mulf %7, %16 : vector<128x384xf32>
    %c0_6 = arith.constant 0 : index
    %c0_7 = arith.constant 0 : index
    %18 = vector.load %arg3[%c0_6, %c0_7] : memref<1x384xf32, #tpu.memory_space<vmem>>, vector<1x384xf32>
    %19 = vector.broadcast %18 : vector<1x384xf32> to vector<128x384xf32>
    %20 = arith.mulf %17, %19 : vector<128x384xf32>
    %c0_8 = arith.constant 0 : index
    %c0_9 = arith.constant 0 : index
    %21 = vector.load %arg4[%c0_8, %c0_9] : memref<1x384xf32, #tpu.memory_space<vmem>>, vector<1x384xf32>
    %22 = vector.broadcast %21 : vector<1x384xf32> to vector<128x384xf32>
    %23 = arith.addf %20, %22 : vector<128x384xf32>
    %24 = arith.truncf %23 : vector<128x384xf32> to vector<128x384xbf16>
    %c0_10 = arith.constant 0 : index
    %c0_11 = arith.constant 0 : index
    %25 = vector.load %arg5[%c0_10, %c0_11] : memref<384x48xbf16, #tpu.memory_space<vmem>>, vector<384x48xbf16>
    %cst_12 = arith.constant dense<0.000000e+00> : vector<128x48xf32>
    %26 = tpu.matmul %24, %25, %cst_12 {dimension_numbers = #tpu.dot_dimension_numbers<[1], [0], [0], [1], [0, 0, 1, 1], [], []>} : vector<128x384xbf16>, vector<384x48xbf16>, vector<128x48xf32> -> vector<128x48xf32>
    %c0_13 = arith.constant 0 : index
    %c0_14 = arith.constant 0 : index
    %27 = vector.load %arg6[%c0_13, %c0_14] : memref<384x48xbf16, #tpu.memory_space<vmem>>, vector<384x48xbf16>
    %cst_15 = arith.constant dense<0.000000e+00> : vector<128x48xf32>
    %28 = tpu.matmul %24, %27, %cst_15 {dimension_numbers = #tpu.dot_dimension_numbers<[1], [0], [0], [1], [0, 0, 1, 1], [], []>} : vector<128x384xbf16>, vector<384x48xbf16>, vector<128x48xf32> -> vector<128x48xf32>
    %c0_16 = arith.constant 0 : index
    %c0_17 = arith.constant 0 : index
    %29 = vector.load %arg7[%c0_16, %c0_17] : memref<384x1536xbf16, #tpu.memory_space<vmem>>, vector<384x1536xbf16>
    %cst_18 = arith.constant dense<0.000000e+00> : vector<128x1536xf32>
    %30 = tpu.matmul %24, %29, %cst_18 {dimension_numbers = #tpu.dot_dimension_numbers<[1], [0], [0], [1], [0, 0, 1, 1], [], []>} : vector<128x384xbf16>, vector<384x1536xbf16>, vector<128x1536xf32> -> vector<128x1536xf32>
    %31 = vector.extract_strided_slice %30 {offsets = [0, 0], sizes = [128, 768], strides = [1, 1]} : vector<128x1536xf32> to vector<128x768xf32>
    %32 = vector.extract_strided_slice %30 {offsets = [0, 768], sizes = [128, 768], strides = [1, 1]} : vector<128x1536xf32> to vector<128x768xf32>
    %cst_19 = arith.constant 5.000000e-01 : f32
    %33 = vector.broadcast %cst_19 : f32 to vector<128x768xf32>
    %34 = arith.mulf %33, %32 : vector<128x768xf32>
    %cst_20 = arith.constant 4.471500e-02 : f32
    %35 = vector.broadcast %cst_20 : f32 to vector<128x768xf32>
    %36 = arith.mulf %35, %32 : vector<128x768xf32>
    %37 = arith.mulf %36, %32 : vector<128x768xf32>
    %38 = arith.mulf %37, %32 : vector<128x768xf32>
    %39 = arith.addf %32, %38 : vector<128x768xf32>
    %cst_21 = arith.constant 0.797884583 : f32
    %40 = vector.broadcast %cst_21 : f32 to vector<128x768xf32>
    %41 = arith.mulf %40, %39 : vector<128x768xf32>
    %42 = math.tanh %41 : vector<128x768xf32>
    %cst_22 = arith.constant 1.000000e+00 : f32
    %43 = vector.broadcast %cst_22 : f32 to vector<128x768xf32>
    %44 = arith.addf %43, %42 : vector<128x768xf32>
    %45 = arith.mulf %34, %44 : vector<128x768xf32>
    %46 = arith.mulf %31, %45 : vector<128x768xf32>
    %47 = arith.truncf %46 : vector<128x768xf32> to vector<128x768xbf16>
    %48 = vector.extract_strided_slice %47 {offsets = [0, 0], sizes = [128, 384], strides = [1, 1]} : vector<128x768xbf16> to vector<128x384xbf16>
    %49 = vector.extract_strided_slice %47 {offsets = [0, 384], sizes = [128, 384], strides = [1, 1]} : vector<128x768xbf16> to vector<128x384xbf16>
    %50 = arith.truncf %26 : vector<128x48xf32> to vector<128x48xbf16>
    %51 = vector.shape_cast %50 : vector<128x48xbf16> to vector<2x64x48xbf16>
    %52 = arith.truncf %28 : vector<128x48xf32> to vector<128x48xbf16>
    %53 = vector.shape_cast %52 : vector<128x48xbf16> to vector<2x64x48xbf16>
    %54 = vector.shape_cast %49 : vector<128x384xbf16> to vector<2x64x384xbf16>
    "tpu.trace_start"() <{level = 10 : i32, message = "bqd,bkd->bqk"}> : () -> ()
    %cst_23 = arith.constant dense<0.000000e+00> : vector<2x64x64xf32>
    %55 = tpu.matmul %51, %53, %cst_23 {dimension_numbers = #tpu.dot_dimension_numbers<[2], [2], [1], [1], [0, 0, 0, 1, 1, 1], [0], [0]>} : vector<2x64x48xbf16>, vector<2x64x48xbf16>, vector<2x64x64xf32> -> vector<2x64x64xf32>
    "tpu.trace_stop"() : () -> ()
    %c0_24 = arith.constant 0 : index
    %c0_25 = arith.constant 0 : index
    %56 = vector.load %arg1[%c0_24, %c0_25] : memref<64x64xf32, #tpu.memory_space<vmem>>, vector<64x64xf32>
    %57 = vector.shape_cast %56 : vector<64x64xf32> to vector<1x64x64xf32>
    %58 = vector.broadcast %57 : vector<1x64x64xf32> to vector<2x64x64xf32>
    %59 = arith.addf %55, %58 : vector<2x64x64xf32>
    %cst_26 = arith.constant dense<0xFF800000> : vector<2x64xf32>
    %60 = vector.multi_reduction <maximumf>, %59, %cst_26 [2] : vector<2x64x64xf32> to vector<2x64xf32>
    %61 = vector.shape_cast %60 : vector<2x64xf32> to vector<2x64x1xf32>
    %62 = vector.broadcast %61 : vector<2x64x1xf32> to vector<2x64x64xf32>
    %63 = arith.subf %59, %62 : vector<2x64x64xf32>
    %64 = math.exp %63 : vector<2x64x64xf32>
    %cst_27 = arith.constant dense<0.000000e+00> : vector<2x64xf32>
    %65 = vector.multi_reduction <add>, %64, %cst_27 [2] : vector<2x64x64xf32> to vector<2x64xf32>
    %66 = vector.shape_cast %65 : vector<2x64xf32> to vector<2x64x1xf32>
    %67 = arith.truncf %64 : vector<2x64x64xf32> to vector<2x64x64xbf16>
    "tpu.trace_start"() <{level = 10 : i32, message = "bqk,bkd->bqd"}> : () -> ()
    %cst_28 = arith.constant dense<0.000000e+00> : vector<2x64x384xf32>
    %68 = tpu.matmul %67, %54, %cst_28 {dimension_numbers = #tpu.dot_dimension_numbers<[2], [1], [1], [2], [0, 0, 0, 1, 1, 2], [0], [0]>} : vector<2x64x64xbf16>, vector<2x64x384xbf16>, vector<2x64x384xf32> -> vector<2x64x384xf32>
    "tpu.trace_stop"() : () -> ()
    %69 = tpu.reciprocal %66 : vector<2x64x1xf32> -> vector<2x64x1xf32>
    %70 = vector.broadcast %69 : vector<2x64x1xf32> to vector<2x64x384xf32>
    %71 = arith.mulf %68, %70 : vector<2x64x384xf32>
    %72 = vector.shape_cast %71 : vector<2x64x384xf32> to vector<128x384xf32>
    %73 = arith.truncf %72 : vector<128x384xf32> to vector<128x384xbf16>
    %c0_29 = arith.constant 0 : index
    %c0_30 = arith.constant 0 : index
    %74 = vector.load %arg8[%c0_29, %c0_30] : memref<384x384xbf16, #tpu.memory_space<vmem>>, vector<384x384xbf16>
    %cst_31 = arith.constant dense<0.000000e+00> : vector<128x384xf32>
    %75 = tpu.matmul %48, %74, %cst_31 {dimension_numbers = #tpu.dot_dimension_numbers<[1], [0], [0], [1], [0, 0, 1, 1], [], []>} : vector<128x384xbf16>, vector<384x384xbf16>, vector<128x384xf32> -> vector<128x384xf32>
    %c0_32 = arith.constant 0 : index
    %c0_33 = arith.constant 0 : index
    %76 = vector.load %arg9[%c0_32, %c0_33] : memref<384x384xbf16, #tpu.memory_space<vmem>>, vector<384x384xbf16>
    %cst_34 = arith.constant dense<0.000000e+00> : vector<128x384xf32>
    %77 = tpu.matmul %73, %76, %cst_34 {dimension_numbers = #tpu.dot_dimension_numbers<[1], [0], [0], [1], [0, 0, 1, 1], [], []>} : vector<128x384xbf16>, vector<384x384xbf16>, vector<128x384xf32> -> vector<128x384xf32>
    %78 = arith.addf %75, %77 : vector<128x384xf32>
    %79 = arith.addf %1, %78 : vector<128x384xf32>
    %80 = vector.shape_cast %79 : vector<128x384xf32> to vector<2x64x384xf32>
    %c0_35 = arith.constant 0 : index
    %c0_36 = arith.constant 0 : index
    %c0_37 = arith.constant 0 : index
    %81 = vector.load %arg10[%c0_35, %c0_36, %c0_37] : memref<2x64x384xf32, #tpu.memory_space<vmem>>, vector<2x64x384xf32>
    tpu.vector_store %arg10[%c0_35, %c0_36, %c0_37], %80 {strides = array<i32>} : memref<2x64x384xf32, #tpu.memory_space<vmem>>, vector<2x64x384xf32>,
    return
  }
  func.func @transform_0(%arg0: i32) -> (i32, i32) {
    %c0_i32 = arith.constant 0 : i32
    %c0_i32_0 = arith.constant 0 : i32
    %c0_i32_1 = arith.constant 0 : i32
    return %c0_i32, %c0_i32_0 : i32, i32
  }
  func.func @transform_1(%arg0: i32) -> (i32, i32, i32) {
    %c0_i32 = arith.constant 0 : i32
    %c0_i32_0 = arith.constant 0 : i32
    %c0_i32_1 = arith.constant 0 : i32
    return %arg0, %c0_i32, %c0_i32_0 : i32, i32, i32
  }
  func.func @transform_2(%arg0: i32) -> (i32, i32) {
    %c0_i32 = arith.constant 0 : i32
    %c0_i32_0 = arith.constant 0 : i32
    %c0_i32_1 = arith.constant 0 : i32
    return %c0_i32, %c0_i32_0 : i32, i32
  }
  func.func @transform_3(%arg0: i32) -> (i32, i32) {
    %c0_i32 = arith.constant 0 : i32
    %c0_i32_0 = arith.constant 0 : i32
    %c0_i32_1 = arith.constant 0 : i32
    return %c0_i32, %c0_i32_0 : i32, i32
  }
  func.func @transform_4(%arg0: i32) -> (i32, i32) {
    %c0_i32 = arith.constant 0 : i32
    %c0_i32_0 = arith.constant 0 : i32
    %c0_i32_1 = arith.constant 0 : i32
    return %c0_i32, %c0_i32_0 : i32, i32
  }
  func.func @transform_5(%arg0: i32) -> (i32, i32) {
    %c0_i32 = arith.constant 0 : i32
    %c0_i32_0 = arith.constant 0 : i32
    %c0_i32_1 = arith.constant 0 : i32
    return %c0_i32, %c0_i32_0 : i32, i32
  }
  func.func @transform_6(%arg0: i32) -> (i32, i32) {
    %c0_i32 = arith.constant 0 : i32
    %c0_i32_0 = arith.constant 0 : i32
    %c0_i32_1 = arith.constant 0 : i32
    return %c0_i32, %c0_i32_0 : i32, i32
  }
  func.func @transform_7(%arg0: i32) -> (i32, i32) {
    %c0_i32 = arith.constant 0 : i32
    %c0_i32_0 = arith.constant 0 : i32
    %c0_i32_1 = arith.constant 0 : i32
    return %c0_i32, %c0_i32_0 : i32, i32
  }
  func.func @transform_8(%arg0: i32) -> (i32, i32) {
    %c0_i32 = arith.constant 0 : i32
    %c0_i32_0 = arith.constant 0 : i32
    %c0_i32_1 = arith.constant 0 : i32
    return %c0_i32, %c0_i32_0 : i32, i32
  }
  func.func @transform_9(%arg0: i32) -> (i32, i32, i32) {
    %c0_i32 = arith.constant 0 : i32
    %c0_i32_0 = arith.constant 0 : i32
    %c0_i32_1 = arith.constant 0 : i32
    return %arg0, %c0_i32, %c0_i32_0 : i32, i32, i32
  }
}

</mosaic_0001>

<llo_original>
// kernel: tpu_custom_call.1
$region0: #{tpu_custom_call.1}
  #allocation0 [shape = 'u32[]', space=smem, size = 0x4, offset = 0x4, fixed_abs, tag = 'smem constant byte address 0x4 - core index']
  #allocation1 [shape = 'u32[144,128]{1,0:T(1,128)}', space=vmem, size = 0x12000, scoped, tag = 'internal scratch']
  %s0 = inlined_call_operand.hbm [shape: f32[64,64], index: 0, kind: input, shape index: {}]
  %s1 = inlined_call_operand.hbm [shape: f32[4,64,384], index: 1, kind: input, shape index: {}, may-alias: {1,9}]
  %s2 = inlined_call_operand.hbm [shape: f32[1,384], index: 2, kind: input, shape index: {}]
  %s3 = inlined_call_operand.hbm [shape: f32[1,384], index: 3, kind: input, shape index: {}]
  %s4 = inlined_call_operand.vmem [shape: bf16[384,48], index: 4, kind: input, shape index: {}]
  %s5 = inlined_call_operand.vmem [shape: bf16[384,48], index: 5, kind: input, shape index: {}]
  %s6 = inlined_call_operand.hbm [shape: bf16[384,1536], index: 6, kind: input, shape index: {}]
  %s7 = inlined_call_operand.vmem [shape: bf16[384,384], index: 7, kind: input, shape index: {}]
  %s8 = inlined_call_operand.vmem [shape: bf16[384,384], index: 8, kind: input, shape index: {}]
  %s9 = inlined_call_operand.hbm [shape: f32[4,64,384], index: 9, kind: output, shape index: {}, may-alias: {1,9}]
  %s10 = sld [smem:[#allocation0]]
  $region89: #{tpu_custom_call.1} parent=0
    _
  %s12 = ssub.s32 1, %s10
  %s13 = scalar_select 0, %s12, %s10
  $region1: #{tpu_custom_call.1} parent=0
    #allocation2 [shape = 'u8[32768]{0}', space=vmem, size = 0x8000, scoped, tag = 'input window, operand 0, single buffered']
    #allocation3 [shape = 's32[2]{0}', space=sflag, size = 0x8, scoped, tag = 'scoped memory for tpu_custom_call.1']
    #allocation4 [shape = 's32[2]{0}', space=sflag, size = 0x8, scoped, tag = 'scoped memory for tpu_custom_call.1']
    #allocation5 [shape = 'u8[393216]{0}', space=vmem, size = 0x60000, scoped, tag = 'input window, operand 1']
    #allocation6 [shape = 's32[2]{0}', space=sflag, size = 0x8, scoped, tag = 'scoped memory for tpu_custom_call.1']
    #allocation7 [shape = 'u8[1536]{0}', space=vmem, size = 0x800, scoped, tag = 'input window, operand 2, single buffered']
    #allocation8 [shape = 'u8[1536]{0}', space=vmem, size = 0x800, scoped, tag = 'input window, operand 3, single buffered']
    #allocation9 [shape = 's32[1]{0}', space=sflag, size = 0x4, scoped, tag = 'scoped memory for tpu_custom_call.1']
    #allocation10 [shape = 'u8[1179648]{0}', space=vmem, size = 0x120000, scoped, tag = 'input window, operand 6, single buffered']
    #allocation11 [shape = 'u8[393216]{0}', space=vmem, size = 0x60000, scoped, tag = 'output window, operand 0']
    %14 = vsyncpa [#allocation3], 0
    %15 = vsyncpa [#allocation6], 0
    %s16 = scalar_lea.sflag [#allocation6], 1
    %17 = vsyncpa %s16, 0
    %18 = vsyncpa [#allocation9], 0
    %19 = vsyncpa [#allocation4], 0
    %s20 = scalar_lea.sflag [#allocation4], 1
    %21 = vsyncpa %s20, 0
    loop: start=0, step=1, limit=4
    $region2: #{tpu_custom_call.1} parent=1 // loop_pre_header
      _
    $region3: #{tpu_custom_call.1} parent=1 // loop_header
      %s23 = sphi 0, %s27
      %p24 = scmp.ge.s32.totalorder %s23, 4
      %s31 = sphi 0, %s31
      %s33 = sphi 0, %s31
      %s34 = sphi 0, %s33
      %s48 = sphi 0, %s34
      %s54 = sphi 0, %s56
      %s57 = sphi 0, %s54
      %s58 = sphi 0, %s57
      %s74 = sphi 0, %s58
      %s78 = sphi 0, %s78
      %s80 = sphi 0, %s78
      %s81 = sphi 0, %s80
      %s95 = sphi 0, %s81
      %s99 = sphi 0, %s99
      %s101 = sphi 0, %s99
      %s102 = sphi 0, %s101
      %s116 = sphi 0, %s102
      %s120 = sphi 0, %s120
      %s122 = sphi 0, %s120
      %s123 = sphi 0, %s122
      %s137 = sphi 0, %s123
      %s141 = sphi 0, %s141
      %s143 = sphi 0, %s141
      %s144 = sphi 0, %s143
      %s158 = sphi 0, %s144
      %s162 = sphi 0, %s162
      %s164 = sphi 0, %s162
      %s165 = sphi 0, %s164
      %s179 = sphi 0, %s165
      %s183 = sphi 0, %s183
      %s185 = sphi 0, %s183
      %s186 = sphi 0, %s185
      %s200 = sphi 0, %s186
      %s204 = sphi 0, %s204
      %s206 = sphi 0, %s204
      %s207 = sphi 0, %s206
      %s221 = sphi 0, %s207
      %s227 = sphi 0, %s229
      %s230 = sphi 0, %s227
      %s231 = sphi 0, %s230
      %s247 = sphi 0, %s231
    $region4: #{tpu_custom_call.1} parent=1 // loop_header_branch
      %26 = sbr.rel (%p24) target = $region8
    $region5: #{tpu_custom_call.1} parent=1 // loop_body
      %s28 = ssub.s32 %s23, 1
      %s29 = ssub.s32 %s23, 2
      %s30 = sadd.s32 %s23, 1
      %s32 = sadd.s32 %s31, 1
      %p35 = scmp.eq.s32.totalorder %s23, 1
      %p36 = scmp.ne.s32.totalorder %s31, %s33
      %p37 = scmp.eq.s32.totalorder %s23, 0
      %p38 = por %p36, %p37
      %p39 = scmp.ne.s32.totalorder %s31, %s33
      %p40 = scmp.eq.s32.totalorder %s28, 1
      %p41 = por %p39, %p40
      %p42 = scmp.ne.s32.totalorder %s33, %s34
      %p43 = scmp.eq.s32.totalorder %s28, 0
      %p44 = por %p42, %p43
      %p45 = scmp.ne.s32.totalorder %s33, %s34
      %p46 = scmp.eq.s32.totalorder %s29, 1
      %p47 = por %p45, %p46
      %p49 = scmp.ne.s32.totalorder %s34, %s48
      %p50 = scmp.eq.s32.totalorder %s29, 0
      %p51 = por %p49, %p50
      %s52 = ssub.s32 %s23, %s30
      %p53 = scmp.eq.s32.totalorder %s52, 0
      %s55 = sadd.s32 %s54, 1
      %s56 = scalar_select %p53, %s54, %s55
      %p59 = pneg %p53
      %p60 = scmp.eq.s32.totalorder %s23, 1
      %p61 = por %p59, %p60
      %p62 = scmp.ne.s32.totalorder %s54, %s57
      %p63 = scmp.eq.s32.totalorder %s23, 0
      %p64 = por %p62, %p63
      %p65 = scmp.ne.s32.totalorder %s54, %s57
      %p66 = scmp.eq.s32.totalorder %s28, 1
      %p67 = por %p65, %p66
      %p68 = scmp.ne.s32.totalorder %s57, %s58
      %p69 = scmp.eq.s32.totalorder %s28, 0
      %p70 = por %p68, %p69
      %p71 = scmp.ne.s32.totalorder %s57, %s58
      %p72 = scmp.eq.s32.totalorder %s29, 1
      %p73 = por %p71, %p72
      %p75 = scmp.ne.s32.totalorder %s58, %s74
      %p76 = scmp.eq.s32.totalorder %s29, 0
      %p77 = por %p75, %p76
      %s79 = sadd.s32 %s78, 1
      %p82 = scmp.eq.s32.totalorder %s23, 1
      %p83 = scmp.ne.s32.totalorder %s78, %s80
      %p84 = scmp.eq.s32.totalorder %s23, 0
      %p85 = por %p83, %p84
      %p86 = scmp.ne.s32.totalorder %s78, %s80
      %p87 = scmp.eq.s32.totalorder %s28, 1
      %p88 = por %p86, %p87
      %p89 = scmp.ne.s32.totalorder %s80, %s81
      %p90 = scmp.eq.s32.totalorder %s28, 0
      %p91 = por %p89, %p90
      %p92 = scmp.ne.s32.totalorder %s80, %s81
      %p93 = scmp.eq.s32.totalorder %s29, 1
      %p94 = por %p92, %p93
      %p96 = scmp.ne.s32.totalorder %s81, %s95
      %p97 = scmp.eq.s32.totalorder %s29, 0
      %p98 = por %p96, %p97
      %s100 = sadd.s32 %s99, 1
      %p103 = scmp.eq.s32.totalorder %s23, 1
      %p104 = scmp.ne.s32.totalorder %s99, %s101
      %p105 = scmp.eq.s32.totalorder %s23, 0
      %p106 = por %p104, %p105
      %p107 = scmp.ne.s32.totalorder %s99, %s101
      %p108 = scmp.eq.s32.totalorder %s28, 1
      %p109 = por %p107, %p108
      %p110 = scmp.ne.s32.totalorder %s101, %s102
      %p111 = scmp.eq.s32.totalorder %s28, 0
      %p112 = por %p110, %p111
      %p113 = scmp.ne.s32.totalorder %s101, %s102
      %p114 = scmp.eq.s32.totalorder %s29, 1
      %p115 = por %p113, %p114
      %p117 = scmp.ne.s32.totalorder %s102, %s116
      %p118 = scmp.eq.s32.totalorder %s29, 0
      %p119 = por %p117, %p118
      %s121 = sadd.s32 %s120, 1
      %p124 = scmp.eq.s32.totalorder %s23, 1
      %p125 = scmp.ne.s32.totalorder %s120, %s122
      %p126 = scmp.eq.s32.totalorder %s23, 0
      %p127 = por %p125, %p126
      %p128 = scmp.ne.s32.totalorder %s120, %s122
      %p129 = scmp.eq.s32.totalorder %s28, 1
      %p130 = por %p128, %p129
      %p131 = scmp.ne.s32.totalorder %s122, %s123
      %p132 = scmp.eq.s32.totalorder %s28, 0
      %p133 = por %p131, %p132
      %p134 = scmp.ne.s32.totalorder %s122, %s123
      %p135 = scmp.eq.s32.totalorder %s29, 1
      %p136 = por %p134, %p135
      %p138 = scmp.ne.s32.totalorder %s123, %s137
      %p139 = scmp.eq.s32.totalorder %s29, 0
      %p140 = por %p138, %p139
      %s142 = sadd.s32 %s141, 1
      %p145 = scmp.eq.s32.totalorder %s23, 1
      %p146 = scmp.ne.s32.totalorder %s141, %s143
      %p147 = scmp.eq.s32.totalorder %s23, 0
      %p148 = por %p146, %p147
      %p149 = scmp.ne.s32.totalorder %s141, %s143
      %p150 = scmp.eq.s32.totalorder %s28, 1
      %p151 = por %p149, %p150
      %p152 = scmp.ne.s32.totalorder %s143, %s144
      %p153 = scmp.eq.s32.totalorder %s28, 0
      %p154 = por %p152, %p153
      %p155 = scmp.ne.s32.totalorder %s143, %s144
      %p156 = scmp.eq.s32.totalorder %s29, 1
      %p157 = por %p155, %p156
      %p159 = scmp.ne.s32.totalorder %s144, %s158
      %p160 = scmp.eq.s32.totalorder %s29, 0
      %p161 = por %p159, %p160
      %s163 = sadd.s32 %s162, 1
      %p166 = scmp.eq.s32.totalorder %s23, 1
      %p167 = scmp.ne.s32.totalorder %s162, %s164
      %p168 = scmp.eq.s32.totalorder %s23, 0
      %p169 = por %p167, %p168
      %p170 = scmp.ne.s32.totalorder %s162, %s164
      %p171 = scmp.eq.s32.totalorder %s28, 1
      %p172 = por %p170, %p171
      %p173 = scmp.ne.s32.totalorder %s164, %s165
      %p174 = scmp.eq.s32.totalorder %s28, 0
      %p175 = por %p173, %p174
      %p176 = scmp.ne.s32.totalorder %s164, %s165
      %p177 = scmp.eq.s32.totalorder %s29, 1
      %p178 = por %p176, %p177
      %p180 = scmp.ne.s32.totalorder %s165, %s179
      %p181 = scmp.eq.s32.totalorder %s29, 0
      %p182 = por %p180, %p181
      %s184 = sadd.s32 %s183, 1
      %p187 = scmp.eq.s32.totalorder %s23, 1
      %p188 = scmp.ne.s32.totalorder %s183, %s185
      %p189 = scmp.eq.s32.totalorder %s23, 0
      %p190 = por %p188, %p189
      %p191 = scmp.ne.s32.totalorder %s183, %s185
      %p192 = scmp.eq.s32.totalorder %s28, 1
      %p193 = por %p191, %p192
      %p194 = scmp.ne.s32.totalorder %s185, %s186
      %p195 = scmp.eq.s32.totalorder %s28, 0
      %p196 = por %p194, %p195
      %p197 = scmp.ne.s32.totalorder %s185, %s186
      %p198 = scmp.eq.s32.totalorder %s29, 1
      %p199 = por %p197, %p198
      %p201 = scmp.ne.s32.totalorder %s186, %s200
      %p202 = scmp.eq.s32.totalorder %s29, 0
      %p203 = por %p201, %p202
      %s205 = sadd.s32 %s204, 1
      %p208 = scmp.eq.s32.totalorder %s23, 1
      %p209 = scmp.ne.s32.totalorder %s204, %s206
      %p210 = scmp.eq.s32.totalorder %s23, 0
      %p211 = por %p209, %p210
      %p212 = scmp.ne.s32.totalorder %s204, %s206
      %p213 = scmp.eq.s32.totalorder %s28, 1
      %p214 = por %p212, %p213
      %p215 = scmp.ne.s32.totalorder %s206, %s207
      %p216 = scmp.eq.s32.totalorder %s28, 0
      %p217 = por %p215, %p216
      %p218 = scmp.ne.s32.totalorder %s206, %s207
      %p219 = scmp.eq.s32.totalorder %s29, 1
      %p220 = por %p218, %p219
      %p222 = scmp.ne.s32.totalorder %s207, %s221
      %p223 = scmp.eq.s32.totalorder %s29, 0
      %p224 = por %p222, %p223
      %s225 = ssub.s32 %s23, %s30
      %p226 = scmp.eq.s32.totalorder %s225, 0
      %s228 = sadd.s32 %s227, 1
      %s229 = scalar_select %p226, %s227, %s228
      %p232 = pneg %p226
      %p233 = scmp.eq.s32.totalorder %s23, 1
      %p234 = por %p232, %p233
      %p235 = scmp.ne.s32.totalorder %s227, %s230
      %p236 = scmp.eq.s32.totalorder %s23, 0
      %p237 = por %p235, %p236
      %p238 = scmp.ne.s32.totalorder %s227, %s230
      %p239 = scmp.eq.s32.totalorder %s28, 1
      %p240 = por %p238, %p239
      %p241 = scmp.ne.s32.totalorder %s230, %s231
      %p242 = scmp.eq.s32.totalorder %s28, 0
      %p243 = por %p241, %p242
      %p244 = scmp.ne.s32.totalorder %s230, %s231
      %p245 = scmp.eq.s32.totalorder %s29, 1
      %p246 = por %p244, %p245
      %p248 = scmp.ne.s32.totalorder %s231, %s247
      %p249 = scmp.eq.s32.totalorder %s29, 0
      %p250 = por %p248, %p249
      %p251 = scmp.le.s32.totalorder 1, %s23
      %p252 = scmp.lt.s32.totalorder %s23, 3
      %p253 = pnand %p251, %p252
      %p254 = pneg %p253
      // Predicated region
      $region9: #{tpu_custom_call.1} parent=5 // pred_check
        _
      $region10: #{tpu_custom_call.1} parent=5 // pred_check_branch
        %256 = sbr.rel (%p253) target = $region12
      $region11: #{tpu_custom_call.1} parent=5 // pred_region
        %s257 = ssub.s32 %s23, 1
        // Predicated region
        $region13: #{tpu_custom_call.1} parent=11 // pred_check
          %p258 = pneg %p44
        $region14: #{tpu_custom_call.1} parent=11 // pred_check_branch
          %260 = sbr.rel (%p258) target = $region16
        $region15: #{tpu_custom_call.1} parent=11 // pred_region
          %s262 = ssub.s32 1024, 1024
          %263 = vsyncadd [#allocation3], %s262
          %s264 = sshll.u32 [#allocation2], 4
          %s265 = int_to_ptr.vmem [resolvable:$true] %s264
          %270 = dma.hbm_to_vmem [thread:$0]  %s0, 1024, %s265, [#allocation3], 128, 128, 8
        $region16: #{tpu_custom_call.1} parent=11 // pred_fallthru
          _
        // Predicated region
        $region17: #{tpu_custom_call.1} parent=11 // pred_check
          %p271 = pneg %p91
        $region18: #{tpu_custom_call.1} parent=11 // pred_check_branch
          %273 = sbr.rel (%p271) target = $region20
        $region19: #{tpu_custom_call.1} parent=11 // pred_region
          %s275 = ssub.s32 48, 48
          %276 = vsyncadd [#allocation6], %s275
          %s278 = sshll.u32 [#allocation7], 4
          %s279 = int_to_ptr.vmem [resolvable:$true] %s278
          %281 = dma.hbm_to_vmem [thread:$0]  %s2, 48, %s279, [#allocation6]
        $region20: #{tpu_custom_call.1} parent=11 // pred_fallthru
          _
        // Predicated region
        $region21: #{tpu_custom_call.1} parent=11 // pred_check
          %p282 = pneg %p112
        $region22: #{tpu_custom_call.1} parent=11 // pred_check_branch
          %284 = sbr.rel (%p282) target = $region24
        $region23: #{tpu_custom_call.1} parent=11 // pred_region
          %s286 = ssub.s32 48, 48
          %287 = vsyncadd [#allocation9], %s286
          %s289 = sshll.u32 [#allocation8], 4
          %s290 = int_to_ptr.vmem [resolvable:$true] %s289
          %292 = dma.hbm_to_vmem [thread:$0]  %s3, 48, %s290, [#allocation9]
        $region24: #{tpu_custom_call.1} parent=11 // pred_fallthru
          _
        // Predicated region
        $region25: #{tpu_custom_call.1} parent=11 // pred_check
          %p293 = pneg %p133
        $region26: #{tpu_custom_call.1} parent=11 // pred_check_branch
          %295 = sbr.rel (%p293) target = $region28
        $region27: #{tpu_custom_call.1} parent=11 // pred_region
          _
        $region28: #{tpu_custom_call.1} parent=11 // pred_fallthru
          _
        // Predicated region
        $region29: #{tpu_custom_call.1} parent=11 // pred_check
          %p296 = pneg %p154
        $region30: #{tpu_custom_call.1} parent=11 // pred_check_branch
          %298 = sbr.rel (%p296) target = $region32
        $region31: #{tpu_custom_call.1} parent=11 // pred_region
          _
        $region32: #{tpu_custom_call.1} parent=11 // pred_fallthru
          _
        // Predicated region
        $region33: #{tpu_custom_call.1} parent=11 // pred_check
          %p299 = pneg %p175
        $region34: #{tpu_custom_call.1} parent=11 // pred_check_branch
          %301 = sbr.rel (%p299) target = $region36
        $region35: #{tpu_custom_call.1} parent=11 // pred_region
          %s303 = ssub.s32 36864, 36864
          %304 = vsyncadd [#allocation9], %s303
          %s305 = sshll.u32 [#allocation10], 4
          %s306 = int_to_ptr.vmem [resolvable:$true] %s305
          %311 = dma.hbm_to_vmem [thread:$0]  %s6, 36864, %s306, [#allocation9], 768, 768, 48
        $region36: #{tpu_custom_call.1} parent=11 // pred_fallthru
          _
        // Predicated region
        $region37: #{tpu_custom_call.1} parent=11 // pred_check
          %p312 = pneg %p196
        $region38: #{tpu_custom_call.1} parent=11 // pred_check_branch
          %314 = sbr.rel (%p312) target = $region40
        $region39: #{tpu_custom_call.1} parent=11 // pred_region
          _
        $region40: #{tpu_custom_call.1} parent=11 // pred_fallthru
          _
        // Predicated region
        $region41: #{tpu_custom_call.1} parent=11 // pred_check
          %p315 = pneg %p217
        $region42: #{tpu_custom_call.1} parent=11 // pred_check_branch
          %317 = sbr.rel (%p315) target = $region44
        $region43: #{tpu_custom_call.1} parent=11 // pred_region
          _
        $region44: #{tpu_custom_call.1} parent=11 // pred_fallthru
          _
      $region12: #{tpu_custom_call.1} parent=5 // pred_fallthru
        _
      %p318 = scmp.lt.s32.totalorder %s23, 2
      // Predicated region
      $region45: #{tpu_custom_call.1} parent=5 // pred_check
        %p319 = pneg %p318
      $region46: #{tpu_custom_call.1} parent=5 // pred_check_branch
        %321 = sbr.rel (%p319) target = $region48
      $region47: #{tpu_custom_call.1} parent=5 // pred_region
        // Predicated region
        $region49: #{tpu_custom_call.1} parent=47 // pred_check
          %p322 = pneg %p64
        $region50: #{tpu_custom_call.1} parent=47 // pred_check_branch
          %324 = sbr.rel (%p322) target = $region52
        $region51: #{tpu_custom_call.1} parent=47 // pred_region
          %s325 = sand.u32 %s23, 1
          %s326 = scalar_lea.sflag [#allocation6], %s325
          %s327 = sand.u32 %s54, 1
          %s328 = smul.addr %s327, 384
          %s329 = scalar_lea.vmem [#allocation5], %s328
          %s330 = smul.u32 2, %s23
          %s332 = ssub.s32 6144, 6144
          %333 = vsyncadd %s326, %s332
          %s334 = smul.addr %s330, 24
          %s335 = smul.addr %s334, 128
          %s336 = scalar_lea.hbm %s1, %s335
          %s337 = sshll.u32 %s329, 4
          %s338 = int_to_ptr.vmem [resolvable:$true] %s337
          %343 = dma.hbm_to_vmem [thread:$0]  %s336, 6144, %s338, %s326, 384, 384, 24
        $region52: #{tpu_custom_call.1} parent=47 // pred_fallthru
          _
      $region48: #{tpu_custom_call.1} parent=5 // pred_fallthru
        _
      %p344 = scmp.le.s32.totalorder 1, %s23
      %p345 = scmp.lt.s32.totalorder %s23, 3
      %p346 = pnand %p344, %p345
      %p347 = pneg %p346
      // Predicated region
      $region53: #{tpu_custom_call.1} parent=5 // pred_check
        _
      $region54: #{tpu_custom_call.1} parent=5 // pred_check_branch
        %349 = sbr.rel (%p346) target = $region56
      $region55: #{tpu_custom_call.1} parent=5 // pred_region
        %s350 = ssub.s32 %s23, 1
        // Predicated region
        $region57: #{tpu_custom_call.1} parent=55 // pred_check
          %p351 = pneg %p44
        $region58: #{tpu_custom_call.1} parent=55 // pred_check_branch
          %353 = sbr.rel (%p351) target = $region60
        $region59: #{tpu_custom_call.1} parent=55 // pred_region
          %354 = dma.done [#allocation3], 1024
        $region60: #{tpu_custom_call.1} parent=55 // pred_fallthru
          _
        %s355 = sand.u32 %s28, 1
        %s356 = scalar_lea.sflag [#allocation6], %s355
        %s357 = sand.u32 %s57, 1
        %s358 = smul.addr %s357, 384
        %s359 = scalar_lea.vmem [#allocation5], %s358
        // Predicated region
        $region61: #{tpu_custom_call.1} parent=55 // pred_check
          %p360 = pneg %p70
        $region62: #{tpu_custom_call.1} parent=55 // pred_check_branch
          %362 = sbr.rel (%p360) target = $region64
        $region63: #{tpu_custom_call.1} parent=55 // pred_region
          %363 = dma.done %s356, 6144
        $region64: #{tpu_custom_call.1} parent=55 // pred_fallthru
          _
        // Predicated region
        $region65: #{tpu_custom_call.1} parent=55 // pred_check
          %p364 = pneg %p91
        $region66: #{tpu_custom_call.1} parent=55 // pred_check_branch
          %366 = sbr.rel (%p364) target = $region68
        $region67: #{tpu_custom_call.1} parent=55 // pred_region
          %367 = dma.done [#allocation6], 48
        $region68: #{tpu_custom_call.1} parent=55 // pred_fallthru
          _
        // Predicated region
        $region69: #{tpu_custom_call.1} parent=55 // pred_check
          %p368 = pneg %p112
        $region70: #{tpu_custom_call.1} parent=55 // pred_check_branch
          %370 = sbr.rel (%p368) target = $region72
        $region71: #{tpu_custom_call.1} parent=55 // pred_region
          %371 = dma.done [#allocation9], 48
        $region72: #{tpu_custom_call.1} parent=55 // pred_fallthru
          _
        // Predicated region
        $region73: #{tpu_custom_call.1} parent=55 // pred_check
          %p372 = pneg %p175
        $region74: #{tpu_custom_call.1} parent=55 // pred_check_branch
          %374 = sbr.rel (%p372) target = $region76
        $region75: #{tpu_custom_call.1} parent=55 // pred_region
          %375 = dma.done [#allocation9], 36864
        $region76: #{tpu_custom_call.1} parent=55 // pred_fallthru
          _
        %p376 = pneg %p44
        %p377 = pneg %p41
        %s378 = sand.u32 %s28, 1
        %s379 = scalar_lea.sflag [#allocation6], %s378
        %s380 = sand.u32 %s57, 1
        %s381 = smul.addr %s380, 384
        %s382 = scalar_lea.vmem [#allocation5], %s381
        %p383 = pneg %p70
        %p384 = pneg %p67
        %p385 = pneg %p91
        %p386 = pneg %p88
        %p387 = pneg %p112
        %p388 = pneg %p109
        %p389 = pneg %p133
        %p390 = pneg %p130
        %p391 = pneg %p154
        %p392 = pneg %p151
        %p393 = pneg %p175
        %p394 = pneg %p172
        %p395 = pneg %p196
        %p396 = pneg %p193
        %p397 = pneg %p217
        %p398 = pneg %p214
        %p399 = pneg %p243
        %p400 = pneg %p240
        %s401 = sand.u32 %s230, 1
        %s402 = scalar_lea.sflag [#allocation4], %s401
        %s403 = sand.u32 %s230, 1
        %s404 = smul.addr %s403, 384
        %s405 = scalar_lea.vmem [#allocation11], %s404
        %s406 = smul.u32 2, %s28
        %s407 = smul.u32 2, %s28
        %v409 = vld [vmem:[%s359] sm:$0xff]
        %v410 = vld [vmem:[%s359 + $0x8] sm:$0xff]
        %v411 = vld [vmem:[%s359 + $0x10] sm:$0xff]
        %v412 = vld [vmem:[%s359 + $0x18] sm:$0xff]
        %v413 = vld [vmem:[%s359 + $0x20] sm:$0xff]
        %v414 = vld [vmem:[%s359 + $0x28] sm:$0xff]
        %v415 = vld [vmem:[%s359 + $0x30] sm:$0xff]
        %v416 = vld [vmem:[%s359 + $0x38] sm:$0xff]
        %v417 = vld [vmem:[%s359 + $0x40] sm:$0xff]
        %v418 = vld [vmem:[%s359 + $0x48] sm:$0xff]
        %v419 = vld [vmem:[%s359 + $0x50] sm:$0xff]
        %v420 = vld [vmem:[%s359 + $0x58] sm:$0xff]
        %v421 = vld [vmem:[%s359 + $0x60] sm:$0xff]
        %v422 = vld [vmem:[%s359 + $0x68] sm:$0xff]
        %v423 = vld [vmem:[%s359 + $0x70] sm:$0xff]
        %v424 = vld [vmem:[%s359 + $0x78] sm:$0xff]
        %v425 = vld [vmem:[%s359 + $0x80] sm:$0xff]
        %v426 = vld [vmem:[%s359 + $0x88] sm:$0xff]
        %v427 = vld [vmem:[%s359 + $0x90] sm:$0xff]
        %v428 = vld [vmem:[%s359 + $0x98] sm:$0xff]
        %v429 = vld [vmem:[%s359 + $0xa0] sm:$0xff]
        %v430 = vld [vmem:[%s359 + $0xa8] sm:$0xff]
        %v431 = vld [vmem:[%s359 + $0xb0] sm:$0xff]
        %v432 = vld [vmem:[%s359 + $0xb8] sm:$0xff]
        %v433 = vld [vmem:[%s359 + $0xc0] sm:$0xff]
        %v434 = vld [vmem:[%s359 + $0xc8] sm:$0xff]
        %v435 = vld [vmem:[%s359 + $0xd0] sm:$0xff]
        %v436 = vld [vmem:[%s359 + $0xd8] sm:$0xff]
        %v437 = vld [vmem:[%s359 + $0xe0] sm:$0xff]
        %v438 = vld [vmem:[%s359 + $0xe8] sm:$0xff]
        %v439 = vld [vmem:[%s359 + $0xf0] sm:$0xff]
        %v440 = vld [vmem:[%s359 + $0xf8] sm:$0xff]
        %v441 = vld [vmem:[%s359 + $0x100] sm:$0xff]
        %v442 = vld [vmem:[%s359 + $0x108] sm:$0xff]
        %v443 = vld [vmem:[%s359 + $0x110] sm:$0xff]
        %v444 = vld [vmem:[%s359 + $0x118] sm:$0xff]
        %v445 = vld [vmem:[%s359 + $0x120] sm:$0xff]
        %v446 = vld [vmem:[%s359 + $0x128] sm:$0xff]
        %v447 = vld [vmem:[%s359 + $0x130] sm:$0xff]
        %v448 = vld [vmem:[%s359 + $0x138] sm:$0xff]
        %v449 = vld [vmem:[%s359 + $0x140] sm:$0xff]
        %v450 = vld [vmem:[%s359 + $0x148] sm:$0xff]
        %v451 = vld [vmem:[%s359 + $0x150] sm:$0xff]
        %v452 = vld [vmem:[%s359 + $0x158] sm:$0xff]
        %v453 = vld [vmem:[%s359 + $0x160] sm:$0xff]
        %v454 = vld [vmem:[%s359 + $0x168] sm:$0xff]
        %v455 = vld [vmem:[%s359 + $0x170] sm:$0xff]
        %v456 = vld [vmem:[%s359 + $0x178] sm:$0xff]
        %v457 = vadd.f32 %v409, %v410
        %v458 = vadd.f32 %v457, %v411
        %459 = vadd.xlane.f32.xlu0 %v458
        %v460 = vpop.xlane.xlu0 %459
        %v461 = vadd.f32 %v412, %v413
        %v462 = vadd.f32 %v461, %v414
        %463 = vadd.xlane.f32.xlu0 %v462
        %v464 = vpop.xlane.xlu0 %463
        %v465 = vadd.f32 %v415, %v416
        %v466 = vadd.f32 %v465, %v417
        %467 = vadd.xlane.f32.xlu0 %v466
        %v468 = vpop.xlane.xlu0 %467
        %v469 = vadd.f32 %v418, %v419
        %v470 = vadd.f32 %v469, %v420
        %471 = vadd.xlane.f32.xlu0 %v470
        %v472 = vpop.xlane.xlu0 %471
        %v473 = vadd.f32 %v421, %v422
        %v474 = vadd.f32 %v473, %v423
        %475 = vadd.xlane.f32.xlu0 %v474
        %v476 = vpop.xlane.xlu0 %475
        %v477 = vadd.f32 %v424, %v425
        %v478 = vadd.f32 %v477, %v426
        %479 = vadd.xlane.f32.xlu0 %v478
        %v480 = vpop.xlane.xlu0 %479
        %v481 = vadd.f32 %v427, %v428
        %v482 = vadd.f32 %v481, %v429
        %483 = vadd.xlane.f32.xlu0 %v482
        %v484 = vpop.xlane.xlu0 %483
        %v485 = vadd.f32 %v430, %v431
        %v486 = vadd.f32 %v485, %v432
        %487 = vadd.xlane.f32.xlu0 %v486
        %v488 = vpop.xlane.xlu0 %487
        %v489 = vadd.f32 %v433, %v434
        %v490 = vadd.f32 %v489, %v435
        %491 = vadd.xlane.f32.xlu0 %v490
        %v492 = vpop.xlane.xlu0 %491
        %v493 = vadd.f32 %v436, %v437
        %v494 = vadd.f32 %v493, %v438
        %495 = vadd.xlane.f32.xlu0 %v494
        %v496 = vpop.xlane.xlu0 %495
        %v497 = vadd.f32 %v439, %v440
        %v498 = vadd.f32 %v497, %v441
        %499 = vadd.xlane.f32.xlu0 %v498
        %v500 = vpop.xlane.xlu0 %499
        %v501 = vadd.f32 %v442, %v443
        %v502 = vadd.f32 %v501, %v444
        %503 = vadd.xlane.f32.xlu0 %v502
        %v504 = vpop.xlane.xlu0 %503
        %v505 = vadd.f32 %v445, %v446
        %v506 = vadd.f32 %v505, %v447
        %507 = vadd.xlane.f32.xlu0 %v506
        %v508 = vpop.xlane.xlu0 %507
        %v509 = vadd.f32 %v448, %v449
        %v510 = vadd.f32 %v509, %v450
        %511 = vadd.xlane.f32.xlu0 %v510
        %v512 = vpop.xlane.xlu0 %511
        %v513 = vadd.f32 %v451, %v452
        %v514 = vadd.f32 %v513, %v453
        %515 = vadd.xlane.f32.xlu0 %v514
        %v516 = vpop.xlane.xlu0 %515
        %v517 = vadd.f32 %v454, %v455
        %v518 = vadd.f32 %v517, %v456
        %519 = vadd.xlane.f32.xlu0 %v518
        %v520 = vpop.xlane.xlu0 %519
        %v521 = vrcp.pop 384.0
        %v522 = vmul.f32 %v460, %v521
        %v523 = vmul.f32 %v464, %v521
        %v524 = vmul.f32 %v468, %v521
        %v525 = vmul.f32 %v472, %v521
        %v526 = vmul.f32 %v476, %v521
        %v527 = vmul.f32 %v480, %v521
        %v528 = vmul.f32 %v484, %v521
        %v529 = vmul.f32 %v488, %v521
        %v530 = vmul.f32 %v492, %v521
        %v531 = vmul.f32 %v496, %v521
        %v532 = vmul.f32 %v500, %v521
        %v533 = vmul.f32 %v504, %v521
        %v534 = vmul.f32 %v508, %v521
        %v535 = vmul.f32 %v512, %v521
        %v536 = vmul.f32 %v516, %v521
        %v537 = vmul.f32 %v520, %v521
        %v538 = vsub.f32 %v409, %v522
        %v539 = vsub.f32 %v410, %v522
        %v540 = vsub.f32 %v411, %v522
        %v541 = vsub.f32 %v412, %v523
        %v542 = vsub.f32 %v413, %v523
        %v543 = vsub.f32 %v414, %v523
        %v544 = vsub.f32 %v415, %v524
        %v545 = vsub.f32 %v416, %v524
        %v546 = vsub.f32 %v417, %v524
        %v547 = vsub.f32 %v418, %v525
        %v548 = vsub.f32 %v419, %v525
        %v549 = vsub.f32 %v420, %v525
        %v550 = vsub.f32 %v421, %v526
        %v551 = vsub.f32 %v422, %v526
        %v552 = vsub.f32 %v423, %v526
        %v553 = vsub.f32 %v424, %v527
        %v554 = vsub.f32 %v425, %v527
        %v555 = vsub.f32 %v426, %v527
        %v556 = vsub.f32 %v427, %v528
        %v557 = vsub.f32 %v428, %v528
        %v558 = vsub.f32 %v429, %v528
        %v559 = vsub.f32 %v430, %v529
        %v560 = vsub.f32 %v431, %v529
        %v561 = vsub.f32 %v432, %v529
        %v562 = vsub.f32 %v433, %v530
        %v563 = vsub.f32 %v434, %v530
        %v564 = vsub.f32 %v435, %v530
        %v565 = vsub.f32 %v436, %v531
        %v566 = vsub.f32 %v437, %v531
        %v567 = vsub.f32 %v438, %v531
        %v568 = vsub.f32 %v439, %v532
        %v569 = vsub.f32 %v440, %v532
        %v570 = vsub.f32 %v441, %v532
        %v571 = vsub.f32 %v442, %v533
        %v572 = vsub.f32 %v443, %v533
        %v573 = vsub.f32 %v444, %v533
        %v574 = vsub.f32 %v445, %v534
        %v575 = vsub.f32 %v446, %v534
        %v576 = vsub.f32 %v447, %v534
        %v577 = vsub.f32 %v448, %v535
        %v578 = vsub.f32 %v449, %v535
        %v579 = vsub.f32 %v450, %v535
        %v580 = vsub.f32 %v451, %v536
        %v581 = vsub.f32 %v452, %v536
        %v582 = vsub.f32 %v453, %v536
        %v583 = vsub.f32 %v454, %v537
        %v584 = vsub.f32 %v455, %v537
        %v585 = vsub.f32 %v456, %v537
        %v586 = vmul.f32 %v538, %v538
        %v587 = vmul.f32 %v539, %v539
        %v588 = vmul.f32 %v540, %v540
        %v589 = vmul.f32 %v541, %v541
        %v590 = vmul.f32 %v542, %v542
        %v591 = vmul.f32 %v543, %v543
        %v592 = vmul.f32 %v544, %v544
        %v593 = vmul.f32 %v545, %v545
        %v594 = vmul.f32 %v546, %v546
        %v595 = vmul.f32 %v547, %v547
        %v596 = vmul.f32 %v548, %v548
        %v597 = vmul.f32 %v549, %v549
        %v598 = vmul.f32 %v550, %v550
        %v599 = vmul.f32 %v551, %v551
        %v600 = vmul.f32 %v552, %v552
        %v601 = vmul.f32 %v553, %v553
        %v602 = vmul.f32 %v554, %v554
        %v603 = vmul.f32 %v555, %v555
        %v604 = vmul.f32 %v556, %v556
        %v605 = vmul.f32 %v557, %v557
        %v606 = vmul.f32 %v558, %v558
        %v607 = vmul.f32 %v559, %v559
        %v608 = vmul.f32 %v560, %v560
        %v609 = vmul.f32 %v561, %v561
        %v610 = vmul.f32 %v562, %v562
        %v611 = vmul.f32 %v563, %v563
        %v612 = vmul.f32 %v564, %v564
        %v613 = vmul.f32 %v565, %v565
        %v614 = vmul.f32 %v566, %v566
        %v615 = vmul.f32 %v567, %v567
        %v616 = vmul.f32 %v568, %v568
        %v617 = vmul.f32 %v569, %v569
        %v618 = vmul.f32 %v570, %v570
        %v619 = vmul.f32 %v571, %v571
        %v620 = vmul.f32 %v572, %v572
        %v621 = vmul.f32 %v573, %v573
        %v622 = vmul.f32 %v574, %v574
        %v623 = vmul.f32 %v575, %v575
        %v624 = vmul.f32 %v576, %v576
        %v625 = vmul.f32 %v577, %v577
        %v626 = vmul.f32 %v578, %v578
        %v627 = vmul.f32 %v579, %v579
        %v628 = vmul.f32 %v580, %v580
        %v629 = vmul.f32 %v581, %v581
        %v630 = vmul.f32 %v582, %v582
        %v631 = vmul.f32 %v583, %v583
        %v632 = vmul.f32 %v584, %v584
        %v633 = vmul.f32 %v585, %v585
        %v634 = vadd.f32 %v586, %v587
        %v635 = vadd.f32 %v634, %v588
        %636 = vadd.xlane.f32.xlu0 %v635
        %v637 = vpop.xlane.xlu0 %636
        %v638 = vadd.f32 %v589, %v590
        %v639 = vadd.f32 %v638, %v591
        %640 = vadd.xlane.f32.xlu0 %v639
        %v641 = vpop.xlane.xlu0 %640
        %v642 = vadd.f32 %v592, %v593
        %v643 = vadd.f32 %v642, %v594
        %644 = vadd.xlane.f32.xlu0 %v643
        %v645 = vpop.xlane.xlu0 %644
        %v646 = vadd.f32 %v595, %v596
        %v647 = vadd.f32 %v646, %v597
        %648 = vadd.xlane.f32.xlu0 %v647
        %v649 = vpop.xlane.xlu0 %648
        %v650 = vadd.f32 %v598, %v599
        %v651 = vadd.f32 %v650, %v600
        %652 = vadd.xlane.f32.xlu0 %v651
        %v653 = vpop.xlane.xlu0 %652
        %v654 = vadd.f32 %v601, %v602
        %v655 = vadd.f32 %v654, %v603
        %656 = vadd.xlane.f32.xlu0 %v655
        %v657 = vpop.xlane.xlu0 %656
        %v658 = vadd.f32 %v604, %v605
        %v659 = vadd.f32 %v658, %v606
        %660 = vadd.xlane.f32.xlu0 %v659
        %v661 = vpop.xlane.xlu0 %660
        %v662 = vadd.f32 %v607, %v608
        %v663 = vadd.f32 %v662, %v609
        %664 = vadd.xlane.f32.xlu0 %v663
        %v665 = vpop.xlane.xlu0 %664
        %v666 = vadd.f32 %v610, %v611
        %v667 = vadd.f32 %v666, %v612
        %668 = vadd.xlane.f32.xlu0 %v667
        %v669 = vpop.xlane.xlu0 %668
        %v670 = vadd.f32 %v613, %v614
        %v671 = vadd.f32 %v670, %v615
        %672 = vadd.xlane.f32.xlu0 %v671
        %v673 = vpop.xlane.xlu0 %672
        %v674 = vadd.f32 %v616, %v617
        %v675 = vadd.f32 %v674, %v618
        %676 = vadd.xlane.f32.xlu0 %v675
        %v677 = vpop.xlane.xlu0 %676
        %v678 = vadd.f32 %v619, %v620
        %v679 = vadd.f32 %v678, %v621
        %680 = vadd.xlane.f32.xlu0 %v679
        %v681 = vpop.xlane.xlu0 %680
        %v682 = vadd.f32 %v622, %v623
        %v683 = vadd.f32 %v682, %v624
        %684 = vadd.xlane.f32.xlu0 %v683
        %v685 = vpop.xlane.xlu0 %684
        %v686 = vadd.f32 %v625, %v626
        %v687 = vadd.f32 %v686, %v627
        %688 = vadd.xlane.f32.xlu0 %v687
        %v689 = vpop.xlane.xlu0 %688
        %v690 = vadd.f32 %v628, %v629
        %v691 = vadd.f32 %v690, %v630
        %692 = vadd.xlane.f32.xlu0 %v691
        %v693 = vpop.xlane.xlu0 %692
        %v694 = vadd.f32 %v631, %v632
        %v695 = vadd.f32 %v694, %v633
        %696 = vadd.xlane.f32.xlu0 %v695
        %v697 = vpop.xlane.xlu0 %696
        %v698 = vmul.f32 %v637, %v521
        %v699 = vmul.f32 %v641, %v521
        %v700 = vmul.f32 %v645, %v521
        %v701 = vmul.f32 %v649, %v521
        %v702 = vmul.f32 %v653, %v521
        %v703 = vmul.f32 %v657, %v521
        %v704 = vmul.f32 %v661, %v521
        %v705 = vmul.f32 %v665, %v521
        %v706 = vmul.f32 %v669, %v521
        %v707 = vmul.f32 %v673, %v521
        %v708 = vmul.f32 %v677, %v521
        %v709 = vmul.f32 %v681, %v521
        %v710 = vmul.f32 %v685, %v521
        %v711 = vmul.f32 %v689, %v521
        %v712 = vmul.f32 %v693, %v521
        %v713 = vmul.f32 %v697, %v521
        %v714 = vadd.f32 %v698, 1e-05
        %v715 = vadd.f32 %v699, 1e-05
        %v716 = vadd.f32 %v700, 1e-05
        %v717 = vadd.f32 %v701, 1e-05
        %v718 = vadd.f32 %v702, 1e-05
        %v719 = vadd.f32 %v703, 1e-05
        %v720 = vadd.f32 %v704, 1e-05
        %v721 = vadd.f32 %v705, 1e-05
        %v722 = vadd.f32 %v706, 1e-05
        %v723 = vadd.f32 %v707, 1e-05
        %v724 = vadd.f32 %v708, 1e-05
        %v725 = vadd.f32 %v709, 1e-05
        %v726 = vadd.f32 %v710, 1e-05
        %v727 = vadd.f32 %v711, 1e-05
        %v728 = vadd.f32 %v712, 1e-05
        %v729 = vadd.f32 %v713, 1e-05
        %v730 = vrsqrt.pop %v714
        %v731 = vrsqrt.pop %v715
        %v732 = vrsqrt.pop %v716
        %v733 = vrsqrt.pop %v717
        %v734 = vrsqrt.pop %v718
        %v735 = vrsqrt.pop %v719
        %v736 = vrsqrt.pop %v720
        %v737 = vrsqrt.pop %v721
        %v738 = vrsqrt.pop %v722
        %v739 = vrsqrt.pop %v723
        %v740 = vrsqrt.pop %v724
        %v741 = vrsqrt.pop %v725
        %v742 = vrsqrt.pop %v726
        %v743 = vrsqrt.pop %v727
        %v744 = vrsqrt.pop %v728
        %v745 = vrsqrt.pop %v729
        %v746 = vmul.f32 %v538, %v730
        %v747 = vmul.f32 %v539, %v730
        %v748 = vmul.f32 %v540, %v730
        %v749 = vmul.f32 %v541, %v731
        %v750 = vmul.f32 %v542, %v731
        %v751 = vmul.f32 %v543, %v731
        %v752 = vmul.f32 %v544, %v732
        %v753 = vmul.f32 %v545, %v732
        %v754 = vmul.f32 %v546, %v732
        %v755 = vmul.f32 %v547, %v733
        %v756 = vmul.f32 %v548, %v733
        %v757 = vmul.f32 %v549, %v733
        %v758 = vmul.f32 %v550, %v734
        %v759 = vmul.f32 %v551, %v734
        %v760 = vmul.f32 %v552, %v734
        %v761 = vmul.f32 %v553, %v735
        %v762 = vmul.f32 %v554, %v735
        %v763 = vmul.f32 %v555, %v735
        %v764 = vmul.f32 %v556, %v736
        %v765 = vmul.f32 %v557, %v736
        %v766 = vmul.f32 %v558, %v736
        %v767 = vmul.f32 %v559, %v737
        %v768 = vmul.f32 %v560, %v737
        %v769 = vmul.f32 %v561, %v737
        %v770 = vmul.f32 %v562, %v738
        %v771 = vmul.f32 %v563, %v738
        %v772 = vmul.f32 %v564, %v738
        %v773 = vmul.f32 %v565, %v739
        %v774 = vmul.f32 %v566, %v739
        %v775 = vmul.f32 %v567, %v739
        %v776 = vmul.f32 %v568, %v740
        %v777 = vmul.f32 %v569, %v740
        %v778 = vmul.f32 %v570, %v740
        %v779 = vmul.f32 %v571, %v741
        %v780 = vmul.f32 %v572, %v741
        %v781 = vmul.f32 %v573, %v741
        %v782 = vmul.f32 %v574, %v742
        %v783 = vmul.f32 %v575, %v742
        %v784 = vmul.f32 %v576, %v742
        %v785 = vmul.f32 %v577, %v743
        %v786 = vmul.f32 %v578, %v743
        %v787 = vmul.f32 %v579, %v743
        %v788 = vmul.f32 %v580, %v744
        %v789 = vmul.f32 %v581, %v744
        %v790 = vmul.f32 %v582, %v744
        %v791 = vmul.f32 %v583, %v745
        %v792 = vmul.f32 %v584, %v745
        %v793 = vmul.f32 %v585, %v745
        %v794 = vld [vmem:[#allocation7] sm:$0x7]
        %v796 = vlaneseq
        %v797 = vshrl.u32 %v796, 7
        %v798 = vsub.s32 0, %v797
        %v799 = vrot.slane %v794, %v798
        %v800 = vlaneseq
        %v801 = vshrl.u32 %v800, 7
        %v802 = vsub.s32 1, %v801
        %v803 = vrot.slane %v794, %v802
        %v804 = vlaneseq
        %v805 = vshrl.u32 %v804, 7
        %v806 = vsub.s32 2, %v805
        %v807 = vrot.slane %v794, %v806
        %v811 = vmul.f32 %v746, %v799
        %v812 = vmul.f32 %v747, %v803
        %v813 = vmul.f32 %v748, %v807
        %v814 = vmul.f32 %v749, %v799
        %v815 = vmul.f32 %v750, %v803
        %v816 = vmul.f32 %v751, %v807
        %v817 = vmul.f32 %v752, %v799
        %v818 = vmul.f32 %v753, %v803
        %v819 = vmul.f32 %v754, %v807
        %v820 = vmul.f32 %v755, %v799
        %v821 = vmul.f32 %v756, %v803
        %v822 = vmul.f32 %v757, %v807
        %v823 = vmul.f32 %v758, %v799
        %v824 = vmul.f32 %v759, %v803
        %v825 = vmul.f32 %v760, %v807
        %v826 = vmul.f32 %v761, %v799
        %v827 = vmul.f32 %v762, %v803
        %v828 = vmul.f32 %v763, %v807
        %v829 = vmul.f32 %v764, %v799
        %v830 = vmul.f32 %v765, %v803
        %v831 = vmul.f32 %v766, %v807
        %v832 = vmul.f32 %v767, %v799
        %v833 = vmul.f32 %v768, %v803
        %v834 = vmul.f32 %v769, %v807
        %v835 = vmul.f32 %v770, %v799
        %v836 = vmul.f32 %v771, %v803
        %v837 = vmul.f32 %v772, %v807
        %v838 = vmul.f32 %v773, %v799
        %v839 = vmul.f32 %v774, %v803
        %v840 = vmul.f32 %v775, %v807
        %v841 = vmul.f32 %v776, %v799
        %v842 = vmul.f32 %v777, %v803
        %v843 = vmul.f32 %v778, %v807
        %v844 = vmul.f32 %v779, %v799
        %v845 = vmul.f32 %v780, %v803
        %v846 = vmul.f32 %v781, %v807
        %v847 = vmul.f32 %v782, %v799
        %v848 = vmul.f32 %v783, %v803
        %v849 = vmul.f32 %v784, %v807
        %v850 = vmul.f32 %v785, %v799
        %v851 = vmul.f32 %v786, %v803
        %v852 = vmul.f32 %v787, %v807
        %v853 = vmul.f32 %v788, %v799
        %v854 = vmul.f32 %v789, %v803
        %v855 = vmul.f32 %v790, %v807
        %v856 = vmul.f32 %v791, %v799
        %v857 = vmul.f32 %v792, %v803
        %v858 = vmul.f32 %v793, %v807
        %v859 = vld [vmem:[#allocation8] sm:$0x7]
        %v861 = vlaneseq
        %v862 = vshrl.u32 %v861, 7
        %v863 = vsub.s32 0, %v862
        %v864 = vrot.slane %v859, %v863
        %v865 = vlaneseq
        %v866 = vshrl.u32 %v865, 7
        %v867 = vsub.s32 1, %v866
        %v868 = vrot.slane %v859, %v867
        %v869 = vlaneseq
        %v870 = vshrl.u32 %v869, 7
        %v871 = vsub.s32 2, %v870
        %v872 = vrot.slane %v859, %v871
        %v876 = vadd.f32 %v811, %v864
        %v877 = vadd.f32 %v812, %v868
        %v878 = vadd.f32 %v813, %v872
        %v879 = vadd.f32 %v814, %v864
        %v880 = vadd.f32 %v815, %v868
        %v881 = vadd.f32 %v816, %v872
        %v882 = vadd.f32 %v817, %v864
        %v883 = vadd.f32 %v818, %v868
        %v884 = vadd.f32 %v819, %v872
        %v885 = vadd.f32 %v820, %v864
        %v886 = vadd.f32 %v821, %v868
        %v887 = vadd.f32 %v822, %v872
        %v888 = vadd.f32 %v823, %v864
        %v889 = vadd.f32 %v824, %v868
        %v890 = vadd.f32 %v825, %v872
        %v891 = vadd.f32 %v826, %v864
        %v892 = vadd.f32 %v827, %v868
        %v893 = vadd.f32 %v828, %v872
        %v894 = vadd.f32 %v829, %v864
        %v895 = vadd.f32 %v830, %v868
        %v896 = vadd.f32 %v831, %v872
        %v897 = vadd.f32 %v832, %v864
        %v898 = vadd.f32 %v833, %v868
        %v899 = vadd.f32 %v834, %v872
        %v900 = vadd.f32 %v835, %v864
        %v901 = vadd.f32 %v836, %v868
        %v902 = vadd.f32 %v837, %v872
        %v903 = vadd.f32 %v838, %v864
        %v904 = vadd.f32 %v839, %v868
        %v905 = vadd.f32 %v840, %v872
        %v906 = vadd.f32 %v841, %v864
        %v907 = vadd.f32 %v842, %v868
        %v908 = vadd.f32 %v843, %v872
        %v909 = vadd.f32 %v844, %v864
        %v910 = vadd.f32 %v845, %v868
        %v911 = vadd.f32 %v846, %v872
        %v912 = vadd.f32 %v847, %v864
        %v913 = vadd.f32 %v848, %v868
        %v914 = vadd.f32 %v849, %v872
        %v915 = vadd.f32 %v850, %v864
        %v916 = vadd.f32 %v851, %v868
        %v917 = vadd.f32 %v852, %v872
        %v918 = vadd.f32 %v853, %v864
        %v919 = vadd.f32 %v854, %v868
        %v920 = vadd.f32 %v855, %v872
        %v921 = vadd.f32 %v856, %v864
        %v922 = vadd.f32 %v857, %v868
        %v923 = vadd.f32 %v858, %v872
        %v924 = vpack.c.bf16 %v879, %v876
        %v925 = vpack.c.bf16 %v880, %v877
        %v926 = vpack.c.bf16 %v881, %v878
        %v927 = vpack.c.bf16 %v885, %v882
        %v928 = vpack.c.bf16 %v886, %v883
        %v929 = vpack.c.bf16 %v887, %v884
        %v930 = vpack.c.bf16 %v891, %v888
        %v931 = vpack.c.bf16 %v892, %v889
        %v932 = vpack.c.bf16 %v893, %v890
        %v933 = vpack.c.bf16 %v897, %v894
        %v934 = vpack.c.bf16 %v898, %v895
        %v935 = vpack.c.bf16 %v899, %v896
        %v936 = vpack.c.bf16 %v903, %v900
        %v937 = vpack.c.bf16 %v904, %v901
        %v938 = vpack.c.bf16 %v905, %v902
        %v939 = vpack.c.bf16 %v909, %v906
        %v940 = vpack.c.bf16 %v910, %v907
        %v941 = vpack.c.bf16 %v911, %v908
        %v942 = vpack.c.bf16 %v915, %v912
        %v943 = vpack.c.bf16 %v916, %v913
        %v944 = vpack.c.bf16 %v917, %v914
        %v945 = vpack.c.bf16 %v921, %v918
        %v946 = vpack.c.bf16 %v922, %v919
        %v947 = vpack.c.bf16 %v923, %v920
        %v948 = vld [vmem:[%s4] sm:$0xf]
        %v949 = vld [vmem:[%s4 + $0x4] sm:$0xf]
        %v950 = vld [vmem:[%s4 + $0x8] sm:$0xf]
        %v951 = vld [vmem:[%s4 + $0xc] sm:$0xf]
        %v952 = vld [vmem:[%s4 + $0x10] sm:$0xf]
        %v953 = vld [vmem:[%s4 + $0x14] sm:$0xf]
        %v954 = vld [vmem:[%s4 + $0x18] sm:$0xf]
        %v955 = vld [vmem:[%s4 + $0x1c] sm:$0xf]
        %v956 = vld [vmem:[%s4 + $0x20] sm:$0xf]
        %v957 = vld [vmem:[%s4 + $0x24] sm:$0xf]
        %v958 = vld [vmem:[%s4 + $0x28] sm:$0xf]
        %v959 = vld [vmem:[%s4 + $0x2c] sm:$0xf]
        %v960 = vld [vmem:[%s4 + $0x30] sm:$0xf]
        %v961 = vld [vmem:[%s4 + $0x34] sm:$0xf]
        %v962 = vld [vmem:[%s4 + $0x38] sm:$0xf]
        %v963 = vld [vmem:[%s4 + $0x3c] sm:$0xf]
        %v964 = vld [vmem:[%s4 + $0x40] sm:$0xf]
        %v965 = vld [vmem:[%s4 + $0x44] sm:$0xf]
        %v966 = vld [vmem:[%s4 + $0x48] sm:$0xf]
        %v967 = vld [vmem:[%s4 + $0x4c] sm:$0xf]
        %v968 = vld [vmem:[%s4 + $0x50] sm:$0xf]
        %v969 = vld [vmem:[%s4 + $0x54] sm:$0xf]
        %v970 = vld [vmem:[%s4 + $0x58] sm:$0xf]
        %v971 = vld [vmem:[%s4 + $0x5c] sm:$0xf]
        %v972 = vld [vmem:[%s4 + $0x60] sm:$0xf]
        %v973 = vld [vmem:[%s4 + $0x64] sm:$0xf]
        %v974 = vld [vmem:[%s4 + $0x68] sm:$0xf]
        %v975 = vld [vmem:[%s4 + $0x6c] sm:$0xf]
        %v976 = vld [vmem:[%s4 + $0x70] sm:$0xf]
        %v977 = vld [vmem:[%s4 + $0x74] sm:$0xf]
        %v978 = vld [vmem:[%s4 + $0x78] sm:$0xf]
        %v979 = vld [vmem:[%s4 + $0x7c] sm:$0xf]
        %v980 = vld [vmem:[%s4 + $0x80] sm:$0xf]
        %v981 = vld [vmem:[%s4 + $0x84] sm:$0xf]
        %v982 = vld [vmem:[%s4 + $0x88] sm:$0xf]
        %v983 = vld [vmem:[%s4 + $0x8c] sm:$0xf]
        %v984 = vld [vmem:[%s4 + $0x90] sm:$0xf]
        %v985 = vld [vmem:[%s4 + $0x94] sm:$0xf]
        %v986 = vld [vmem:[%s4 + $0x98] sm:$0xf]
        %v987 = vld [vmem:[%s4 + $0x9c] sm:$0xf]
        %v988 = vld [vmem:[%s4 + $0xa0] sm:$0xf]
        %v989 = vld [vmem:[%s4 + $0xa4] sm:$0xf]
        %v990 = vld [vmem:[%s4 + $0xa8] sm:$0xf]
        %v991 = vld [vmem:[%s4 + $0xac] sm:$0xf]
        %v992 = vld [vmem:[%s4 + $0xb0] sm:$0xf]
        %v993 = vld [vmem:[%s4 + $0xb4] sm:$0xf]
        %v994 = vld [vmem:[%s4 + $0xb8] sm:$0xf]
        %v995 = vld [vmem:[%s4 + $0xbc] sm:$0xf]
        %v1044 = vunpack.c.l.b16 %v948
        %v1045 = vunpack.c.l.b16 %v949
        %v1046 = vunpack.c.l.b16 %v950
        %v1047 = vunpack.c.l.b16 %v951
        %v1048 = vunpack.c.l.b16 %v952
        %v1049 = vunpack.c.l.b16 %v953
        %v1050 = vunpack.c.l.b16 %v954
        %v1051 = vunpack.c.l.b16 %v955
        %v1052 = vunpack.c.l.b16 %v956
        %v1053 = vunpack.c.l.b16 %v957
        %v1054 = vunpack.c.l.b16 %v958
        %v1055 = vunpack.c.l.b16 %v959
        %v1056 = vunpack.c.l.b16 %v960
        %v1057 = vunpack.c.l.b16 %v961
        %v1058 = vunpack.c.l.b16 %v962
        %v1059 = vunpack.c.l.b16 %v963
        %v1060 = vunpack.c.l.b16 %v964
        %v1061 = vunpack.c.l.b16 %v965
        %v1062 = vunpack.c.l.b16 %v966
        %v1063 = vunpack.c.l.b16 %v967
        %v1064 = vunpack.c.l.b16 %v968
        %v1065 = vunpack.c.l.b16 %v969
        %v1066 = vunpack.c.l.b16 %v970
        %v1067 = vunpack.c.l.b16 %v971
        %v1068 = vunpack.c.l.b16 %v972
        %v1069 = vunpack.c.l.b16 %v973
        %v1070 = vunpack.c.l.b16 %v974
        %v1071 = vunpack.c.l.b16 %v975
        %v1072 = vunpack.c.l.b16 %v976
        %v1073 = vunpack.c.l.b16 %v977
        %v1074 = vunpack.c.l.b16 %v978
        %v1075 = vunpack.c.l.b16 %v979
        %v1076 = vunpack.c.l.b16 %v980
        %v1077 = vunpack.c.l.b16 %v981
        %v1078 = vunpack.c.l.b16 %v982
        %v1079 = vunpack.c.l.b16 %v983
        %v1080 = vunpack.c.l.b16 %v984
        %v1081 = vunpack.c.l.b16 %v985
        %v1082 = vunpack.c.l.b16 %v986
        %v1083 = vunpack.c.l.b16 %v987
        %v1084 = vunpack.c.l.b16 %v988
        %v1085 = vunpack.c.l.b16 %v989
        %v1086 = vunpack.c.l.b16 %v990
        %v1087 = vunpack.c.l.b16 %v991
        %v1088 = vunpack.c.l.b16 %v992
        %v1089 = vunpack.c.l.b16 %v993
        %v1090 = vunpack.c.l.b16 %v994
        %v1091 = vunpack.c.l.b16 %v995
        %v1092 = vpack.c.b16 %v1045, %v1044
        %v1093 = vpack.c.b16 %v1047, %v1046
        %v1094 = vpack.c.b16 %v1049, %v1048
        %v1095 = vpack.c.b16 %v1051, %v1050
        %v1096 = vpack.c.b16 %v1053, %v1052
        %v1097 = vpack.c.b16 %v1055, %v1054
        %v1098 = vpack.c.b16 %v1057, %v1056
        %v1099 = vpack.c.b16 %v1059, %v1058
        %v1100 = vpack.c.b16 %v1061, %v1060
        %v1101 = vpack.c.b16 %v1063, %v1062
        %v1102 = vpack.c.b16 %v1065, %v1064
        %v1103 = vpack.c.b16 %v1067, %v1066
        %v1104 = vpack.c.b16 %v1069, %v1068
        %v1105 = vpack.c.b16 %v1071, %v1070
        %v1106 = vpack.c.b16 %v1073, %v1072
        %v1107 = vpack.c.b16 %v1075, %v1074
        %v1108 = vpack.c.b16 %v1077, %v1076
        %v1109 = vpack.c.b16 %v1079, %v1078
        %v1110 = vpack.c.b16 %v1081, %v1080
        %v1111 = vpack.c.b16 %v1083, %v1082
        %v1112 = vpack.c.b16 %v1085, %v1084
        %v1113 = vpack.c.b16 %v1087, %v1086
        %v1114 = vpack.c.b16 %v1089, %v1088
        %v1115 = vpack.c.b16 %v1091, %v1090
        %1140 = vmatprep.subr.bf16.mxu0 0
        %1141 = vmatpush1.bf16.msra.mxu0 %v1092
        %1142 = vmatprep.subr.bf16.mxu0 0
        %1143 = vmatpush1.bf16.msra.mxu0 %v1093
        %1144 = vmatprep.subr.bf16.mxu0 0
        %1145 = vmatpush1.bf16.msra.mxu0 %v1094
        %1146 = vmatprep.subr.bf16.mxu0 0
        %1147 = vmatpush1.bf16.msra.mxu0 %v1095
        %1148 = vmatprep.subr.bf16.mxu0 0
        %1149 = vmatpush1.bf16.msra.mxu0 %v1096
        %1150 = vmatprep.subr.bf16.mxu0 0
        %1151 = vmatpush1.bf16.msra.mxu0 %v1097
        %1152 = vmatprep.subr.bf16.mxu0 0
        %1153 = vmatpush1.bf16.msra.mxu0 %v1098
        %1154 = vmatprep.subr.bf16.mxu0 0
        %1155 = vmatpush1.bf16.msra.mxu0 %v1099
        %1156 = vmatprep.subr.bf16.mxu0 0
        %1157 = vmatpush1.bf16.msra.mxu0 %v1100
        %1158 = vmatprep.subr.bf16.mxu0 0
        %1159 = vmatpush1.bf16.msra.mxu0 %v1101
        %1160 = vmatprep.subr.bf16.mxu0 0
        %1161 = vmatpush1.bf16.msra.mxu0 %v1102
        %1162 = vmatprep.subr.bf16.mxu0 0
        %1163 = vmatpush1.bf16.msra.mxu0 %v1103
        %1164 = vmatprep.subr.bf16.mxu0 0
        %1165 = vmatpush1.bf16.msra.mxu0 %v1104
        %1166 = vmatprep.subr.bf16.mxu0 0
        %1167 = vmatpush1.bf16.msra.mxu0 %v1105
        %1168 = vmatprep.subr.bf16.mxu0 0
        %1169 = vmatpush1.bf16.msra.mxu0 %v1106
        %1170 = vmatprep.subr.bf16.mxu0 0
        %1171 = vmatpush1.bf16.msra.mxu0 %v1107
        %1172 = vmatprep.mubr.bf16.mxu0 %v925
        %1173 = vmatmul.mubr.bf16.gmra.mrb[0].mxu0 %v924
        %v1174 = vpop.f32.mrb[0].mxu0
        %v1175 = vadd.f32 0.0, %v1174
        %v1176 = vpop.f32.mrb[0].mxu0
        %v1177 = vpop.f32.mrb[0].mxu0
        %v1178 = vadd.f32 0.0, %v1177
        %v1179 = vpop.f32.mrb[0].mxu0
        %1180 = vmatprep.mubr.bf16.mxu0 %v928
        %1181 = vmatmul.mubr.bf16.gmra.mrb[0].mxu0 %v927
        %v1182 = vpop.f32.mrb[0].mxu0
        %v1183 = vadd.f32 0.0, %v1182
        %v1184 = vpop.f32.mrb[0].mxu0
        %v1185 = vpop.f32.mrb[0].mxu0
        %v1186 = vadd.f32 0.0, %v1185
        %v1187 = vpop.f32.mrb[0].mxu0
        %1188 = vmatprep.mubr.bf16.mxu0 %v931
        %1189 = vmatmul.mubr.bf16.gmra.mrb[0].mxu0 %v930
        %v1190 = vpop.f32.mrb[0].mxu0
        %v1191 = vadd.f32 0.0, %v1190
        %v1192 = vpop.f32.mrb[0].mxu0
        %v1193 = vpop.f32.mrb[0].mxu0
        %v1194 = vadd.f32 0.0, %v1193
        %v1195 = vpop.f32.mrb[0].mxu0
        %1196 = vmatprep.mubr.bf16.mxu0 %v934
        %1197 = vmatmul.mubr.bf16.gmra.mrb[0].mxu0 %v933
        %v1198 = vpop.f32.mrb[0].mxu0
        %v1199 = vadd.f32 0.0, %v1198
        %v1200 = vpop.f32.mrb[0].mxu0
        %v1201 = vpop.f32.mrb[0].mxu0
        %v1202 = vadd.f32 0.0, %v1201
        %v1203 = vpop.f32.mrb[0].mxu0
        %1204 = vmatprep.mubr.bf16.mxu0 %v937
        %1205 = vmatmul.mubr.bf16.gmra.mrb[0].mxu0 %v936
        %v1206 = vpop.f32.mrb[0].mxu0
        %v1207 = vadd.f32 0.0, %v1206
        %v1208 = vpop.f32.mrb[0].mxu0
        %v1209 = vpop.f32.mrb[0].mxu0
        %v1210 = vadd.f32 0.0, %v1209
        %v1211 = vpop.f32.mrb[0].mxu0
        %1212 = vmatprep.mubr.bf16.mxu0 %v940
        %1213 = vmatmul.mubr.bf16.gmra.mrb[0].mxu0 %v939
        %v1214 = vpop.f32.mrb[0].mxu0
        %v1215 = vadd.f32 0.0, %v1214
        %v1216 = vpop.f32.mrb[0].mxu0
        %v1217 = vpop.f32.mrb[0].mxu0
        %v1218 = vadd.f32 0.0, %v1217
        %v1219 = vpop.f32.mrb[0].mxu0
        %1220 = vmatprep.mubr.bf16.mxu0 %v943
        %1221 = vmatmul.mubr.bf16.gmra.mrb[0].mxu0 %v942
        %v1222 = vpop.f32.mrb[0].mxu0
        %v1223 = vadd.f32 0.0, %v1222
        %v1224 = vpop.f32.mrb[0].mxu0
        %v1225 = vpop.f32.mrb[0].mxu0
        %v1226 = vadd.f32 0.0, %v1225
        %v1227 = vpop.f32.mrb[0].mxu0
        %1228 = vmatprep.mubr.bf16.mxu0 %v946
        %1229 = vmatmul.mubr.bf16.gmra.mrb[0].mxu0 %v945
        %v1230 = vpop.f32.mrb[0].mxu0
        %v1231 = vadd.f32 0.0, %v1230
        %v1232 = vpop.f32.mrb[0].mxu0
        %v1233 = vpop.f32.mrb[0].mxu0
        %v1234 = vadd.f32 0.0, %v1233
        %v1235 = vpop.f32.mrb[0].mxu0
        %1236 = vdwg.mxu0
        %1237 = vmatprep.subr.bf16.mxu0 0
        %1238 = vmatpush1.bf16.msra.mxu0 %v1108
        %1239 = vmatprep.subr.bf16.mxu0 0
        %1240 = vmatpush1.bf16.msra.mxu0 %v1109
        %1241 = vmatprep.subr.bf16.mxu0 0
        %1242 = vmatpush1.bf16.msra.mxu0 %v1110
        %1243 = vmatprep.subr.bf16.mxu0 0
        %1244 = vmatpush1.bf16.msra.mxu0 %v1111
        %1245 = vmatprep.subr.bf16.mxu0 0
        %1246 = vmatpush1.bf16.msra.mxu0 %v1112
        %1247 = vmatprep.subr.bf16.mxu0 0
        %1248 = vmatpush1.bf16.msra.mxu0 %v1113
        %1249 = vmatprep.subr.bf16.mxu0 0
        %1250 = vmatpush1.bf16.msra.mxu0 %v1114
        %1251 = vmatprep.subr.bf16.mxu0 0
        %1252 = vmatpush1.bf16.msra.mxu0 %v1115
        %1253 = vmatprep.subr.bf16.mxu0 0
        %1254 = vmatpush1.bf16.msra.mxu0 0
        %1255 = vmatprep.subr.bf16.mxu0 0
        %1256 = vmatpush1.bf16.msra.mxu0 0
        %1257 = vmatprep.subr.bf16.mxu0 0
        %1258 = vmatpush1.bf16.msra.mxu0 0
        %1259 = vmatprep.subr.bf16.mxu0 0
        %1260 = vmatpush1.bf16.msra.mxu0 0
        %1261 = vmatprep.subr.bf16.mxu0 0
        %1262 = vmatpush1.bf16.msra.mxu0 0
        %1263 = vmatprep.subr.bf16.mxu0 0
        %1264 = vmatpush1.bf16.msra.mxu0 0
        %1265 = vmatprep.subr.bf16.mxu0 0
        %1266 = vmatpush1.bf16.msra.mxu0 0
        %1267 = vmatprep.subr.bf16.mxu0 0
        %1268 = vmatpush1.bf16.msra.mxu0 0
        %1269 = vmatprep.mubr.bf16.mxu0 0
        %1270 = vmatmul.mubr.bf16.gmra.mrb[0].mxu0 %v926
        %v1271 = vpop.f32.mrb[0].mxu0
        %v1272 = vadd.f32 %v1175, %v1271
        %v1273 = vpop.f32.mrb[0].mxu0
        %v1274 = vpop.f32.mrb[0].mxu0
        %v1275 = vadd.f32 %v1178, %v1274
        %v1276 = vpop.f32.mrb[0].mxu0
        %1277 = vmatprep.mubr.bf16.mxu0 0
        %1278 = vmatmul.mubr.bf16.gmra.mrb[0].mxu0 %v929
        %v1279 = vpop.f32.mrb[0].mxu0
        %v1280 = vadd.f32 %v1183, %v1279
        %v1281 = vpop.f32.mrb[0].mxu0
        %v1282 = vpop.f32.mrb[0].mxu0
        %v1283 = vadd.f32 %v1186, %v1282
        %v1284 = vpop.f32.mrb[0].mxu0
        %1285 = vmatprep.mubr.bf16.mxu0 0
        %1286 = vmatmul.mubr.bf16.gmra.mrb[0].mxu0 %v932
        %v1287 = vpop.f32.mrb[0].mxu0
        %v1288 = vadd.f32 %v1191, %v1287
        %v1289 = vpop.f32.mrb[0].mxu0
        %v1290 = vpop.f32.mrb[0].mxu0
        %v1291 = vadd.f32 %v1194, %v1290
        %v1292 = vpop.f32.mrb[0].mxu0
        %1293 = vmatprep.mubr.bf16.mxu0 0
        %1294 = vmatmul.mubr.bf16.gmra.mrb[0].mxu0 %v935
        %v1295 = vpop.f32.mrb[0].mxu0
        %v1296 = vadd.f32 %v1199, %v1295
        %v1297 = vpop.f32.mrb[0].mxu0
        %v1298 = vpop.f32.mrb[0].mxu0
        %v1299 = vadd.f32 %v1202, %v1298
        %v1300 = vpop.f32.mrb[0].mxu0
        %1301 = vmatprep.mubr.bf16.mxu0 0
        %1302 = vmatmul.mubr.bf16.gmra.mrb[0].mxu0 %v938
        %v1303 = vpop.f32.mrb[0].mxu0
        %v1304 = vadd.f32 %v1207, %v1303
        %v1305 = vpop.f32.mrb[0].mxu0
        %v1306 = vpop.f32.mrb[0].mxu0
        %v1307 = vadd.f32 %v1210, %v1306
        %v1308 = vpop.f32.mrb[0].mxu0
        %1309 = vmatprep.mubr.bf16.mxu0 0
        %1310 = vmatmul.mubr.bf16.gmra.mrb[0].mxu0 %v941
        %v1311 = vpop.f32.mrb[0].mxu0
        %v1312 = vadd.f32 %v1215, %v1311
        %v1313 = vpop.f32.mrb[0].mxu0
        %v1314 = vpop.f32.mrb[0].mxu0
        %v1315 = vadd.f32 %v1218, %v1314
        %v1316 = vpop.f32.mrb[0].mxu0
        %1317 = vmatprep.mubr.bf16.mxu0 0
        %1318 = vmatmul.mubr.bf16.gmra.mrb[0].mxu0 %v944
        %v1319 = vpop.f32.mrb[0].mxu0
        %v1320 = vadd.f32 %v1223, %v1319
        %v1321 = vpop.f32.mrb[0].mxu0
        %v1322 = vpop.f32.mrb[0].mxu0
        %v1323 = vadd.f32 %v1226, %v1322
        %v1324 = vpop.f32.mrb[0].mxu0
        %1325 = vmatprep.mubr.bf16.mxu0 0
        %1326 = vmatmul.mubr.bf16.gmra.mrb[0].mxu0 %v947
        %v1327 = vpop.f32.mrb[0].mxu0
        %v1328 = vadd.f32 %v1231, %v1327
        %v1329 = vpop.f32.mrb[0].mxu0
        %v1330 = vpop.f32.mrb[0].mxu0
        %v1331 = vadd.f32 %v1234, %v1330
        %v1332 = vpop.f32.mrb[0].mxu0
        %1333 = vdwg.mxu0
        %v1334 = vld [vmem:[%s5] sm:$0xf]
        %v1335 = vld [vmem:[%s5 + $0x4] sm:$0xf]
        %v1336 = vld [vmem:[%s5 + $0x8] sm:$0xf]
        %v1337 = vld [vmem:[%s5 + $0xc] sm:$0xf]
        %v1338 = vld [vmem:[%s5 + $0x10] sm:$0xf]
        %v1339 = vld [vmem:[%s5 + $0x14] sm:$0xf]
        %v1340 = vld [vmem:[%s5 + $0x18] sm:$0xf]
        %v1341 = vld [vmem:[%s5 + $0x1c] sm:$0xf]
        %v1342 = vld [vmem:[%s5 + $0x20] sm:$0xf]
        %v1343 = vld [vmem:[%s5 + $0x24] sm:$0xf]
        %v1344 = vld [vmem:[%s5 + $0x28] sm:$0xf]
        %v1345 = vld [vmem:[%s5 + $0x2c] sm:$0xf]
        %v1346 = vld [vmem:[%s5 + $0x30] sm:$0xf]
        %v1347 = vld [vmem:[%s5 + $0x34] sm:$0xf]
        %v1348 = vld [vmem:[%s5 + $0x38] sm:$0xf]
        %v1349 = vld [vmem:[%s5 + $0x3c] sm:$0xf]
        %v1350 = vld [vmem:[%s5 + $0x40] sm:$0xf]
        %v1351 = vld [vmem:[%s5 + $0x44] sm:$0xf]
        %v1352 = vld [vmem:[%s5 + $0x48] sm:$0xf]
        %v1353 = vld [vmem:[%s5 + $0x4c] sm:$0xf]
        %v1354 = vld [vmem:[%s5 + $0x50] sm:$0xf]
        %v1355 = vld [vmem:[%s5 + $0x54] sm:$0xf]
        %v1356 = vld [vmem:[%s5 + $0x58] sm:$0xf]
        %v1357 = vld [vmem:[%s5 + $0x5c] sm:$0xf]
        %v1358 = vld [vmem:[%s5 + $0x60] sm:$0xf]
        %v1359 = vld [vmem:[%s5 + $0x64] sm:$0xf]
        %v1360 = vld [vmem:[%s5 + $0x68] sm:$0xf]
        %v1361 = vld [vmem:[%s5 + $0x6c] sm:$0xf]
        %v1362 = vld [vmem:[%s5 + $0x70] sm:$0xf]
        %v1363 = vld [vmem:[%s5 + $0x74] sm:$0xf]
        %v1364 = vld [vmem:[%s5 + $0x78] sm:$0xf]
        %v1365 = vld [vmem:[%s5 + $0x7c] sm:$0xf]
        %v1366 = vld [vmem:[%s5 + $0x80] sm:$0xf]
        %v1367 = vld [vmem:[%s5 + $0x84] sm:$0xf]
        %v1368 = vld [vmem:[%s5 + $0x88] sm:$0xf]
        %v1369 = vld [vmem:[%s5 + $0x8c] sm:$0xf]
        %v1370 = vld [vmem:[%s5 + $0x90] sm:$0xf]
        %v1371 = vld [vmem:[%s5 + $0x94] sm:$0xf]
        %v1372 = vld [vmem:[%s5 + $0x98] sm:$0xf]
        %v1373 = vld [vmem:[%s5 + $0x9c] sm:$0xf]
        %v1374 = vld [vmem:[%s5 + $0xa0] sm:$0xf]
        %v1375 = vld [vmem:[%s5 + $0xa4] sm:$0xf]
        %v1376 = vld [vmem:[%s5 + $0xa8] sm:$0xf]
        %v1377 = vld [vmem:[%s5 + $0xac] sm:$0xf]
        %v1378 = vld [vmem:[%s5 + $0xb0] sm:$0xf]
        %v1379 = vld [vmem:[%s5 + $0xb4] sm:$0xf]
        %v1380 = vld [vmem:[%s5 + $0xb8] sm:$0xf]
        %v1381 = vld [vmem:[%s5 + $0xbc] sm:$0xf]
        %v1430 = vunpack.c.l.b16 %v1334
        %v1431 = vunpack.c.l.b16 %v1335
        %v1432 = vunpack.c.l.b16 %v1336
        %v1433 = vunpack.c.l.b16 %v1337
        %v1434 = vunpack.c.l.b16 %v1338
        %v1435 = vunpack.c.l.b16 %v1339
        %v1436 = vunpack.c.l.b16 %v1340
        %v1437 = vunpack.c.l.b16 %v1341
        %v1438 = vunpack.c.l.b16 %v1342
        %v1439 = vunpack.c.l.b16 %v1343
        %v1440 = vunpack.c.l.b16 %v1344
        %v1441 = vunpack.c.l.b16 %v1345
        %v1442 = vunpack.c.l.b16 %v1346
        %v1443 = vunpack.c.l.b16 %v1347
        %v1444 = vunpack.c.l.b16 %v1348
        %v1445 = vunpack.c.l.b16 %v1349
        %v1446 = vunpack.c.l.b16 %v1350
        %v1447 = vunpack.c.l.b16 %v1351
        %v1448 = vunpack.c.l.b16 %v1352
        %v1449 = vunpack.c.l.b16 %v1353
        %v1450 = vunpack.c.l.b16 %v1354
        %v1451 = vunpack.c.l.b16 %v1355
        %v1452 = vunpack.c.l.b16 %v1356
        %v1453 = vunpack.c.l.b16 %v1357
        %v1454 = vunpack.c.l.b16 %v1358
        %v1455 = vunpack.c.l.b16 %v1359
        %v1456 = vunpack.c.l.b16 %v1360
        %v1457 = vunpack.c.l.b16 %v1361
        %v1458 = vunpack.c.l.b16 %v1362
        %v1459 = vunpack.c.l.b16 %v1363
        %v1460 = vunpack.c.l.b16 %v1364
        %v1461 = vunpack.c.l.b16 %v1365
        %v1462 = vunpack.c.l.b16 %v1366
        %v1463 = vunpack.c.l.b16 %v1367
        %v1464 = vunpack.c.l.b16 %v1368
        %v1465 = vunpack.c.l.b16 %v1369
        %v1466 = vunpack.c.l.b16 %v1370
        %v1467 = vunpack.c.l.b16 %v1371
        %v1468 = vunpack.c.l.b16 %v1372
        %v1469 = vunpack.c.l.b16 %v1373
        %v1470 = vunpack.c.l.b16 %v1374
        %v1471 = vunpack.c.l.b16 %v1375
        %v1472 = vunpack.c.l.b16 %v1376
        %v1473 = vunpack.c.l.b16 %v1377
        %v1474 = vunpack.c.l.b16 %v1378
        %v1475 = vunpack.c.l.b16 %v1379
        %v1476 = vunpack.c.l.b16 %v1380
        %v1477 = vunpack.c.l.b16 %v1381
        %v1478 = vpack.c.b16 %v1431, %v1430
        %v1479 = vpack.c.b16 %v1433, %v1432
        %v1480 = vpack.c.b16 %v1435, %v1434
        %v1481 = vpack.c.b16 %v1437, %v1436
        %v1482 = vpack.c.b16 %v1439, %v1438
        %v1483 = vpack.c.b16 %v1441, %v1440
        %v1484 = vpack.c.b16 %v1443, %v1442
        %v1485 = vpack.c.b16 %v1445, %v1444
        %v1486 = vpack.c.b16 %v1447, %v1446
        %v1487 = vpack.c.b16 %v1449, %v1448
        %v1488 = vpack.c.b16 %v1451, %v1450
        %v1489 = vpack.c.b16 %v1453, %v1452
        %v1490 = vpack.c.b16 %v1455, %v1454
        %v1491 = vpack.c.b16 %v1457, %v1456
        %v1492 = vpack.c.b16 %v1459, %v1458
        %v1493 = vpack.c.b16 %v1461, %v1460
        %v1494 = vpack.c.b16 %v1463, %v1462
        %v1495 = vpack.c.b16 %v1465, %v1464
        %v1496 = vpack.c.b16 %v1467, %v1466
        %v1497 = vpack.c.b16 %v1469, %v1468
        %v1498 = vpack.c.b16 %v1471, %v1470
        %v1499 = vpack.c.b16 %v1473, %v1472
        %v1500 = vpack.c.b16 %v1475, %v1474
        %v1501 = vpack.c.b16 %v1477, %v1476
        %1526 = vmatprep.subr.bf16.mxu0 0
        %1527 = vmatpush1.bf16.msra.mxu0 %v1478
        %1528 = vmatprep.subr.bf16.mxu0 0
        %1529 = vmatpush1.bf16.msra.mxu0 %v1479
        %1530 = vmatprep.subr.bf16.mxu0 0
        %1531 = vmatpush1.bf16.msra.mxu0 %v1480
        %1532 = vmatprep.subr.bf16.mxu0 0
        %1533 = vmatpush1.bf16.msra.mxu0 %v1481
        %1534 = vmatprep.subr.bf16.mxu0 0
        %1535 = vmatpush1.bf16.msra.mxu0 %v1482
        %1536 = vmatprep.subr.bf16.mxu0 0
        %1537 = vmatpush1.bf16.msra.mxu0 %v1483
        %1538 = vmatprep.subr.bf16.mxu0 0
        %1539 = vmatpush1.bf16.msra.mxu0 %v1484
        %1540 = vmatprep.subr.bf16.mxu0 0
        %1541 = vmatpush1.bf16.msra.mxu0 %v1485
        %1542 = vmatprep.subr.bf16.mxu0 0
        %1543 = vmatpush1.bf16.msra.mxu0 %v1486
        %1544 = vmatprep.subr.bf16.mxu0 0
        %1545 = vmatpush1.bf16.msra.mxu0 %v1487
        %1546 = vmatprep.subr.bf16.mxu0 0
        %1547 = vmatpush1.bf16.msra.mxu0 %v1488
        %1548 = vmatprep.subr.bf16.mxu0 0
        %1549 = vmatpush1.bf16.msra.mxu0 %v1489
        %1550 = vmatprep.subr.bf16.mxu0 0
        %1551 = vmatpush1.bf16.msra.mxu0 %v1490
        %1552 = vmatprep.subr.bf16.mxu0 0
        %1553 = vmatpush1.bf16.msra.mxu0 %v1491
        %1554 = vmatprep.subr.bf16.mxu0 0
        %1555 = vmatpush1.bf16.msra.mxu0 %v1492
        %1556 = vmatprep.subr.bf16.mxu0 0
        %1557 = vmatpush1.bf16.msra.mxu0 %v1493
        %1558 = vmatprep.mubr.bf16.mxu0 %v925
        %1559 = vmatmul.mubr.bf16.gmra.mrb[0].mxu0 %v924
        %v1560 = vpop.f32.mrb[0].mxu0
        %v1561 = vadd.f32 0.0, %v1560
        %v1562 = vpop.f32.mrb[0].mxu0
        %v1563 = vpop.f32.mrb[0].mxu0
        %v1564 = vadd.f32 0.0, %v1563
        %v1565 = vpop.f32.mrb[0].mxu0
        %1566 = vmatprep.mubr.bf16.mxu0 %v928
        %1567 = vmatmul.mubr.bf16.gmra.mrb[0].mxu0 %v927
        %v1568 = vpop.f32.mrb[0].mxu0
        %v1569 = vadd.f32 0.0, %v1568
        %v1570 = vpop.f32.mrb[0].mxu0
        %v1571 = vpop.f32.mrb[0].mxu0
        %v1572 = vadd.f32 0.0, %v1571
        %v1573 = vpop.f32.mrb[0].mxu0
        %1574 = vmatprep.mubr.bf16.mxu0 %v931
        %1575 = vmatmul.mubr.bf16.gmra.mrb[0].mxu0 %v930
        %v1576 = vpop.f32.mrb[0].mxu0
        %v1577 = vadd.f32 0.0, %v1576
        %v1578 = vpop.f32.mrb[0].mxu0
        %v1579 = vpop.f32.mrb[0].mxu0
        %v1580 = vadd.f32 0.0, %v1579
        %v1581 = vpop.f32.mrb[0].mxu0
        %1582 = vmatprep.mubr.bf16.mxu0 %v934
        %1583 = vmatmul.mubr.bf16.gmra.mrb[0].mxu0 %v933
        %v1584 = vpop.f32.mrb[0].mxu0
        %v1585 = vadd.f32 0.0, %v1584
        %v1586 = vpop.f32.mrb[0].mxu0
        %v1587 = vpop.f32.mrb[0].mxu0
        %v1588 = vadd.f32 0.0, %v1587
        %v1589 = vpop.f32.mrb[0].mxu0
        %1590 = vmatprep.mubr.bf16.mxu0 %v937
        %1591 = vmatmul.mubr.bf16.gmra.mrb[0].mxu0 %v936
        %v1592 = vpop.f32.mrb[0].mxu0
        %v1593 = vadd.f32 0.0, %v1592
        %v1594 = vpop.f32.mrb[0].mxu0
        %v1595 = vpop.f32.mrb[0].mxu0
        %v1596 = vadd.f32 0.0, %v1595
        %v1597 = vpop.f32.mrb[0].mxu0
        %1598 = vmatprep.mubr.bf16.mxu0 %v940
        %1599 = vmatmul.mubr.bf16.gmra.mrb[0].mxu0 %v939
        %v1600 = vpop.f32.mrb[0].mxu0
        %v1601 = vadd.f32 0.0, %v1600
        %v1602 = vpop.f32.mrb[0].mxu0
        %v1603 = vpop.f32.mrb[0].mxu0
        %v1604 = vadd.f32 0.0, %v1603
        %v1605 = vpop.f32.mrb[0].mxu0
        %1606 = vmatprep.mubr.bf16.mxu0 %v943
        %1607 = vmatmul.mubr.bf16.gmra.mrb[0].mxu0 %v942
        %v1608 = vpop.f32.mrb[0].mxu0
        %v1609 = vadd.f32 0.0, %v1608
        %v1610 = vpop.f32.mrb[0].mxu0
        %v1611 = vpop.f32.mrb[0].mxu0
        %v1612 = vadd.f32 0.0, %v1611
        %v1613 = vpop.f32.mrb[0].mxu0
        %1614 = vmatprep.mubr.bf16.mxu0 %v946
        %1615 = vmatmul.mubr.bf16.gmra.mrb[0].mxu0 %v945
        %v1616 = vpop.f32.mrb[0].mxu0
        %v1617 = vadd.f32 0.0, %v1616
        %v1618 = vpop.f32.mrb[0].mxu0
        %v1619 = vpop.f32.mrb[0].mxu0
        %v1620 = vadd.f32 0.0, %v1619
        %v1621 = vpop.f32.mrb[0].mxu0
        %1622 = vdwg.mxu0
        %1623 = vmatprep.subr.bf16.mxu0 0
        %1624 = vmatpush1.bf16.msra.mxu0 %v1494
        %1625 = vmatprep.subr.bf16.mxu0 0
        %1626 = vmatpush1.bf16.msra.mxu0 %v1495
        %1627 = vmatprep.subr.bf16.mxu0 0
        %1628 = vmatpush1.bf16.msra.mxu0 %v1496
        %1629 = vmatprep.subr.bf16.mxu0 0
        %1630 = vmatpush1.bf16.msra.mxu0 %v1497
        %1631 = vmatprep.subr.bf16.mxu0 0
        %1632 = vmatpush1.bf16.msra.mxu0 %v1498
        %1633 = vmatprep.subr.bf16.mxu0 0
        %1634 = vmatpush1.bf16.msra.mxu0 %v1499
        %1635 = vmatprep.subr.bf16.mxu0 0
        %1636 = vmatpush1.bf16.msra.mxu0 %v1500
        %1637 = vmatprep.subr.bf16.mxu0 0
        %1638 = vmatpush1.bf16.msra.mxu0 %v1501
        %1639 = vmatprep.subr.bf16.mxu0 0
        %1640 = vmatpush1.bf16.msra.mxu0 0
        %1641 = vmatprep.subr.bf16.mxu0 0
        %1642 = vmatpush1.bf16.msra.mxu0 0
        %1643 = vmatprep.subr.bf16.mxu0 0
        %1644 = vmatpush1.bf16.msra.mxu0 0
        %1645 = vmatprep.subr.bf16.mxu0 0
        %1646 = vmatpush1.bf16.msra.mxu0 0
        %1647 = vmatprep.subr.bf16.mxu0 0
        %1648 = vmatpush1.bf16.msra.mxu0 0
        %1649 = vmatprep.subr.bf16.mxu0 0
        %1650 = vmatpush1.bf16.msra.mxu0 0
        %1651 = vmatprep.subr.bf16.mxu0 0
        %1652 = vmatpush1.bf16.msra.mxu0 0
        %1653 = vmatprep.subr.bf16.mxu0 0
        %1654 = vmatpush1.bf16.msra.mxu0 0
        %1655 = vmatprep.mubr.bf16.mxu0 0
        %1656 = vmatmul.mubr.bf16.gmra.mrb[0].mxu0 %v926
        %v1657 = vpop.f32.mrb[0].mxu0
        %v1658 = vadd.f32 %v1561, %v1657
        %v1659 = vpop.f32.mrb[0].mxu0
        %v1660 = vpop.f32.mrb[0].mxu0
        %v1661 = vadd.f32 %v1564, %v1660
        %v1662 = vpop.f32.mrb[0].mxu0
        %1663 = vmatprep.mubr.bf16.mxu0 0
        %1664 = vmatmul.mubr.bf16.gmra.mrb[0].mxu0 %v929
        %v1665 = vpop.f32.mrb[0].mxu0
        %v1666 = vadd.f32 %v1569, %v1665
        %v1667 = vpop.f32.mrb[0].mxu0
        %v1668 = vpop.f32.mrb[0].mxu0
        %v1669 = vadd.f32 %v1572, %v1668
        %v1670 = vpop.f32.mrb[0].mxu0
        %1671 = vmatprep.mubr.bf16.mxu0 0
        %1672 = vmatmul.mubr.bf16.gmra.mrb[0].mxu0 %v932
        %v1673 = vpop.f32.mrb[0].mxu0
        %v1674 = vadd.f32 %v1577, %v1673
        %v1675 = vpop.f32.mrb[0].mxu0
        %v1676 = vpop.f32.mrb[0].mxu0
        %v1677 = vadd.f32 %v1580, %v1676
        %v1678 = vpop.f32.mrb[0].mxu0
        %1679 = vmatprep.mubr.bf16.mxu0 0
        %1680 = vmatmul.mubr.bf16.gmra.mrb[0].mxu0 %v935
        %v1681 = vpop.f32.mrb[0].mxu0
        %v1682 = vadd.f32 %v1585, %v1681
        %v1683 = vpop.f32.mrb[0].mxu0
        %v1684 = vpop.f32.mrb[0].mxu0
        %v1685 = vadd.f32 %v1588, %v1684
        %v1686 = vpop.f32.mrb[0].mxu0
        %1687 = vmatprep.mubr.bf16.mxu0 0
        %1688 = vmatmul.mubr.bf16.gmra.mrb[0].mxu0 %v938
        %v1689 = vpop.f32.mrb[0].mxu0
        %v1690 = vadd.f32 %v1593, %v1689
        %v1691 = vpop.f32.mrb[0].mxu0
        %v1692 = vpop.f32.mrb[0].mxu0
        %v1693 = vadd.f32 %v1596, %v1692
        %v1694 = vpop.f32.mrb[0].mxu0
        %1695 = vmatprep.mubr.bf16.mxu0 0
        %1696 = vmatmul.mubr.bf16.gmra.mrb[0].mxu0 %v941
        %v1697 = vpop.f32.mrb[0].mxu0
        %v1698 = vadd.f32 %v1601, %v1697
        %v1699 = vpop.f32.mrb[0].mxu0
        %v1700 = vpop.f32.mrb[0].mxu0
        %v1701 = vadd.f32 %v1604, %v1700
        %v1702 = vpop.f32.mrb[0].mxu0
        %1703 = vmatprep.mubr.bf16.mxu0 0
        %1704 = vmatmul.mubr.bf16.gmra.mrb[0].mxu0 %v944
        %v1705 = vpop.f32.mrb[0].mxu0
        %v1706 = vadd.f32 %v1609, %v1705
        %v1707 = vpop.f32.mrb[0].mxu0
        %v1708 = vpop.f32.mrb[0].mxu0
        %v1709 = vadd.f32 %v1612, %v1708
        %v1710 = vpop.f32.mrb[0].mxu0
        %1711 = vmatprep.mubr.bf16.mxu0 0
        %1712 = vmatmul.mubr.bf16.gmra.mrb[0].mxu0 %v947
        %v1713 = vpop.f32.mrb[0].mxu0
        %v1714 = vadd.f32 %v1617, %v1713
        %v1715 = vpop.f32.mrb[0].mxu0
        %v1716 = vpop.f32.mrb[0].mxu0
        %v1717 = vadd.f32 %v1620, %v1716
        %v1718 = vpop.f32.mrb[0].mxu0
        %1719 = vdwg.mxu0
        %v1720 = vld [vmem:[#allocation10] sm:$0xff]
        %v1721 = vld [vmem:[#allocation10 + $0x8] sm:$0xff]
        %v1722 = vld [vmem:[#allocation10 + $0x10] sm:$0xff]
        %v1723 = vld [vmem:[#allocation10 + $0x18] sm:$0xff]
        %v1724 = vld [vmem:[#allocation10 + $0x20] sm:$0xff]
        %v1725 = vld [vmem:[#allocation10 + $0x28] sm:$0xff]
        %v1726 = vld [vmem:[#allocation10 + $0x30] sm:$0xff]
        %v1727 = vld [vmem:[#allocation10 + $0x38] sm:$0xff]
        %v1728 = vld [vmem:[#allocation10 + $0x40] sm:$0xff]
        %v1729 = vld [vmem:[#allocation10 + $0x48] sm:$0xff]
        %v1730 = vld [vmem:[#allocation10 + $0x50] sm:$0xff]
        %v1731 = vld [vmem:[#allocation10 + $0x58] sm:$0xff]
        %v1732 = vld [vmem:[#allocation10 + $0x60] sm:$0xff]
        %v1733 = vld [vmem:[#allocation10 + $0x68] sm:$0xff]
        %v1734 = vld [vmem:[#allocation10 + $0x70] sm:$0xff]
        %v1735 = vld [vmem:[#allocation10 + $0x78] sm:$0xff]
        %v1736 = vld [vmem:[#allocation10 + $0x80] sm:$0xff]
        %v1737 = vld [vmem:[#allocation10 + $0x88] sm:$0xff]
        %v1738 = vld [vmem:[#allocation10 + $0x90] sm:$0xff]
        %v1739 = vld [vmem:[#allocation10 + $0x98] sm:$0xff]
        %v1740 = vld [vmem:[#allocation10 + $0xa0] sm:$0xff]
        %v1741 = vld [vmem:[#allocation10 + $0xa8] sm:$0xff]
        %v1742 = vld [vmem:[#allocation10 + $0xb0] sm:$0xff]
        %v1743 = vld [vmem:[#allocation10 + $0xb8] sm:$0xff]
        %v1744 = vld [vmem:[#allocation10 + $0xc0] sm:$0xff]
        %v1745 = vld [vmem:[#allocation10 + $0xc8] sm:$0xff]
        %v1746 = vld [vmem:[#allocation10 + $0xd0] sm:$0xff]
        %v1747 = vld [vmem:[#allocation10 + $0xd8] sm:$0xff]
        %v1748 = vld [vmem:[#allocation10 + $0xe0] sm:$0xff]
        %v1749 = vld [vmem:[#allocation10 + $0xe8] sm:$0xff]
        %v1750 = vld [vmem:[#allocation10 + $0xf0] sm:$0xff]
        %v1751 = vld [vmem:[#allocation10 + $0xf8] sm:$0xff]
        %v1752 = vld [vmem:[#allocation10 + $0x100] sm:$0xff]
        %v1753 = vld [vmem:[#allocation10 + $0x108] sm:$0xff]
        %v1754 = vld [vmem:[#allocation10 + $0x110] sm:$0xff]
        %v1755 = vld [vmem:[#allocation10 + $0x118] sm:$0xff]
        %v1756 = vld [vmem:[#allocation10 + $0x120] sm:$0xff]
        %v1757 = vld [vmem:[#allocation10 + $0x128] sm:$0xff]
        %v1758 = vld [vmem:[#allocation10 + $0x130] sm:$0xff]
        %v1759 = vld [vmem:[#allocation10 + $0x138] sm:$0xff]
        %v1760 = vld [vmem:[#allocation10 + $0x140] sm:$0xff]
        %v1761 = vld [vmem:[#allocation10 + $0x148] sm:$0xff]
        %v1762 = vld [vmem:[#allocation10 + $0x150] sm:$0xff]
        %v1763 = vld [vmem:[#allocation10 + $0x158] sm:$0xff]
        %v1764 = vld [vmem:[#allocation10 + $0x160] sm:$0xff]
        %v1765 = vld [vmem:[#allocation10 + $0x168] sm:$0xff]
        %v1766 = vld [vmem:[#allocation10 + $0x170] sm:$0xff]
        %v1767 = vld [vmem:[#allocation10 + $0x178] sm:$0xff]
        %v1768 = vld [vmem:[#allocation10 + $0x180] sm:$0xff]
        %v1769 = vld [vmem:[#allocation10 + $0x188] sm:$0xff]
        %v1770 = vld [vmem:[#allocation10 + $0x190] sm:$0xff]
        %v1771 = vld [vmem:[#allocation10 + $0x198] sm:$0xff]
        %v1772 = vld [vmem:[#allocation10 + $0x1a0] sm:$0xff]
        %v1773 = vld [vmem:[#allocation10 + $0x1a8] sm:$0xff]
        %v1774 = vld [vmem:[#allocation10 + $0x1b0] sm:$0xff]
        %v1775 = vld [vmem:[#allocation10 + $0x1b8] sm:$0xff]
        %v1776 = vld [vmem:[#allocation10 + $0x1c0] sm:$0xff]
        %v1777 = vld [vmem:[#allocation10 + $0x1c8] sm:$0xff]
        %v1778 = vld [vmem:[#allocation10 + $0x1d0] sm:$0xff]
        %v1779 = vld [vmem:[#allocation10 + $0x1d8] sm:$0xff]
        %v1780 = vld [vmem:[#allocation10 + $0x1e0] sm:$0xff]
        %v1781 = vld [vmem:[#allocation10 + $0x1e8] sm:$0xff]
        %v1782 = vld [vmem:[#allocation10 + $0x1f0] sm:$0xff]
        %v1783 = vld [vmem:[#allocation10 + $0x1f8] sm:$0xff]
        %v1784 = vld [vmem:[#allocation10 + $0x200] sm:$0xff]
        %v1785 = vld [vmem:[#allocation10 + $0x208] sm:$0xff]
        %v1786 = vld [vmem:[#allocation10 + $0x210] sm:$0xff]
        %v1787 = vld [vmem:[#allocation10 + $0x218] sm:$0xff]
        %v1788 = vld [vmem:[#allocation10 + $0x220] sm:$0xff]
        %v1789 = vld [vmem:[#allocation10 + $0x228] sm:$0xff]
        %v1790 = vld [vmem:[#allocation10 + $0x230] sm:$0xff]
        %v1791 = vld [vmem:[#allocation10 + $0x238] sm:$0xff]
        %v1792 = vld [vmem:[#allocation10 + $0x240] sm:$0xff]
        %v1793 = vld [vmem:[#allocation10 + $0x248] sm:$0xff]
        %v1794 = vld [vmem:[#allocation10 + $0x250] sm:$0xff]
        %v1795 = vld [vmem:[#allocation10 + $0x258] sm:$0xff]
        %v1796 = vld [vmem:[#allocation10 + $0x260] sm:$0xff]
        %v1797 = vld [vmem:[#allocation10 + $0x268] sm:$0xff]
        %v1798 = vld [vmem:[#allocation10 + $0x270] sm:$0xff]
        %v1799 = vld [vmem:[#allocation10 + $0x278] sm:$0xff]
        %v1800 = vld [vmem:[#allocation10 + $0x280] sm:$0xff]
        %v1801 = vld [vmem:[#allocation10 + $0x288] sm:$0xff]
        %v1802 = vld [vmem:[#allocation10 + $0x290] sm:$0xff]
        %v1803 = vld [vmem:[#allocation10 + $0x298] sm:$0xff]
        %v1804 = vld [vmem:[#allocation10 + $0x2a0] sm:$0xff]
        %v1805 = vld [vmem:[#allocation10 + $0x2a8] sm:$0xff]
        %v1806 = vld [vmem:[#allocation10 + $0x2b0] sm:$0xff]
        %v1807 = vld [vmem:[#allocation10 + $0x2b8] sm:$0xff]
        %v1808 = vld [vmem:[#allocation10 + $0x2c0] sm:$0xff]
        %v1809 = vld [vmem:[#allocation10 + $0x2c8] sm:$0xff]
        %v1810 = vld [vmem:[#allocation10 + $0x2d0] sm:$0xff]
        %v1811 = vld [vmem:[#allocation10 + $0x2d8] sm:$0xff]
        %v1812 = vld [vmem:[#allocation10 + $0x2e0] sm:$0xff]
        %v1813 = vld [vmem:[#allocation10 + $0x2e8] sm:$0xff]
        %v1814 = vld [vmem:[#allocation10 + $0x2f0] sm:$0xff]
        %v1815 = vld [vmem:[#allocation10 + $0x2f8] sm:$0xff]
        %v1816 = vld [vmem:[#allocation10 + $0x300] sm:$0xff]
        %v1817 = vld [vmem:[#allocation10 + $0x308] sm:$0xff]
        %v1818 = vld [vmem:[#allocation10 + $0x310] sm:$0xff]
        %v1819 = vld [vmem:[#allocation10 + $0x318] sm:$0xff]
        %v1820 = vld [vmem:[#allocation10 + $0x320] sm:$0xff]
        %v1821 = vld [vmem:[#allocation10 + $0x328] sm:$0xff]
        %v1822 = vld [vmem:[#allocation10 + $0x330] sm:$0xff]
        %v1823 = vld [vmem:[#allocation10 + $0x338] sm:$0xff]
        %v1824 = vld [vmem:[#allocation10 + $0x340] sm:$0xff]
        %v1825 = vld [vmem:[#allocation10 + $0x348] sm:$0xff]
        %v1826 = vld [vmem:[#allocation10 + $0x350] sm:$0xff]
        %v1827 = vld [vmem:[#allocation10 + $0x358] sm:$0xff]
        %v1828 = vld [vmem:[#allocation10 + $0x360] sm:$0xff]
        %v1829 = vld [vmem:[#allocation10 + $0x368] sm:$0xff]
        %v1830 = vld [vmem:[#allocation10 + $0x370] sm:$0xff]
        %v1831 = vld [vmem:[#allocation10 + $0x378] sm:$0xff]
        %v1832 = vld [vmem:[#allocation10 + $0x380] sm:$0xff]
        %v1833 = vld [vmem:[#allocation10 + $0x388] sm:$0xff]
        %v1834 = vld [vmem:[#allocation10 + $0x390] sm:$0xff]
        %v1835 = vld [vmem:[#allocation10 + $0x398] sm:$0xff]
        %v1836 = vld [vmem:[#allocation10 + $0x3a0] sm:$0xff]
        %v1837 = vld [vmem:[#allocation10 + $0x3a8] sm:$0xff]
        %v1838 = vld [vmem:[#allocation10 + $0x3b0] sm:$0xff]
        %v1839 = vld [vmem:[#allocation10 + $0x3b8] sm:$0xff]
        %v1840 = vld [vmem:[#allocation10 + $0x3c0] sm:$0xff]
        %v1841 = vld [vmem:[#allocation10 + $0x3c8] sm:$0xff]
        %v1842 = vld [vmem:[#allocation10 + $0x3d0] sm:$0xff]
        %v1843 = vld [vmem:[#allocation10 + $0x3d8] sm:$0xff]
        %v1844 = vld [vmem:[#allocation10 + $0x3e0] sm:$0xff]
        %v1845 = vld [vmem:[#allocation10 + $0x3e8] sm:$0xff]
        %v1846 = vld [vmem:[#allocation10 + $0x3f0] sm:$0xff]
        %v1847 = vld [vmem:[#allocation10 + $0x3f8] sm:$0xff]
        %v1848 = vld [vmem:[#allocation10 + $0x400] sm:$0xff]
        %v1849 = vld [vmem:[#allocation10 + $0x408] sm:$0xff]
        %v1850 = vld [vmem:[#allocation10 + $0x410] sm:$0xff]
        %v1851 = vld [vmem:[#allocation10 + $0x418] sm:$0xff]
        %v1852 = vld [vmem:[#allocation10 + $0x420] sm:$0xff]
        %v1853 = vld [vmem:[#allocation10 + $0x428] sm:$0xff]
        %v1854 = vld [vmem:[#allocation10 + $0x430] sm:$0xff]
        %v1855 = vld [vmem:[#allocation10 + $0x438] sm:$0xff]
        %v1856 = vld [vmem:[#allocation10 + $0x440] sm:$0xff]
        %v1857 = vld [vmem:[#allocation10 + $0x448] sm:$0xff]
        %v1858 = vld [vmem:[#allocation10 + $0x450] sm:$0xff]
        %v1859 = vld [vmem:[#allocation10 + $0x458] sm:$0xff]
        %v1860 = vld [vmem:[#allocation10 + $0x460] sm:$0xff]
        %v1861 = vld [vmem:[#allocation10 + $0x468] sm:$0xff]
        %v1862 = vld [vmem:[#allocation10 + $0x470] sm:$0xff]
        %v1863 = vld [vmem:[#allocation10 + $0x478] sm:$0xff]
        %v1864 = vld [vmem:[#allocation10 + $0x480] sm:$0xff]
        %v1865 = vld [vmem:[#allocation10 + $0x488] sm:$0xff]
        %v1866 = vld [vmem:[#allocation10 + $0x490] sm:$0xff]
        %v1867 = vld [vmem:[#allocation10 + $0x498] sm:$0xff]
        %v1868 = vld [vmem:[#allocation10 + $0x4a0] sm:$0xff]
        %v1869 = vld [vmem:[#allocation10 + $0x4a8] sm:$0xff]
        %v1870 = vld [vmem:[#allocation10 + $0x4b0] sm:$0xff]
        %v1871 = vld [vmem:[#allocation10 + $0x4b8] sm:$0xff]
        %v1872 = vld [vmem:[#allocation10 + $0x4c0] sm:$0xff]
        %v1873 = vld [vmem:[#allocation10 + $0x4c8] sm:$0xff]
        %v1874 = vld [vmem:[#allocation10 + $0x4d0] sm:$0xff]
        %v1875 = vld [vmem:[#allocation10 + $0x4d8] sm:$0xff]
        %v1876 = vld [vmem:[#allocation10 + $0x4e0] sm:$0xff]
        %v1877 = vld [vmem:[#allocation10 + $0x4e8] sm:$0xff]
        %v1878 = vld [vmem:[#allocation10 + $0x4f0] sm:$0xff]
        %v1879 = vld [vmem:[#allocation10 + $0x4f8] sm:$0xff]
        %v1880 = vld [vmem:[#allocation10 + $0x500] sm:$0xff]
        %v1881 = vld [vmem:[#allocation10 + $0x508] sm:$0xff]
        %v1882 = vld [vmem:[#allocation10 + $0x510] sm:$0xff]
        %v1883 = vld [vmem:[#allocation10 + $0x518] sm:$0xff]
        %v1884 = vld [vmem:[#allocation10 + $0x520] sm:$0xff]
        %v1885 = vld [vmem:[#allocation10 + $0x528] sm:$0xff]
        %v1886 = vld [vmem:[#allocation10 + $0x530] sm:$0xff]
        %v1887 = vld [vmem:[#allocation10 + $0x538] sm:$0xff]
        %v1888 = vld [vmem:[#allocation10 + $0x540] sm:$0xff]
        %v1889 = vld [vmem:[#allocation10 + $0x548] sm:$0xff]
        %v1890 = vld [vmem:[#allocation10 + $0x550] sm:$0xff]
        %v1891 = vld [vmem:[#allocation10 + $0x558] sm:$0xff]
        %v1892 = vld [vmem:[#allocation10 + $0x560] sm:$0xff]
        %v1893 = vld [vmem:[#allocation10 + $0x568] sm:$0xff]
        %v1894 = vld [vmem:[#allocation10 + $0x570] sm:$0xff]
        %v1895 = vld [vmem:[#allocation10 + $0x578] sm:$0xff]
        %v1896 = vld [vmem:[#allocation10 + $0x580] sm:$0xff]
        %v1897 = vld [vmem:[#allocation10 + $0x588] sm:$0xff]
        %v1898 = vld [vmem:[#allocation10 + $0x590] sm:$0xff]
        %v1899 = vld [vmem:[#allocation10 + $0x598] sm:$0xff]
        %v1900 = vld [vmem:[#allocation10 + $0x5a0] sm:$0xff]
        %v1901 = vld [vmem:[#allocation10 + $0x5a8] sm:$0xff]
        %v1902 = vld [vmem:[#allocation10 + $0x5b0] sm:$0xff]
        %v1903 = vld [vmem:[#allocation10 + $0x5b8] sm:$0xff]
        %v1904 = vld [vmem:[#allocation10 + $0x5c0] sm:$0xff]
        %v1905 = vld [vmem:[#allocation10 + $0x5c8] sm:$0xff]
        %v1906 = vld [vmem:[#allocation10 + $0x5d0] sm:$0xff]
        %v1907 = vld [vmem:[#allocation10 + $0x5d8] sm:$0xff]
        %v1908 = vld [vmem:[#allocation10 + $0x5e0] sm:$0xff]
        %v1909 = vld [vmem:[#allocation10 + $0x5e8] sm:$0xff]
        %v1910 = vld [vmem:[#allocation10 + $0x5f0] sm:$0xff]
        %v1911 = vld [vmem:[#allocation10 + $0x5f8] sm:$0xff]
        %v1912 = vld [vmem:[#allocation10 + $0x600] sm:$0xff]
        %v1913 = vld [vmem:[#allocation10 + $0x608] sm:$0xff]
        %v1914 = vld [vmem:[#allocation10 + $0x610] sm:$0xff]
        %v1915 = vld [vmem:[#allocation10 + $0x618] sm:$0xff]
        %v1916 = vld [vmem:[#allocation10 + $0x620] sm:$0xff]
        %v1917 = vld [vmem:[#allocation10 + $0x628] sm:$0xff]
        %v1918 = vld [vmem:[#allocation10 + $0x630] sm:$0xff]
        %v1919 = vld [vmem:[#allocation10 + $0x638] sm:$0xff]
        %v1920 = vld [vmem:[#allocation10 + $0x640] sm:$0xff]
        %v1921 = vld [vmem:[#allocation10 + $0x648] sm:$0xff]
        %v1922 = vld [vmem:[#allocation10 + $0x650] sm:$0xff]
        %v1923 = vld [vmem:[#allocation10 + $0x658] sm:$0xff]
        %v1924 = vld [vmem:[#allocation10 + $0x660] sm:$0xff]
        %v1925 = vld [vmem:[#allocation10 + $0x668] sm:$0xff]
        %v1926 = vld [vmem:[#allocation10 + $0x670] sm:$0xff]
        %v1927 = vld [vmem:[#allocation10 + $0x678] sm:$0xff]
        %v1928 = vld [vmem:[#allocation10 + $0x680] sm:$0xff]
        %v1929 = vld [vmem:[#allocation10 + $0x688] sm:$0xff]
        %v1930 = vld [vmem:[#allocation10 + $0x690] sm:$0xff]
        %v1931 = vld [vmem:[#allocation10 + $0x698] sm:$0xff]
        %v1932 = vld [vmem:[#allocation10 + $0x6a0] sm:$0xff]
        %v1933 = vld [vmem:[#allocation10 + $0x6a8] sm:$0xff]
        %v1934 = vld [vmem:[#allocation10 + $0x6b0] sm:$0xff]
        %v1935 = vld [vmem:[#allocation10 + $0x6b8] sm:$0xff]
        %v1936 = vld [vmem:[#allocation10 + $0x6c0] sm:$0xff]
        %v1937 = vld [vmem:[#allocation10 + $0x6c8] sm:$0xff]
        %v1938 = vld [vmem:[#allocation10 + $0x6d0] sm:$0xff]
        %v1939 = vld [vmem:[#allocation10 + $0x6d8] sm:$0xff]
        %v1940 = vld [vmem:[#allocation10 + $0x6e0] sm:$0xff]
        %v1941 = vld [vmem:[#allocation10 + $0x6e8] sm:$0xff]
        %v1942 = vld [vmem:[#allocation10 + $0x6f0] sm:$0xff]
        %v1943 = vld [vmem:[#allocation10 + $0x6f8] sm:$0xff]
        %v1944 = vld [vmem:[#allocation10 + $0x700] sm:$0xff]
        %v1945 = vld [vmem:[#allocation10 + $0x708] sm:$0xff]
        %v1946 = vld [vmem:[#allocation10 + $0x710] sm:$0xff]
        %v1947 = vld [vmem:[#allocation10 + $0x718] sm:$0xff]
        %v1948 = vld [vmem:[#allocation10 + $0x720] sm:$0xff]
        %v1949 = vld [vmem:[#allocation10 + $0x728] sm:$0xff]
        %v1950 = vld [vmem:[#allocation10 + $0x730] sm:$0xff]
        %v1951 = vld [vmem:[#allocation10 + $0x738] sm:$0xff]
        %v1952 = vld [vmem:[#allocation10 + $0x740] sm:$0xff]
        %v1953 = vld [vmem:[#allocation10 + $0x748] sm:$0xff]
        %v1954 = vld [vmem:[#allocation10 + $0x750] sm:$0xff]
        %v1955 = vld [vmem:[#allocation10 + $0x758] sm:$0xff]
        %v1956 = vld [vmem:[#allocation10 + $0x760] sm:$0xff]
        %v1957 = vld [vmem:[#allocation10 + $0x768] sm:$0xff]
        %v1958 = vld [vmem:[#allocation10 + $0x770] sm:$0xff]
        %v1959 = vld [vmem:[#allocation10 + $0x778] sm:$0xff]
        %v1960 = vld [vmem:[#allocation10 + $0x780] sm:$0xff]
        %v1961 = vld [vmem:[#allocation10 + $0x788] sm:$0xff]
        %v1962 = vld [vmem:[#allocation10 + $0x790] sm:$0xff]
        %v1963 = vld [vmem:[#allocation10 + $0x798] sm:$0xff]
        %v1964 = vld [vmem:[#allocation10 + $0x7a0] sm:$0xff]
        %v1965 = vld [vmem:[#allocation10 + $0x7a8] sm:$0xff]
        %v1966 = vld [vmem:[#allocation10 + $0x7b0] sm:$0xff]
        %v1967 = vld [vmem:[#allocation10 + $0x7b8] sm:$0xff]
        %v1968 = vld [vmem:[#allocation10 + $0x7c0] sm:$0xff]
        %v1969 = vld [vmem:[#allocation10 + $0x7c8] sm:$0xff]
        %v1970 = vld [vmem:[#allocation10 + $0x7d0] sm:$0xff]
        %v1971 = vld [vmem:[#allocation10 + $0x7d8] sm:$0xff]
        %v1972 = vld [vmem:[#allocation10 + $0x7e0] sm:$0xff]
        %v1973 = vld [vmem:[#allocation10 + $0x7e8] sm:$0xff]
        %v1974 = vld [vmem:[#allocation10 + $0x7f0] sm:$0xff]
        %v1975 = vld [vmem:[#allocation10 + $0x7f8] sm:$0xff]
        %v1976 = vld [vmem:[#allocation10 + $0x800] sm:$0xff]
        %v1977 = vld [vmem:[#allocation10 + $0x808] sm:$0xff]
        %v1978 = vld [vmem:[#allocation10 + $0x810] sm:$0xff]
        %v1979 = vld [vmem:[#allocation10 + $0x818] sm:$0xff]
        %v1980 = vld [vmem:[#allocation10 + $0x820] sm:$0xff]
        %v1981 = vld [vmem:[#allocation10 + $0x828] sm:$0xff]
        %v1982 = vld [vmem:[#allocation10 + $0x830] sm:$0xff]
        %v1983 = vld [vmem:[#allocation10 + $0x838] sm:$0xff]
        %v1984 = vld [vmem:[#allocation10 + $0x840] sm:$0xff]
        %v1985 = vld [vmem:[#allocation10 + $0x848] sm:$0xff]
        %v1986 = vld [vmem:[#allocation10 + $0x850] sm:$0xff]
        %v1987 = vld [vmem:[#allocation10 + $0x858] sm:$0xff]
        %v1988 = vld [vmem:[#allocation10 + $0x860] sm:$0xff]
        %v1989 = vld [vmem:[#allocation10 + $0x868] sm:$0xff]
        %v1990 = vld [vmem:[#allocation10 + $0x870] sm:$0xff]
        %v1991 = vld [vmem:[#allocation10 + $0x878] sm:$0xff]
        %v1992 = vld [vmem:[#allocation10 + $0x880] sm:$0xff]
        %v1993 = vld [vmem:[#allocation10 + $0x888] sm:$0xff]
        %v1994 = vld [vmem:[#allocation10 + $0x890] sm:$0xff]
        %v1995 = vld [vmem:[#allocation10 + $0x898] sm:$0xff]
        %v1996 = vld [vmem:[#allocation10 + $0x8a0] sm:$0xff]
        %v1997 = vld [vmem:[#allocation10 + $0x8a8] sm:$0xff]
        %v1998 = vld [vmem:[#allocation10 + $0x8b0] sm:$0xff]
        %v1999 = vld [vmem:[#allocation10 + $0x8b8] sm:$0xff]
        %v2000 = vld [vmem:[#allocation10 + $0x8c0] sm:$0xff]
        %v2001 = vld [vmem:[#allocation10 + $0x8c8] sm:$0xff]
        %v2002 = vld [vmem:[#allocation10 + $0x8d0] sm:$0xff]
        %v2003 = vld [vmem:[#allocation10 + $0x8d8] sm:$0xff]
        %v2004 = vld [vmem:[#allocation10 + $0x8e0] sm:$0xff]
        %v2005 = vld [vmem:[#allocation10 + $0x8e8] sm:$0xff]
        %v2006 = vld [vmem:[#allocation10 + $0x8f0] sm:$0xff]
        %v2007 = vld [vmem:[#allocation10 + $0x8f8] sm:$0xff]
        %v2296 = vunpack.c.l.b16 %v1720
        %v2297 = vunpack.c.h.b16 %v1720
        %v2298 = vunpack.c.l.b16 %v1721
        %v2299 = vunpack.c.h.b16 %v1721
        %v2300 = vunpack.c.l.b16 %v1722
        %v2301 = vunpack.c.h.b16 %v1722
        %v2302 = vunpack.c.l.b16 %v1723
        %v2303 = vunpack.c.h.b16 %v1723
        %v2304 = vunpack.c.l.b16 %v1724
        %v2305 = vunpack.c.h.b16 %v1724
        %v2306 = vunpack.c.l.b16 %v1725
        %v2307 = vunpack.c.h.b16 %v1725
        %v2308 = vunpack.c.l.b16 %v1726
        %v2309 = vunpack.c.h.b16 %v1726
        %v2310 = vunpack.c.l.b16 %v1727
        %v2311 = vunpack.c.h.b16 %v1727
        %v2312 = vunpack.c.l.b16 %v1728
        %v2313 = vunpack.c.h.b16 %v1728
        %v2314 = vunpack.c.l.b16 %v1729
        %v2315 = vunpack.c.h.b16 %v1729
        %v2316 = vunpack.c.l.b16 %v1730
        %v2317 = vunpack.c.h.b16 %v1730
        %v2318 = vunpack.c.l.b16 %v1731
        %v2319 = vunpack.c.h.b16 %v1731
        %v2320 = vunpack.c.l.b16 %v1732
        %v2321 = vunpack.c.h.b16 %v1732
        %v2322 = vunpack.c.l.b16 %v1733
        %v2323 = vunpack.c.h.b16 %v1733
        %v2324 = vunpack.c.l.b16 %v1734
        %v2325 = vunpack.c.h.b16 %v1734
        %v2326 = vunpack.c.l.b16 %v1735
        %v2327 = vunpack.c.h.b16 %v1735
        %v2328 = vunpack.c.l.b16 %v1736
        %v2329 = vunpack.c.h.b16 %v1736
        %v2330 = vunpack.c.l.b16 %v1737
        %v2331 = vunpack.c.h.b16 %v1737
        %v2332 = vunpack.c.l.b16 %v1738
        %v2333 = vunpack.c.h.b16 %v1738
        %v2334 = vunpack.c.l.b16 %v1739
        %v2335 = vunpack.c.h.b16 %v1739
        %v2336 = vunpack.c.l.b16 %v1740
        %v2337 = vunpack.c.h.b16 %v1740
        %v2338 = vunpack.c.l.b16 %v1741
        %v2339 = vunpack.c.h.b16 %v1741
        %v2340 = vunpack.c.l.b16 %v1742
        %v2341 = vunpack.c.h.b16 %v1742
        %v2342 = vunpack.c.l.b16 %v1743
        %v2343 = vunpack.c.h.b16 %v1743
        %v2344 = vunpack.c.l.b16 %v1744
        %v2345 = vunpack.c.h.b16 %v1744
        %v2346 = vunpack.c.l.b16 %v1745
        %v2347 = vunpack.c.h.b16 %v1745
        %v2348 = vunpack.c.l.b16 %v1746
        %v2349 = vunpack.c.h.b16 %v1746
        %v2350 = vunpack.c.l.b16 %v1747
        %v2351 = vunpack.c.h.b16 %v1747
        %v2352 = vunpack.c.l.b16 %v1748
        %v2353 = vunpack.c.h.b16 %v1748
        %v2354 = vunpack.c.l.b16 %v1749
        %v2355 = vunpack.c.h.b16 %v1749
        %v2356 = vunpack.c.l.b16 %v1750
        %v2357 = vunpack.c.h.b16 %v1750
        %v2358 = vunpack.c.l.b16 %v1751
        %v2359 = vunpack.c.h.b16 %v1751
        %v2360 = vunpack.c.l.b16 %v1752
        %v2361 = vunpack.c.h.b16 %v1752
        %v2362 = vunpack.c.l.b16 %v1753
        %v2363 = vunpack.c.h.b16 %v1753
        %v2364 = vunpack.c.l.b16 %v1754
        %v2365 = vunpack.c.h.b16 %v1754
        %v2366 = vunpack.c.l.b16 %v1755
        %v2367 = vunpack.c.h.b16 %v1755
        %v2368 = vunpack.c.l.b16 %v1756
        %v2369 = vunpack.c.h.b16 %v1756
        %v2370 = vunpack.c.l.b16 %v1757
        %v2371 = vunpack.c.h.b16 %v1757
        %v2372 = vunpack.c.l.b16 %v1758
        %v2373 = vunpack.c.h.b16 %v1758
        %v2374 = vunpack.c.l.b16 %v1759
        %v2375 = vunpack.c.h.b16 %v1759
        %v2376 = vunpack.c.l.b16 %v1760
        %v2377 = vunpack.c.h.b16 %v1760
        %v2378 = vunpack.c.l.b16 %v1761
        %v2379 = vunpack.c.h.b16 %v1761
        %v2380 = vunpack.c.l.b16 %v1762
        %v2381 = vunpack.c.h.b16 %v1762
        %v2382 = vunpack.c.l.b16 %v1763
        %v2383 = vunpack.c.h.b16 %v1763
        %v2384 = vunpack.c.l.b16 %v1764
        %v2385 = vunpack.c.h.b16 %v1764
        %v2386 = vunpack.c.l.b16 %v1765
        %v2387 = vunpack.c.h.b16 %v1765
        %v2388 = vunpack.c.l.b16 %v1766
        %v2389 = vunpack.c.h.b16 %v1766
        %v2390 = vunpack.c.l.b16 %v1767
        %v2391 = vunpack.c.h.b16 %v1767
        %v2392 = vunpack.c.l.b16 %v1768
        %v2393 = vunpack.c.h.b16 %v1768
        %v2394 = vunpack.c.l.b16 %v1769
        %v2395 = vunpack.c.h.b16 %v1769
        %v2396 = vunpack.c.l.b16 %v1770
        %v2397 = vunpack.c.h.b16 %v1770
        %v2398 = vunpack.c.l.b16 %v1771
        %v2399 = vunpack.c.h.b16 %v1771
        %v2400 = vunpack.c.l.b16 %v1772
        %v2401 = vunpack.c.h.b16 %v1772
        %v2402 = vunpack.c.l.b16 %v1773
        %v2403 = vunpack.c.h.b16 %v1773
        %v2404 = vunpack.c.l.b16 %v1774
        %v2405 = vunpack.c.h.b16 %v1774
        %v2406 = vunpack.c.l.b16 %v1775
        %v2407 = vunpack.c.h.b16 %v1775
        %v2408 = vunpack.c.l.b16 %v1776
        %v2409 = vunpack.c.h.b16 %v1776
        %v2410 = vunpack.c.l.b16 %v1777
        %v2411 = vunpack.c.h.b16 %v1777
        %v2412 = vunpack.c.l.b16 %v1778
        %v2413 = vunpack.c.h.b16 %v1778
        %v2414 = vunpack.c.l.b16 %v1779
        %v2415 = vunpack.c.h.b16 %v1779
        %v2416 = vunpack.c.l.b16 %v1780
        %v2417 = vunpack.c.h.b16 %v1780
        %v2418 = vunpack.c.l.b16 %v1781
        %v2419 = vunpack.c.h.b16 %v1781
        %v2420 = vunpack.c.l.b16 %v1782
        %v2421 = vunpack.c.h.b16 %v1782
        %v2422 = vunpack.c.l.b16 %v1783
        %v2423 = vunpack.c.h.b16 %v1783
        %v2424 = vunpack.c.l.b16 %v1784
        %v2425 = vunpack.c.h.b16 %v1784
        %v2426 = vunpack.c.l.b16 %v1785
        %v2427 = vunpack.c.h.b16 %v1785
        %v2428 = vunpack.c.l.b16 %v1786
        %v2429 = vunpack.c.h.b16 %v1786
        %v2430 = vunpack.c.l.b16 %v1787
        %v2431 = vunpack.c.h.b16 %v1787
        %v2432 = vunpack.c.l.b16 %v1788
        %v2433 = vunpack.c.h.b16 %v1788
        %v2434 = vunpack.c.l.b16 %v1789
        %v2435 = vunpack.c.h.b16 %v1789
        %v2436 = vunpack.c.l.b16 %v1790
        %v2437 = vunpack.c.h.b16 %v1790
        %v2438 = vunpack.c.l.b16 %v1791
        %v2439 = vunpack.c.h.b16 %v1791
        %v2440 = vunpack.c.l.b16 %v1792
        %v2441 = vunpack.c.h.b16 %v1792
        %v2442 = vunpack.c.l.b16 %v1793
        %v2443 = vunpack.c.h.b16 %v1793
        %v2444 = vunpack.c.l.b16 %v1794
        %v2445 = vunpack.c.h.b16 %v1794
        %v2446 = vunpack.c.l.b16 %v1795
        %v2447 = vunpack.c.h.b16 %v1795
        %v2448 = vunpack.c.l.b16 %v1796
        %v2449 = vunpack.c.h.b16 %v1796
        %v2450 = vunpack.c.l.b16 %v1797
        %v2451 = vunpack.c.h.b16 %v1797
        %v2452 = vunpack.c.l.b16 %v1798
        %v2453 = vunpack.c.h.b16 %v1798
        %v2454 = vunpack.c.l.b16 %v1799
        %v2455 = vunpack.c.h.b16 %v1799
        %v2456 = vunpack.c.l.b16 %v1800
        %v2457 = vunpack.c.h.b16 %v1800
        %v2458 = vunpack.c.l.b16 %v1801
        %v2459 = vunpack.c.h.b16 %v1801
        %v2460 = vunpack.c.l.b16 %v1802
        %v2461 = vunpack.c.h.b16 %v1802
        %v2462 = vunpack.c.l.b16 %v1803
        %v2463 = vunpack.c.h.b16 %v1803
        %v2464 = vunpack.c.l.b16 %v1804
        %v2465 = vunpack.c.h.b16 %v1804
        %v2466 = vunpack.c.l.b16 %v1805
        %v2467 = vunpack.c.h.b16 %v1805
        %v2468 = vunpack.c.l.b16 %v1806
        %v2469 = vunpack.c.h.b16 %v1806
        %v2470 = vunpack.c.l.b16 %v1807
        %v2471 = vunpack.c.h.b16 %v1807
        %v2472 = vunpack.c.l.b16 %v1808
        %v2473 = vunpack.c.h.b16 %v1808
        %v2474 = vunpack.c.l.b16 %v1809
        %v2475 = vunpack.c.h.b16 %v1809
        %v2476 = vunpack.c.l.b16 %v1810
        %v2477 = vunpack.c.h.b16 %v1810
        %v2478 = vunpack.c.l.b16 %v1811
        %v2479 = vunpack.c.h.b16 %v1811
        %v2480 = vunpack.c.l.b16 %v1812
        %v2481 = vunpack.c.h.b16 %v1812
        %v2482 = vunpack.c.l.b16 %v1813
        %v2483 = vunpack.c.h.b16 %v1813
        %v2484 = vunpack.c.l.b16 %v1814
        %v2485 = vunpack.c.h.b16 %v1814
        %v2486 = vunpack.c.l.b16 %v1815
        %v2487 = vunpack.c.h.b16 %v1815
        %v2488 = vunpack.c.l.b16 %v1816
        %v2489 = vunpack.c.h.b16 %v1816
        %v2490 = vunpack.c.l.b16 %v1817
        %v2491 = vunpack.c.h.b16 %v1817
        %v2492 = vunpack.c.l.b16 %v1818
        %v2493 = vunpack.c.h.b16 %v1818
        %v2494 = vunpack.c.l.b16 %v1819
        %v2495 = vunpack.c.h.b16 %v1819
        %v2496 = vunpack.c.l.b16 %v1820
        %v2497 = vunpack.c.h.b16 %v1820
        %v2498 = vunpack.c.l.b16 %v1821
        %v2499 = vunpack.c.h.b16 %v1821
        %v2500 = vunpack.c.l.b16 %v1822
        %v2501 = vunpack.c.h.b16 %v1822
        %v2502 = vunpack.c.l.b16 %v1823
        %v2503 = vunpack.c.h.b16 %v1823
        %v2504 = vunpack.c.l.b16 %v1824
        %v2505 = vunpack.c.h.b16 %v1824
        %v2506 = vunpack.c.l.b16 %v1825
        %v2507 = vunpack.c.h.b16 %v1825
        %v2508 = vunpack.c.l.b16 %v1826
        %v2509 = vunpack.c.h.b16 %v1826
        %v2510 = vunpack.c.l.b16 %v1827
        %v2511 = vunpack.c.h.b16 %v1827
        %v2512 = vunpack.c.l.b16 %v1828
        %v2513 = vunpack.c.h.b16 %v1828
        %v2514 = vunpack.c.l.b16 %v1829
        %v2515 = vunpack.c.h.b16 %v1829
        %v2516 = vunpack.c.l.b16 %v1830
        %v2517 = vunpack.c.h.b16 %v1830
        %v2518 = vunpack.c.l.b16 %v1831
        %v2519 = vunpack.c.h.b16 %v1831
        %v2520 = vunpack.c.l.b16 %v1832
        %v2521 = vunpack.c.h.b16 %v1832
        %v2522 = vunpack.c.l.b16 %v1833
        %v2523 = vunpack.c.h.b16 %v1833
        %v2524 = vunpack.c.l.b16 %v1834
        %v2525 = vunpack.c.h.b16 %v1834
        %v2526 = vunpack.c.l.b16 %v1835
        %v2527 = vunpack.c.h.b16 %v1835
        %v2528 = vunpack.c.l.b16 %v1836
        %v2529 = vunpack.c.h.b16 %v1836
        %v2530 = vunpack.c.l.b16 %v1837
        %v2531 = vunpack.c.h.b16 %v1837
        %v2532 = vunpack.c.l.b16 %v1838
        %v2533 = vunpack.c.h.b16 %v1838
        %v2534 = vunpack.c.l.b16 %v1839
        %v2535 = vunpack.c.h.b16 %v1839
        %v2536 = vunpack.c.l.b16 %v1840
        %v2537 = vunpack.c.h.b16 %v1840
        %v2538 = vunpack.c.l.b16 %v1841
        %v2539 = vunpack.c.h.b16 %v1841
        %v2540 = vunpack.c.l.b16 %v1842
        %v2541 = vunpack.c.h.b16 %v1842
        %v2542 = vunpack.c.l.b16 %v1843
        %v2543 = vunpack.c.h.b16 %v1843
        %v2544 = vunpack.c.l.b16 %v1844
        %v2545 = vunpack.c.h.b16 %v1844
        %v2546 = vunpack.c.l.b16 %v1845
        %v2547 = vunpack.c.h.b16 %v1845
        %v2548 = vunpack.c.l.b16 %v1846
        %v2549 = vunpack.c.h.b16 %v1846
        %v2550 = vunpack.c.l.b16 %v1847
        %v2551 = vunpack.c.h.b16 %v1847
        %v2552 = vunpack.c.l.b16 %v1848
        %v2553 = vunpack.c.h.b16 %v1848
        %v2554 = vunpack.c.l.b16 %v1849
        %v2555 = vunpack.c.h.b16 %v1849
        %v2556 = vunpack.c.l.b16 %v1850
        %v2557 = vunpack.c.h.b16 %v1850
        %v2558 = vunpack.c.l.b16 %v1851
        %v2559 = vunpack.c.h.b16 %v1851
        %v2560 = vunpack.c.l.b16 %v1852
        %v2561 = vunpack.c.h.b16 %v1852
        %v2562 = vunpack.c.l.b16 %v1853
        %v2563 = vunpack.c.h.b16 %v1853
        %v2564 = vunpack.c.l.b16 %v1854
        %v2565 = vunpack.c.h.b16 %v1854
        %v2566 = vunpack.c.l.b16 %v1855
        %v2567 = vunpack.c.h.b16 %v1855
        %v2568 = vunpack.c.l.b16 %v1856
        %v2569 = vunpack.c.h.b16 %v1856
        %v2570 = vunpack.c.l.b16 %v1857
        %v2571 = vunpack.c.h.b16 %v1857
        %v2572 = vunpack.c.l.b16 %v1858
        %v2573 = vunpack.c.h.b16 %v1858
        %v2574 = vunpack.c.l.b16 %v1859
        %v2575 = vunpack.c.h.b16 %v1859
        %v2576 = vunpack.c.l.b16 %v1860
        %v2577 = vunpack.c.h.b16 %v1860
        %v2578 = vunpack.c.l.b16 %v1861
        %v2579 = vunpack.c.h.b16 %v1861
        %v2580 = vunpack.c.l.b16 %v1862
        %v2581 = vunpack.c.h.b16 %v1862
        %v2582 = vunpack.c.l.b16 %v1863
        %v2583 = vunpack.c.h.b16 %v1863
        %v2584 = vunpack.c.l.b16 %v1864
        %v2585 = vunpack.c.h.b16 %v1864
        %v2586 = vunpack.c.l.b16 %v1865
        %v2587 = vunpack.c.h.b16 %v1865
        %v2588 = vunpack.c.l.b16 %v1866
        %v2589 = vunpack.c.h.b16 %v1866
        %v2590 = vunpack.c.l.b16 %v1867
        %v2591 = vunpack.c.h.b16 %v1867
        %v2592 = vunpack.c.l.b16 %v1868
        %v2593 = vunpack.c.h.b16 %v1868
        %v2594 = vunpack.c.l.b16 %v1869
        %v2595 = vunpack.c.h.b16 %v1869
        %v2596 = vunpack.c.l.b16 %v1870
        %v2597 = vunpack.c.h.b16 %v1870
        %v2598 = vunpack.c.l.b16 %v1871
        %v2599 = vunpack.c.h.b16 %v1871
        %v2600 = vunpack.c.l.b16 %v1872
        %v2601 = vunpack.c.h.b16 %v1872
        %v2602 = vunpack.c.l.b16 %v1873
        %v2603 = vunpack.c.h.b16 %v1873
        %v2604 = vunpack.c.l.b16 %v1874
        %v2605 = vunpack.c.h.b16 %v1874
        %v2606 = vunpack.c.l.b16 %v1875
        %v2607 = vunpack.c.h.b16 %v1875
        %v2608 = vunpack.c.l.b16 %v1876
        %v2609 = vunpack.c.h.b16 %v1876
        %v2610 = vunpack.c.l.b16 %v1877
        %v2611 = vunpack.c.h.b16 %v1877
        %v2612 = vunpack.c.l.b16 %v1878
        %v2613 = vunpack.c.h.b16 %v1878
        %v2614 = vunpack.c.l.b16 %v1879
        %v2615 = vunpack.c.h.b16 %v1879
        %v2616 = vunpack.c.l.b16 %v1880
        %v2617 = vunpack.c.h.b16 %v1880
        %v2618 = vunpack.c.l.b16 %v1881
        %v2619 = vunpack.c.h.b16 %v1881
        %v2620 = vunpack.c.l.b16 %v1882
        %v2621 = vunpack.c.h.b16 %v1882
        %v2622 = vunpack.c.l.b16 %v1883
        %v2623 = vunpack.c.h.b16 %v1883
        %v2624 = vunpack.c.l.b16 %v1884
        %v2625 = vunpack.c.h.b16 %v1884
        %v2626 = vunpack.c.l.b16 %v1885
        %v2627 = vunpack.c.h.b16 %v1885
        %v2628 = vunpack.c.l.b16 %v1886
        %v2629 = vunpack.c.h.b16 %v1886
        %v2630 = vunpack.c.l.b16 %v1887
        %v2631 = vunpack.c.h.b16 %v1887
        %v2632 = vunpack.c.l.b16 %v1888
        %v2633 = vunpack.c.h.b16 %v1888
        %v2634 = vunpack.c.l.b16 %v1889
        %v2635 = vunpack.c.h.b16 %v1889
        %v2636 = vunpack.c.l.b16 %v1890
        %v2637 = vunpack.c.h.b16 %v1890
        %v2638 = vunpack.c.l.b16 %v1891
        %v2639 = vunpack.c.h.b16 %v1891
        %v2640 = vunpack.c.l.b16 %v1892
        %v2641 = vunpack.c.h.b16 %v1892
        %v2642 = vunpack.c.l.b16 %v1893
        %v2643 = vunpack.c.h.b16 %v1893
        %v2644 = vunpack.c.l.b16 %v1894
        %v2645 = vunpack.c.h.b16 %v1894
        %v2646 = vunpack.c.l.b16 %v1895
        %v2647 = vunpack.c.h.b16 %v1895
        %v2648 = vunpack.c.l.b16 %v1896
        %v2649 = vunpack.c.h.b16 %v1896
        %v2650 = vunpack.c.l.b16 %v1897
        %v2651 = vunpack.c.h.b16 %v1897
        %v2652 = vunpack.c.l.b16 %v1898
        %v2653 = vunpack.c.h.b16 %v1898
        %v2654 = vunpack.c.l.b16 %v1899
        %v2655 = vunpack.c.h.b16 %v1899
        %v2656 = vunpack.c.l.b16 %v1900
        %v2657 = vunpack.c.h.b16 %v1900
        %v2658 = vunpack.c.l.b16 %v1901
        %v2659 = vunpack.c.h.b16 %v1901
        %v2660 = vunpack.c.l.b16 %v1902
        %v2661 = vunpack.c.h.b16 %v1902
        %v2662 = vunpack.c.l.b16 %v1903
        %v2663 = vunpack.c.h.b16 %v1903
        %v2664 = vunpack.c.l.b16 %v1904
        %v2665 = vunpack.c.h.b16 %v1904
        %v2666 = vunpack.c.l.b16 %v1905
        %v2667 = vunpack.c.h.b16 %v1905
        %v2668 = vunpack.c.l.b16 %v1906
        %v2669 = vunpack.c.h.b16 %v1906
        %v2670 = vunpack.c.l.b16 %v1907
        %v2671 = vunpack.c.h.b16 %v1907
        %v2672 = vunpack.c.l.b16 %v1908
        %v2673 = vunpack.c.h.b16 %v1908
        %v2674 = vunpack.c.l.b16 %v1909
        %v2675 = vunpack.c.h.b16 %v1909
        %v2676 = vunpack.c.l.b16 %v1910
        %v2677 = vunpack.c.h.b16 %v1910
        %v2678 = vunpack.c.l.b16 %v1911
        %v2679 = vunpack.c.h.b16 %v1911
        %v2680 = vunpack.c.l.b16 %v1912
        %v2681 = vunpack.c.h.b16 %v1912
        %v2682 = vunpack.c.l.b16 %v1913
        %v2683 = vunpack.c.h.b16 %v1913
        %v2684 = vunpack.c.l.b16 %v1914
        %v2685 = vunpack.c.h.b16 %v1914
        %v2686 = vunpack.c.l.b16 %v1915
        %v2687 = vunpack.c.h.b16 %v1915
        %v2688 = vunpack.c.l.b16 %v1916
        %v2689 = vunpack.c.h.b16 %v1916
        %v2690 = vunpack.c.l.b16 %v1917
        %v2691 = vunpack.c.h.b16 %v1917
        %v2692 = vunpack.c.l.b16 %v1918
        %v2693 = vunpack.c.h.b16 %v1918
        %v2694 = vunpack.c.l.b16 %v1919
        %v2695 = vunpack.c.h.b16 %v1919
        %v2696 = vunpack.c.l.b16 %v1920
        %v2697 = vunpack.c.h.b16 %v1920
        %v2698 = vunpack.c.l.b16 %v1921
        %v2699 = vunpack.c.h.b16 %v1921
        %v2700 = vunpack.c.l.b16 %v1922
        %v2701 = vunpack.c.h.b16 %v1922
        %v2702 = vunpack.c.l.b16 %v1923
        %v2703 = vunpack.c.h.b16 %v1923
        %v2704 = vunpack.c.l.b16 %v1924
        %v2705 = vunpack.c.h.b16 %v1924
        %v2706 = vunpack.c.l.b16 %v1925
        %v2707 = vunpack.c.h.b16 %v1925
        %v2708 = vunpack.c.l.b16 %v1926
        %v2709 = vunpack.c.h.b16 %v1926
        %v2710 = vunpack.c.l.b16 %v1927
        %v2711 = vunpack.c.h.b16 %v1927
        %v2712 = vunpack.c.l.b16 %v1928
        %v2713 = vunpack.c.h.b16 %v1928
        %v2714 = vunpack.c.l.b16 %v1929
        %v2715 = vunpack.c.h.b16 %v1929
        %v2716 = vunpack.c.l.b16 %v1930
        %v2717 = vunpack.c.h.b16 %v1930
        %v2718 = vunpack.c.l.b16 %v1931
        %v2719 = vunpack.c.h.b16 %v1931
        %v2720 = vunpack.c.l.b16 %v1932
        %v2721 = vunpack.c.h.b16 %v1932
        %v2722 = vunpack.c.l.b16 %v1933
        %v2723 = vunpack.c.h.b16 %v1933
        %v2724 = vunpack.c.l.b16 %v1934
        %v2725 = vunpack.c.h.b16 %v1934
        %v2726 = vunpack.c.l.b16 %v1935
        %v2727 = vunpack.c.h.b16 %v1935
        %v2728 = vunpack.c.l.b16 %v1936
        %v2729 = vunpack.c.h.b16 %v1936
        %v2730 = vunpack.c.l.b16 %v1937
        %v2731 = vunpack.c.h.b16 %v1937
        %v2732 = vunpack.c.l.b16 %v1938
        %v2733 = vunpack.c.h.b16 %v1938
        %v2734 = vunpack.c.l.b16 %v1939
        %v2735 = vunpack.c.h.b16 %v1939
        %v2736 = vunpack.c.l.b16 %v1940
        %v2737 = vunpack.c.h.b16 %v1940
        %v2738 = vunpack.c.l.b16 %v1941
        %v2739 = vunpack.c.h.b16 %v1941
        %v2740 = vunpack.c.l.b16 %v1942
        %v2741 = vunpack.c.h.b16 %v1942
        %v2742 = vunpack.c.l.b16 %v1943
        %v2743 = vunpack.c.h.b16 %v1943
        %v2744 = vunpack.c.l.b16 %v1944
        %v2745 = vunpack.c.h.b16 %v1944
        %v2746 = vunpack.c.l.b16 %v1945
        %v2747 = vunpack.c.h.b16 %v1945
        %v2748 = vunpack.c.l.b16 %v1946
        %v2749 = vunpack.c.h.b16 %v1946
        %v2750 = vunpack.c.l.b16 %v1947
        %v2751 = vunpack.c.h.b16 %v1947
        %v2752 = vunpack.c.l.b16 %v1948
        %v2753 = vunpack.c.h.b16 %v1948
        %v2754 = vunpack.c.l.b16 %v1949
        %v2755 = vunpack.c.h.b16 %v1949
        %v2756 = vunpack.c.l.b16 %v1950
        %v2757 = vunpack.c.h.b16 %v1950
        %v2758 = vunpack.c.l.b16 %v1951
        %v2759 = vunpack.c.h.b16 %v1951
        %v2760 = vunpack.c.l.b16 %v1952
        %v2761 = vunpack.c.h.b16 %v1952
        %v2762 = vunpack.c.l.b16 %v1953
        %v2763 = vunpack.c.h.b16 %v1953
        %v2764 = vunpack.c.l.b16 %v1954
        %v2765 = vunpack.c.h.b16 %v1954
        %v2766 = vunpack.c.l.b16 %v1955
        %v2767 = vunpack.c.h.b16 %v1955
        %v2768 = vunpack.c.l.b16 %v1956
        %v2769 = vunpack.c.h.b16 %v1956
        %v2770 = vunpack.c.l.b16 %v1957
        %v2771 = vunpack.c.h.b16 %v1957
        %v2772 = vunpack.c.l.b16 %v1958
        %v2773 = vunpack.c.h.b16 %v1958
        %v2774 = vunpack.c.l.b16 %v1959
        %v2775 = vunpack.c.h.b16 %v1959
        %v2776 = vunpack.c.l.b16 %v1960
        %v2777 = vunpack.c.h.b16 %v1960
        %v2778 = vunpack.c.l.b16 %v1961
        %v2779 = vunpack.c.h.b16 %v1961
        %v2780 = vunpack.c.l.b16 %v1962
        %v2781 = vunpack.c.h.b16 %v1962
        %v2782 = vunpack.c.l.b16 %v1963
        %v2783 = vunpack.c.h.b16 %v1963
        %v2784 = vunpack.c.l.b16 %v1964
        %v2785 = vunpack.c.h.b16 %v1964
        %v2786 = vunpack.c.l.b16 %v1965
        %v2787 = vunpack.c.h.b16 %v1965
        %v2788 = vunpack.c.l.b16 %v1966
        %v2789 = vunpack.c.h.b16 %v1966
        %v2790 = vunpack.c.l.b16 %v1967
        %v2791 = vunpack.c.h.b16 %v1967
        %v2792 = vunpack.c.l.b16 %v1968
        %v2793 = vunpack.c.h.b16 %v1968
        %v2794 = vunpack.c.l.b16 %v1969
        %v2795 = vunpack.c.h.b16 %v1969
        %v2796 = vunpack.c.l.b16 %v1970
        %v2797 = vunpack.c.h.b16 %v1970
        %v2798 = vunpack.c.l.b16 %v1971
        %v2799 = vunpack.c.h.b16 %v1971
        %v2800 = vunpack.c.l.b16 %v1972
        %v2801 = vunpack.c.h.b16 %v1972
        %v2802 = vunpack.c.l.b16 %v1973
        %v2803 = vunpack.c.h.b16 %v1973
        %v2804 = vunpack.c.l.b16 %v1974
        %v2805 = vunpack.c.h.b16 %v1974
        %v2806 = vunpack.c.l.b16 %v1975
        %v2807 = vunpack.c.h.b16 %v1975
        %v2808 = vunpack.c.l.b16 %v1976
        %v2809 = vunpack.c.h.b16 %v1976
        %v2810 = vunpack.c.l.b16 %v1977
        %v2811 = vunpack.c.h.b16 %v1977
        %v2812 = vunpack.c.l.b16 %v1978
        %v2813 = vunpack.c.h.b16 %v1978
        %v2814 = vunpack.c.l.b16 %v1979
        %v2815 = vunpack.c.h.b16 %v1979
        %v2816 = vunpack.c.l.b16 %v1980
        %v2817 = vunpack.c.h.b16 %v1980
        %v2818 = vunpack.c.l.b16 %v1981
        %v2819 = vunpack.c.h.b16 %v1981
        %v2820 = vunpack.c.l.b16 %v1982
        %v2821 = vunpack.c.h.b16 %v1982
        %v2822 = vunpack.c.l.b16 %v1983
        %v2823 = vunpack.c.h.b16 %v1983
        %v2824 = vunpack.c.l.b16 %v1984
        %v2825 = vunpack.c.h.b16 %v1984
        %v2826 = vunpack.c.l.b16 %v1985
        %v2827 = vunpack.c.h.b16 %v1985
        %v2828 = vunpack.c.l.b16 %v1986
        %v2829 = vunpack.c.h.b16 %v1986
        %v2830 = vunpack.c.l.b16 %v1987
        %v2831 = vunpack.c.h.b16 %v1987
        %v2832 = vunpack.c.l.b16 %v1988
        %v2833 = vunpack.c.h.b16 %v1988
        %v2834 = vunpack.c.l.b16 %v1989
        %v2835 = vunpack.c.h.b16 %v1989
        %v2836 = vunpack.c.l.b16 %v1990
        %v2837 = vunpack.c.h.b16 %v1990
        %v2838 = vunpack.c.l.b16 %v1991
        %v2839 = vunpack.c.h.b16 %v1991
        %v2840 = vunpack.c.l.b16 %v1992
        %v2841 = vunpack.c.h.b16 %v1992
        %v2842 = vunpack.c.l.b16 %v1993
        %v2843 = vunpack.c.h.b16 %v1993
        %v2844 = vunpack.c.l.b16 %v1994
        %v2845 = vunpack.c.h.b16 %v1994
        %v2846 = vunpack.c.l.b16 %v1995
        %v2847 = vunpack.c.h.b16 %v1995
        %v2848 = vunpack.c.l.b16 %v1996
        %v2849 = vunpack.c.h.b16 %v1996
        %v2850 = vunpack.c.l.b16 %v1997
        %v2851 = vunpack.c.h.b16 %v1997
        %v2852 = vunpack.c.l.b16 %v1998
        %v2853 = vunpack.c.h.b16 %v1998
        %v2854 = vunpack.c.l.b16 %v1999
        %v2855 = vunpack.c.h.b16 %v1999
        %v2856 = vunpack.c.l.b16 %v2000
        %v2857 = vunpack.c.h.b16 %v2000
        %v2858 = vunpack.c.l.b16 %v2001
        %v2859 = vunpack.c.h.b16 %v2001
        %v2860 = vunpack.c.l.b16 %v2002
        %v2861 = vunpack.c.h.b16 %v2002
        %v2862 = vunpack.c.l.b16 %v2003
        %v2863 = vunpack.c.h.b16 %v2003
        %v2864 = vunpack.c.l.b16 %v2004
        %v2865 = vunpack.c.h.b16 %v2004
        %v2866 = vunpack.c.l.b16 %v2005
        %v2867 = vunpack.c.h.b16 %v2005
        %v2868 = vunpack.c.l.b16 %v2006
        %v2869 = vunpack.c.h.b16 %v2006
        %v2870 = vunpack.c.l.b16 %v2007
        %v2871 = vunpack.c.h.b16 %v2007
        %v2872 = vpack.c.b16 %v2308, %v2296
        %v2873 = vpack.c.b16 %v2309, %v2297
        %v2874 = vpack.c.b16 %v2310, %v2298
        %v2875 = vpack.c.b16 %v2311, %v2299
        %v2876 = vpack.c.b16 %v2312, %v2300
        %v2877 = vpack.c.b16 %v2313, %v2301
        %v2878 = vpack.c.b16 %v2314, %v2302
        %v2879 = vpack.c.b16 %v2315, %v2303
        %v2880 = vpack.c.b16 %v2316, %v2304
        %v2881 = vpack.c.b16 %v2317, %v2305
        %v2882 = vpack.c.b16 %v2318, %v2306
        %v2883 = vpack.c.b16 %v2319, %v2307
        %v2884 = vpack.c.b16 %v2332, %v2320
        %v2885 = vpack.c.b16 %v2333, %v2321
        %v2886 = vpack.c.b16 %v2334, %v2322
        %v2887 = vpack.c.b16 %v2335, %v2323
        %v2888 = vpack.c.b16 %v2336, %v2324
        %v2889 = vpack.c.b16 %v2337, %v2325
        %v2890 = vpack.c.b16 %v2338, %v2326
        %v2891 = vpack.c.b16 %v2339, %v2327
        %v2892 = vpack.c.b16 %v2340, %v2328
        %v2893 = vpack.c.b16 %v2341, %v2329
        %v2894 = vpack.c.b16 %v2342, %v2330
        %v2895 = vpack.c.b16 %v2343, %v2331
        %v2896 = vpack.c.b16 %v2356, %v2344
        %v2897 = vpack.c.b16 %v2357, %v2345
        %v2898 = vpack.c.b16 %v2358, %v2346
        %v2899 = vpack.c.b16 %v2359, %v2347
        %v2900 = vpack.c.b16 %v2360, %v2348
        %v2901 = vpack.c.b16 %v2361, %v2349
        %v2902 = vpack.c.b16 %v2362, %v2350
        %v2903 = vpack.c.b16 %v2363, %v2351
        %v2904 = vpack.c.b16 %v2364, %v2352
        %v2905 = vpack.c.b16 %v2365, %v2353
        %v2906 = vpack.c.b16 %v2366, %v2354
        %v2907 = vpack.c.b16 %v2367, %v2355
        %v2908 = vpack.c.b16 %v2380, %v2368
        %v2909 = vpack.c.b16 %v2381, %v2369
        %v2910 = vpack.c.b16 %v2382, %v2370
        %v2911 = vpack.c.b16 %v2383, %v2371
        %v2912 = vpack.c.b16 %v2384, %v2372
        %v2913 = vpack.c.b16 %v2385, %v2373
        %v2914 = vpack.c.b16 %v2386, %v2374
        %v2915 = vpack.c.b16 %v2387, %v2375
        %v2916 = vpack.c.b16 %v2388, %v2376
        %v2917 = vpack.c.b16 %v2389, %v2377
        %v2918 = vpack.c.b16 %v2390, %v2378
        %v2919 = vpack.c.b16 %v2391, %v2379
        %v2920 = vpack.c.b16 %v2404, %v2392
        %v2921 = vpack.c.b16 %v2405, %v2393
        %v2922 = vpack.c.b16 %v2406, %v2394
        %v2923 = vpack.c.b16 %v2407, %v2395
        %v2924 = vpack.c.b16 %v2408, %v2396
        %v2925 = vpack.c.b16 %v2409, %v2397
        %v2926 = vpack.c.b16 %v2410, %v2398
        %v2927 = vpack.c.b16 %v2411, %v2399
        %v2928 = vpack.c.b16 %v2412, %v2400
        %v2929 = vpack.c.b16 %v2413, %v2401
        %v2930 = vpack.c.b16 %v2414, %v2402
        %v2931 = vpack.c.b16 %v2415, %v2403
        %v2932 = vpack.c.b16 %v2428, %v2416
        %v2933 = vpack.c.b16 %v2429, %v2417
        %v2934 = vpack.c.b16 %v2430, %v2418
        %v2935 = vpack.c.b16 %v2431, %v2419
        %v2936 = vpack.c.b16 %v2432, %v2420
        %v2937 = vpack.c.b16 %v2433, %v2421
        %v2938 = vpack.c.b16 %v2434, %v2422
        %v2939 = vpack.c.b16 %v2435, %v2423
        %v2940 = vpack.c.b16 %v2436, %v2424
        %v2941 = vpack.c.b16 %v2437, %v2425
        %v2942 = vpack.c.b16 %v2438, %v2426
        %v2943 = vpack.c.b16 %v2439, %v2427
        %v2944 = vpack.c.b16 %v2452, %v2440
        %v2945 = vpack.c.b16 %v2453, %v2441
        %v2946 = vpack.c.b16 %v2454, %v2442
        %v2947 = vpack.c.b16 %v2455, %v2443
        %v2948 = vpack.c.b16 %v2456, %v2444
        %v2949 = vpack.c.b16 %v2457, %v2445
        %v2950 = vpack.c.b16 %v2458, %v2446
        %v2951 = vpack.c.b16 %v2459, %v2447
        %v2952 = vpack.c.b16 %v2460, %v2448
        %v2953 = vpack.c.b16 %v2461, %v2449
        %v2954 = vpack.c.b16 %v2462, %v2450
        %v2955 = vpack.c.b16 %v2463, %v2451
        %v2956 = vpack.c.b16 %v2476, %v2464
        %v2957 = vpack.c.b16 %v2477, %v2465
        %v2958 = vpack.c.b16 %v2478, %v2466
        %v2959 = vpack.c.b16 %v2479, %v2467
        %v2960 = vpack.c.b16 %v2480, %v2468
        %v2961 = vpack.c.b16 %v2481, %v2469
        %v2962 = vpack.c.b16 %v2482, %v2470
        %v2963 = vpack.c.b16 %v2483, %v2471
        %v2964 = vpack.c.b16 %v2484, %v2472
        %v2965 = vpack.c.b16 %v2485, %v2473
        %v2966 = vpack.c.b16 %v2486, %v2474
        %v2967 = vpack.c.b16 %v2487, %v2475
        %v2968 = vpack.c.b16 %v2500, %v2488
        %v2969 = vpack.c.b16 %v2501, %v2489
        %v2970 = vpack.c.b16 %v2502, %v2490
        %v2971 = vpack.c.b16 %v2503, %v2491
        %v2972 = vpack.c.b16 %v2504, %v2492
        %v2973 = vpack.c.b16 %v2505, %v2493
        %v2974 = vpack.c.b16 %v2506, %v2494
        %v2975 = vpack.c.b16 %v2507, %v2495
        %v2976 = vpack.c.b16 %v2508, %v2496
        %v2977 = vpack.c.b16 %v2509, %v2497
        %v2978 = vpack.c.b16 %v2510, %v2498
        %v2979 = vpack.c.b16 %v2511, %v2499
        %v2980 = vpack.c.b16 %v2524, %v2512
        %v2981 = vpack.c.b16 %v2525, %v2513
        %v2982 = vpack.c.b16 %v2526, %v2514
        %v2983 = vpack.c.b16 %v2527, %v2515
        %v2984 = vpack.c.b16 %v2528, %v2516
        %v2985 = vpack.c.b16 %v2529, %v2517
        %v2986 = vpack.c.b16 %v2530, %v2518
        %v2987 = vpack.c.b16 %v2531, %v2519
        %v2988 = vpack.c.b16 %v2532, %v2520
        %v2989 = vpack.c.b16 %v2533, %v2521
        %v2990 = vpack.c.b16 %v2534, %v2522
        %v2991 = vpack.c.b16 %v2535, %v2523
        %v2992 = vpack.c.b16 %v2548, %v2536
        %v2993 = vpack.c.b16 %v2549, %v2537
        %v2994 = vpack.c.b16 %v2550, %v2538
        %v2995 = vpack.c.b16 %v2551, %v2539
        %v2996 = vpack.c.b16 %v2552, %v2540
        %v2997 = vpack.c.b16 %v2553, %v2541
        %v2998 = vpack.c.b16 %v2554, %v2542
        %v2999 = vpack.c.b16 %v2555, %v2543
        %v3000 = vpack.c.b16 %v2556, %v2544
        %v3001 = vpack.c.b16 %v2557, %v2545
        %v3002 = vpack.c.b16 %v2558, %v2546
        %v3003 = vpack.c.b16 %v2559, %v2547
        %v3004 = vpack.c.b16 %v2572, %v2560
        %v3005 = vpack.c.b16 %v2573, %v2561
        %v3006 = vpack.c.b16 %v2574, %v2562
        %v3007 = vpack.c.b16 %v2575, %v2563
        %v3008 = vpack.c.b16 %v2576, %v2564
        %v3009 = vpack.c.b16 %v2577, %v2565
        %v3010 = vpack.c.b16 %v2578, %v2566
        %v3011 = vpack.c.b16 %v2579, %v2567
        %v3012 = vpack.c.b16 %v2580, %v2568
        %v3013 = vpack.c.b16 %v2581, %v2569
        %v3014 = vpack.c.b16 %v2582, %v2570
        %v3015 = vpack.c.b16 %v2583, %v2571
        %v3016 = vpack.c.b16 %v2596, %v2584
        %v3017 = vpack.c.b16 %v2597, %v2585
        %v3018 = vpack.c.b16 %v2598, %v2586
        %v3019 = vpack.c.b16 %v2599, %v2587
        %v3020 = vpack.c.b16 %v2600, %v2588
        %v3021 = vpack.c.b16 %v2601, %v2589
        %v3022 = vpack.c.b16 %v2602, %v2590
        %v3023 = vpack.c.b16 %v2603, %v2591
        %v3024 = vpack.c.b16 %v2604, %v2592
        %v3025 = vpack.c.b16 %v2605, %v2593
        %v3026 = vpack.c.b16 %v2606, %v2594
        %v3027 = vpack.c.b16 %v2607, %v2595
        %v3028 = vpack.c.b16 %v2620, %v2608
        %v3029 = vpack.c.b16 %v2621, %v2609
        %v3030 = vpack.c.b16 %v2622, %v2610
        %v3031 = vpack.c.b16 %v2623, %v2611
        %v3032 = vpack.c.b16 %v2624, %v2612
        %v3033 = vpack.c.b16 %v2625, %v2613
        %v3034 = vpack.c.b16 %v2626, %v2614
        %v3035 = vpack.c.b16 %v2627, %v2615
        %v3036 = vpack.c.b16 %v2628, %v2616
        %v3037 = vpack.c.b16 %v2629, %v2617
        %v3038 = vpack.c.b16 %v2630, %v2618
        %v3039 = vpack.c.b16 %v2631, %v2619
        %v3040 = vpack.c.b16 %v2644, %v2632
        %v3041 = vpack.c.b16 %v2645, %v2633
        %v3042 = vpack.c.b16 %v2646, %v2634
        %v3043 = vpack.c.b16 %v2647, %v2635
        %v3044 = vpack.c.b16 %v2648, %v2636
        %v3045 = vpack.c.b16 %v2649, %v2637
        %v3046 = vpack.c.b16 %v2650, %v2638
        %v3047 = vpack.c.b16 %v2651, %v2639
        %v3048 = vpack.c.b16 %v2652, %v2640
        %v3049 = vpack.c.b16 %v2653, %v2641
        %v3050 = vpack.c.b16 %v2654, %v2642
        %v3051 = vpack.c.b16 %v2655, %v2643
        %v3052 = vpack.c.b16 %v2668, %v2656
        %v3053 = vpack.c.b16 %v2669, %v2657
        %v3054 = vpack.c.b16 %v2670, %v2658
        %v3055 = vpack.c.b16 %v2671, %v2659
        %v3056 = vpack.c.b16 %v2672, %v2660
        %v3057 = vpack.c.b16 %v2673, %v2661
        %v3058 = vpack.c.b16 %v2674, %v2662
        %v3059 = vpack.c.b16 %v2675, %v2663
        %v3060 = vpack.c.b16 %v2676, %v2664
        %v3061 = vpack.c.b16 %v2677, %v2665
        %v3062 = vpack.c.b16 %v2678, %v2666
        %v3063 = vpack.c.b16 %v2679, %v2667
        %v3064 = vpack.c.b16 %v2692, %v2680
        %v3065 = vpack.c.b16 %v2693, %v2681
        %v3066 = vpack.c.b16 %v2694, %v2682
        %v3067 = vpack.c.b16 %v2695, %v2683
        %v3068 = vpack.c.b16 %v2696, %v2684
        %v3069 = vpack.c.b16 %v2697, %v2685
        %v3070 = vpack.c.b16 %v2698, %v2686
        %v3071 = vpack.c.b16 %v2699, %v2687
        %v3072 = vpack.c.b16 %v2700, %v2688
        %v3073 = vpack.c.b16 %v2701, %v2689
        %v3074 = vpack.c.b16 %v2702, %v2690
        %v3075 = vpack.c.b16 %v2703, %v2691
        %v3076 = vpack.c.b16 %v2716, %v2704
        %v3077 = vpack.c.b16 %v2717, %v2705
        %v3078 = vpack.c.b16 %v2718, %v2706
        %v3079 = vpack.c.b16 %v2719, %v2707
        %v3080 = vpack.c.b16 %v2720, %v2708
        %v3081 = vpack.c.b16 %v2721, %v2709
        %v3082 = vpack.c.b16 %v2722, %v2710
        %v3083 = vpack.c.b16 %v2723, %v2711
        %v3084 = vpack.c.b16 %v2724, %v2712
        %v3085 = vpack.c.b16 %v2725, %v2713
        %v3086 = vpack.c.b16 %v2726, %v2714
        %v3087 = vpack.c.b16 %v2727, %v2715
        %v3088 = vpack.c.b16 %v2740, %v2728
        %v3089 = vpack.c.b16 %v2741, %v2729
        %v3090 = vpack.c.b16 %v2742, %v2730
        %v3091 = vpack.c.b16 %v2743, %v2731
        %v3092 = vpack.c.b16 %v2744, %v2732
        %v3093 = vpack.c.b16 %v2745, %v2733
        %v3094 = vpack.c.b16 %v2746, %v2734
        %v3095 = vpack.c.b16 %v2747, %v2735
        %v3096 = vpack.c.b16 %v2748, %v2736
        %v3097 = vpack.c.b16 %v2749, %v2737
        %v3098 = vpack.c.b16 %v2750, %v2738
        %v3099 = vpack.c.b16 %v2751, %v2739
        %v3100 = vpack.c.b16 %v2764, %v2752
        %v3101 = vpack.c.b16 %v2765, %v2753
        %v3102 = vpack.c.b16 %v2766, %v2754
        %v3103 = vpack.c.b16 %v2767, %v2755
        %v3104 = vpack.c.b16 %v2768, %v2756
        %v3105 = vpack.c.b16 %v2769, %v2757
        %v3106 = vpack.c.b16 %v2770, %v2758
        %v3107 = vpack.c.b16 %v2771, %v2759
        %v3108 = vpack.c.b16 %v2772, %v2760
        %v3109 = vpack.c.b16 %v2773, %v2761
        %v3110 = vpack.c.b16 %v2774, %v2762
        %v3111 = vpack.c.b16 %v2775, %v2763
        %v3112 = vpack.c.b16 %v2788, %v2776
        %v3113 = vpack.c.b16 %v2789, %v2777
        %v3114 = vpack.c.b16 %v2790, %v2778
        %v3115 = vpack.c.b16 %v2791, %v2779
        %v3116 = vpack.c.b16 %v2792, %v2780
        %v3117 = vpack.c.b16 %v2793, %v2781
        %v3118 = vpack.c.b16 %v2794, %v2782
        %v3119 = vpack.c.b16 %v2795, %v2783
        %v3120 = vpack.c.b16 %v2796, %v2784
        %v3121 = vpack.c.b16 %v2797, %v2785
        %v3122 = vpack.c.b16 %v2798, %v2786
        %v3123 = vpack.c.b16 %v2799, %v2787
        %v3124 = vpack.c.b16 %v2812, %v2800
        %v3125 = vpack.c.b16 %v2813, %v2801
        %v3126 = vpack.c.b16 %v2814, %v2802
        %v3127 = vpack.c.b16 %v2815, %v2803
        %v3128 = vpack.c.b16 %v2816, %v2804
        %v3129 = vpack.c.b16 %v2817, %v2805
        %v3130 = vpack.c.b16 %v2818, %v2806
        %v3131 = vpack.c.b16 %v2819, %v2807
        %v3132 = vpack.c.b16 %v2820, %v2808
        %v3133 = vpack.c.b16 %v2821, %v2809
        %v3134 = vpack.c.b16 %v2822, %v2810
        %v3135 = vpack.c.b16 %v2823, %v2811
        %v3136 = vpack.c.b16 %v2836, %v2824
        %v3137 = vpack.c.b16 %v2837, %v2825
        %v3138 = vpack.c.b16 %v2838, %v2826
        %v3139 = vpack.c.b16 %v2839, %v2827
        %v3140 = vpack.c.b16 %v2840, %v2828
        %v3141 = vpack.c.b16 %v2841, %v2829
        %v3142 = vpack.c.b16 %v2842, %v2830
        %v3143 = vpack.c.b16 %v2843, %v2831
        %v3144 = vpack.c.b16 %v2844, %v2832
        %v3145 = vpack.c.b16 %v2845, %v2833
        %v3146 = vpack.c.b16 %v2846, %v2834
        %v3147 = vpack.c.b16 %v2847, %v2835
        %v3148 = vpack.c.b16 %v2860, %v2848
        %v3149 = vpack.c.b16 %v2861, %v2849
        %v3150 = vpack.c.b16 %v2862, %v2850
        %v3151 = vpack.c.b16 %v2863, %v2851
        %v3152 = vpack.c.b16 %v2864, %v2852
        %v3153 = vpack.c.b16 %v2865, %v2853
        %v3154 = vpack.c.b16 %v2866, %v2854
        %v3155 = vpack.c.b16 %v2867, %v2855
        %v3156 = vpack.c.b16 %v2868, %v2856
        %v3157 = vpack.c.b16 %v2869, %v2857
        %v3158 = vpack.c.b16 %v2870, %v2858
        %v3159 = vpack.c.b16 %v2871, %v2859
        %3448 = vmatprep.subr.bf16.mxu0 %v2873
        %3449 = vmatpush1.bf16.msra.mxu0 %v2872
        %3450 = vmatprep.subr.bf16.mxu0 %v2885
        %3451 = vmatpush1.bf16.msra.mxu0 %v2884
        %3452 = vmatprep.subr.bf16.mxu0 %v2897
        %3453 = vmatpush1.bf16.msra.mxu0 %v2896
        %3454 = vmatprep.subr.bf16.mxu0 %v2909
        %3455 = vmatpush1.bf16.msra.mxu0 %v2908
        %3456 = vmatprep.subr.bf16.mxu0 %v2921
        %3457 = vmatpush1.bf16.msra.mxu0 %v2920
        %3458 = vmatprep.subr.bf16.mxu0 %v2933
        %3459 = vmatpush1.bf16.msra.mxu0 %v2932
        %3460 = vmatprep.subr.bf16.mxu0 %v2945
        %3461 = vmatpush1.bf16.msra.mxu0 %v2944
        %3462 = vmatprep.subr.bf16.mxu0 %v2957
        %3463 = vmatpush1.bf16.msra.mxu0 %v2956
        %3464 = vmatprep.subr.bf16.mxu0 %v2969
        %3465 = vmatpush1.bf16.msra.mxu0 %v2968
        %3466 = vmatprep.subr.bf16.mxu0 %v2981
        %3467 = vmatpush1.bf16.msra.mxu0 %v2980
        %3468 = vmatprep.subr.bf16.mxu0 %v2993
        %3469 = vmatpush1.bf16.msra.mxu0 %v2992
        %3470 = vmatprep.subr.bf16.mxu0 %v3005
        %3471 = vmatpush1.bf16.msra.mxu0 %v3004
        %3472 = vmatprep.subr.bf16.mxu0 %v3017
        %3473 = vmatpush1.bf16.msra.mxu0 %v3016
        %3474 = vmatprep.subr.bf16.mxu0 %v3029
        %3475 = vmatpush1.bf16.msra.mxu0 %v3028
        %3476 = vmatprep.subr.bf16.mxu0 %v3041
        %3477 = vmatpush1.bf16.msra.mxu0 %v3040
        %3478 = vmatprep.subr.bf16.mxu0 %v3053
        %3479 = vmatpush1.bf16.msra.mxu0 %v3052
        %3480 = vmatprep.mubr.bf16.mxu0 %v925
        %3481 = vmatmul.mubr.bf16.gmra.mrb[0].mxu0 %v924
        %v3482 = vpop.f32.mrb[0].mxu0
        %v3483 = vadd.f32 0.0, %v3482
        %v3484 = vpop.f32.mrb[0].mxu0
        %v3485 = vadd.f32 0.0, %v3484
        %v3486 = vpop.f32.mrb[0].mxu0
        %v3487 = vadd.f32 0.0, %v3486
        %v3488 = vpop.f32.mrb[0].mxu0
        %v3489 = vadd.f32 0.0, %v3488
        %3490 = vmatprep.mubr.bf16.mxu0 %v928
        %3491 = vmatmul.mubr.bf16.gmra.mrb[0].mxu0 %v927
        %v3492 = vpop.f32.mrb[0].mxu0
        %v3493 = vadd.f32 0.0, %v3492
        %v3494 = vpop.f32.mrb[0].mxu0
        %v3495 = vadd.f32 0.0, %v3494
        %v3496 = vpop.f32.mrb[0].mxu0
        %v3497 = vadd.f32 0.0, %v3496
        %v3498 = vpop.f32.mrb[0].mxu0
        %v3499 = vadd.f32 0.0, %v3498
        %3500 = vmatprep.mubr.bf16.mxu0 %v931
        %3501 = vmatmul.mubr.bf16.gmra.mrb[0].mxu0 %v930
        %v3502 = vpop.f32.mrb[0].mxu0
        %v3503 = vadd.f32 0.0, %v3502
        %v3504 = vpop.f32.mrb[0].mxu0
        %v3505 = vadd.f32 0.0, %v3504
        %v3506 = vpop.f32.mrb[0].mxu0
        %v3507 = vadd.f32 0.0, %v3506
        %v3508 = vpop.f32.mrb[0].mxu0
        %v3509 = vadd.f32 0.0, %v3508
        %3510 = vmatprep.mubr.bf16.mxu0 %v934
        %3511 = vmatmul.mubr.bf16.gmra.mrb[0].mxu0 %v933
        %v3512 = vpop.f32.mrb[0].mxu0
        %v3513 = vadd.f32 0.0, %v3512
        %v3514 = vpop.f32.mrb[0].mxu0
        %v3515 = vadd.f32 0.0, %v3514
        %v3516 = vpop.f32.mrb[0].mxu0
        %v3517 = vadd.f32 0.0, %v3516
        %v3518 = vpop.f32.mrb[0].mxu0
        %v3519 = vadd.f32 0.0, %v3518
        %3520 = vmatprep.mubr.bf16.mxu0 %v937
        %3521 = vmatmul.mubr.bf16.gmra.mrb[0].mxu0 %v936
        %v3522 = vpop.f32.mrb[0].mxu0
        %v3523 = vadd.f32 0.0, %v3522
        %v3524 = vpop.f32.mrb[0].mxu0
        %v3525 = vadd.f32 0.0, %v3524
        %v3526 = vpop.f32.mrb[0].mxu0
        %v3527 = vadd.f32 0.0, %v3526
        %v3528 = vpop.f32.mrb[0].mxu0
        %v3529 = vadd.f32 0.0, %v3528
        %3530 = vmatprep.mubr.bf16.mxu0 %v940
        %3531 = vmatmul.mubr.bf16.gmra.mrb[0].mxu0 %v939
        %v3532 = vpop.f32.mrb[0].mxu0
        %v3533 = vadd.f32 0.0, %v3532
        %v3534 = vpop.f32.mrb[0].mxu0
        %v3535 = vadd.f32 0.0, %v3534
        %v3536 = vpop.f32.mrb[0].mxu0
        %v3537 = vadd.f32 0.0, %v3536
        %v3538 = vpop.f32.mrb[0].mxu0
        %v3539 = vadd.f32 0.0, %v3538
        %3540 = vmatprep.mubr.bf16.mxu0 %v943
        %3541 = vmatmul.mubr.bf16.gmra.mrb[0].mxu0 %v942
        %v3542 = vpop.f32.mrb[0].mxu0
        %v3543 = vadd.f32 0.0, %v3542
        %v3544 = vpop.f32.mrb[0].mxu0
        %v3545 = vadd.f32 0.0, %v3544
        %v3546 = vpop.f32.mrb[0].mxu0
        %v3547 = vadd.f32 0.0, %v3546
        %v3548 = vpop.f32.mrb[0].mxu0
        %v3549 = vadd.f32 0.0, %v3548
        %3550 = vmatprep.mubr.bf16.mxu0 %v946
        %3551 = vmatmul.mubr.bf16.gmra.mrb[0].mxu0 %v945
        %v3552 = vpop.f32.mrb[0].mxu0
        %v3553 = vadd.f32 0.0, %v3552
        %v3554 = vpop.f32.mrb[0].mxu0
        %v3555 = vadd.f32 0.0, %v3554
        %v3556 = vpop.f32.mrb[0].mxu0
        %v3557 = vadd.f32 0.0, %v3556
        %v3558 = vpop.f32.mrb[0].mxu0
        %v3559 = vadd.f32 0.0, %v3558
        %3560 = vdwg.mxu0
        %3561 = vmatprep.subr.bf16.mxu0 %v3065
        %3562 = vmatpush1.bf16.msra.mxu0 %v3064
        %3563 = vmatprep.subr.bf16.mxu0 %v3077
        %3564 = vmatpush1.bf16.msra.mxu0 %v3076
        %3565 = vmatprep.subr.bf16.mxu0 %v3089
        %3566 = vmatpush1.bf16.msra.mxu0 %v3088
        %3567 = vmatprep.subr.bf16.mxu0 %v3101
        %3568 = vmatpush1.bf16.msra.mxu0 %v3100
        %3569 = vmatprep.subr.bf16.mxu0 %v3113
        %3570 = vmatpush1.bf16.msra.mxu0 %v3112
        %3571 = vmatprep.subr.bf16.mxu0 %v3125
        %3572 = vmatpush1.bf16.msra.mxu0 %v3124
        %3573 = vmatprep.subr.bf16.mxu0 %v3137
        %3574 = vmatpush1.bf16.msra.mxu0 %v3136
        %3575 = vmatprep.subr.bf16.mxu0 %v3149
        %3576 = vmatpush1.bf16.msra.mxu0 %v3148
        %3577 = vmatprep.subr.bf16.mxu0 0
        %3578 = vmatpush1.bf16.msra.mxu0 0
        %3579 = vmatprep.subr.bf16.mxu0 0
        %3580 = vmatpush1.bf16.msra.mxu0 0
        %3581 = vmatprep.subr.bf16.mxu0 0
        %3582 = vmatpush1.bf16.msra.mxu0 0
        %3583 = vmatprep.subr.bf16.mxu0 0
        %3584 = vmatpush1.bf16.msra.mxu0 0
        %3585 = vmatprep.subr.bf16.mxu0 0
        %3586 = vmatpush1.bf16.msra.mxu0 0
        %3587 = vmatprep.subr.bf16.mxu0 0
        %3588 = vmatpush1.bf16.msra.mxu0 0
        %3589 = vmatprep.subr.bf16.mxu0 0
        %3590 = vmatpush1.bf16.msra.mxu0 0
        %3591 = vmatprep.subr.bf16.mxu0 0
        %3592 = vmatpush1.bf16.msra.mxu0 0
        %3593 = vmatprep.mubr.bf16.mxu0 0
        %3594 = vmatmul.mubr.bf16.gmra.mrb[0].mxu0 %v926
        %v3595 = vpop.f32.mrb[0].mxu0
        %v3596 = vadd.f32 %v3483, %v3595
        %v3597 = vpop.f32.mrb[0].mxu0
        %v3598 = vadd.f32 %v3485, %v3597
        %v3599 = vpop.f32.mrb[0].mxu0
        %v3600 = vadd.f32 %v3487, %v3599
        %v3601 = vpop.f32.mrb[0].mxu0
        %v3602 = vadd.f32 %v3489, %v3601
        %3603 = vmatprep.mubr.bf16.mxu0 0
        %3604 = vmatmul.mubr.bf16.gmra.mrb[0].mxu0 %v929
        %v3605 = vpop.f32.mrb[0].mxu0
        %v3606 = vadd.f32 %v3493, %v3605
        %v3607 = vpop.f32.mrb[0].mxu0
        %v3608 = vadd.f32 %v3495, %v3607
        %v3609 = vpop.f32.mrb[0].mxu0
        %v3610 = vadd.f32 %v3497, %v3609
        %v3611 = vpop.f32.mrb[0].mxu0
        %v3612 = vadd.f32 %v3499, %v3611
        %3613 = vmatprep.mubr.bf16.mxu0 0
        %3614 = vmatmul.mubr.bf16.gmra.mrb[0].mxu0 %v932
        %v3615 = vpop.f32.mrb[0].mxu0
        %v3616 = vadd.f32 %v3503, %v3615
        %v3617 = vpop.f32.mrb[0].mxu0
        %v3618 = vadd.f32 %v3505, %v3617
        %v3619 = vpop.f32.mrb[0].mxu0
        %v3620 = vadd.f32 %v3507, %v3619
        %v3621 = vpop.f32.mrb[0].mxu0
        %v3622 = vadd.f32 %v3509, %v3621
        %3623 = vmatprep.mubr.bf16.mxu0 0
        %3624 = vmatmul.mubr.bf16.gmra.mrb[0].mxu0 %v935
        %v3625 = vpop.f32.mrb[0].mxu0
        %v3626 = vadd.f32 %v3513, %v3625
        %v3627 = vpop.f32.mrb[0].mxu0
        %v3628 = vadd.f32 %v3515, %v3627
        %v3629 = vpop.f32.mrb[0].mxu0
        %v3630 = vadd.f32 %v3517, %v3629
        %v3631 = vpop.f32.mrb[0].mxu0
        %v3632 = vadd.f32 %v3519, %v3631
        %3633 = vmatprep.mubr.bf16.mxu0 0
        %3634 = vmatmul.mubr.bf16.gmra.mrb[0].mxu0 %v938
        %v3635 = vpop.f32.mrb[0].mxu0
        %v3636 = vadd.f32 %v3523, %v3635
        %v3637 = vpop.f32.mrb[0].mxu0
        %v3638 = vadd.f32 %v3525, %v3637
        %v3639 = vpop.f32.mrb[0].mxu0
        %v3640 = vadd.f32 %v3527, %v3639
        %v3641 = vpop.f32.mrb[0].mxu0
        %v3642 = vadd.f32 %v3529, %v3641
        %3643 = vmatprep.mubr.bf16.mxu0 0
        %3644 = vmatmul.mubr.bf16.gmra.mrb[0].mxu0 %v941
        %v3645 = vpop.f32.mrb[0].mxu0
        %v3646 = vadd.f32 %v3533, %v3645
        %v3647 = vpop.f32.mrb[0].mxu0
        %v3648 = vadd.f32 %v3535, %v3647
        %v3649 = vpop.f32.mrb[0].mxu0
        %v3650 = vadd.f32 %v3537, %v3649
        %v3651 = vpop.f32.mrb[0].mxu0
        %v3652 = vadd.f32 %v3539, %v3651
        %3653 = vmatprep.mubr.bf16.mxu0 0
        %3654 = vmatmul.mubr.bf16.gmra.mrb[0].mxu0 %v944
        %v3655 = vpop.f32.mrb[0].mxu0
        %v3656 = vadd.f32 %v3543, %v3655
        %v3657 = vpop.f32.mrb[0].mxu0
        %v3658 = vadd.f32 %v3545, %v3657
        %v3659 = vpop.f32.mrb[0].mxu0
        %v3660 = vadd.f32 %v3547, %v3659
        %v3661 = vpop.f32.mrb[0].mxu0
        %v3662 = vadd.f32 %v3549, %v3661
        %3663 = vmatprep.mubr.bf16.mxu0 0
        %3664 = vmatmul.mubr.bf16.gmra.mrb[0].mxu0 %v947
        %v3665 = vpop.f32.mrb[0].mxu0
        %v3666 = vadd.f32 %v3553, %v3665
        %v3667 = vpop.f32.mrb[0].mxu0
        %v3668 = vadd.f32 %v3555, %v3667
        %v3669 = vpop.f32.mrb[0].mxu0
        %v3670 = vadd.f32 %v3557, %v3669
        %v3671 = vpop.f32.mrb[0].mxu0
        %v3672 = vadd.f32 %v3559, %v3671
        %3673 = vdwg.mxu0
        %3674 = vmatprep.subr.bf16.mxu0 %v2875
        %3675 = vmatpush1.bf16.msra.mxu0 %v2874
        %3676 = vmatprep.subr.bf16.mxu0 %v2887
        %3677 = vmatpush1.bf16.msra.mxu0 %v2886
        %3678 = vmatprep.subr.bf16.mxu0 %v2899
        %3679 = vmatpush1.bf16.msra.mxu0 %v2898
        %3680 = vmatprep.subr.bf16.mxu0 %v2911
        %3681 = vmatpush1.bf16.msra.mxu0 %v2910
        %3682 = vmatprep.subr.bf16.mxu0 %v2923
        %3683 = vmatpush1.bf16.msra.mxu0 %v2922
        %3684 = vmatprep.subr.bf16.mxu0 %v2935
        %3685 = vmatpush1.bf16.msra.mxu0 %v2934
        %3686 = vmatprep.subr.bf16.mxu0 %v2947
        %3687 = vmatpush1.bf16.msra.mxu0 %v2946
        %3688 = vmatprep.subr.bf16.mxu0 %v2959
        %3689 = vmatpush1.bf16.msra.mxu0 %v2958
        %3690 = vmatprep.subr.bf16.mxu0 %v2971
        %3691 = vmatpush1.bf16.msra.mxu0 %v2970
        %3692 = vmatprep.subr.bf16.mxu0 %v2983
        %3693 = vmatpush1.bf16.msra.mxu0 %v2982
        %3694 = vmatprep.subr.bf16.mxu0 %v2995
        %3695 = vmatpush1.bf16.msra.mxu0 %v2994
        %3696 = vmatprep.subr.bf16.mxu0 %v3007
        %3697 = vmatpush1.bf16.msra.mxu0 %v3006
        %3698 = vmatprep.subr.bf16.mxu0 %v3019
        %3699 = vmatpush1.bf16.msra.mxu0 %v3018
        %3700 = vmatprep.subr.bf16.mxu0 %v3031
        %3701 = vmatpush1.bf16.msra.mxu0 %v3030
        %3702 = vmatprep.subr.bf16.mxu0 %v3043
        %3703 = vmatpush1.bf16.msra.mxu0 %v3042
        %3704 = vmatprep.subr.bf16.mxu0 %v3055
        %3705 = vmatpush1.bf16.msra.mxu0 %v3054
        %3706 = vmatprep.mubr.bf16.mxu0 %v925
        %3707 = vmatmul.mubr.bf16.gmra.mrb[0].mxu0 %v924
        %v3708 = vpop.f32.mrb[0].mxu0
        %v3709 = vadd.f32 0.0, %v3708
        %v3710 = vpop.f32.mrb[0].mxu0
        %v3711 = vadd.f32 0.0, %v3710
        %v3712 = vpop.f32.mrb[0].mxu0
        %v3713 = vadd.f32 0.0, %v3712
        %v3714 = vpop.f32.mrb[0].mxu0
        %v3715 = vadd.f32 0.0, %v3714
        %3716 = vmatprep.mubr.bf16.mxu0 %v928
        %3717 = vmatmul.mubr.bf16.gmra.mrb[0].mxu0 %v927
        %v3718 = vpop.f32.mrb[0].mxu0
        %v3719 = vadd.f32 0.0, %v3718
        %v3720 = vpop.f32.mrb[0].mxu0
        %v3721 = vadd.f32 0.0, %v3720
        %v3722 = vpop.f32.mrb[0].mxu0
        %v3723 = vadd.f32 0.0, %v3722
        %v3724 = vpop.f32.mrb[0].mxu0
        %v3725 = vadd.f32 0.0, %v3724
        %3726 = vmatprep.mubr.bf16.mxu0 %v931
        %3727 = vmatmul.mubr.bf16.gmra.mrb[0].mxu0 %v930
        %v3728 = vpop.f32.mrb[0].mxu0
        %v3729 = vadd.f32 0.0, %v3728
        %v3730 = vpop.f32.mrb[0].mxu0
        %v3731 = vadd.f32 0.0, %v3730
        %v3732 = vpop.f32.mrb[0].mxu0
        %v3733 = vadd.f32 0.0, %v3732
        %v3734 = vpop.f32.mrb[0].mxu0
        %v3735 = vadd.f32 0.0, %v3734
        %3736 = vmatprep.mubr.bf16.mxu0 %v934
        %3737 = vmatmul.mubr.bf16.gmra.mrb[0].mxu0 %v933
        %v3738 = vpop.f32.mrb[0].mxu0
        %v3739 = vadd.f32 0.0, %v3738
        %v3740 = vpop.f32.mrb[0].mxu0
        %v3741 = vadd.f32 0.0, %v3740
        %v3742 = vpop.f32.mrb[0].mxu0
        %v3743 = vadd.f32 0.0, %v3742
        %v3744 = vpop.f32.mrb[0].mxu0
        %v3745 = vadd.f32 0.0, %v3744
        %3746 = vmatprep.mubr.bf16.mxu0 %v937
        %3747 = vmatmul.mubr.bf16.gmra.mrb[0].mxu0 %v936
        %v3748 = vpop.f32.mrb[0].mxu0
        %v3749 = vadd.f32 0.0, %v3748
        %v3750 = vpop.f32.mrb[0].mxu0
        %v3751 = vadd.f32 0.0, %v3750
        %v3752 = vpop.f32.mrb[0].mxu0
        %v3753 = vadd.f32 0.0, %v3752
        %v3754 = vpop.f32.mrb[0].mxu0
        %v3755 = vadd.f32 0.0, %v3754
        %3756 = vmatprep.mubr.bf16.mxu0 %v940
        %3757 = vmatmul.mubr.bf16.gmra.mrb[0].mxu0 %v939
        %v3758 = vpop.f32.mrb[0].mxu0
        %v3759 = vadd.f32 0.0, %v3758
        %v3760 = vpop.f32.mrb[0].mxu0
        %v3761 = vadd.f32 0.0, %v3760
        %v3762 = vpop.f32.mrb[0].mxu0
        %v3763 = vadd.f32 0.0, %v3762
        %v3764 = vpop.f32.mrb[0].mxu0
        %v3765 = vadd.f32 0.0, %v3764
        %3766 = vmatprep.mubr.bf16.mxu0 %v943
        %3767 = vmatmul.mubr.bf16.gmra.mrb[0].mxu0 %v942
        %v3768 = vpop.f32.mrb[0].mxu0
        %v3769 = vadd.f32 0.0, %v3768
        %v3770 = vpop.f32.mrb[0].mxu0
        %v3771 = vadd.f32 0.0, %v3770
        %v3772 = vpop.f32.mrb[0].mxu0
        %v3773 = vadd.f32 0.0, %v3772
        %v3774 = vpop.f32.mrb[0].mxu0
        %v3775 = vadd.f32 0.0, %v3774
        %3776 = vmatprep.mubr.bf16.mxu0 %v946
        %3777 = vmatmul.mubr.bf16.gmra.mrb[0].mxu0 %v945
        %v3778 = vpop.f32.mrb[0].mxu0
        %v3779 = vadd.f32 0.0, %v3778
        %v3780 = vpop.f32.mrb[0].mxu0
        %v3781 = vadd.f32 0.0, %v3780
        %v3782 = vpop.f32.mrb[0].mxu0
        %v3783 = vadd.f32 0.0, %v3782
        %v3784 = vpop.f32.mrb[0].mxu0
        %v3785 = vadd.f32 0.0, %v3784
        %3786 = vdwg.mxu0
        %3787 = vmatprep.subr.bf16.mxu0 %v3067
        %3788 = vmatpush1.bf16.msra.mxu0 %v3066
        %3789 = vmatprep.subr.bf16.mxu0 %v3079
        %3790 = vmatpush1.bf16.msra.mxu0 %v3078
        %3791 = vmatprep.subr.bf16.mxu0 %v3091
        %3792 = vmatpush1.bf16.msra.mxu0 %v3090
        %3793 = vmatprep.subr.bf16.mxu0 %v3103
        %3794 = vmatpush1.bf16.msra.mxu0 %v3102
        %3795 = vmatprep.subr.bf16.mxu0 %v3115
        %3796 = vmatpush1.bf16.msra.mxu0 %v3114
        %3797 = vmatprep.subr.bf16.mxu0 %v3127
        %3798 = vmatpush1.bf16.msra.mxu0 %v3126
        %3799 = vmatprep.subr.bf16.mxu0 %v3139
        %3800 = vmatpush1.bf16.msra.mxu0 %v3138
        %3801 = vmatprep.subr.bf16.mxu0 %v3151
        %3802 = vmatpush1.bf16.msra.mxu0 %v3150
        %3803 = vmatprep.subr.bf16.mxu0 0
        %3804 = vmatpush1.bf16.msra.mxu0 0
        %3805 = vmatprep.subr.bf16.mxu0 0
        %3806 = vmatpush1.bf16.msra.mxu0 0
        %3807 = vmatprep.subr.bf16.mxu0 0
        %3808 = vmatpush1.bf16.msra.mxu0 0
        %3809 = vmatprep.subr.bf16.mxu0 0
        %3810 = vmatpush1.bf16.msra.mxu0 0
        %3811 = vmatprep.subr.bf16.mxu0 0
        %3812 = vmatpush1.bf16.msra.mxu0 0
        %3813 = vmatprep.subr.bf16.mxu0 0
        %3814 = vmatpush1.bf16.msra.mxu0 0
        %3815 = vmatprep.subr.bf16.mxu0 0
        %3816 = vmatpush1.bf16.msra.mxu0 0
        %3817 = vmatprep.subr.bf16.mxu0 0
        %3818 = vmatpush1.bf16.msra.mxu0 0
        %3819 = vmatprep.mubr.bf16.mxu0 0
        %3820 = vmatmul.mubr.bf16.gmra.mrb[0].mxu0 %v926
        %v3821 = vpop.f32.mrb[0].mxu0
        %v3822 = vadd.f32 %v3709, %v3821
        %v3823 = vpop.f32.mrb[0].mxu0
        %v3824 = vadd.f32 %v3711, %v3823
        %v3825 = vpop.f32.mrb[0].mxu0
        %v3826 = vadd.f32 %v3713, %v3825
        %v3827 = vpop.f32.mrb[0].mxu0
        %v3828 = vadd.f32 %v3715, %v3827
        %3829 = vmatprep.mubr.bf16.mxu0 0
        %3830 = vmatmul.mubr.bf16.gmra.mrb[0].mxu0 %v929
        %v3831 = vpop.f32.mrb[0].mxu0
        %v3832 = vadd.f32 %v3719, %v3831
        %v3833 = vpop.f32.mrb[0].mxu0
        %v3834 = vadd.f32 %v3721, %v3833
        %v3835 = vpop.f32.mrb[0].mxu0
        %v3836 = vadd.f32 %v3723, %v3835
        %v3837 = vpop.f32.mrb[0].mxu0
        %v3838 = vadd.f32 %v3725, %v3837
        %3839 = vmatprep.mubr.bf16.mxu0 0
        %3840 = vmatmul.mubr.bf16.gmra.mrb[0].mxu0 %v932
        %v3841 = vpop.f32.mrb[0].mxu0
        %v3842 = vadd.f32 %v3729, %v3841
        %v3843 = vpop.f32.mrb[0].mxu0
        %v3844 = vadd.f32 %v3731, %v3843
        %v3845 = vpop.f32.mrb[0].mxu0
        %v3846 = vadd.f32 %v3733, %v3845
        %v3847 = vpop.f32.mrb[0].mxu0
        %v3848 = vadd.f32 %v3735, %v3847
        %3849 = vmatprep.mubr.bf16.mxu0 0
        %3850 = vmatmul.mubr.bf16.gmra.mrb[0].mxu0 %v935
        %v3851 = vpop.f32.mrb[0].mxu0
        %v3852 = vadd.f32 %v3739, %v3851
        %v3853 = vpop.f32.mrb[0].mxu0
        %v3854 = vadd.f32 %v3741, %v3853
        %v3855 = vpop.f32.mrb[0].mxu0
        %v3856 = vadd.f32 %v3743, %v3855
        %v3857 = vpop.f32.mrb[0].mxu0
        %v3858 = vadd.f32 %v3745, %v3857
        %3859 = vmatprep.mubr.bf16.mxu0 0
        %3860 = vmatmul.mubr.bf16.gmra.mrb[0].mxu0 %v938
        %v3861 = vpop.f32.mrb[0].mxu0
        %v3862 = vadd.f32 %v3749, %v3861
        %v3863 = vpop.f32.mrb[0].mxu0
        %v3864 = vadd.f32 %v3751, %v3863
        %v3865 = vpop.f32.mrb[0].mxu0
        %v3866 = vadd.f32 %v3753, %v3865
        %v3867 = vpop.f32.mrb[0].mxu0
        %v3868 = vadd.f32 %v3755, %v3867
        %3869 = vmatprep.mubr.bf16.mxu0 0
        %3870 = vmatmul.mubr.bf16.gmra.mrb[0].mxu0 %v941
        %v3871 = vpop.f32.mrb[0].mxu0
        %v3872 = vadd.f32 %v3759, %v3871
        %v3873 = vpop.f32.mrb[0].mxu0
        %v3874 = vadd.f32 %v3761, %v3873
        %v3875 = vpop.f32.mrb[0].mxu0
        %v3876 = vadd.f32 %v3763, %v3875
        %v3877 = vpop.f32.mrb[0].mxu0
        %v3878 = vadd.f32 %v3765, %v3877
        %3879 = vmatprep.mubr.bf16.mxu0 0
        %3880 = vmatmul.mubr.bf16.gmra.mrb[0].mxu0 %v944
        %v3881 = vpop.f32.mrb[0].mxu0
        %v3882 = vadd.f32 %v3769, %v3881
        %v3883 = vpop.f32.mrb[0].mxu0
        %v3884 = vadd.f32 %v3771, %v3883
        %v3885 = vpop.f32.mrb[0].mxu0
        %v3886 = vadd.f32 %v3773, %v3885
        %v3887 = vpop.f32.mrb[0].mxu0
        %v3888 = vadd.f32 %v3775, %v3887
        %3889 = vmatprep.mubr.bf16.mxu0 0
        %3890 = vmatmul.mubr.bf16.gmra.mrb[0].mxu0 %v947
        %v3891 = vpop.f32.mrb[0].mxu0
        %v3892 = vadd.f32 %v3779, %v3891
        %v3893 = vpop.f32.mrb[0].mxu0
        %v3894 = vadd.f32 %v3781, %v3893
        %v3895 = vpop.f32.mrb[0].mxu0
        %v3896 = vadd.f32 %v3783, %v3895
        %v3897 = vpop.f32.mrb[0].mxu0
        %v3898 = vadd.f32 %v3785, %v3897
        %3899 = vdwg.mxu0
        %3900 = vmatprep.subr.bf16.mxu0 %v2877
        %3901 = vmatpush1.bf16.msra.mxu0 %v2876
        %3902 = vmatprep.subr.bf16.mxu0 %v2889
        %3903 = vmatpush1.bf16.msra.mxu0 %v2888
        %3904 = vmatprep.subr.bf16.mxu0 %v2901
        %3905 = vmatpush1.bf16.msra.mxu0 %v2900
        %3906 = vmatprep.subr.bf16.mxu0 %v2913
        %3907 = vmatpush1.bf16.msra.mxu0 %v2912
        %3908 = vmatprep.subr.bf16.mxu0 %v2925
        %3909 = vmatpush1.bf16.msra.mxu0 %v2924
        %3910 = vmatprep.subr.bf16.mxu0 %v2937
        %3911 = vmatpush1.bf16.msra.mxu0 %v2936
        %3912 = vmatprep.subr.bf16.mxu0 %v2949
        %3913 = vmatpush1.bf16.msra.mxu0 %v2948
        %3914 = vmatprep.subr.bf16.mxu0 %v2961
        %3915 = vmatpush1.bf16.msra.mxu0 %v2960
        %3916 = vmatprep.subr.bf16.mxu0 %v2973
        %3917 = vmatpush1.bf16.msra.mxu0 %v2972
        %3918 = vmatprep.subr.bf16.mxu0 %v2985
        %3919 = vmatpush1.bf16.msra.mxu0 %v2984
        %3920 = vmatprep.subr.bf16.mxu0 %v2997
        %3921 = vmatpush1.bf16.msra.mxu0 %v2996
        %3922 = vmatprep.subr.bf16.mxu0 %v3009
        %3923 = vmatpush1.bf16.msra.mxu0 %v3008
        %3924 = vmatprep.subr.bf16.mxu0 %v3021
        %3925 = vmatpush1.bf16.msra.mxu0 %v3020
        %3926 = vmatprep.subr.bf16.mxu0 %v3033
        %3927 = vmatpush1.bf16.msra.mxu0 %v3032
        %3928 = vmatprep.subr.bf16.mxu0 %v3045
        %3929 = vmatpush1.bf16.msra.mxu0 %v3044
        %3930 = vmatprep.subr.bf16.mxu0 %v3057
        %3931 = vmatpush1.bf16.msra.mxu0 %v3056
        %3932 = vmatprep.mubr.bf16.mxu0 %v925
        %3933 = vmatmul.mubr.bf16.gmra.mrb[0].mxu0 %v924
        %v3934 = vpop.f32.mrb[0].mxu0
        %v3935 = vadd.f32 0.0, %v3934
        %v3936 = vpop.f32.mrb[0].mxu0
        %v3937 = vadd.f32 0.0, %v3936
        %v3938 = vpop.f32.mrb[0].mxu0
        %v3939 = vadd.f32 0.0, %v3938
        %v3940 = vpop.f32.mrb[0].mxu0
        %v3941 = vadd.f32 0.0, %v3940
        %3942 = vmatprep.mubr.bf16.mxu0 %v928
        %3943 = vmatmul.mubr.bf16.gmra.mrb[0].mxu0 %v927
        %v3944 = vpop.f32.mrb[0].mxu0
        %v3945 = vadd.f32 0.0, %v3944
        %v3946 = vpop.f32.mrb[0].mxu0
        %v3947 = vadd.f32 0.0, %v3946
        %v3948 = vpop.f32.mrb[0].mxu0
        %v3949 = vadd.f32 0.0, %v3948
        %v3950 = vpop.f32.mrb[0].mxu0
        %v3951 = vadd.f32 0.0, %v3950
        %3952 = vmatprep.mubr.bf16.mxu0 %v931
        %3953 = vmatmul.mubr.bf16.gmra.mrb[0].mxu0 %v930
        %v3954 = vpop.f32.mrb[0].mxu0
        %v3955 = vadd.f32 0.0, %v3954
        %v3956 = vpop.f32.mrb[0].mxu0
        %v3957 = vadd.f32 0.0, %v3956
        %v3958 = vpop.f32.mrb[0].mxu0
        %v3959 = vadd.f32 0.0, %v3958
        %v3960 = vpop.f32.mrb[0].mxu0
        %v3961 = vadd.f32 0.0, %v3960
        %3962 = vmatprep.mubr.bf16.mxu0 %v934
        %3963 = vmatmul.mubr.bf16.gmra.mrb[0].mxu0 %v933
        %v3964 = vpop.f32.mrb[0].mxu0
        %v3965 = vadd.f32 0.0, %v3964
        %v3966 = vpop.f32.mrb[0].mxu0
        %v3967 = vadd.f32 0.0, %v3966
        %v3968 = vpop.f32.mrb[0].mxu0
        %v3969 = vadd.f32 0.0, %v3968
        %v3970 = vpop.f32.mrb[0].mxu0
        %v3971 = vadd.f32 0.0, %v3970
        %3972 = vmatprep.mubr.bf16.mxu0 %v937
        %3973 = vmatmul.mubr.bf16.gmra.mrb[0].mxu0 %v936
        %v3974 = vpop.f32.mrb[0].mxu0
        %v3975 = vadd.f32 0.0, %v3974
        %v3976 = vpop.f32.mrb[0].mxu0
        %v3977 = vadd.f32 0.0, %v3976
        %v3978 = vpop.f32.mrb[0].mxu0
        %v3979 = vadd.f32 0.0, %v3978
        %v3980 = vpop.f32.mrb[0].mxu0
        %v3981 = vadd.f32 0.0, %v3980
        %3982 = vmatprep.mubr.bf16.mxu0 %v940
        %3983 = vmatmul.mubr.bf16.gmra.mrb[0].mxu0 %v939
        %v3984 = vpop.f32.mrb[0].mxu0
        %v3985 = vadd.f32 0.0, %v3984
        %v3986 = vpop.f32.mrb[0].mxu0
        %v3987 = vadd.f32 0.0, %v3986
        %v3988 = vpop.f32.mrb[0].mxu0
        %v3989 = vadd.f32 0.0, %v3988
        %v3990 = vpop.f32.mrb[0].mxu0
        %v3991 = vadd.f32 0.0, %v3990
        %3992 = vmatprep.mubr.bf16.mxu0 %v943
        %3993 = vmatmul.mubr.bf16.gmra.mrb[0].mxu0 %v942
        %v3994 = vpop.f32.mrb[0].mxu0
        %v3995 = vadd.f32 0.0, %v3994
        %v3996 = vpop.f32.mrb[0].mxu0
        %v3997 = vadd.f32 0.0, %v3996
        %v3998 = vpop.f32.mrb[0].mxu0
        %v3999 = vadd.f32 0.0, %v3998
        %v4000 = vpop.f32.mrb[0].mxu0
        %v4001 = vadd.f32 0.0, %v4000
        %4002 = vmatprep.mubr.bf16.mxu0 %v946
        %4003 = vmatmul.mubr.bf16.gmra.mrb[0].mxu0 %v945
        %v4004 = vpop.f32.mrb[0].mxu0
        %v4005 = vadd.f32 0.0, %v4004
        %v4006 = vpop.f32.mrb[0].mxu0
        %v4007 = vadd.f32 0.0, %v4006
        %v4008 = vpop.f32.mrb[0].mxu0
        %v4009 = vadd.f32 0.0, %v4008
        %v4010 = vpop.f32.mrb[0].mxu0
        %v4011 = vadd.f32 0.0, %v4010
        %4012 = vdwg.mxu0
        %4013 = vmatprep.subr.bf16.mxu0 %v3069
        %4014 = vmatpush1.bf16.msra.mxu0 %v3068
        %4015 = vmatprep.subr.bf16.mxu0 %v3081
        %4016 = vmatpush1.bf16.msra.mxu0 %v3080
        %4017 = vmatprep.subr.bf16.mxu0 %v3093
        %4018 = vmatpush1.bf16.msra.mxu0 %v3092
        %4019 = vmatprep.subr.bf16.mxu0 %v3105
        %4020 = vmatpush1.bf16.msra.mxu0 %v3104
        %4021 = vmatprep.subr.bf16.mxu0 %v3117
        %4022 = vmatpush1.bf16.msra.mxu0 %v3116
        %4023 = vmatprep.subr.bf16.mxu0 %v3129
        %4024 = vmatpush1.bf16.msra.mxu0 %v3128
        %4025 = vmatprep.subr.bf16.mxu0 %v3141
        %4026 = vmatpush1.bf16.msra.mxu0 %v3140
        %4027 = vmatprep.subr.bf16.mxu0 %v3153
        %4028 = vmatpush1.bf16.msra.mxu0 %v3152
        %4029 = vmatprep.subr.bf16.mxu0 0
        %4030 = vmatpush1.bf16.msra.mxu0 0
        %4031 = vmatprep.subr.bf16.mxu0 0
        %4032 = vmatpush1.bf16.msra.mxu0 0
        %4033 = vmatprep.subr.bf16.mxu0 0
        %4034 = vmatpush1.bf16.msra.mxu0 0
        %4035 = vmatprep.subr.bf16.mxu0 0
        %4036 = vmatpush1.bf16.msra.mxu0 0
        %4037 = vmatprep.subr.bf16.mxu0 0
        %4038 = vmatpush1.bf16.msra.mxu0 0
        %4039 = vmatprep.subr.bf16.mxu0 0
        %4040 = vmatpush1.bf16.msra.mxu0 0
        %4041 = vmatprep.subr.bf16.mxu0 0
        %4042 = vmatpush1.bf16.msra.mxu0 0
        %4043 = vmatprep.subr.bf16.mxu0 0
        %4044 = vmatpush1.bf16.msra.mxu0 0
        %4045 = vmatprep.mubr.bf16.mxu0 0
        %4046 = vmatmul.mubr.bf16.gmra.mrb[0].mxu0 %v926
        %v4047 = vpop.f32.mrb[0].mxu0
        %v4048 = vadd.f32 %v3935, %v4047
        %v4049 = vpop.f32.mrb[0].mxu0
        %v4050 = vadd.f32 %v3937, %v4049
        %v4051 = vpop.f32.mrb[0].mxu0
        %v4052 = vadd.f32 %v3939, %v4051
        %v4053 = vpop.f32.mrb[0].mxu0
        %v4054 = vadd.f32 %v3941, %v4053
        %4055 = vmatprep.mubr.bf16.mxu0 0
        %4056 = vmatmul.mubr.bf16.gmra.mrb[0].mxu0 %v929
        %v4057 = vpop.f32.mrb[0].mxu0
        %v4058 = vadd.f32 %v3945, %v4057
        %v4059 = vpop.f32.mrb[0].mxu0
        %v4060 = vadd.f32 %v3947, %v4059
        %v4061 = vpop.f32.mrb[0].mxu0
        %v4062 = vadd.f32 %v3949, %v4061
        %v4063 = vpop.f32.mrb[0].mxu0
        %v4064 = vadd.f32 %v3951, %v4063
        %4065 = vmatprep.mubr.bf16.mxu0 0
        %4066 = vmatmul.mubr.bf16.gmra.mrb[0].mxu0 %v932
        %v4067 = vpop.f32.mrb[0].mxu0
        %v4068 = vadd.f32 %v3955, %v4067
        %v4069 = vpop.f32.mrb[0].mxu0
        %v4070 = vadd.f32 %v3957, %v4069
        %v4071 = vpop.f32.mrb[0].mxu0
        %v4072 = vadd.f32 %v3959, %v4071
        %v4073 = vpop.f32.mrb[0].mxu0
        %v4074 = vadd.f32 %v3961, %v4073
        %4075 = vmatprep.mubr.bf16.mxu0 0
        %4076 = vmatmul.mubr.bf16.gmra.mrb[0].mxu0 %v935
        %v4077 = vpop.f32.mrb[0].mxu0
        %v4078 = vadd.f32 %v3965, %v4077
        %v4079 = vpop.f32.mrb[0].mxu0
        %v4080 = vadd.f32 %v3967, %v4079
        %v4081 = vpop.f32.mrb[0].mxu0
        %v4082 = vadd.f32 %v3969, %v4081
        %v4083 = vpop.f32.mrb[0].mxu0
        %v4084 = vadd.f32 %v3971, %v4083
        %4085 = vmatprep.mubr.bf16.mxu0 0
        %4086 = vmatmul.mubr.bf16.gmra.mrb[0].mxu0 %v938
        %v4087 = vpop.f32.mrb[0].mxu0
        %v4088 = vadd.f32 %v3975, %v4087
        %v4089 = vpop.f32.mrb[0].mxu0
        %v4090 = vadd.f32 %v3977, %v4089
        %v4091 = vpop.f32.mrb[0].mxu0
        %v4092 = vadd.f32 %v3979, %v4091
        %v4093 = vpop.f32.mrb[0].mxu0
        %v4094 = vadd.f32 %v3981, %v4093
        %4095 = vmatprep.mubr.bf16.mxu0 0
        %4096 = vmatmul.mubr.bf16.gmra.mrb[0].mxu0 %v941
        %v4097 = vpop.f32.mrb[0].mxu0
        %v4098 = vadd.f32 %v3985, %v4097
        %v4099 = vpop.f32.mrb[0].mxu0
        %v4100 = vadd.f32 %v3987, %v4099
        %v4101 = vpop.f32.mrb[0].mxu0
        %v4102 = vadd.f32 %v3989, %v4101
        %v4103 = vpop.f32.mrb[0].mxu0
        %v4104 = vadd.f32 %v3991, %v4103
        %4105 = vmatprep.mubr.bf16.mxu0 0
        %4106 = vmatmul.mubr.bf16.gmra.mrb[0].mxu0 %v944
        %v4107 = vpop.f32.mrb[0].mxu0
        %v4108 = vadd.f32 %v3995, %v4107
        %v4109 = vpop.f32.mrb[0].mxu0
        %v4110 = vadd.f32 %v3997, %v4109
        %v4111 = vpop.f32.mrb[0].mxu0
        %v4112 = vadd.f32 %v3999, %v4111
        %v4113 = vpop.f32.mrb[0].mxu0
        %v4114 = vadd.f32 %v4001, %v4113
        %4115 = vmatprep.mubr.bf16.mxu0 0
        %4116 = vmatmul.mubr.bf16.gmra.mrb[0].mxu0 %v947
        %v4117 = vpop.f32.mrb[0].mxu0
        %v4118 = vadd.f32 %v4005, %v4117
        %v4119 = vpop.f32.mrb[0].mxu0
        %v4120 = vadd.f32 %v4007, %v4119
        %v4121 = vpop.f32.mrb[0].mxu0
        %v4122 = vadd.f32 %v4009, %v4121
        %v4123 = vpop.f32.mrb[0].mxu0
        %v4124 = vadd.f32 %v4011, %v4123
        %4125 = vdwg.mxu0
        %4126 = vmatprep.subr.bf16.mxu0 %v2879
        %4127 = vmatpush1.bf16.msra.mxu0 %v2878
        %4128 = vmatprep.subr.bf16.mxu0 %v2891
        %4129 = vmatpush1.bf16.msra.mxu0 %v2890
        %4130 = vmatprep.subr.bf16.mxu0 %v2903
        %4131 = vmatpush1.bf16.msra.mxu0 %v2902
        %4132 = vmatprep.subr.bf16.mxu0 %v2915
        %4133 = vmatpush1.bf16.msra.mxu0 %v2914
        %4134 = vmatprep.subr.bf16.mxu0 %v2927
        %4135 = vmatpush1.bf16.msra.mxu0 %v2926
        %4136 = vmatprep.subr.bf16.mxu0 %v2939
        %4137 = vmatpush1.bf16.msra.mxu0 %v2938
        %4138 = vmatprep.subr.bf16.mxu0 %v2951
        %4139 = vmatpush1.bf16.msra.mxu0 %v2950
        %4140 = vmatprep.subr.bf16.mxu0 %v2963
        %4141 = vmatpush1.bf16.msra.mxu0 %v2962
        %4142 = vmatprep.subr.bf16.mxu0 %v2975
        %4143 = vmatpush1.bf16.msra.mxu0 %v2974
        %4144 = vmatprep.subr.bf16.mxu0 %v2987
        %4145 = vmatpush1.bf16.msra.mxu0 %v2986
        %4146 = vmatprep.subr.bf16.mxu0 %v2999
        %4147 = vmatpush1.bf16.msra.mxu0 %v2998
        %4148 = vmatprep.subr.bf16.mxu0 %v3011
        %4149 = vmatpush1.bf16.msra.mxu0 %v3010
        %4150 = vmatprep.subr.bf16.mxu0 %v3023
        %4151 = vmatpush1.bf16.msra.mxu0 %v3022
        %4152 = vmatprep.subr.bf16.mxu0 %v3035
        %4153 = vmatpush1.bf16.msra.mxu0 %v3034
        %4154 = vmatprep.subr.bf16.mxu0 %v3047
        %4155 = vmatpush1.bf16.msra.mxu0 %v3046
        %4156 = vmatprep.subr.bf16.mxu0 %v3059
        %4157 = vmatpush1.bf16.msra.mxu0 %v3058
        %4158 = vmatprep.mubr.bf16.mxu0 %v925
        %4159 = vmatmul.mubr.bf16.gmra.mrb[0].mxu0 %v924
        %v4160 = vpop.f32.mrb[0].mxu0
        %v4161 = vadd.f32 0.0, %v4160
        %v4162 = vpop.f32.mrb[0].mxu0
        %v4163 = vadd.f32 0.0, %v4162
        %v4164 = vpop.f32.mrb[0].mxu0
        %v4165 = vadd.f32 0.0, %v4164
        %v4166 = vpop.f32.mrb[0].mxu0
        %v4167 = vadd.f32 0.0, %v4166
        %4168 = vmatprep.mubr.bf16.mxu0 %v928
        %4169 = vmatmul.mubr.bf16.gmra.mrb[0].mxu0 %v927
        %v4170 = vpop.f32.mrb[0].mxu0
        %v4171 = vadd.f32 0.0, %v4170
        %v4172 = vpop.f32.mrb[0].mxu0
        %v4173 = vadd.f32 0.0, %v4172
        %v4174 = vpop.f32.mrb[0].mxu0
        %v4175 = vadd.f32 0.0, %v4174
        %v4176 = vpop.f32.mrb[0].mxu0
        %v4177 = vadd.f32 0.0, %v4176
        %4178 = vmatprep.mubr.bf16.mxu0 %v931
        %4179 = vmatmul.mubr.bf16.gmra.mrb[0].mxu0 %v930
        %v4180 = vpop.f32.mrb[0].mxu0
        %v4181 = vadd.f32 0.0, %v4180
        %v4182 = vpop.f32.mrb[0].mxu0
        %v4183 = vadd.f32 0.0, %v4182
        %v4184 = vpop.f32.mrb[0].mxu0
        %v4185 = vadd.f32 0.0, %v4184
        %v4186 = vpop.f32.mrb[0].mxu0
        %v4187 = vadd.f32 0.0, %v4186
        %4188 = vmatprep.mubr.bf16.mxu0 %v934
        %4189 = vmatmul.mubr.bf16.gmra.mrb[0].mxu0 %v933
        %v4190 = vpop.f32.mrb[0].mxu0
        %v4191 = vadd.f32 0.0, %v4190
        %v4192 = vpop.f32.mrb[0].mxu0
        %v4193 = vadd.f32 0.0, %v4192
        %v4194 = vpop.f32.mrb[0].mxu0
        %v4195 = vadd.f32 0.0, %v4194
        %v4196 = vpop.f32.mrb[0].mxu0
        %v4197 = vadd.f32 0.0, %v4196
        %4198 = vmatprep.mubr.bf16.mxu0 %v937
        %4199 = vmatmul.mubr.bf16.gmra.mrb[0].mxu0 %v936
        %v4200 = vpop.f32.mrb[0].mxu0
        %v4201 = vadd.f32 0.0, %v4200
        %v4202 = vpop.f32.mrb[0].mxu0
        %v4203 = vadd.f32 0.0, %v4202
        %v4204 = vpop.f32.mrb[0].mxu0
        %v4205 = vadd.f32 0.0, %v4204
        %v4206 = vpop.f32.mrb[0].mxu0
        %v4207 = vadd.f32 0.0, %v4206
        %4208 = vmatprep.mubr.bf16.mxu0 %v940
        %4209 = vmatmul.mubr.bf16.gmra.mrb[0].mxu0 %v939
        %v4210 = vpop.f32.mrb[0].mxu0
        %v4211 = vadd.f32 0.0, %v4210
        %v4212 = vpop.f32.mrb[0].mxu0
        %v4213 = vadd.f32 0.0, %v4212
        %v4214 = vpop.f32.mrb[0].mxu0
        %v4215 = vadd.f32 0.0, %v4214
        %v4216 = vpop.f32.mrb[0].mxu0
        %v4217 = vadd.f32 0.0, %v4216
        %4218 = vmatprep.mubr.bf16.mxu0 %v943
        %4219 = vmatmul.mubr.bf16.gmra.mrb[0].mxu0 %v942
        %v4220 = vpop.f32.mrb[0].mxu0
        %v4221 = vadd.f32 0.0, %v4220
        %v4222 = vpop.f32.mrb[0].mxu0
        %v4223 = vadd.f32 0.0, %v4222
        %v4224 = vpop.f32.mrb[0].mxu0
        %v4225 = vadd.f32 0.0, %v4224
        %v4226 = vpop.f32.mrb[0].mxu0
        %v4227 = vadd.f32 0.0, %v4226
        %4228 = vmatprep.mubr.bf16.mxu0 %v946
        %4229 = vmatmul.mubr.bf16.gmra.mrb[0].mxu0 %v945
        %v4230 = vpop.f32.mrb[0].mxu0
        %v4231 = vadd.f32 0.0, %v4230
        %v4232 = vpop.f32.mrb[0].mxu0
        %v4233 = vadd.f32 0.0, %v4232
        %v4234 = vpop.f32.mrb[0].mxu0
        %v4235 = vadd.f32 0.0, %v4234
        %v4236 = vpop.f32.mrb[0].mxu0
        %v4237 = vadd.f32 0.0, %v4236
        %4238 = vdwg.mxu0
        %4239 = vmatprep.subr.bf16.mxu0 %v3071
        %4240 = vmatpush1.bf16.msra.mxu0 %v3070
        %4241 = vmatprep.subr.bf16.mxu0 %v3083
        %4242 = vmatpush1.bf16.msra.mxu0 %v3082
        %4243 = vmatprep.subr.bf16.mxu0 %v3095
        %4244 = vmatpush1.bf16.msra.mxu0 %v3094
        %4245 = vmatprep.subr.bf16.mxu0 %v3107
        %4246 = vmatpush1.bf16.msra.mxu0 %v3106
        %4247 = vmatprep.subr.bf16.mxu0 %v3119
        %4248 = vmatpush1.bf16.msra.mxu0 %v3118
        %4249 = vmatprep.subr.bf16.mxu0 %v3131
        %4250 = vmatpush1.bf16.msra.mxu0 %v3130
        %4251 = vmatprep.subr.bf16.mxu0 %v3143
        %4252 = vmatpush1.bf16.msra.mxu0 %v3142
        %4253 = vmatprep.subr.bf16.mxu0 %v3155
        %4254 = vmatpush1.bf16.msra.mxu0 %v3154
        %4255 = vmatprep.subr.bf16.mxu0 0
        %4256 = vmatpush1.bf16.msra.mxu0 0
        %4257 = vmatprep.subr.bf16.mxu0 0
        %4258 = vmatpush1.bf16.msra.mxu0 0
        %4259 = vmatprep.subr.bf16.mxu0 0
        %4260 = vmatpush1.bf16.msra.mxu0 0
        %4261 = vmatprep.subr.bf16.mxu0 0
        %4262 = vmatpush1.bf16.msra.mxu0 0
        %4263 = vmatprep.subr.bf16.mxu0 0
        %4264 = vmatpush1.bf16.msra.mxu0 0
        %4265 = vmatprep.subr.bf16.mxu0 0
        %4266 = vmatpush1.bf16.msra.mxu0 0
        %4267 = vmatprep.subr.bf16.mxu0 0
        %4268 = vmatpush1.bf16.msra.mxu0 0
        %4269 = vmatprep.subr.bf16.mxu0 0
        %4270 = vmatpush1.bf16.msra.mxu0 0
        %4271 = vmatprep.mubr.bf16.mxu0 0
        %4272 = vmatmul.mubr.bf16.gmra.mrb[0].mxu0 %v926
        %v4273 = vpop.f32.mrb[0].mxu0
        %v4274 = vadd.f32 %v4161, %v4273
        %v4275 = vpop.f32.mrb[0].mxu0
        %v4276 = vadd.f32 %v4163, %v4275
        %v4277 = vpop.f32.mrb[0].mxu0
        %v4278 = vadd.f32 %v4165, %v4277
        %v4279 = vpop.f32.mrb[0].mxu0
        %v4280 = vadd.f32 %v4167, %v4279
        %4281 = vmatprep.mubr.bf16.mxu0 0
        %4282 = vmatmul.mubr.bf16.gmra.mrb[0].mxu0 %v929
        %v4283 = vpop.f32.mrb[0].mxu0
        %v4284 = vadd.f32 %v4171, %v4283
        %v4285 = vpop.f32.mrb[0].mxu0
        %v4286 = vadd.f32 %v4173, %v4285
        %v4287 = vpop.f32.mrb[0].mxu0
        %v4288 = vadd.f32 %v4175, %v4287
        %v4289 = vpop.f32.mrb[0].mxu0
        %v4290 = vadd.f32 %v4177, %v4289
        %4291 = vmatprep.mubr.bf16.mxu0 0
        %4292 = vmatmul.mubr.bf16.gmra.mrb[0].mxu0 %v932
        %v4293 = vpop.f32.mrb[0].mxu0
        %v4294 = vadd.f32 %v4181, %v4293
        %v4295 = vpop.f32.mrb[0].mxu0
        %v4296 = vadd.f32 %v4183, %v4295
        %v4297 = vpop.f32.mrb[0].mxu0
        %v4298 = vadd.f32 %v4185, %v4297
        %v4299 = vpop.f32.mrb[0].mxu0
        %v4300 = vadd.f32 %v4187, %v4299
        %4301 = vmatprep.mubr.bf16.mxu0 0
        %4302 = vmatmul.mubr.bf16.gmra.mrb[0].mxu0 %v935
        %v4303 = vpop.f32.mrb[0].mxu0
        %v4304 = vadd.f32 %v4191, %v4303
        %v4305 = vpop.f32.mrb[0].mxu0
        %v4306 = vadd.f32 %v4193, %v4305
        %v4307 = vpop.f32.mrb[0].mxu0
        %v4308 = vadd.f32 %v4195, %v4307
        %v4309 = vpop.f32.mrb[0].mxu0
        %v4310 = vadd.f32 %v4197, %v4309
        %4311 = vmatprep.mubr.bf16.mxu0 0
        %4312 = vmatmul.mubr.bf16.gmra.mrb[0].mxu0 %v938
        %v4313 = vpop.f32.mrb[0].mxu0
        %v4314 = vadd.f32 %v4201, %v4313
        %v4315 = vpop.f32.mrb[0].mxu0
        %v4316 = vadd.f32 %v4203, %v4315
        %v4317 = vpop.f32.mrb[0].mxu0
        %v4318 = vadd.f32 %v4205, %v4317
        %v4319 = vpop.f32.mrb[0].mxu0
        %v4320 = vadd.f32 %v4207, %v4319
        %4321 = vmatprep.mubr.bf16.mxu0 0
        %4322 = vmatmul.mubr.bf16.gmra.mrb[0].mxu0 %v941
        %v4323 = vpop.f32.mrb[0].mxu0
        %v4324 = vadd.f32 %v4211, %v4323
        %v4325 = vpop.f32.mrb[0].mxu0
        %v4326 = vadd.f32 %v4213, %v4325
        %v4327 = vpop.f32.mrb[0].mxu0
        %v4328 = vadd.f32 %v4215, %v4327
        %v4329 = vpop.f32.mrb[0].mxu0
        %v4330 = vadd.f32 %v4217, %v4329
        %4331 = vmatprep.mubr.bf16.mxu0 0
        %4332 = vmatmul.mubr.bf16.gmra.mrb[0].mxu0 %v944
        %v4333 = vpop.f32.mrb[0].mxu0
        %v4334 = vadd.f32 %v4221, %v4333
        %v4335 = vpop.f32.mrb[0].mxu0
        %v4336 = vadd.f32 %v4223, %v4335
        %v4337 = vpop.f32.mrb[0].mxu0
        %v4338 = vadd.f32 %v4225, %v4337
        %v4339 = vpop.f32.mrb[0].mxu0
        %v4340 = vadd.f32 %v4227, %v4339
        %4341 = vmatprep.mubr.bf16.mxu0 0
        %4342 = vmatmul.mubr.bf16.gmra.mrb[0].mxu0 %v947
        %v4343 = vpop.f32.mrb[0].mxu0
        %v4344 = vadd.f32 %v4231, %v4343
        %v4345 = vpop.f32.mrb[0].mxu0
        %v4346 = vadd.f32 %v4233, %v4345
        %v4347 = vpop.f32.mrb[0].mxu0
        %v4348 = vadd.f32 %v4235, %v4347
        %v4349 = vpop.f32.mrb[0].mxu0
        %v4350 = vadd.f32 %v4237, %v4349
        %4351 = vdwg.mxu0
        %4352 = vmatprep.subr.bf16.mxu0 %v2881
        %4353 = vmatpush1.bf16.msra.mxu0 %v2880
        %4354 = vmatprep.subr.bf16.mxu0 %v2893
        %4355 = vmatpush1.bf16.msra.mxu0 %v2892
        %4356 = vmatprep.subr.bf16.mxu0 %v2905
        %4357 = vmatpush1.bf16.msra.mxu0 %v2904
        %4358 = vmatprep.subr.bf16.mxu0 %v2917
        %4359 = vmatpush1.bf16.msra.mxu0 %v2916
        %4360 = vmatprep.subr.bf16.mxu0 %v2929
        %4361 = vmatpush1.bf16.msra.mxu0 %v2928
        %4362 = vmatprep.subr.bf16.mxu0 %v2941
        %4363 = vmatpush1.bf16.msra.mxu0 %v2940
        %4364 = vmatprep.subr.bf16.mxu0 %v2953
        %4365 = vmatpush1.bf16.msra.mxu0 %v2952
        %4366 = vmatprep.subr.bf16.mxu0 %v2965
        %4367 = vmatpush1.bf16.msra.mxu0 %v2964
        %4368 = vmatprep.subr.bf16.mxu0 %v2977
        %4369 = vmatpush1.bf16.msra.mxu0 %v2976
        %4370 = vmatprep.subr.bf16.mxu0 %v2989
        %4371 = vmatpush1.bf16.msra.mxu0 %v2988
        %4372 = vmatprep.subr.bf16.mxu0 %v3001
        %4373 = vmatpush1.bf16.msra.mxu0 %v3000
        %4374 = vmatprep.subr.bf16.mxu0 %v3013
        %4375 = vmatpush1.bf16.msra.mxu0 %v3012
        %4376 = vmatprep.subr.bf16.mxu0 %v3025
        %4377 = vmatpush1.bf16.msra.mxu0 %v3024
        %4378 = vmatprep.subr.bf16.mxu0 %v3037
        %4379 = vmatpush1.bf16.msra.mxu0 %v3036
        %4380 = vmatprep.subr.bf16.mxu0 %v3049
        %4381 = vmatpush1.bf16.msra.mxu0 %v3048
        %4382 = vmatprep.subr.bf16.mxu0 %v3061
        %4383 = vmatpush1.bf16.msra.mxu0 %v3060
        %4384 = vmatprep.mubr.bf16.mxu0 %v925
        %4385 = vmatmul.mubr.bf16.gmra.mrb[0].mxu0 %v924
        %v4386 = vpop.f32.mrb[0].mxu0
        %v4387 = vadd.f32 0.0, %v4386
        %v4388 = vpop.f32.mrb[0].mxu0
        %v4389 = vadd.f32 0.0, %v4388
        %v4390 = vpop.f32.mrb[0].mxu0
        %v4391 = vadd.f32 0.0, %v4390
        %v4392 = vpop.f32.mrb[0].mxu0
        %v4393 = vadd.f32 0.0, %v4392
        %4394 = vmatprep.mubr.bf16.mxu0 %v928
        %4395 = vmatmul.mubr.bf16.gmra.mrb[0].mxu0 %v927
        %v4396 = vpop.f32.mrb[0].mxu0
        %v4397 = vadd.f32 0.0, %v4396
        %v4398 = vpop.f32.mrb[0].mxu0
        %v4399 = vadd.f32 0.0, %v4398
        %v4400 = vpop.f32.mrb[0].mxu0
        %v4401 = vadd.f32 0.0, %v4400
        %v4402 = vpop.f32.mrb[0].mxu0
        %v4403 = vadd.f32 0.0, %v4402
        %4404 = vmatprep.mubr.bf16.mxu0 %v931
        %4405 = vmatmul.mubr.bf16.gmra.mrb[0].mxu0 %v930
        %v4406 = vpop.f32.mrb[0].mxu0
        %v4407 = vadd.f32 0.0, %v4406
        %v4408 = vpop.f32.mrb[0].mxu0
        %v4409 = vadd.f32 0.0, %v4408
        %v4410 = vpop.f32.mrb[0].mxu0
        %v4411 = vadd.f32 0.0, %v4410
        %v4412 = vpop.f32.mrb[0].mxu0
        %v4413 = vadd.f32 0.0, %v4412
        %4414 = vmatprep.mubr.bf16.mxu0 %v934
        %4415 = vmatmul.mubr.bf16.gmra.mrb[0].mxu0 %v933
        %v4416 = vpop.f32.mrb[0].mxu0
        %v4417 = vadd.f32 0.0, %v4416
        %v4418 = vpop.f32.mrb[0].mxu0
        %v4419 = vadd.f32 0.0, %v4418
        %v4420 = vpop.f32.mrb[0].mxu0
        %v4421 = vadd.f32 0.0, %v4420
        %v4422 = vpop.f32.mrb[0].mxu0
        %v4423 = vadd.f32 0.0, %v4422
        %4424 = vmatprep.mubr.bf16.mxu0 %v937
        %4425 = vmatmul.mubr.bf16.gmra.mrb[0].mxu0 %v936
        %v4426 = vpop.f32.mrb[0].mxu0
        %v4427 = vadd.f32 0.0, %v4426
        %v4428 = vpop.f32.mrb[0].mxu0
        %v4429 = vadd.f32 0.0, %v4428
        %v4430 = vpop.f32.mrb[0].mxu0
        %v4431 = vadd.f32 0.0, %v4430
        %v4432 = vpop.f32.mrb[0].mxu0
        %v4433 = vadd.f32 0.0, %v4432
        %4434 = vmatprep.mubr.bf16.mxu0 %v940
        %4435 = vmatmul.mubr.bf16.gmra.mrb[0].mxu0 %v939
        %v4436 = vpop.f32.mrb[0].mxu0
        %v4437 = vadd.f32 0.0, %v4436
        %v4438 = vpop.f32.mrb[0].mxu0
        %v4439 = vadd.f32 0.0, %v4438
        %v4440 = vpop.f32.mrb[0].mxu0
        %v4441 = vadd.f32 0.0, %v4440
        %v4442 = vpop.f32.mrb[0].mxu0
        %v4443 = vadd.f32 0.0, %v4442
        %4444 = vmatprep.mubr.bf16.mxu0 %v943
        %4445 = vmatmul.mubr.bf16.gmra.mrb[0].mxu0 %v942
        %v4446 = vpop.f32.mrb[0].mxu0
        %v4447 = vadd.f32 0.0, %v4446
        %v4448 = vpop.f32.mrb[0].mxu0
        %v4449 = vadd.f32 0.0, %v4448
        %v4450 = vpop.f32.mrb[0].mxu0
        %v4451 = vadd.f32 0.0, %v4450
        %v4452 = vpop.f32.mrb[0].mxu0
        %v4453 = vadd.f32 0.0, %v4452
        %4454 = vmatprep.mubr.bf16.mxu0 %v946
        %4455 = vmatmul.mubr.bf16.gmra.mrb[0].mxu0 %v945
        %v4456 = vpop.f32.mrb[0].mxu0
        %v4457 = vadd.f32 0.0, %v4456
        %v4458 = vpop.f32.mrb[0].mxu0
        %v4459 = vadd.f32 0.0, %v4458
        %v4460 = vpop.f32.mrb[0].mxu0
        %v4461 = vadd.f32 0.0, %v4460
        %v4462 = vpop.f32.mrb[0].mxu0
        %v4463 = vadd.f32 0.0, %v4462
        %4464 = vdwg.mxu0
        %4465 = vmatprep.subr.bf16.mxu0 %v3073
        %4466 = vmatpush1.bf16.msra.mxu0 %v3072
        %4467 = vmatprep.subr.bf16.mxu0 %v3085
        %4468 = vmatpush1.bf16.msra.mxu0 %v3084
        %4469 = vmatprep.subr.bf16.mxu0 %v3097
        %4470 = vmatpush1.bf16.msra.mxu0 %v3096
        %4471 = vmatprep.subr.bf16.mxu0 %v3109
        %4472 = vmatpush1.bf16.msra.mxu0 %v3108
        %4473 = vmatprep.subr.bf16.mxu0 %v3121
        %4474 = vmatpush1.bf16.msra.mxu0 %v3120
        %4475 = vmatprep.subr.bf16.mxu0 %v3133
        %4476 = vmatpush1.bf16.msra.mxu0 %v3132
        %4477 = vmatprep.subr.bf16.mxu0 %v3145
        %4478 = vmatpush1.bf16.msra.mxu0 %v3144
        %4479 = vmatprep.subr.bf16.mxu0 %v3157
        %4480 = vmatpush1.bf16.msra.mxu0 %v3156
        %4481 = vmatprep.subr.bf16.mxu0 0
        %4482 = vmatpush1.bf16.msra.mxu0 0
        %4483 = vmatprep.subr.bf16.mxu0 0
        %4484 = vmatpush1.bf16.msra.mxu0 0
        %4485 = vmatprep.subr.bf16.mxu0 0
        %4486 = vmatpush1.bf16.msra.mxu0 0
        %4487 = vmatprep.subr.bf16.mxu0 0
        %4488 = vmatpush1.bf16.msra.mxu0 0
        %4489 = vmatprep.subr.bf16.mxu0 0
        %4490 = vmatpush1.bf16.msra.mxu0 0
        %4491 = vmatprep.subr.bf16.mxu0 0
        %4492 = vmatpush1.bf16.msra.mxu0 0
        %4493 = vmatprep.subr.bf16.mxu0 0
        %4494 = vmatpush1.bf16.msra.mxu0 0
        %4495 = vmatprep.subr.bf16.mxu0 0
        %4496 = vmatpush1.bf16.msra.mxu0 0
        %4497 = vmatprep.mubr.bf16.mxu0 0
        %4498 = vmatmul.mubr.bf16.gmra.mrb[0].mxu0 %v926
        %v4499 = vpop.f32.mrb[0].mxu0
        %v4500 = vadd.f32 %v4387, %v4499
        %v4501 = vpop.f32.mrb[0].mxu0
        %v4502 = vadd.f32 %v4389, %v4501
        %v4503 = vpop.f32.mrb[0].mxu0
        %v4504 = vadd.f32 %v4391, %v4503
        %v4505 = vpop.f32.mrb[0].mxu0
        %v4506 = vadd.f32 %v4393, %v4505
        %4507 = vmatprep.mubr.bf16.mxu0 0
        %4508 = vmatmul.mubr.bf16.gmra.mrb[0].mxu0 %v929
        %v4509 = vpop.f32.mrb[0].mxu0
        %v4510 = vadd.f32 %v4397, %v4509
        %v4511 = vpop.f32.mrb[0].mxu0
        %v4512 = vadd.f32 %v4399, %v4511
        %v4513 = vpop.f32.mrb[0].mxu0
        %v4514 = vadd.f32 %v4401, %v4513
        %v4515 = vpop.f32.mrb[0].mxu0
        %v4516 = vadd.f32 %v4403, %v4515
        %4517 = vmatprep.mubr.bf16.mxu0 0
        %4518 = vmatmul.mubr.bf16.gmra.mrb[0].mxu0 %v932
        %v4519 = vpop.f32.mrb[0].mxu0
        %v4520 = vadd.f32 %v4407, %v4519
        %v4521 = vpop.f32.mrb[0].mxu0
        %v4522 = vadd.f32 %v4409, %v4521
        %v4523 = vpop.f32.mrb[0].mxu0
        %v4524 = vadd.f32 %v4411, %v4523
        %v4525 = vpop.f32.mrb[0].mxu0
        %v4526 = vadd.f32 %v4413, %v4525
        %4527 = vmatprep.mubr.bf16.mxu0 0
        %4528 = vmatmul.mubr.bf16.gmra.mrb[0].mxu0 %v935
        %v4529 = vpop.f32.mrb[0].mxu0
        %v4530 = vadd.f32 %v4417, %v4529
        %v4531 = vpop.f32.mrb[0].mxu0
        %v4532 = vadd.f32 %v4419, %v4531
        %v4533 = vpop.f32.mrb[0].mxu0
        %v4534 = vadd.f32 %v4421, %v4533
        %v4535 = vpop.f32.mrb[0].mxu0
        %v4536 = vadd.f32 %v4423, %v4535
        %4537 = vmatprep.mubr.bf16.mxu0 0
        %4538 = vmatmul.mubr.bf16.gmra.mrb[0].mxu0 %v938
        %v4539 = vpop.f32.mrb[0].mxu0
        %v4540 = vadd.f32 %v4427, %v4539
        %v4541 = vpop.f32.mrb[0].mxu0
        %v4542 = vadd.f32 %v4429, %v4541
        %v4543 = vpop.f32.mrb[0].mxu0
        %v4544 = vadd.f32 %v4431, %v4543
        %v4545 = vpop.f32.mrb[0].mxu0
        %v4546 = vadd.f32 %v4433, %v4545
        %4547 = vmatprep.mubr.bf16.mxu0 0
        %4548 = vmatmul.mubr.bf16.gmra.mrb[0].mxu0 %v941
        %v4549 = vpop.f32.mrb[0].mxu0
        %v4550 = vadd.f32 %v4437, %v4549
        %v4551 = vpop.f32.mrb[0].mxu0
        %v4552 = vadd.f32 %v4439, %v4551
        %v4553 = vpop.f32.mrb[0].mxu0
        %v4554 = vadd.f32 %v4441, %v4553
        %v4555 = vpop.f32.mrb[0].mxu0
        %v4556 = vadd.f32 %v4443, %v4555
        %4557 = vmatprep.mubr.bf16.mxu0 0
        %4558 = vmatmul.mubr.bf16.gmra.mrb[0].mxu0 %v944
        %v4559 = vpop.f32.mrb[0].mxu0
        %v4560 = vadd.f32 %v4447, %v4559
        %v4561 = vpop.f32.mrb[0].mxu0
        %v4562 = vadd.f32 %v4449, %v4561
        %v4563 = vpop.f32.mrb[0].mxu0
        %v4564 = vadd.f32 %v4451, %v4563
        %v4565 = vpop.f32.mrb[0].mxu0
        %v4566 = vadd.f32 %v4453, %v4565
        %4567 = vmatprep.mubr.bf16.mxu0 0
        %4568 = vmatmul.mubr.bf16.gmra.mrb[0].mxu0 %v947
        %v4569 = vpop.f32.mrb[0].mxu0
        %v4570 = vadd.f32 %v4457, %v4569
        %v4571 = vpop.f32.mrb[0].mxu0
        %v4572 = vadd.f32 %v4459, %v4571
        %v4573 = vpop.f32.mrb[0].mxu0
        %v4574 = vadd.f32 %v4461, %v4573
        %v4575 = vpop.f32.mrb[0].mxu0
        %v4576 = vadd.f32 %v4463, %v4575
        %4577 = vdwg.mxu0
        %4578 = vmatprep.subr.bf16.mxu0 %v2883
        %4579 = vmatpush1.bf16.msra.mxu0 %v2882
        %4580 = vmatprep.subr.bf16.mxu0 %v2895
        %4581 = vmatpush1.bf16.msra.mxu0 %v2894
        %4582 = vmatprep.subr.bf16.mxu0 %v2907
        %4583 = vmatpush1.bf16.msra.mxu0 %v2906
        %4584 = vmatprep.subr.bf16.mxu0 %v2919
        %4585 = vmatpush1.bf16.msra.mxu0 %v2918
        %4586 = vmatprep.subr.bf16.mxu0 %v2931
        %4587 = vmatpush1.bf16.msra.mxu0 %v2930
        %4588 = vmatprep.subr.bf16.mxu0 %v2943
        %4589 = vmatpush1.bf16.msra.mxu0 %v2942
        %4590 = vmatprep.subr.bf16.mxu0 %v2955
        %4591 = vmatpush1.bf16.msra.mxu0 %v2954
        %4592 = vmatprep.subr.bf16.mxu0 %v2967
        %4593 = vmatpush1.bf16.msra.mxu0 %v2966
        %4594 = vmatprep.subr.bf16.mxu0 %v2979
        %4595 = vmatpush1.bf16.msra.mxu0 %v2978
        %4596 = vmatprep.subr.bf16.mxu0 %v2991
        %4597 = vmatpush1.bf16.msra.mxu0 %v2990
        %4598 = vmatprep.subr.bf16.mxu0 %v3003
        %4599 = vmatpush1.bf16.msra.mxu0 %v3002
        %4600 = vmatprep.subr.bf16.mxu0 %v3015
        %4601 = vmatpush1.bf16.msra.mxu0 %v3014
        %4602 = vmatprep.subr.bf16.mxu0 %v3027
        %4603 = vmatpush1.bf16.msra.mxu0 %v3026
        %4604 = vmatprep.subr.bf16.mxu0 %v3039
        %4605 = vmatpush1.bf16.msra.mxu0 %v3038
        %4606 = vmatprep.subr.bf16.mxu0 %v3051
        %4607 = vmatpush1.bf16.msra.mxu0 %v3050
        %4608 = vmatprep.subr.bf16.mxu0 %v3063
        %4609 = vmatpush1.bf16.msra.mxu0 %v3062
        %4610 = vmatprep.mubr.bf16.mxu0 %v925
        %4611 = vmatmul.mubr.bf16.gmra.mrb[0].mxu0 %v924
        %v4612 = vpop.f32.mrb[0].mxu0
        %v4613 = vadd.f32 0.0, %v4612
        %v4614 = vpop.f32.mrb[0].mxu0
        %v4615 = vadd.f32 0.0, %v4614
        %v4616 = vpop.f32.mrb[0].mxu0
        %v4617 = vadd.f32 0.0, %v4616
        %v4618 = vpop.f32.mrb[0].mxu0
        %v4619 = vadd.f32 0.0, %v4618
        %4620 = vmatprep.mubr.bf16.mxu0 %v928
        %4621 = vmatmul.mubr.bf16.gmra.mrb[0].mxu0 %v927
        %v4622 = vpop.f32.mrb[0].mxu0
        %v4623 = vadd.f32 0.0, %v4622
        %v4624 = vpop.f32.mrb[0].mxu0
        %v4625 = vadd.f32 0.0, %v4624
        %v4626 = vpop.f32.mrb[0].mxu0
        %v4627 = vadd.f32 0.0, %v4626
        %v4628 = vpop.f32.mrb[0].mxu0
        %v4629 = vadd.f32 0.0, %v4628
        %4630 = vmatprep.mubr.bf16.mxu0 %v931
        %4631 = vmatmul.mubr.bf16.gmra.mrb[0].mxu0 %v930
        %v4632 = vpop.f32.mrb[0].mxu0
        %v4633 = vadd.f32 0.0, %v4632
        %v4634 = vpop.f32.mrb[0].mxu0
        %v4635 = vadd.f32 0.0, %v4634
        %v4636 = vpop.f32.mrb[0].mxu0
        %v4637 = vadd.f32 0.0, %v4636
        %v4638 = vpop.f32.mrb[0].mxu0
        %v4639 = vadd.f32 0.0, %v4638
        %4640 = vmatprep.mubr.bf16.mxu0 %v934
        %4641 = vmatmul.mubr.bf16.gmra.mrb[0].mxu0 %v933
        %v4642 = vpop.f32.mrb[0].mxu0
        %v4643 = vadd.f32 0.0, %v4642
        %v4644 = vpop.f32.mrb[0].mxu0
        %v4645 = vadd.f32 0.0, %v4644
        %v4646 = vpop.f32.mrb[0].mxu0
        %v4647 = vadd.f32 0.0, %v4646
        %v4648 = vpop.f32.mrb[0].mxu0
        %v4649 = vadd.f32 0.0, %v4648
        %4650 = vmatprep.mubr.bf16.mxu0 %v937
        %4651 = vmatmul.mubr.bf16.gmra.mrb[0].mxu0 %v936
        %v4652 = vpop.f32.mrb[0].mxu0
        %v4653 = vadd.f32 0.0, %v4652
        %v4654 = vpop.f32.mrb[0].mxu0
        %v4655 = vadd.f32 0.0, %v4654
        %v4656 = vpop.f32.mrb[0].mxu0
        %v4657 = vadd.f32 0.0, %v4656
        %v4658 = vpop.f32.mrb[0].mxu0
        %v4659 = vadd.f32 0.0, %v4658
        %4660 = vmatprep.mubr.bf16.mxu0 %v940
        %4661 = vmatmul.mubr.bf16.gmra.mrb[0].mxu0 %v939
        %v4662 = vpop.f32.mrb[0].mxu0
        %v4663 = vadd.f32 0.0, %v4662
        %v4664 = vpop.f32.mrb[0].mxu0
        %v4665 = vadd.f32 0.0, %v4664
        %v4666 = vpop.f32.mrb[0].mxu0
        %v4667 = vadd.f32 0.0, %v4666
        %v4668 = vpop.f32.mrb[0].mxu0
        %v4669 = vadd.f32 0.0, %v4668
        %4670 = vmatprep.mubr.bf16.mxu0 %v943
        %4671 = vmatmul.mubr.bf16.gmra.mrb[0].mxu0 %v942
        %v4672 = vpop.f32.mrb[0].mxu0
        %v4673 = vadd.f32 0.0, %v4672
        %v4674 = vpop.f32.mrb[0].mxu0
        %v4675 = vadd.f32 0.0, %v4674
        %v4676 = vpop.f32.mrb[0].mxu0
        %v4677 = vadd.f32 0.0, %v4676
        %v4678 = vpop.f32.mrb[0].mxu0
        %v4679 = vadd.f32 0.0, %v4678
        %4680 = vmatprep.mubr.bf16.mxu0 %v946
        %4681 = vmatmul.mubr.bf16.gmra.mrb[0].mxu0 %v945
        %v4682 = vpop.f32.mrb[0].mxu0
        %v4683 = vadd.f32 0.0, %v4682
        %v4684 = vpop.f32.mrb[0].mxu0
        %v4685 = vadd.f32 0.0, %v4684
        %v4686 = vpop.f32.mrb[0].mxu0
        %v4687 = vadd.f32 0.0, %v4686
        %v4688 = vpop.f32.mrb[0].mxu0
        %v4689 = vadd.f32 0.0, %v4688
        %4690 = vdwg.mxu0
        %4691 = vmatprep.subr.bf16.mxu0 %v3075
        %4692 = vmatpush1.bf16.msra.mxu0 %v3074
        %4693 = vmatprep.subr.bf16.mxu0 %v3087
        %4694 = vmatpush1.bf16.msra.mxu0 %v3086
        %4695 = vmatprep.subr.bf16.mxu0 %v3099
        %4696 = vmatpush1.bf16.msra.mxu0 %v3098
        %4697 = vmatprep.subr.bf16.mxu0 %v3111
        %4698 = vmatpush1.bf16.msra.mxu0 %v3110
        %4699 = vmatprep.subr.bf16.mxu0 %v3123
        %4700 = vmatpush1.bf16.msra.mxu0 %v3122
        %4701 = vmatprep.subr.bf16.mxu0 %v3135
        %4702 = vmatpush1.bf16.msra.mxu0 %v3134
        %4703 = vmatprep.subr.bf16.mxu0 %v3147
        %4704 = vmatpush1.bf16.msra.mxu0 %v3146
        %4705 = vmatprep.subr.bf16.mxu0 %v3159
        %4706 = vmatpush1.bf16.msra.mxu0 %v3158
        %4707 = vmatprep.subr.bf16.mxu0 0
        %4708 = vmatpush1.bf16.msra.mxu0 0
        %4709 = vmatprep.subr.bf16.mxu0 0
        %4710 = vmatpush1.bf16.msra.mxu0 0
        %4711 = vmatprep.subr.bf16.mxu0 0
        %4712 = vmatpush1.bf16.msra.mxu0 0
        %4713 = vmatprep.subr.bf16.mxu0 0
        %4714 = vmatpush1.bf16.msra.mxu0 0
        %4715 = vmatprep.subr.bf16.mxu0 0
        %4716 = vmatpush1.bf16.msra.mxu0 0
        %4717 = vmatprep.subr.bf16.mxu0 0
        %4718 = vmatpush1.bf16.msra.mxu0 0
        %4719 = vmatprep.subr.bf16.mxu0 0
        %4720 = vmatpush1.bf16.msra.mxu0 0
        %4721 = vmatprep.subr.bf16.mxu0 0
        %4722 = vmatpush1.bf16.msra.mxu0 0
        %4723 = vmatprep.mubr.bf16.mxu0 0
        %4724 = vmatmul.mubr.bf16.gmra.mrb[0].mxu0 %v926
        %v4725 = vpop.f32.mrb[0].mxu0
        %v4726 = vadd.f32 %v4613, %v4725
        %v4727 = vpop.f32.mrb[0].mxu0
        %v4728 = vadd.f32 %v4615, %v4727
        %v4729 = vpop.f32.mrb[0].mxu0
        %v4730 = vadd.f32 %v4617, %v4729
        %v4731 = vpop.f32.mrb[0].mxu0
        %v4732 = vadd.f32 %v4619, %v4731
        %4733 = vmatprep.mubr.bf16.mxu0 0
        %4734 = vmatmul.mubr.bf16.gmra.mrb[0].mxu0 %v929
        %v4735 = vpop.f32.mrb[0].mxu0
        %v4736 = vadd.f32 %v4623, %v4735
        %v4737 = vpop.f32.mrb[0].mxu0
        %v4738 = vadd.f32 %v4625, %v4737
        %v4739 = vpop.f32.mrb[0].mxu0
        %v4740 = vadd.f32 %v4627, %v4739
        %v4741 = vpop.f32.mrb[0].mxu0
        %v4742 = vadd.f32 %v4629, %v4741
        %4743 = vmatprep.mubr.bf16.mxu0 0
        %4744 = vmatmul.mubr.bf16.gmra.mrb[0].mxu0 %v932
        %v4745 = vpop.f32.mrb[0].mxu0
        %v4746 = vadd.f32 %v4633, %v4745
        %v4747 = vpop.f32.mrb[0].mxu0
        %v4748 = vadd.f32 %v4635, %v4747
        %v4749 = vpop.f32.mrb[0].mxu0
        %v4750 = vadd.f32 %v4637, %v4749
        %v4751 = vpop.f32.mrb[0].mxu0
        %v4752 = vadd.f32 %v4639, %v4751
        %4753 = vmatprep.mubr.bf16.mxu0 0
        %4754 = vmatmul.mubr.bf16.gmra.mrb[0].mxu0 %v935
        %v4755 = vpop.f32.mrb[0].mxu0
        %v4756 = vadd.f32 %v4643, %v4755
        %v4757 = vpop.f32.mrb[0].mxu0
        %v4758 = vadd.f32 %v4645, %v4757
        %v4759 = vpop.f32.mrb[0].mxu0
        %v4760 = vadd.f32 %v4647, %v4759
        %v4761 = vpop.f32.mrb[0].mxu0
        %v4762 = vadd.f32 %v4649, %v4761
        %4763 = vmatprep.mubr.bf16.mxu0 0
        %4764 = vmatmul.mubr.bf16.gmra.mrb[0].mxu0 %v938
        %v4765 = vpop.f32.mrb[0].mxu0
        %v4766 = vadd.f32 %v4653, %v4765
        %v4767 = vpop.f32.mrb[0].mxu0
        %v4768 = vadd.f32 %v4655, %v4767
        %v4769 = vpop.f32.mrb[0].mxu0
        %v4770 = vadd.f32 %v4657, %v4769
        %v4771 = vpop.f32.mrb[0].mxu0
        %v4772 = vadd.f32 %v4659, %v4771
        %4773 = vmatprep.mubr.bf16.mxu0 0
        %4774 = vmatmul.mubr.bf16.gmra.mrb[0].mxu0 %v941
        %v4775 = vpop.f32.mrb[0].mxu0
        %v4776 = vadd.f32 %v4663, %v4775
        %v4777 = vpop.f32.mrb[0].mxu0
        %v4778 = vadd.f32 %v4665, %v4777
        %v4779 = vpop.f32.mrb[0].mxu0
        %v4780 = vadd.f32 %v4667, %v4779
        %v4781 = vpop.f32.mrb[0].mxu0
        %v4782 = vadd.f32 %v4669, %v4781
        %4783 = vmatprep.mubr.bf16.mxu0 0
        %4784 = vmatmul.mubr.bf16.gmra.mrb[0].mxu0 %v944
        %v4785 = vpop.f32.mrb[0].mxu0
        %v4786 = vadd.f32 %v4673, %v4785
        %v4787 = vpop.f32.mrb[0].mxu0
        %v4788 = vadd.f32 %v4675, %v4787
        %v4789 = vpop.f32.mrb[0].mxu0
        %v4790 = vadd.f32 %v4677, %v4789
        %v4791 = vpop.f32.mrb[0].mxu0
        %v4792 = vadd.f32 %v4679, %v4791
        %4793 = vmatprep.mubr.bf16.mxu0 0
        %4794 = vmatmul.mubr.bf16.gmra.mrb[0].mxu0 %v947
        %v4795 = vpop.f32.mrb[0].mxu0
        %v4796 = vadd.f32 %v4683, %v4795
        %v4797 = vpop.f32.mrb[0].mxu0
        %v4798 = vadd.f32 %v4685, %v4797
        %v4799 = vpop.f32.mrb[0].mxu0
        %v4800 = vadd.f32 %v4687, %v4799
        %v4801 = vpop.f32.mrb[0].mxu0
        %v4802 = vadd.f32 %v4689, %v4801
        %4803 = vdwg.mxu0
        %v4804 = vmul.f32 %v4274, 0.5
        %v4805 = vmul.f32 %v4276, 0.5
        %v4806 = vmul.f32 %v4500, 0.5
        %v4807 = vmul.f32 %v4502, 0.5
        %v4808 = vmul.f32 %v4726, 0.5
        %v4809 = vmul.f32 %v4728, 0.5
        %v4810 = vmul.f32 %v4278, 0.5
        %v4811 = vmul.f32 %v4280, 0.5
        %v4812 = vmul.f32 %v4504, 0.5
        %v4813 = vmul.f32 %v4506, 0.5
        %v4814 = vmul.f32 %v4730, 0.5
        %v4815 = vmul.f32 %v4732, 0.5
        %v4816 = vmul.f32 %v4284, 0.5
        %v4817 = vmul.f32 %v4286, 0.5
        %v4818 = vmul.f32 %v4510, 0.5
        %v4819 = vmul.f32 %v4512, 0.5
        %v4820 = vmul.f32 %v4736, 0.5
        %v4821 = vmul.f32 %v4738, 0.5
        %v4822 = vmul.f32 %v4288, 0.5
        %v4823 = vmul.f32 %v4290, 0.5
        %v4824 = vmul.f32 %v4514, 0.5
        %v4825 = vmul.f32 %v4516, 0.5
        %v4826 = vmul.f32 %v4740, 0.5
        %v4827 = vmul.f32 %v4742, 0.5
        %v4828 = vmul.f32 %v4294, 0.5
        %v4829 = vmul.f32 %v4296, 0.5
        %v4830 = vmul.f32 %v4520, 0.5
        %v4831 = vmul.f32 %v4522, 0.5
        %v4832 = vmul.f32 %v4746, 0.5
        %v4833 = vmul.f32 %v4748, 0.5
        %v4834 = vmul.f32 %v4298, 0.5
        %v4835 = vmul.f32 %v4300, 0.5
        %v4836 = vmul.f32 %v4524, 0.5
        %v4837 = vmul.f32 %v4526, 0.5
        %v4838 = vmul.f32 %v4750, 0.5
        %v4839 = vmul.f32 %v4752, 0.5
        %v4840 = vmul.f32 %v4304, 0.5
        %v4841 = vmul.f32 %v4306, 0.5
        %v4842 = vmul.f32 %v4530, 0.5
        %v4843 = vmul.f32 %v4532, 0.5
        %v4844 = vmul.f32 %v4756, 0.5
        %v4845 = vmul.f32 %v4758, 0.5
        %v4846 = vmul.f32 %v4308, 0.5
        %v4847 = vmul.f32 %v4310, 0.5
        %v4848 = vmul.f32 %v4534, 0.5
        %v4849 = vmul.f32 %v4536, 0.5
        %v4850 = vmul.f32 %v4760, 0.5
        %v4851 = vmul.f32 %v4762, 0.5
        %v4852 = vmul.f32 %v4314, 0.5
        %v4853 = vmul.f32 %v4316, 0.5
        %v4854 = vmul.f32 %v4540, 0.5
        %v4855 = vmul.f32 %v4542, 0.5
        %v4856 = vmul.f32 %v4766, 0.5
        %v4857 = vmul.f32 %v4768, 0.5
        %v4858 = vmul.f32 %v4318, 0.5
        %v4859 = vmul.f32 %v4320, 0.5
        %v4860 = vmul.f32 %v4544, 0.5
        %v4861 = vmul.f32 %v4546, 0.5
        %v4862 = vmul.f32 %v4770, 0.5
        %v4863 = vmul.f32 %v4772, 0.5
        %v4864 = vmul.f32 %v4324, 0.5
        %v4865 = vmul.f32 %v4326, 0.5
        %v4866 = vmul.f32 %v4550, 0.5
        %v4867 = vmul.f32 %v4552, 0.5
        %v4868 = vmul.f32 %v4776, 0.5
        %v4869 = vmul.f32 %v4778, 0.5
        %v4870 = vmul.f32 %v4328, 0.5
        %v4871 = vmul.f32 %v4330, 0.5
        %v4872 = vmul.f32 %v4554, 0.5
        %v4873 = vmul.f32 %v4556, 0.5
        %v4874 = vmul.f32 %v4780, 0.5
        %v4875 = vmul.f32 %v4782, 0.5
        %v4876 = vmul.f32 %v4334, 0.5
        %v4877 = vmul.f32 %v4336, 0.5
        %v4878 = vmul.f32 %v4560, 0.5
        %v4879 = vmul.f32 %v4562, 0.5
        %v4880 = vmul.f32 %v4786, 0.5
        %v4881 = vmul.f32 %v4788, 0.5
        %v4882 = vmul.f32 %v4338, 0.5
        %v4883 = vmul.f32 %v4340, 0.5
        %v4884 = vmul.f32 %v4564, 0.5
        %v4885 = vmul.f32 %v4566, 0.5
        %v4886 = vmul.f32 %v4790, 0.5
        %v4887 = vmul.f32 %v4792, 0.5
        %v4888 = vmul.f32 %v4344, 0.5
        %v4889 = vmul.f32 %v4346, 0.5
        %v4890 = vmul.f32 %v4570, 0.5
        %v4891 = vmul.f32 %v4572, 0.5
        %v4892 = vmul.f32 %v4796, 0.5
        %v4893 = vmul.f32 %v4798, 0.5
        %v4894 = vmul.f32 %v4348, 0.5
        %v4895 = vmul.f32 %v4350, 0.5
        %v4896 = vmul.f32 %v4574, 0.5
        %v4897 = vmul.f32 %v4576, 0.5
        %v4898 = vmul.f32 %v4800, 0.5
        %v4899 = vmul.f32 %v4802, 0.5
        %v4900 = vmul.f32 %v4274, 0.044715
        %v4901 = vmul.f32 %v4276, 0.044715
        %v4902 = vmul.f32 %v4500, 0.044715
        %v4903 = vmul.f32 %v4502, 0.044715
        %v4904 = vmul.f32 %v4726, 0.044715
        %v4905 = vmul.f32 %v4728, 0.044715
        %v4906 = vmul.f32 %v4278, 0.044715
        %v4907 = vmul.f32 %v4280, 0.044715
        %v4908 = vmul.f32 %v4504, 0.044715
        %v4909 = vmul.f32 %v4506, 0.044715
        %v4910 = vmul.f32 %v4730, 0.044715
        %v4911 = vmul.f32 %v4732, 0.044715
        %v4912 = vmul.f32 %v4284, 0.044715
        %v4913 = vmul.f32 %v4286, 0.044715
        %v4914 = vmul.f32 %v4510, 0.044715
        %v4915 = vmul.f32 %v4512, 0.044715
        %v4916 = vmul.f32 %v4736, 0.044715
        %v4917 = vmul.f32 %v4738, 0.044715
        %v4918 = vmul.f32 %v4288, 0.044715
        %v4919 = vmul.f32 %v4290, 0.044715
        %v4920 = vmul.f32 %v4514, 0.044715
        %v4921 = vmul.f32 %v4516, 0.044715
        %v4922 = vmul.f32 %v4740, 0.044715
        %v4923 = vmul.f32 %v4742, 0.044715
        %v4924 = vmul.f32 %v4294, 0.044715
        %v4925 = vmul.f32 %v4296, 0.044715
        %v4926 = vmul.f32 %v4520, 0.044715
        %v4927 = vmul.f32 %v4522, 0.044715
        %v4928 = vmul.f32 %v4746, 0.044715
        %v4929 = vmul.f32 %v4748, 0.044715
        %v4930 = vmul.f32 %v4298, 0.044715
        %v4931 = vmul.f32 %v4300, 0.044715
        %v4932 = vmul.f32 %v4524, 0.044715
        %v4933 = vmul.f32 %v4526, 0.044715
        %v4934 = vmul.f32 %v4750, 0.044715
        %v4935 = vmul.f32 %v4752, 0.044715
        %v4936 = vmul.f32 %v4304, 0.044715
        %v4937 = vmul.f32 %v4306, 0.044715
        %v4938 = vmul.f32 %v4530, 0.044715
        %v4939 = vmul.f32 %v4532, 0.044715
        %v4940 = vmul.f32 %v4756, 0.044715
        %v4941 = vmul.f32 %v4758, 0.044715
        %v4942 = vmul.f32 %v4308, 0.044715
        %v4943 = vmul.f32 %v4310, 0.044715
        %v4944 = vmul.f32 %v4534, 0.044715
        %v4945 = vmul.f32 %v4536, 0.044715
        %v4946 = vmul.f32 %v4760, 0.044715
        %v4947 = vmul.f32 %v4762, 0.044715
        %v4948 = vmul.f32 %v4314, 0.044715
        %v4949 = vmul.f32 %v4316, 0.044715
        %v4950 = vmul.f32 %v4540, 0.044715
        %v4951 = vmul.f32 %v4542, 0.044715
        %v4952 = vmul.f32 %v4766, 0.044715
        %v4953 = vmul.f32 %v4768, 0.044715
        %v4954 = vmul.f32 %v4318, 0.044715
        %v4955 = vmul.f32 %v4320, 0.044715
        %v4956 = vmul.f32 %v4544, 0.044715
        %v4957 = vmul.f32 %v4546, 0.044715
        %v4958 = vmul.f32 %v4770, 0.044715
        %v4959 = vmul.f32 %v4772, 0.044715
        %v4960 = vmul.f32 %v4324, 0.044715
        %v4961 = vmul.f32 %v4326, 0.044715
        %v4962 = vmul.f32 %v4550, 0.044715
        %v4963 = vmul.f32 %v4552, 0.044715
        %v4964 = vmul.f32 %v4776, 0.044715
        %v4965 = vmul.f32 %v4778, 0.044715
        %v4966 = vmul.f32 %v4328, 0.044715
        %v4967 = vmul.f32 %v4330, 0.044715
        %v4968 = vmul.f32 %v4554, 0.044715
        %v4969 = vmul.f32 %v4556, 0.044715
        %v4970 = vmul.f32 %v4780, 0.044715
        %v4971 = vmul.f32 %v4782, 0.044715
        %v4972 = vmul.f32 %v4334, 0.044715
        %v4973 = vmul.f32 %v4336, 0.044715
        %v4974 = vmul.f32 %v4560, 0.044715
        %v4975 = vmul.f32 %v4562, 0.044715
        %v4976 = vmul.f32 %v4786, 0.044715
        %v4977 = vmul.f32 %v4788, 0.044715
        %v4978 = vmul.f32 %v4338, 0.044715
        %v4979 = vmul.f32 %v4340, 0.044715
        %v4980 = vmul.f32 %v4564, 0.044715
        %v4981 = vmul.f32 %v4566, 0.044715
        %v4982 = vmul.f32 %v4790, 0.044715
        %v4983 = vmul.f32 %v4792, 0.044715
        %v4984 = vmul.f32 %v4344, 0.044715
        %v4985 = vmul.f32 %v4346, 0.044715
        %v4986 = vmul.f32 %v4570, 0.044715
        %v4987 = vmul.f32 %v4572, 0.044715
        %v4988 = vmul.f32 %v4796, 0.044715
        %v4989 = vmul.f32 %v4798, 0.044715
        %v4990 = vmul.f32 %v4348, 0.044715
        %v4991 = vmul.f32 %v4350, 0.044715
        %v4992 = vmul.f32 %v4574, 0.044715
        %v4993 = vmul.f32 %v4576, 0.044715
        %v4994 = vmul.f32 %v4800, 0.044715
        %v4995 = vmul.f32 %v4802, 0.044715
        %v4996 = vmul.f32 %v4900, %v4274
        %v4997 = vmul.f32 %v4901, %v4276
        %v4998 = vmul.f32 %v4902, %v4500
        %v4999 = vmul.f32 %v4903, %v4502
        %v5000 = vmul.f32 %v4904, %v4726
        %v5001 = vmul.f32 %v4905, %v4728
        %v5002 = vmul.f32 %v4906, %v4278
        %v5003 = vmul.f32 %v4907, %v4280
        %v5004 = vmul.f32 %v4908, %v4504
        %v5005 = vmul.f32 %v4909, %v4506
        %v5006 = vmul.f32 %v4910, %v4730
        %v5007 = vmul.f32 %v4911, %v4732
        %v5008 = vmul.f32 %v4912, %v4284
        %v5009 = vmul.f32 %v4913, %v4286
        %v5010 = vmul.f32 %v4914, %v4510
        %v5011 = vmul.f32 %v4915, %v4512
        %v5012 = vmul.f32 %v4916, %v4736
        %v5013 = vmul.f32 %v4917, %v4738
        %v5014 = vmul.f32 %v4918, %v4288
        %v5015 = vmul.f32 %v4919, %v4290
        %v5016 = vmul.f32 %v4920, %v4514
        %v5017 = vmul.f32 %v4921, %v4516
        %v5018 = vmul.f32 %v4922, %v4740
        %v5019 = vmul.f32 %v4923, %v4742
        %v5020 = vmul.f32 %v4924, %v4294
        %v5021 = vmul.f32 %v4925, %v4296
        %v5022 = vmul.f32 %v4926, %v4520
        %v5023 = vmul.f32 %v4927, %v4522
        %v5024 = vmul.f32 %v4928, %v4746
        %v5025 = vmul.f32 %v4929, %v4748
        %v5026 = vmul.f32 %v4930, %v4298
        %v5027 = vmul.f32 %v4931, %v4300
        %v5028 = vmul.f32 %v4932, %v4524
        %v5029 = vmul.f32 %v4933, %v4526
        %v5030 = vmul.f32 %v4934, %v4750
        %v5031 = vmul.f32 %v4935, %v4752
        %v5032 = vmul.f32 %v4936, %v4304
        %v5033 = vmul.f32 %v4937, %v4306
        %v5034 = vmul.f32 %v4938, %v4530
        %v5035 = vmul.f32 %v4939, %v4532
        %v5036 = vmul.f32 %v4940, %v4756
        %v5037 = vmul.f32 %v4941, %v4758
        %v5038 = vmul.f32 %v4942, %v4308
        %v5039 = vmul.f32 %v4943, %v4310
        %v5040 = vmul.f32 %v4944, %v4534
        %v5041 = vmul.f32 %v4945, %v4536
        %v5042 = vmul.f32 %v4946, %v4760
        %v5043 = vmul.f32 %v4947, %v4762
        %v5044 = vmul.f32 %v4948, %v4314
        %v5045 = vmul.f32 %v4949, %v4316
        %v5046 = vmul.f32 %v4950, %v4540
        %v5047 = vmul.f32 %v4951, %v4542
        %v5048 = vmul.f32 %v4952, %v4766
        %v5049 = vmul.f32 %v4953, %v4768
        %v5050 = vmul.f32 %v4954, %v4318
        %v5051 = vmul.f32 %v4955, %v4320
        %v5052 = vmul.f32 %v4956, %v4544
        %v5053 = vmul.f32 %v4957, %v4546
        %v5054 = vmul.f32 %v4958, %v4770
        %v5055 = vmul.f32 %v4959, %v4772
        %v5056 = vmul.f32 %v4960, %v4324
        %v5057 = vmul.f32 %v4961, %v4326
        %v5058 = vmul.f32 %v4962, %v4550
        %v5059 = vmul.f32 %v4963, %v4552
        %v5060 = vmul.f32 %v4964, %v4776
        %v5061 = vmul.f32 %v4965, %v4778
        %v5062 = vmul.f32 %v4966, %v4328
        %v5063 = vmul.f32 %v4967, %v4330
        %v5064 = vmul.f32 %v4968, %v4554
        %v5065 = vmul.f32 %v4969, %v4556
        %v5066 = vmul.f32 %v4970, %v4780
        %v5067 = vmul.f32 %v4971, %v4782
        %v5068 = vmul.f32 %v4972, %v4334
        %v5069 = vmul.f32 %v4973, %v4336
        %v5070 = vmul.f32 %v4974, %v4560
        %v5071 = vmul.f32 %v4975, %v4562
        %v5072 = vmul.f32 %v4976, %v4786
        %v5073 = vmul.f32 %v4977, %v4788
        %v5074 = vmul.f32 %v4978, %v4338
        %v5075 = vmul.f32 %v4979, %v4340
        %v5076 = vmul.f32 %v4980, %v4564
        %v5077 = vmul.f32 %v4981, %v4566
        %v5078 = vmul.f32 %v4982, %v4790
        %v5079 = vmul.f32 %v4983, %v4792
        %v5080 = vmul.f32 %v4984, %v4344
        %v5081 = vmul.f32 %v4985, %v4346
        %v5082 = vmul.f32 %v4986, %v4570
        %v5083 = vmul.f32 %v4987, %v4572
        %v5084 = vmul.f32 %v4988, %v4796
        %v5085 = vmul.f32 %v4989, %v4798
        %v5086 = vmul.f32 %v4990, %v4348
        %v5087 = vmul.f32 %v4991, %v4350
        %v5088 = vmul.f32 %v4992, %v4574
        %v5089 = vmul.f32 %v4993, %v4576
        %v5090 = vmul.f32 %v4994, %v4800
        %v5091 = vmul.f32 %v4995, %v4802
        %v5092 = vmul.f32 %v4996, %v4274
        %v5093 = vmul.f32 %v4997, %v4276
        %v5094 = vmul.f32 %v4998, %v4500
        %v5095 = vmul.f32 %v4999, %v4502
        %v5096 = vmul.f32 %v5000, %v4726
        %v5097 = vmul.f32 %v5001, %v4728
        %v5098 = vmul.f32 %v5002, %v4278
        %v5099 = vmul.f32 %v5003, %v4280
        %v5100 = vmul.f32 %v5004, %v4504
        %v5101 = vmul.f32 %v5005, %v4506
        %v5102 = vmul.f32 %v5006, %v4730
        %v5103 = vmul.f32 %v5007, %v4732
        %v5104 = vmul.f32 %v5008, %v4284
        %v5105 = vmul.f32 %v5009, %v4286
        %v5106 = vmul.f32 %v5010, %v4510
        %v5107 = vmul.f32 %v5011, %v4512
        %v5108 = vmul.f32 %v5012, %v4736
        %v5109 = vmul.f32 %v5013, %v4738
        %v5110 = vmul.f32 %v5014, %v4288
        %v5111 = vmul.f32 %v5015, %v4290
        %v5112 = vmul.f32 %v5016, %v4514
        %v5113 = vmul.f32 %v5017, %v4516
        %v5114 = vmul.f32 %v5018, %v4740
        %v5115 = vmul.f32 %v5019, %v4742
        %v5116 = vmul.f32 %v5020, %v4294
        %v5117 = vmul.f32 %v5021, %v4296
        %v5118 = vmul.f32 %v5022, %v4520
        %v5119 = vmul.f32 %v5023, %v4522
        %v5120 = vmul.f32 %v5024, %v4746
        %v5121 = vmul.f32 %v5025, %v4748
        %v5122 = vmul.f32 %v5026, %v4298
        %v5123 = vmul.f32 %v5027, %v4300
        %v5124 = vmul.f32 %v5028, %v4524
        %v5125 = vmul.f32 %v5029, %v4526
        %v5126 = vmul.f32 %v5030, %v4750
        %v5127 = vmul.f32 %v5031, %v4752
        %v5128 = vmul.f32 %v5032, %v4304
        %v5129 = vmul.f32 %v5033, %v4306
        %v5130 = vmul.f32 %v5034, %v4530
        %v5131 = vmul.f32 %v5035, %v4532
        %v5132 = vmul.f32 %v5036, %v4756
        %v5133 = vmul.f32 %v5037, %v4758
        %v5134 = vmul.f32 %v5038, %v4308
        %v5135 = vmul.f32 %v5039, %v4310
        %v5136 = vmul.f32 %v5040, %v4534
        %v5137 = vmul.f32 %v5041, %v4536
        %v5138 = vmul.f32 %v5042, %v4760
        %v5139 = vmul.f32 %v5043, %v4762
        %v5140 = vmul.f32 %v5044, %v4314
        %v5141 = vmul.f32 %v5045, %v4316
        %v5142 = vmul.f32 %v5046, %v4540
        %v5143 = vmul.f32 %v5047, %v4542
        %v5144 = vmul.f32 %v5048, %v4766
        %v5145 = vmul.f32 %v5049, %v4768
        %v5146 = vmul.f32 %v5050, %v4318
        %v5147 = vmul.f32 %v5051, %v4320
        %v5148 = vmul.f32 %v5052, %v4544
        %v5149 = vmul.f32 %v5053, %v4546
        %v5150 = vmul.f32 %v5054, %v4770
        %v5151 = vmul.f32 %v5055, %v4772
        %v5152 = vmul.f32 %v5056, %v4324
        %v5153 = vmul.f32 %v5057, %v4326
        %v5154 = vmul.f32 %v5058, %v4550
        %v5155 = vmul.f32 %v5059, %v4552
        %v5156 = vmul.f32 %v5060, %v4776
        %v5157 = vmul.f32 %v5061, %v4778
        %v5158 = vmul.f32 %v5062, %v4328
        %v5159 = vmul.f32 %v5063, %v4330
        %v5160 = vmul.f32 %v5064, %v4554
        %v5161 = vmul.f32 %v5065, %v4556
        %v5162 = vmul.f32 %v5066, %v4780
        %v5163 = vmul.f32 %v5067, %v4782
        %v5164 = vmul.f32 %v5068, %v4334
        %v5165 = vmul.f32 %v5069, %v4336
        %v5166 = vmul.f32 %v5070, %v4560
        %v5167 = vmul.f32 %v5071, %v4562
        %v5168 = vmul.f32 %v5072, %v4786
        %v5169 = vmul.f32 %v5073, %v4788
        %v5170 = vmul.f32 %v5074, %v4338
        %v5171 = vmul.f32 %v5075, %v4340
        %v5172 = vmul.f32 %v5076, %v4564
        %v5173 = vmul.f32 %v5077, %v4566
        %v5174 = vmul.f32 %v5078, %v4790
        %v5175 = vmul.f32 %v5079, %v4792
        %v5176 = vmul.f32 %v5080, %v4344
        %v5177 = vmul.f32 %v5081, %v4346
        %v5178 = vmul.f32 %v5082, %v4570
        %v5179 = vmul.f32 %v5083, %v4572
        %v5180 = vmul.f32 %v5084, %v4796
        %v5181 = vmul.f32 %v5085, %v4798
        %v5182 = vmul.f32 %v5086, %v4348
        %v5183 = vmul.f32 %v5087, %v4350
        %v5184 = vmul.f32 %v5088, %v4574
        %v5185 = vmul.f32 %v5089, %v4576
        %v5186 = vmul.f32 %v5090, %v4800
        %v5187 = vmul.f32 %v5091, %v4802
        %v5188 = vadd.f32 %v4274, %v5092
        %v5189 = vadd.f32 %v4276, %v5093
        %v5190 = vadd.f32 %v4500, %v5094
        %v5191 = vadd.f32 %v4502, %v5095
        %v5192 = vadd.f32 %v4726, %v5096
        %v5193 = vadd.f32 %v4728, %v5097
        %v5194 = vadd.f32 %v4278, %v5098
        %v5195 = vadd.f32 %v4280, %v5099
        %v5196 = vadd.f32 %v4504, %v5100
        %v5197 = vadd.f32 %v4506, %v5101
        %v5198 = vadd.f32 %v4730, %v5102
        %v5199 = vadd.f32 %v4732, %v5103
        %v5200 = vadd.f32 %v4284, %v5104
        %v5201 = vadd.f32 %v4286, %v5105
        %v5202 = vadd.f32 %v4510, %v5106
        %v5203 = vadd.f32 %v4512, %v5107
        %v5204 = vadd.f32 %v4736, %v5108
        %v5205 = vadd.f32 %v4738, %v5109
        %v5206 = vadd.f32 %v4288, %v5110
        %v5207 = vadd.f32 %v4290, %v5111
        %v5208 = vadd.f32 %v4514, %v5112
        %v5209 = vadd.f32 %v4516, %v5113
        %v5210 = vadd.f32 %v4740, %v5114
        %v5211 = vadd.f32 %v4742, %v5115
        %v5212 = vadd.f32 %v4294, %v5116
        %v5213 = vadd.f32 %v4296, %v5117
        %v5214 = vadd.f32 %v4520, %v5118
        %v5215 = vadd.f32 %v4522, %v5119
        %v5216 = vadd.f32 %v4746, %v5120
        %v5217 = vadd.f32 %v4748, %v5121
        %v5218 = vadd.f32 %v4298, %v5122
        %v5219 = vadd.f32 %v4300, %v5123
        %v5220 = vadd.f32 %v4524, %v5124
        %v5221 = vadd.f32 %v4526, %v5125
        %v5222 = vadd.f32 %v4750, %v5126
        %v5223 = vadd.f32 %v4752, %v5127
        %v5224 = vadd.f32 %v4304, %v5128
        %v5225 = vadd.f32 %v4306, %v5129
        %v5226 = vadd.f32 %v4530, %v5130
        %v5227 = vadd.f32 %v4532, %v5131
        %v5228 = vadd.f32 %v4756, %v5132
        %v5229 = vadd.f32 %v4758, %v5133
        %v5230 = vadd.f32 %v4308, %v5134
        %v5231 = vadd.f32 %v4310, %v5135
        %v5232 = vadd.f32 %v4534, %v5136
        %v5233 = vadd.f32 %v4536, %v5137
        %v5234 = vadd.f32 %v4760, %v5138
        %v5235 = vadd.f32 %v4762, %v5139
        %v5236 = vadd.f32 %v4314, %v5140
        %v5237 = vadd.f32 %v4316, %v5141
        %v5238 = vadd.f32 %v4540, %v5142
        %v5239 = vadd.f32 %v4542, %v5143
        %v5240 = vadd.f32 %v4766, %v5144
        %v5241 = vadd.f32 %v4768, %v5145
        %v5242 = vadd.f32 %v4318, %v5146
        %v5243 = vadd.f32 %v4320, %v5147
        %v5244 = vadd.f32 %v4544, %v5148
        %v5245 = vadd.f32 %v4546, %v5149
        %v5246 = vadd.f32 %v4770, %v5150
        %v5247 = vadd.f32 %v4772, %v5151
        %v5248 = vadd.f32 %v4324, %v5152
        %v5249 = vadd.f32 %v4326, %v5153
        %v5250 = vadd.f32 %v4550, %v5154
        %v5251 = vadd.f32 %v4552, %v5155
        %v5252 = vadd.f32 %v4776, %v5156
        %v5253 = vadd.f32 %v4778, %v5157
        %v5254 = vadd.f32 %v4328, %v5158
        %v5255 = vadd.f32 %v4330, %v5159
        %v5256 = vadd.f32 %v4554, %v5160
        %v5257 = vadd.f32 %v4556, %v5161
        %v5258 = vadd.f32 %v4780, %v5162
        %v5259 = vadd.f32 %v4782, %v5163
        %v5260 = vadd.f32 %v4334, %v5164
        %v5261 = vadd.f32 %v4336, %v5165
        %v5262 = vadd.f32 %v4560, %v5166
        %v5263 = vadd.f32 %v4562, %v5167
        %v5264 = vadd.f32 %v4786, %v5168
        %v5265 = vadd.f32 %v4788, %v5169
        %v5266 = vadd.f32 %v4338, %v5170
        %v5267 = vadd.f32 %v4340, %v5171
        %v5268 = vadd.f32 %v4564, %v5172
        %v5269 = vadd.f32 %v4566, %v5173
        %v5270 = vadd.f32 %v4790, %v5174
        %v5271 = vadd.f32 %v4792, %v5175
        %v5272 = vadd.f32 %v4344, %v5176
        %v5273 = vadd.f32 %v4346, %v5177
        %v5274 = vadd.f32 %v4570, %v5178
        %v5275 = vadd.f32 %v4572, %v5179
        %v5276 = vadd.f32 %v4796, %v5180
        %v5277 = vadd.f32 %v4798, %v5181
        %v5278 = vadd.f32 %v4348, %v5182
        %v5279 = vadd.f32 %v4350, %v5183
        %v5280 = vadd.f32 %v4574, %v5184
        %v5281 = vadd.f32 %v4576, %v5185
        %v5282 = vadd.f32 %v4800, %v5186
        %v5283 = vadd.f32 %v4802, %v5187
        %v5284 = vmul.f32 %v5188, 0.7978846
        %v5285 = vmul.f32 %v5189, 0.7978846
        %v5286 = vmul.f32 %v5190, 0.7978846
        %v5287 = vmul.f32 %v5191, 0.7978846
        %v5288 = vmul.f32 %v5192, 0.7978846
        %v5289 = vmul.f32 %v5193, 0.7978846
        %v5290 = vmul.f32 %v5194, 0.7978846
        %v5291 = vmul.f32 %v5195, 0.7978846
        %v5292 = vmul.f32 %v5196, 0.7978846
        %v5293 = vmul.f32 %v5197, 0.7978846
        %v5294 = vmul.f32 %v5198, 0.7978846
        %v5295 = vmul.f32 %v5199, 0.7978846
        %v5296 = vmul.f32 %v5200, 0.7978846
        %v5297 = vmul.f32 %v5201, 0.7978846
        %v5298 = vmul.f32 %v5202, 0.7978846
        %v5299 = vmul.f32 %v5203, 0.7978846
        %v5300 = vmul.f32 %v5204, 0.7978846
        %v5301 = vmul.f32 %v5205, 0.7978846
        %v5302 = vmul.f32 %v5206, 0.7978846
        %v5303 = vmul.f32 %v5207, 0.7978846
        %v5304 = vmul.f32 %v5208, 0.7978846
        %v5305 = vmul.f32 %v5209, 0.7978846
        %v5306 = vmul.f32 %v5210, 0.7978846
        %v5307 = vmul.f32 %v5211, 0.7978846
        %v5308 = vmul.f32 %v5212, 0.7978846
        %v5309 = vmul.f32 %v5213, 0.7978846
        %v5310 = vmul.f32 %v5214, 0.7978846
        %v5311 = vmul.f32 %v5215, 0.7978846
        %v5312 = vmul.f32 %v5216, 0.7978846
        %v5313 = vmul.f32 %v5217, 0.7978846
        %v5314 = vmul.f32 %v5218, 0.7978846
        %v5315 = vmul.f32 %v5219, 0.7978846
        %v5316 = vmul.f32 %v5220, 0.7978846
        %v5317 = vmul.f32 %v5221, 0.7978846
        %v5318 = vmul.f32 %v5222, 0.7978846
        %v5319 = vmul.f32 %v5223, 0.7978846
        %v5320 = vmul.f32 %v5224, 0.7978846
        %v5321 = vmul.f32 %v5225, 0.7978846
        %v5322 = vmul.f32 %v5226, 0.7978846
        %v5323 = vmul.f32 %v5227, 0.7978846
        %v5324 = vmul.f32 %v5228, 0.7978846
        %v5325 = vmul.f32 %v5229, 0.7978846
        %v5326 = vmul.f32 %v5230, 0.7978846
        %v5327 = vmul.f32 %v5231, 0.7978846
        %v5328 = vmul.f32 %v5232, 0.7978846
        %v5329 = vmul.f32 %v5233, 0.7978846
        %v5330 = vmul.f32 %v5234, 0.7978846
        %v5331 = vmul.f32 %v5235, 0.7978846
        %v5332 = vmul.f32 %v5236, 0.7978846
        %v5333 = vmul.f32 %v5237, 0.7978846
        %v5334 = vmul.f32 %v5238, 0.7978846
        %v5335 = vmul.f32 %v5239, 0.7978846
        %v5336 = vmul.f32 %v5240, 0.7978846
        %v5337 = vmul.f32 %v5241, 0.7978846
        %v5338 = vmul.f32 %v5242, 0.7978846
        %v5339 = vmul.f32 %v5243, 0.7978846
        %v5340 = vmul.f32 %v5244, 0.7978846
        %v5341 = vmul.f32 %v5245, 0.7978846
        %v5342 = vmul.f32 %v5246, 0.7978846
        %v5343 = vmul.f32 %v5247, 0.7978846
        %v5344 = vmul.f32 %v5248, 0.7978846
        %v5345 = vmul.f32 %v5249, 0.7978846
        %v5346 = vmul.f32 %v5250, 0.7978846
        %v5347 = vmul.f32 %v5251, 0.7978846
        %v5348 = vmul.f32 %v5252, 0.7978846
        %v5349 = vmul.f32 %v5253, 0.7978846
        %v5350 = vmul.f32 %v5254, 0.7978846
        %v5351 = vmul.f32 %v5255, 0.7978846
        %v5352 = vmul.f32 %v5256, 0.7978846
        %v5353 = vmul.f32 %v5257, 0.7978846
        %v5354 = vmul.f32 %v5258, 0.7978846
        %v5355 = vmul.f32 %v5259, 0.7978846
        %v5356 = vmul.f32 %v5260, 0.7978846
        %v5357 = vmul.f32 %v5261, 0.7978846
        %v5358 = vmul.f32 %v5262, 0.7978846
        %v5359 = vmul.f32 %v5263, 0.7978846
        %v5360 = vmul.f32 %v5264, 0.7978846
        %v5361 = vmul.f32 %v5265, 0.7978846
        %v5362 = vmul.f32 %v5266, 0.7978846
        %v5363 = vmul.f32 %v5267, 0.7978846
        %v5364 = vmul.f32 %v5268, 0.7978846
        %v5365 = vmul.f32 %v5269, 0.7978846
        %v5366 = vmul.f32 %v5270, 0.7978846
        %v5367 = vmul.f32 %v5271, 0.7978846
        %v5368 = vmul.f32 %v5272, 0.7978846
        %v5369 = vmul.f32 %v5273, 0.7978846
        %v5370 = vmul.f32 %v5274, 0.7978846
        %v5371 = vmul.f32 %v5275, 0.7978846
        %v5372 = vmul.f32 %v5276, 0.7978846
        %v5373 = vmul.f32 %v5277, 0.7978846
        %v5374 = vmul.f32 %v5278, 0.7978846
        %v5375 = vmul.f32 %v5279, 0.7978846
        %v5376 = vmul.f32 %v5280, 0.7978846
        %v5377 = vmul.f32 %v5281, 0.7978846
        %v5378 = vmul.f32 %v5282, 0.7978846
        %v5379 = vmul.f32 %v5283, 0.7978846
        %v5380 = vtanh.pop %v5284
        %v5381 = vtanh.pop %v5285
        %v5382 = vtanh.pop %v5286
        %v5383 = vtanh.pop %v5287
        %v5384 = vtanh.pop %v5288
        %v5385 = vtanh.pop %v5289
        %v5386 = vtanh.pop %v5290
        %v5387 = vtanh.pop %v5291
        %v5388 = vtanh.pop %v5292
        %v5389 = vtanh.pop %v5293
        %v5390 = vtanh.pop %v5294
        %v5391 = vtanh.pop %v5295
        %v5392 = vtanh.pop %v5296
        %v5393 = vtanh.pop %v5297
        %v5394 = vtanh.pop %v5298
        %v5395 = vtanh.pop %v5299
        %v5396 = vtanh.pop %v5300
        %v5397 = vtanh.pop %v5301
        %v5398 = vtanh.pop %v5302
        %v5399 = vtanh.pop %v5303
        %v5400 = vtanh.pop %v5304
        %v5401 = vtanh.pop %v5305
        %v5402 = vtanh.pop %v5306
        %v5403 = vtanh.pop %v5307
        %v5404 = vtanh.pop %v5308
        %v5405 = vtanh.pop %v5309
        %v5406 = vtanh.pop %v5310
        %v5407 = vtanh.pop %v5311
        %v5408 = vtanh.pop %v5312
        %v5409 = vtanh.pop %v5313
        %v5410 = vtanh.pop %v5314
        %v5411 = vtanh.pop %v5315
        %v5412 = vtanh.pop %v5316
        %v5413 = vtanh.pop %v5317
        %v5414 = vtanh.pop %v5318
        %v5415 = vtanh.pop %v5319
        %v5416 = vtanh.pop %v5320
        %v5417 = vtanh.pop %v5321
        %v5418 = vtanh.pop %v5322
        %v5419 = vtanh.pop %v5323
        %v5420 = vtanh.pop %v5324
        %v5421 = vtanh.pop %v5325
        %v5422 = vtanh.pop %v5326
        %v5423 = vtanh.pop %v5327
        %v5424 = vtanh.pop %v5328
        %v5425 = vtanh.pop %v5329
        %v5426 = vtanh.pop %v5330
        %v5427 = vtanh.pop %v5331
        %v5428 = vtanh.pop %v5332
        %v5429 = vtanh.pop %v5333
        %v5430 = vtanh.pop %v5334
        %v5431 = vtanh.pop %v5335
        %v5432 = vtanh.pop %v5336
        %v5433 = vtanh.pop %v5337
        %v5434 = vtanh.pop %v5338
        %v5435 = vtanh.pop %v5339
        %v5436 = vtanh.pop %v5340
        %v5437 = vtanh.pop %v5341
        %v5438 = vtanh.pop %v5342
        %v5439 = vtanh.pop %v5343
        %v5440 = vtanh.pop %v5344
        %v5441 = vtanh.pop %v5345
        %v5442 = vtanh.pop %v5346
        %v5443 = vtanh.pop %v5347
        %v5444 = vtanh.pop %v5348
        %v5445 = vtanh.pop %v5349
        %v5446 = vtanh.pop %v5350
        %v5447 = vtanh.pop %v5351
        %v5448 = vtanh.pop %v5352
        %v5449 = vtanh.pop %v5353
        %v5450 = vtanh.pop %v5354
        %v5451 = vtanh.pop %v5355
        %v5452 = vtanh.pop %v5356
        %v5453 = vtanh.pop %v5357
        %v5454 = vtanh.pop %v5358
        %v5455 = vtanh.pop %v5359
        %v5456 = vtanh.pop %v5360
        %v5457 = vtanh.pop %v5361
        %v5458 = vtanh.pop %v5362
        %v5459 = vtanh.pop %v5363
        %v5460 = vtanh.pop %v5364
        %v5461 = vtanh.pop %v5365
        %v5462 = vtanh.pop %v5366
        %v5463 = vtanh.pop %v5367
        %v5464 = vtanh.pop %v5368
        %v5465 = vtanh.pop %v5369
        %v5466 = vtanh.pop %v5370
        %v5467 = vtanh.pop %v5371
        %v5468 = vtanh.pop %v5372
        %v5469 = vtanh.pop %v5373
        %v5470 = vtanh.pop %v5374
        %v5471 = vtanh.pop %v5375
        %v5472 = vtanh.pop %v5376
        %v5473 = vtanh.pop %v5377
        %v5474 = vtanh.pop %v5378
        %v5475 = vtanh.pop %v5379
        %v5476 = vadd.f32 %v5380, 1.0
        %v5477 = vadd.f32 %v5381, 1.0
        %v5478 = vadd.f32 %v5382, 1.0
        %v5479 = vadd.f32 %v5383, 1.0
        %v5480 = vadd.f32 %v5384, 1.0
        %v5481 = vadd.f32 %v5385, 1.0
        %v5482 = vadd.f32 %v5386, 1.0
        %v5483 = vadd.f32 %v5387, 1.0
        %v5484 = vadd.f32 %v5388, 1.0
        %v5485 = vadd.f32 %v5389, 1.0
        %v5486 = vadd.f32 %v5390, 1.0
        %v5487 = vadd.f32 %v5391, 1.0
        %v5488 = vadd.f32 %v5392, 1.0
        %v5489 = vadd.f32 %v5393, 1.0
        %v5490 = vadd.f32 %v5394, 1.0
        %v5491 = vadd.f32 %v5395, 1.0
        %v5492 = vadd.f32 %v5396, 1.0
        %v5493 = vadd.f32 %v5397, 1.0
        %v5494 = vadd.f32 %v5398, 1.0
        %v5495 = vadd.f32 %v5399, 1.0
        %v5496 = vadd.f32 %v5400, 1.0
        %v5497 = vadd.f32 %v5401, 1.0
        %v5498 = vadd.f32 %v5402, 1.0
        %v5499 = vadd.f32 %v5403, 1.0
        %v5500 = vadd.f32 %v5404, 1.0
        %v5501 = vadd.f32 %v5405, 1.0
        %v5502 = vadd.f32 %v5406, 1.0
        %v5503 = vadd.f32 %v5407, 1.0
        %v5504 = vadd.f32 %v5408, 1.0
        %v5505 = vadd.f32 %v5409, 1.0
        %v5506 = vadd.f32 %v5410, 1.0
        %v5507 = vadd.f32 %v5411, 1.0
        %v5508 = vadd.f32 %v5412, 1.0
        %v5509 = vadd.f32 %v5413, 1.0
        %v5510 = vadd.f32 %v5414, 1.0
        %v5511 = vadd.f32 %v5415, 1.0
        %v5512 = vadd.f32 %v5416, 1.0
        %v5513 = vadd.f32 %v5417, 1.0
        %v5514 = vadd.f32 %v5418, 1.0
        %v5515 = vadd.f32 %v5419, 1.0
        %v5516 = vadd.f32 %v5420, 1.0
        %v5517 = vadd.f32 %v5421, 1.0
        %v5518 = vadd.f32 %v5422, 1.0
        %v5519 = vadd.f32 %v5423, 1.0
        %v5520 = vadd.f32 %v5424, 1.0
        %v5521 = vadd.f32 %v5425, 1.0
        %v5522 = vadd.f32 %v5426, 1.0
        %v5523 = vadd.f32 %v5427, 1.0
        %v5524 = vadd.f32 %v5428, 1.0
        %v5525 = vadd.f32 %v5429, 1.0
        %v5526 = vadd.f32 %v5430, 1.0
        %v5527 = vadd.f32 %v5431, 1.0
        %v5528 = vadd.f32 %v5432, 1.0
        %v5529 = vadd.f32 %v5433, 1.0
        %v5530 = vadd.f32 %v5434, 1.0
        %v5531 = vadd.f32 %v5435, 1.0
        %v5532 = vadd.f32 %v5436, 1.0
        %v5533 = vadd.f32 %v5437, 1.0
        %v5534 = vadd.f32 %v5438, 1.0
        %v5535 = vadd.f32 %v5439, 1.0
        %v5536 = vadd.f32 %v5440, 1.0
        %v5537 = vadd.f32 %v5441, 1.0
        %v5538 = vadd.f32 %v5442, 1.0
        %v5539 = vadd.f32 %v5443, 1.0
        %v5540 = vadd.f32 %v5444, 1.0
        %v5541 = vadd.f32 %v5445, 1.0
        %v5542 = vadd.f32 %v5446, 1.0
        %v5543 = vadd.f32 %v5447, 1.0
        %v5544 = vadd.f32 %v5448, 1.0
        %v5545 = vadd.f32 %v5449, 1.0
        %v5546 = vadd.f32 %v5450, 1.0
        %v5547 = vadd.f32 %v5451, 1.0
        %v5548 = vadd.f32 %v5452, 1.0
        %v5549 = vadd.f32 %v5453, 1.0
        %v5550 = vadd.f32 %v5454, 1.0
        %v5551 = vadd.f32 %v5455, 1.0
        %v5552 = vadd.f32 %v5456, 1.0
        %v5553 = vadd.f32 %v5457, 1.0
        %v5554 = vadd.f32 %v5458, 1.0
        %v5555 = vadd.f32 %v5459, 1.0
        %v5556 = vadd.f32 %v5460, 1.0
        %v5557 = vadd.f32 %v5461, 1.0
        %v5558 = vadd.f32 %v5462, 1.0
        %v5559 = vadd.f32 %v5463, 1.0
        %v5560 = vadd.f32 %v5464, 1.0
        %v5561 = vadd.f32 %v5465, 1.0
        %v5562 = vadd.f32 %v5466, 1.0
        %v5563 = vadd.f32 %v5467, 1.0
        %v5564 = vadd.f32 %v5468, 1.0
        %v5565 = vadd.f32 %v5469, 1.0
        %v5566 = vadd.f32 %v5470, 1.0
        %v5567 = vadd.f32 %v5471, 1.0
        %v5568 = vadd.f32 %v5472, 1.0
        %v5569 = vadd.f32 %v5473, 1.0
        %v5570 = vadd.f32 %v5474, 1.0
        %v5571 = vadd.f32 %v5475, 1.0
        %v5572 = vmul.f32 %v4804, %v5476
        %v5573 = vmul.f32 %v4805, %v5477
        %v5574 = vmul.f32 %v4806, %v5478
        %v5575 = vmul.f32 %v4807, %v5479
        %v5576 = vmul.f32 %v4808, %v5480
        %v5577 = vmul.f32 %v4809, %v5481
        %v5578 = vmul.f32 %v4810, %v5482
        %v5579 = vmul.f32 %v4811, %v5483
        %v5580 = vmul.f32 %v4812, %v5484
        %v5581 = vmul.f32 %v4813, %v5485
        %v5582 = vmul.f32 %v4814, %v5486
        %v5583 = vmul.f32 %v4815, %v5487
        %v5584 = vmul.f32 %v4816, %v5488
        %v5585 = vmul.f32 %v4817, %v5489
        %v5586 = vmul.f32 %v4818, %v5490
        %v5587 = vmul.f32 %v4819, %v5491
        %v5588 = vmul.f32 %v4820, %v5492
        %v5589 = vmul.f32 %v4821, %v5493
        %v5590 = vmul.f32 %v4822, %v5494
        %v5591 = vmul.f32 %v4823, %v5495
        %v5592 = vmul.f32 %v4824, %v5496
        %v5593 = vmul.f32 %v4825, %v5497
        %v5594 = vmul.f32 %v4826, %v5498
        %v5595 = vmul.f32 %v4827, %v5499
        %v5596 = vmul.f32 %v4828, %v5500
        %v5597 = vmul.f32 %v4829, %v5501
        %v5598 = vmul.f32 %v4830, %v5502
        %v5599 = vmul.f32 %v4831, %v5503
        %v5600 = vmul.f32 %v4832, %v5504
        %v5601 = vmul.f32 %v4833, %v5505
        %v5602 = vmul.f32 %v4834, %v5506
        %v5603 = vmul.f32 %v4835, %v5507
        %v5604 = vmul.f32 %v4836, %v5508
        %v5605 = vmul.f32 %v4837, %v5509
        %v5606 = vmul.f32 %v4838, %v5510
        %v5607 = vmul.f32 %v4839, %v5511
        %v5608 = vmul.f32 %v4840, %v5512
        %v5609 = vmul.f32 %v4841, %v5513
        %v5610 = vmul.f32 %v4842, %v5514
        %v5611 = vmul.f32 %v4843, %v5515
        %v5612 = vmul.f32 %v4844, %v5516
        %v5613 = vmul.f32 %v4845, %v5517
        %v5614 = vmul.f32 %v4846, %v5518
        %v5615 = vmul.f32 %v4847, %v5519
        %v5616 = vmul.f32 %v4848, %v5520
        %v5617 = vmul.f32 %v4849, %v5521
        %v5618 = vmul.f32 %v4850, %v5522
        %v5619 = vmul.f32 %v4851, %v5523
        %v5620 = vmul.f32 %v4852, %v5524
        %v5621 = vmul.f32 %v4853, %v5525
        %v5622 = vmul.f32 %v4854, %v5526
        %v5623 = vmul.f32 %v4855, %v5527
        %v5624 = vmul.f32 %v4856, %v5528
        %v5625 = vmul.f32 %v4857, %v5529
        %v5626 = vmul.f32 %v4858, %v5530
        %v5627 = vmul.f32 %v4859, %v5531
        %v5628 = vmul.f32 %v4860, %v5532
        %v5629 = vmul.f32 %v4861, %v5533
        %v5630 = vmul.f32 %v4862, %v5534
        %v5631 = vmul.f32 %v4863, %v5535
        %v5632 = vmul.f32 %v4864, %v5536
        %v5633 = vmul.f32 %v4865, %v5537
        %v5634 = vmul.f32 %v4866, %v5538
        %v5635 = vmul.f32 %v4867, %v5539
        %v5636 = vmul.f32 %v4868, %v5540
        %v5637 = vmul.f32 %v4869, %v5541
        %v5638 = vmul.f32 %v4870, %v5542
        %v5639 = vmul.f32 %v4871, %v5543
        %v5640 = vmul.f32 %v4872, %v5544
        %v5641 = vmul.f32 %v4873, %v5545
        %v5642 = vmul.f32 %v4874, %v5546
        %v5643 = vmul.f32 %v4875, %v5547
        %v5644 = vmul.f32 %v4876, %v5548
        %v5645 = vmul.f32 %v4877, %v5549
        %v5646 = vmul.f32 %v4878, %v5550
        %v5647 = vmul.f32 %v4879, %v5551
        %v5648 = vmul.f32 %v4880, %v5552
        %v5649 = vmul.f32 %v4881, %v5553
        %v5650 = vmul.f32 %v4882, %v5554
        %v5651 = vmul.f32 %v4883, %v5555
        %v5652 = vmul.f32 %v4884, %v5556
        %v5653 = vmul.f32 %v4885, %v5557
        %v5654 = vmul.f32 %v4886, %v5558
        %v5655 = vmul.f32 %v4887, %v5559
        %v5656 = vmul.f32 %v4888, %v5560
        %v5657 = vmul.f32 %v4889, %v5561
        %v5658 = vmul.f32 %v4890, %v5562
        %v5659 = vmul.f32 %v4891, %v5563
        %v5660 = vmul.f32 %v4892, %v5564
        %v5661 = vmul.f32 %v4893, %v5565
        %v5662 = vmul.f32 %v4894, %v5566
        %v5663 = vmul.f32 %v4895, %v5567
        %v5664 = vmul.f32 %v4896, %v5568
        %v5665 = vmul.f32 %v4897, %v5569
        %v5666 = vmul.f32 %v4898, %v5570
        %v5667 = vmul.f32 %v4899, %v5571
        %v5668 = vmul.f32 %v3596, %v5572
        %v5669 = vmul.f32 %v3598, %v5573
        %v5670 = vmul.f32 %v3822, %v5574
        %v5671 = vmul.f32 %v3824, %v5575
        %v5672 = vmul.f32 %v4048, %v5576
        %v5673 = vmul.f32 %v4050, %v5577
        %v5674 = vmul.f32 %v3600, %v5578
        %v5675 = vmul.f32 %v3602, %v5579
        %v5676 = vmul.f32 %v3826, %v5580
        %v5677 = vmul.f32 %v3828, %v5581
        %v5678 = vmul.f32 %v4052, %v5582
        %v5679 = vmul.f32 %v4054, %v5583
        %v5680 = vmul.f32 %v3606, %v5584
        %v5681 = vmul.f32 %v3608, %v5585
        %v5682 = vmul.f32 %v3832, %v5586
        %v5683 = vmul.f32 %v3834, %v5587
        %v5684 = vmul.f32 %v4058, %v5588
        %v5685 = vmul.f32 %v4060, %v5589
        %v5686 = vmul.f32 %v3610, %v5590
        %v5687 = vmul.f32 %v3612, %v5591
        %v5688 = vmul.f32 %v3836, %v5592
        %v5689 = vmul.f32 %v3838, %v5593
        %v5690 = vmul.f32 %v4062, %v5594
        %v5691 = vmul.f32 %v4064, %v5595
        %v5692 = vmul.f32 %v3616, %v5596
        %v5693 = vmul.f32 %v3618, %v5597
        %v5694 = vmul.f32 %v3842, %v5598
        %v5695 = vmul.f32 %v3844, %v5599
        %v5696 = vmul.f32 %v4068, %v5600
        %v5697 = vmul.f32 %v4070, %v5601
        %v5698 = vmul.f32 %v3620, %v5602
        %v5699 = vmul.f32 %v3622, %v5603
        %v5700 = vmul.f32 %v3846, %v5604
        %v5701 = vmul.f32 %v3848, %v5605
        %v5702 = vmul.f32 %v4072, %v5606
        %v5703 = vmul.f32 %v4074, %v5607
        %v5704 = vmul.f32 %v3626, %v5608
        %v5705 = vmul.f32 %v3628, %v5609
        %v5706 = vmul.f32 %v3852, %v5610
        %v5707 = vmul.f32 %v3854, %v5611
        %v5708 = vmul.f32 %v4078, %v5612
        %v5709 = vmul.f32 %v4080, %v5613
        %v5710 = vmul.f32 %v3630, %v5614
        %v5711 = vmul.f32 %v3632, %v5615
        %v5712 = vmul.f32 %v3856, %v5616
        %v5713 = vmul.f32 %v3858, %v5617
        %v5714 = vmul.f32 %v4082, %v5618
        %v5715 = vmul.f32 %v4084, %v5619
        %v5716 = vmul.f32 %v3636, %v5620
        %v5717 = vmul.f32 %v3638, %v5621
        %v5718 = vmul.f32 %v3862, %v5622
        %v5719 = vmul.f32 %v3864, %v5623
        %v5720 = vmul.f32 %v4088, %v5624
        %v5721 = vmul.f32 %v4090, %v5625
        %v5722 = vmul.f32 %v3640, %v5626
        %v5723 = vmul.f32 %v3642, %v5627
        %v5724 = vmul.f32 %v3866, %v5628
        %v5725 = vmul.f32 %v3868, %v5629
        %v5726 = vmul.f32 %v4092, %v5630
        %v5727 = vmul.f32 %v4094, %v5631
        %v5728 = vmul.f32 %v3646, %v5632
        %v5729 = vmul.f32 %v3648, %v5633
        %v5730 = vmul.f32 %v3872, %v5634
        %v5731 = vmul.f32 %v3874, %v5635
        %v5732 = vmul.f32 %v4098, %v5636
        %v5733 = vmul.f32 %v4100, %v5637
        %v5734 = vmul.f32 %v3650, %v5638
        %v5735 = vmul.f32 %v3652, %v5639
        %v5736 = vmul.f32 %v3876, %v5640
        %v5737 = vmul.f32 %v3878, %v5641
        %v5738 = vmul.f32 %v4102, %v5642
        %v5739 = vmul.f32 %v4104, %v5643
        %v5740 = vmul.f32 %v3656, %v5644
        %v5741 = vmul.f32 %v3658, %v5645
        %v5742 = vmul.f32 %v3882, %v5646
        %v5743 = vmul.f32 %v3884, %v5647
        %v5744 = vmul.f32 %v4108, %v5648
        %v5745 = vmul.f32 %v4110, %v5649
        %v5746 = vmul.f32 %v3660, %v5650
        %v5747 = vmul.f32 %v3662, %v5651
        %v5748 = vmul.f32 %v3886, %v5652
        %v5749 = vmul.f32 %v3888, %v5653
        %v5750 = vmul.f32 %v4112, %v5654
        %v5751 = vmul.f32 %v4114, %v5655
        %v5752 = vmul.f32 %v3666, %v5656
        %v5753 = vmul.f32 %v3668, %v5657
        %v5754 = vmul.f32 %v3892, %v5658
        %v5755 = vmul.f32 %v3894, %v5659
        %v5756 = vmul.f32 %v4118, %v5660
        %v5757 = vmul.f32 %v4120, %v5661
        %v5758 = vmul.f32 %v3670, %v5662
        %v5759 = vmul.f32 %v3672, %v5663
        %v5760 = vmul.f32 %v3896, %v5664
        %v5761 = vmul.f32 %v3898, %v5665
        %v5762 = vmul.f32 %v4122, %v5666
        %v5763 = vmul.f32 %v4124, %v5667
        %v5764 = vpack.c.bf16 %v5674, %v5668
        %v5765 = vpack.c.bf16 %v5675, %v5669
        %v5766 = vpack.c.bf16 %v5676, %v5670
        %v5767 = vpack.c.bf16 %v5677, %v5671
        %v5768 = vpack.c.bf16 %v5678, %v5672
        %v5769 = vpack.c.bf16 %v5679, %v5673
        %v5770 = vpack.c.bf16 %v5686, %v5680
        %v5771 = vpack.c.bf16 %v5687, %v5681
        %v5772 = vpack.c.bf16 %v5688, %v5682
        %v5773 = vpack.c.bf16 %v5689, %v5683
        %v5774 = vpack.c.bf16 %v5690, %v5684
        %v5775 = vpack.c.bf16 %v5691, %v5685
        %v5776 = vpack.c.bf16 %v5698, %v5692
        %v5777 = vpack.c.bf16 %v5699, %v5693
        %v5778 = vpack.c.bf16 %v5700, %v5694
        %v5779 = vpack.c.bf16 %v5701, %v5695
        %v5780 = vpack.c.bf16 %v5702, %v5696
        %v5781 = vpack.c.bf16 %v5703, %v5697
        %v5782 = vpack.c.bf16 %v5710, %v5704
        %v5783 = vpack.c.bf16 %v5711, %v5705
        %v5784 = vpack.c.bf16 %v5712, %v5706
        %v5785 = vpack.c.bf16 %v5713, %v5707
        %v5786 = vpack.c.bf16 %v5714, %v5708
        %v5787 = vpack.c.bf16 %v5715, %v5709
        %v5788 = vpack.c.bf16 %v5722, %v5716
        %v5789 = vpack.c.bf16 %v5723, %v5717
        %v5790 = vpack.c.bf16 %v5724, %v5718
        %v5791 = vpack.c.bf16 %v5725, %v5719
        %v5792 = vpack.c.bf16 %v5726, %v5720
        %v5793 = vpack.c.bf16 %v5727, %v5721
        %v5794 = vpack.c.bf16 %v5734, %v5728
        %v5795 = vpack.c.bf16 %v5735, %v5729
        %v5796 = vpack.c.bf16 %v5736, %v5730
        %v5797 = vpack.c.bf16 %v5737, %v5731
        %v5798 = vpack.c.bf16 %v5738, %v5732
        %v5799 = vpack.c.bf16 %v5739, %v5733
        %v5800 = vpack.c.bf16 %v5746, %v5740
        %v5801 = vpack.c.bf16 %v5747, %v5741
        %v5802 = vpack.c.bf16 %v5748, %v5742
        %v5803 = vpack.c.bf16 %v5749, %v5743
        %v5804 = vpack.c.bf16 %v5750, %v5744
        %v5805 = vpack.c.bf16 %v5751, %v5745
        %v5806 = vpack.c.bf16 %v5758, %v5752
        %v5807 = vpack.c.bf16 %v5759, %v5753
        %v5808 = vpack.c.bf16 %v5760, %v5754
        %v5809 = vpack.c.bf16 %v5761, %v5755
        %v5810 = vpack.c.bf16 %v5762, %v5756
        %v5811 = vpack.c.bf16 %v5763, %v5757
        %v5812 = vpack.c.bf16 %v1275, %v1272
        %v5813 = vpack.c.bf16 %v1283, %v1280
        %v5814 = vpack.c.bf16 %v1291, %v1288
        %v5815 = vpack.c.bf16 %v1299, %v1296
        %v5816 = vpack.c.bf16 %v1307, %v1304
        %v5817 = vpack.c.bf16 %v1315, %v1312
        %v5818 = vpack.c.bf16 %v1323, %v1320
        %v5819 = vpack.c.bf16 %v1331, %v1328
        %v5820 = vpack.c.bf16 %v1661, %v1658
        %v5821 = vpack.c.bf16 %v1669, %v1666
        %v5822 = vpack.c.bf16 %v1677, %v1674
        %v5823 = vpack.c.bf16 %v1685, %v1682
        %v5824 = vpack.c.bf16 %v1693, %v1690
        %v5825 = vpack.c.bf16 %v1701, %v1698
        %v5826 = vpack.c.bf16 %v1709, %v1706
        %v5827 = vpack.c.bf16 %v1717, %v1714
        %v5828 = vld [vmem:[#allocation2] sm:$0xff]
        %v5829 = vld [vmem:[#allocation2 + $0x8] sm:$0xff]
        %v5830 = vld [vmem:[#allocation2 + $0x10] sm:$0xff]
        %v5831 = vld [vmem:[#allocation2 + $0x18] sm:$0xff]
        %v5832 = vld [vmem:[#allocation2 + $0x20] sm:$0xff]
        %v5833 = vld [vmem:[#allocation2 + $0x28] sm:$0xff]
        %v5834 = vld [vmem:[#allocation2 + $0x30] sm:$0xff]
        %v5835 = vld [vmem:[#allocation2 + $0x38] sm:$0xff]
        %vm5836 = vcmask 392192
        %v5838 = vsel %vm5836, %v5812, 0
        %v5841 = vsel %vm5836, %v5813, 0
        %v5844 = vsel %vm5836, %v5814, 0
        %v5847 = vsel %vm5836, %v5815, 0
        %v5850 = vsel %vm5836, %v5820, 0
        %v5853 = vsel %vm5836, %v5821, 0
        %v5856 = vsel %vm5836, %v5822, 0
        %v5859 = vsel %vm5836, %v5823, 0
        %5861 = vmatprep.subr.bf16.mxu0 0
        %5862 = vmatpush1.bf16.xpose.msra.mxu0 %v5850
        %5863 = vmatprep.subr.bf16.mxu0 0
        %5864 = vmatpush1.bf16.xpose.msra.mxu0 %v5853
        %5865 = vmatprep.subr.bf16.mxu0 0
        %5866 = vmatpush1.bf16.xpose.msra.mxu0 %v5856
        %5867 = vmatprep.subr.bf16.mxu0 0
        %5868 = vmatpush1.bf16.xpose.msra.mxu0 %v5859
        %5869 = vmatprep.subr.bf16.mxu0 0
        %5870 = vmatpush1.bf16.xpose.msra.mxu0 0
        %5871 = vmatprep.subr.bf16.mxu0 0
        %5872 = vmatpush1.bf16.xpose.msra.mxu0 0
        %5873 = vmatprep.subr.bf16.mxu0 0
        %5874 = vmatpush1.bf16.xpose.msra.mxu0 0
        %5875 = vmatprep.subr.bf16.mxu0 0
        %5876 = vmatpush1.bf16.xpose.msra.mxu0 0
        %5877 = vmatprep.subr.bf16.mxu0 0
        %5878 = vmatpush1.bf16.xpose.msra.mxu0 0
        %5879 = vmatprep.subr.bf16.mxu0 0
        %5880 = vmatpush1.bf16.xpose.msra.mxu0 0
        %5881 = vmatprep.subr.bf16.mxu0 0
        %5882 = vmatpush1.bf16.xpose.msra.mxu0 0
        %5883 = vmatprep.subr.bf16.mxu0 0
        %5884 = vmatpush1.bf16.xpose.msra.mxu0 0
        %5885 = vmatprep.subr.bf16.mxu0 0
        %5886 = vmatpush1.bf16.xpose.msra.mxu0 0
        %5887 = vmatprep.subr.bf16.mxu0 0
        %5888 = vmatpush1.bf16.xpose.msra.mxu0 0
        %5889 = vmatprep.subr.bf16.mxu0 0
        %5890 = vmatpush1.bf16.xpose.msra.mxu0 0
        %5891 = vmatprep.subr.bf16.mxu0 0
        %5892 = vmatpush1.bf16.xpose.msra.mxu0 0
        %5893 = vmatprep.mubr.bf16.mxu0 0
        %5894 = vmatmul.mubr.bf16.gmra.mrb[0].mxu0 %v5838
        %v5895 = vpop.f32.mrb[0].mxu0
        %v5896 = vadd.f32 %v5828, %v5895
        %v5897 = vpop.f32.mrb[0].mxu0
        %v5898 = vpop.f32.mrb[0].mxu0
        %v5899 = vadd.f32 %v5829, %v5898
        %v5900 = vpop.f32.mrb[0].mxu0
        %5901 = vmatprep.mubr.bf16.mxu0 0
        %5902 = vmatmul.mubr.bf16.gmra.mrb[0].mxu0 %v5841
        %v5903 = vpop.f32.mrb[0].mxu0
        %v5904 = vadd.f32 %v5830, %v5903
        %v5905 = vpop.f32.mrb[0].mxu0
        %v5906 = vpop.f32.mrb[0].mxu0
        %v5907 = vadd.f32 %v5831, %v5906
        %v5908 = vpop.f32.mrb[0].mxu0
        %5909 = vmatprep.mubr.bf16.mxu0 0
        %5910 = vmatmul.mubr.bf16.gmra.mrb[0].mxu0 %v5844
        %v5911 = vpop.f32.mrb[0].mxu0
        %v5912 = vadd.f32 %v5832, %v5911
        %v5913 = vpop.f32.mrb[0].mxu0
        %v5914 = vpop.f32.mrb[0].mxu0
        %v5915 = vadd.f32 %v5833, %v5914
        %v5916 = vpop.f32.mrb[0].mxu0
        %5917 = vmatprep.mubr.bf16.mxu0 0
        %5918 = vmatmul.mubr.bf16.gmra.mrb[0].mxu0 %v5847
        %v5919 = vpop.f32.mrb[0].mxu0
        %v5920 = vadd.f32 %v5834, %v5919
        %v5921 = vpop.f32.mrb[0].mxu0
        %v5922 = vpop.f32.mrb[0].mxu0
        %v5923 = vadd.f32 %v5835, %v5922
        %v5924 = vpop.f32.mrb[0].mxu0
        %5925 = vdwg.mxu0
        %v5927 = vsel %vm5836, %v5816, 0
        %v5930 = vsel %vm5836, %v5817, 0
        %v5933 = vsel %vm5836, %v5818, 0
        %v5936 = vsel %vm5836, %v5819, 0
        %v5939 = vsel %vm5836, %v5824, 0
        %v5942 = vsel %vm5836, %v5825, 0
        %v5945 = vsel %vm5836, %v5826, 0
        %v5948 = vsel %vm5836, %v5827, 0
        %5950 = vmatprep.subr.bf16.mxu0 0
        %5951 = vmatpush1.bf16.xpose.msra.mxu0 %v5939
        %5952 = vmatprep.subr.bf16.mxu0 0
        %5953 = vmatpush1.bf16.xpose.msra.mxu0 %v5942
        %5954 = vmatprep.subr.bf16.mxu0 0
        %5955 = vmatpush1.bf16.xpose.msra.mxu0 %v5945
        %5956 = vmatprep.subr.bf16.mxu0 0
        %5957 = vmatpush1.bf16.xpose.msra.mxu0 %v5948
        %5958 = vmatprep.subr.bf16.mxu0 0
        %5959 = vmatpush1.bf16.xpose.msra.mxu0 0
        %5960 = vmatprep.subr.bf16.mxu0 0
        %5961 = vmatpush1.bf16.xpose.msra.mxu0 0
        %5962 = vmatprep.subr.bf16.mxu0 0
        %5963 = vmatpush1.bf16.xpose.msra.mxu0 0
        %5964 = vmatprep.subr.bf16.mxu0 0
        %5965 = vmatpush1.bf16.xpose.msra.mxu0 0
        %5966 = vmatprep.subr.bf16.mxu0 0
        %5967 = vmatpush1.bf16.xpose.msra.mxu0 0
        %5968 = vmatprep.subr.bf16.mxu0 0
        %5969 = vmatpush1.bf16.xpose.msra.mxu0 0
        %5970 = vmatprep.subr.bf16.mxu0 0
        %5971 = vmatpush1.bf16.xpose.msra.mxu0 0
        %5972 = vmatprep.subr.bf16.mxu0 0
        %5973 = vmatpush1.bf16.xpose.msra.mxu0 0
        %5974 = vmatprep.subr.bf16.mxu0 0
        %5975 = vmatpush1.bf16.xpose.msra.mxu0 0
        %5976 = vmatprep.subr.bf16.mxu0 0
        %5977 = vmatpush1.bf16.xpose.msra.mxu0 0
        %5978 = vmatprep.subr.bf16.mxu0 0
        %5979 = vmatpush1.bf16.xpose.msra.mxu0 0
        %5980 = vmatprep.subr.bf16.mxu0 0
        %5981 = vmatpush1.bf16.xpose.msra.mxu0 0
        %5982 = vmatprep.mubr.bf16.mxu0 0
        %5983 = vmatmul.mubr.bf16.gmra.mrb[0].mxu0 %v5927
        %v5984 = vpop.f32.mrb[0].mxu0
        %v5985 = vadd.f32 %v5828, %v5984
        %v5986 = vpop.f32.mrb[0].mxu0
        %v5987 = vpop.f32.mrb[0].mxu0
        %v5988 = vadd.f32 %v5829, %v5987
        %v5989 = vpop.f32.mrb[0].mxu0
        %5990 = vmatprep.mubr.bf16.mxu0 0
        %5991 = vmatmul.mubr.bf16.gmra.mrb[0].mxu0 %v5930
        %v5992 = vpop.f32.mrb[0].mxu0
        %v5993 = vadd.f32 %v5830, %v5992
        %v5994 = vpop.f32.mrb[0].mxu0
        %v5995 = vpop.f32.mrb[0].mxu0
        %v5996 = vadd.f32 %v5831, %v5995
        %v5997 = vpop.f32.mrb[0].mxu0
        %5998 = vmatprep.mubr.bf16.mxu0 0
        %5999 = vmatmul.mubr.bf16.gmra.mrb[0].mxu0 %v5933
        %v6000 = vpop.f32.mrb[0].mxu0
        %v6001 = vadd.f32 %v5832, %v6000
        %v6002 = vpop.f32.mrb[0].mxu0
        %v6003 = vpop.f32.mrb[0].mxu0
        %v6004 = vadd.f32 %v5833, %v6003
        %v6005 = vpop.f32.mrb[0].mxu0
        %6006 = vmatprep.mubr.bf16.mxu0 0
        %6007 = vmatmul.mubr.bf16.gmra.mrb[0].mxu0 %v5936
        %v6008 = vpop.f32.mrb[0].mxu0
        %v6009 = vadd.f32 %v5834, %v6008
        %v6010 = vpop.f32.mrb[0].mxu0
        %v6011 = vpop.f32.mrb[0].mxu0
        %v6012 = vadd.f32 %v5835, %v6011
        %v6013 = vpop.f32.mrb[0].mxu0
        %6014 = vdwg.mxu0
        %vm6015 = vcmask 523264
        %v6016 = vsel %vm6015, %v5896, -inf
        %6017 = vmax.xlane.f32.xlu0 %v6016
        %v6018 = vpop.xlane.xlu0 %6017
        %v6019 = vsel %vm6015, %v5899, -inf
        %6020 = vmax.xlane.f32.xlu0 %v6019
        %v6021 = vpop.xlane.xlu0 %6020
        %v6022 = vsel %vm6015, %v5904, -inf
        %6023 = vmax.xlane.f32.xlu0 %v6022
        %v6024 = vpop.xlane.xlu0 %6023
        %v6025 = vsel %vm6015, %v5907, -inf
        %6026 = vmax.xlane.f32.xlu0 %v6025
        %v6027 = vpop.xlane.xlu0 %6026
        %v6028 = vsel %vm6015, %v5912, -inf
        %6029 = vmax.xlane.f32.xlu0 %v6028
        %v6030 = vpop.xlane.xlu0 %6029
        %v6031 = vsel %vm6015, %v5915, -inf
        %6032 = vmax.xlane.f32.xlu0 %v6031
        %v6033 = vpop.xlane.xlu0 %6032
        %v6034 = vsel %vm6015, %v5920, -inf
        %6035 = vmax.xlane.f32.xlu0 %v6034
        %v6036 = vpop.xlane.xlu0 %6035
        %v6037 = vsel %vm6015, %v5923, -inf
        %6038 = vmax.xlane.f32.xlu0 %v6037
        %v6039 = vpop.xlane.xlu0 %6038
        %v6040 = vsel %vm6015, %v5985, -inf
        %6041 = vmax.xlane.f32.xlu0 %v6040
        %v6042 = vpop.xlane.xlu0 %6041
        %v6043 = vsel %vm6015, %v5988, -inf
        %6044 = vmax.xlane.f32.xlu0 %v6043
        %v6045 = vpop.xlane.xlu0 %6044
        %v6046 = vsel %vm6015, %v5993, -inf
        %6047 = vmax.xlane.f32.xlu0 %v6046
        %v6048 = vpop.xlane.xlu0 %6047
        %v6049 = vsel %vm6015, %v5996, -inf
        %6050 = vmax.xlane.f32.xlu0 %v6049
        %v6051 = vpop.xlane.xlu0 %6050
        %v6052 = vsel %vm6015, %v6001, -inf
        %6053 = vmax.xlane.f32.xlu0 %v6052
        %v6054 = vpop.xlane.xlu0 %6053
        %v6055 = vsel %vm6015, %v6004, -inf
        %6056 = vmax.xlane.f32.xlu0 %v6055
        %v6057 = vpop.xlane.xlu0 %6056
        %v6058 = vsel %vm6015, %v6009, -inf
        %6059 = vmax.xlane.f32.xlu0 %v6058
        %v6060 = vpop.xlane.xlu0 %6059
        %v6061 = vsel %vm6015, %v6012, -inf
        %6062 = vmax.xlane.f32.xlu0 %v6061
        %v6063 = vpop.xlane.xlu0 %6062
        %v6064 = vsub.f32 %v5896, %v6018
        %v6065 = vsub.f32 %v5899, %v6021
        %v6066 = vsub.f32 %v5904, %v6024
        %v6067 = vsub.f32 %v5907, %v6027
        %v6068 = vsub.f32 %v5912, %v6030
        %v6069 = vsub.f32 %v5915, %v6033
        %v6070 = vsub.f32 %v5920, %v6036
        %v6071 = vsub.f32 %v5923, %v6039
        %v6072 = vsub.f32 %v5985, %v6042
        %v6073 = vsub.f32 %v5988, %v6045
        %v6074 = vsub.f32 %v5993, %v6048
        %v6075 = vsub.f32 %v5996, %v6051
        %v6076 = vsub.f32 %v6001, %v6054
        %v6077 = vsub.f32 %v6004, %v6057
        %v6078 = vsub.f32 %v6009, %v6060
        %v6079 = vsub.f32 %v6012, %v6063
        %v6080 = vmul.f32 %v6064, 1.442695
        %v6081 = vpow.pop %v6080
        %v6082 = vmul.f32 %v6065, 1.442695
        %v6083 = vpow.pop %v6082
        %v6084 = vmul.f32 %v6066, 1.442695
        %v6085 = vpow.pop %v6084
        %v6086 = vmul.f32 %v6067, 1.442695
        %v6087 = vpow.pop %v6086
        %v6088 = vmul.f32 %v6068, 1.442695
        %v6089 = vpow.pop %v6088
        %v6090 = vmul.f32 %v6069, 1.442695
        %v6091 = vpow.pop %v6090
        %v6092 = vmul.f32 %v6070, 1.442695
        %v6093 = vpow.pop %v6092
        %v6094 = vmul.f32 %v6071, 1.442695
        %v6095 = vpow.pop %v6094
        %v6096 = vmul.f32 %v6072, 1.442695
        %v6097 = vpow.pop %v6096
        %v6098 = vmul.f32 %v6073, 1.442695
        %v6099 = vpow.pop %v6098
        %v6100 = vmul.f32 %v6074, 1.442695
        %v6101 = vpow.pop %v6100
        %v6102 = vmul.f32 %v6075, 1.442695
        %v6103 = vpow.pop %v6102
        %v6104 = vmul.f32 %v6076, 1.442695
        %v6105 = vpow.pop %v6104
        %v6106 = vmul.f32 %v6077, 1.442695
        %v6107 = vpow.pop %v6106
        %v6108 = vmul.f32 %v6078, 1.442695
        %v6109 = vpow.pop %v6108
        %v6110 = vmul.f32 %v6079, 1.442695
        %v6111 = vpow.pop %v6110
        %v6112 = vsel %vm6015, %v6081, 0.0
        %6113 = vadd.xlane.f32.xlu0 %v6112
        %v6114 = vpop.xlane.xlu0 %6113
        %v6115 = vsel %vm6015, %v6083, 0.0
        %6116 = vadd.xlane.f32.xlu0 %v6115
        %v6117 = vpop.xlane.xlu0 %6116
        %v6118 = vsel %vm6015, %v6085, 0.0
        %6119 = vadd.xlane.f32.xlu0 %v6118
        %v6120 = vpop.xlane.xlu0 %6119
        %v6121 = vsel %vm6015, %v6087, 0.0
        %6122 = vadd.xlane.f32.xlu0 %v6121
        %v6123 = vpop.xlane.xlu0 %6122
        %v6124 = vsel %vm6015, %v6089, 0.0
        %6125 = vadd.xlane.f32.xlu0 %v6124
        %v6126 = vpop.xlane.xlu0 %6125
        %v6127 = vsel %vm6015, %v6091, 0.0
        %6128 = vadd.xlane.f32.xlu0 %v6127
        %v6129 = vpop.xlane.xlu0 %6128
        %v6130 = vsel %vm6015, %v6093, 0.0
        %6131 = vadd.xlane.f32.xlu0 %v6130
        %v6132 = vpop.xlane.xlu0 %6131
        %v6133 = vsel %vm6015, %v6095, 0.0
        %6134 = vadd.xlane.f32.xlu0 %v6133
        %v6135 = vpop.xlane.xlu0 %6134
        %v6136 = vsel %vm6015, %v6097, 0.0
        %6137 = vadd.xlane.f32.xlu0 %v6136
        %v6138 = vpop.xlane.xlu0 %6137
        %v6139 = vsel %vm6015, %v6099, 0.0
        %6140 = vadd.xlane.f32.xlu0 %v6139
        %v6141 = vpop.xlane.xlu0 %6140
        %v6142 = vsel %vm6015, %v6101, 0.0
        %6143 = vadd.xlane.f32.xlu0 %v6142
        %v6144 = vpop.xlane.xlu0 %6143
        %v6145 = vsel %vm6015, %v6103, 0.0
        %6146 = vadd.xlane.f32.xlu0 %v6145
        %v6147 = vpop.xlane.xlu0 %6146
        %v6148 = vsel %vm6015, %v6105, 0.0
        %6149 = vadd.xlane.f32.xlu0 %v6148
        %v6150 = vpop.xlane.xlu0 %6149
        %v6151 = vsel %vm6015, %v6107, 0.0
        %6152 = vadd.xlane.f32.xlu0 %v6151
        %v6153 = vpop.xlane.xlu0 %6152
        %v6154 = vsel %vm6015, %v6109, 0.0
        %6155 = vadd.xlane.f32.xlu0 %v6154
        %v6156 = vpop.xlane.xlu0 %6155
        %v6157 = vsel %vm6015, %v6111, 0.0
        %6158 = vadd.xlane.f32.xlu0 %v6157
        %v6159 = vpop.xlane.xlu0 %6158
        %v6160 = vpack.c.bf16 %v6083, %v6081
        %v6161 = vpack.c.bf16 %v6087, %v6085
        %v6162 = vpack.c.bf16 %v6091, %v6089
        %v6163 = vpack.c.bf16 %v6095, %v6093
        %v6164 = vpack.c.bf16 %v6099, %v6097
        %v6165 = vpack.c.bf16 %v6103, %v6101
        %v6166 = vpack.c.bf16 %v6107, %v6105
        %v6167 = vpack.c.bf16 %v6111, %v6109
        %v6169 = vsel %vm6015, %v6160, 0
        %v6172 = vsel %vm6015, %v6161, 0
        %v6175 = vsel %vm6015, %v6162, 0
        %v6178 = vsel %vm6015, %v6163, 0
        %6180 = vmatprep.subr.bf16.mxu0 %v5768
        %6181 = vmatpush1.bf16.msra.mxu0 %v5767
        %6182 = vmatprep.subr.bf16.mxu0 %v5774
        %6183 = vmatpush1.bf16.msra.mxu0 %v5773
        %6184 = vmatprep.subr.bf16.mxu0 %v5780
        %6185 = vmatpush1.bf16.msra.mxu0 %v5779
        %6186 = vmatprep.subr.bf16.mxu0 %v5786
        %6187 = vmatpush1.bf16.msra.mxu0 %v5785
        %6188 = vmatprep.subr.bf16.mxu0 0
        %6189 = vmatpush1.bf16.msra.mxu0 0
        %6190 = vmatprep.subr.bf16.mxu0 0
        %6191 = vmatpush1.bf16.msra.mxu0 0
        %6192 = vmatprep.subr.bf16.mxu0 0
        %6193 = vmatpush1.bf16.msra.mxu0 0
        %6194 = vmatprep.subr.bf16.mxu0 0
        %6195 = vmatpush1.bf16.msra.mxu0 0
        %6196 = vmatprep.subr.bf16.mxu0 0
        %6197 = vmatpush1.bf16.msra.mxu0 0
        %6198 = vmatprep.subr.bf16.mxu0 0
        %6199 = vmatpush1.bf16.msra.mxu0 0
        %6200 = vmatprep.subr.bf16.mxu0 0
        %6201 = vmatpush1.bf16.msra.mxu0 0
        %6202 = vmatprep.subr.bf16.mxu0 0
        %6203 = vmatpush1.bf16.msra.mxu0 0
        %6204 = vmatprep.subr.bf16.mxu0 0
        %6205 = vmatpush1.bf16.msra.mxu0 0
        %6206 = vmatprep.subr.bf16.mxu0 0
        %6207 = vmatpush1.bf16.msra.mxu0 0
        %6208 = vmatprep.subr.bf16.mxu0 0
        %6209 = vmatpush1.bf16.msra.mxu0 0
        %6210 = vmatprep.subr.bf16.mxu0 0
        %6211 = vmatpush1.bf16.msra.mxu0 0
        %6212 = vmatprep.mubr.bf16.mxu0 0
        %6213 = vmatmul.mubr.bf16.gmra.mrb[0].mxu0 %v6169
        %v6214 = vpop.f32.mrb[0].mxu0
        %v6215 = vadd.f32 0.0, %v6214
        %v6216 = vpop.f32.mrb[0].mxu0
        %v6217 = vadd.f32 0.0, %v6216
        %v6218 = vpop.f32.mrb[0].mxu0
        %v6219 = vadd.f32 0.0, %v6218
        %v6220 = vpop.f32.mrb[0].mxu0
        %v6221 = vadd.f32 0.0, %v6220
        %6222 = vmatprep.mubr.bf16.mxu0 0
        %6223 = vmatmul.mubr.bf16.gmra.mrb[0].mxu0 %v6172
        %v6224 = vpop.f32.mrb[0].mxu0
        %v6225 = vadd.f32 0.0, %v6224
        %v6226 = vpop.f32.mrb[0].mxu0
        %v6227 = vadd.f32 0.0, %v6226
        %v6228 = vpop.f32.mrb[0].mxu0
        %v6229 = vadd.f32 0.0, %v6228
        %v6230 = vpop.f32.mrb[0].mxu0
        %v6231 = vadd.f32 0.0, %v6230
        %6232 = vmatprep.mubr.bf16.mxu0 0
        %6233 = vmatmul.mubr.bf16.gmra.mrb[0].mxu0 %v6175
        %v6234 = vpop.f32.mrb[0].mxu0
        %v6235 = vadd.f32 0.0, %v6234
        %v6236 = vpop.f32.mrb[0].mxu0
        %v6237 = vadd.f32 0.0, %v6236
        %v6238 = vpop.f32.mrb[0].mxu0
        %v6239 = vadd.f32 0.0, %v6238
        %v6240 = vpop.f32.mrb[0].mxu0
        %v6241 = vadd.f32 0.0, %v6240
        %6242 = vmatprep.mubr.bf16.mxu0 0
        %6243 = vmatmul.mubr.bf16.gmra.mrb[0].mxu0 %v6178
        %v6244 = vpop.f32.mrb[0].mxu0
        %v6245 = vadd.f32 0.0, %v6244
        %v6246 = vpop.f32.mrb[0].mxu0
        %v6247 = vadd.f32 0.0, %v6246
        %v6248 = vpop.f32.mrb[0].mxu0
        %v6249 = vadd.f32 0.0, %v6248
        %v6250 = vpop.f32.mrb[0].mxu0
        %v6251 = vadd.f32 0.0, %v6250
        %6252 = vdwg.mxu0
        %6253 = vmatprep.subr.bf16.mxu0 0
        %6254 = vmatpush1.bf16.msra.mxu0 %v5769
        %6255 = vmatprep.subr.bf16.mxu0 0
        %6256 = vmatpush1.bf16.msra.mxu0 %v5775
        %6257 = vmatprep.subr.bf16.mxu0 0
        %6258 = vmatpush1.bf16.msra.mxu0 %v5781
        %6259 = vmatprep.subr.bf16.mxu0 0
        %6260 = vmatpush1.bf16.msra.mxu0 %v5787
        %6261 = vmatprep.subr.bf16.mxu0 0
        %6262 = vmatpush1.bf16.msra.mxu0 0
        %6263 = vmatprep.subr.bf16.mxu0 0
        %6264 = vmatpush1.bf16.msra.mxu0 0
        %6265 = vmatprep.subr.bf16.mxu0 0
        %6266 = vmatpush1.bf16.msra.mxu0 0
        %6267 = vmatprep.subr.bf16.mxu0 0
        %6268 = vmatpush1.bf16.msra.mxu0 0
        %6269 = vmatprep.subr.bf16.mxu0 0
        %6270 = vmatpush1.bf16.msra.mxu0 0
        %6271 = vmatprep.subr.bf16.mxu0 0
        %6272 = vmatpush1.bf16.msra.mxu0 0
        %6273 = vmatprep.subr.bf16.mxu0 0
        %6274 = vmatpush1.bf16.msra.mxu0 0
        %6275 = vmatprep.subr.bf16.mxu0 0
        %6276 = vmatpush1.bf16.msra.mxu0 0
        %6277 = vmatprep.subr.bf16.mxu0 0
        %6278 = vmatpush1.bf16.msra.mxu0 0
        %6279 = vmatprep.subr.bf16.mxu0 0
        %6280 = vmatpush1.bf16.msra.mxu0 0
        %6281 = vmatprep.subr.bf16.mxu0 0
        %6282 = vmatpush1.bf16.msra.mxu0 0
        %6283 = vmatprep.subr.bf16.mxu0 0
        %6284 = vmatpush1.bf16.msra.mxu0 0
        %6285 = vmatprep.mubr.bf16.mxu0 0
        %6286 = vmatmul.mubr.bf16.gmra.mrb[0].mxu0 %v6169
        %v6287 = vpop.f32.mrb[0].mxu0
        %v6288 = vadd.f32 0.0, %v6287
        %v6289 = vpop.f32.mrb[0].mxu0
        %v6290 = vpop.f32.mrb[0].mxu0
        %v6291 = vadd.f32 0.0, %v6290
        %v6292 = vpop.f32.mrb[0].mxu0
        %6293 = vmatprep.mubr.bf16.mxu0 0
        %6294 = vmatmul.mubr.bf16.gmra.mrb[0].mxu0 %v6172
        %v6295 = vpop.f32.mrb[0].mxu0
        %v6296 = vadd.f32 0.0, %v6295
        %v6297 = vpop.f32.mrb[0].mxu0
        %v6298 = vpop.f32.mrb[0].mxu0
        %v6299 = vadd.f32 0.0, %v6298
        %v6300 = vpop.f32.mrb[0].mxu0
        %6301 = vmatprep.mubr.bf16.mxu0 0
        %6302 = vmatmul.mubr.bf16.gmra.mrb[0].mxu0 %v6175
        %v6303 = vpop.f32.mrb[0].mxu0
        %v6304 = vadd.f32 0.0, %v6303
        %v6305 = vpop.f32.mrb[0].mxu0
        %v6306 = vpop.f32.mrb[0].mxu0
        %v6307 = vadd.f32 0.0, %v6306
        %v6308 = vpop.f32.mrb[0].mxu0
        %6309 = vmatprep.mubr.bf16.mxu0 0
        %6310 = vmatmul.mubr.bf16.gmra.mrb[0].mxu0 %v6178
        %v6311 = vpop.f32.mrb[0].mxu0
        %v6312 = vadd.f32 0.0, %v6311
        %v6313 = vpop.f32.mrb[0].mxu0
        %v6314 = vpop.f32.mrb[0].mxu0
        %v6315 = vadd.f32 0.0, %v6314
        %v6316 = vpop.f32.mrb[0].mxu0
        %6317 = vdwg.mxu0
        %v6319 = vsel %vm6015, %v6164, 0
        %v6322 = vsel %vm6015, %v6165, 0
        %v6325 = vsel %vm6015, %v6166, 0
        %v6328 = vsel %vm6015, %v6167, 0
        %6330 = vmatprep.subr.bf16.mxu0 %v5792
        %6331 = vmatpush1.bf16.msra.mxu0 %v5791
        %6332 = vmatprep.subr.bf16.mxu0 %v5798
        %6333 = vmatpush1.bf16.msra.mxu0 %v5797
        %6334 = vmatprep.subr.bf16.mxu0 %v5804
        %6335 = vmatpush1.bf16.msra.mxu0 %v5803
        %6336 = vmatprep.subr.bf16.mxu0 %v5810
        %6337 = vmatpush1.bf16.msra.mxu0 %v5809
        %6338 = vmatprep.subr.bf16.mxu0 0
        %6339 = vmatpush1.bf16.msra.mxu0 0
        %6340 = vmatprep.subr.bf16.mxu0 0
        %6341 = vmatpush1.bf16.msra.mxu0 0
        %6342 = vmatprep.subr.bf16.mxu0 0
        %6343 = vmatpush1.bf16.msra.mxu0 0
        %6344 = vmatprep.subr.bf16.mxu0 0
        %6345 = vmatpush1.bf16.msra.mxu0 0
        %6346 = vmatprep.subr.bf16.mxu0 0
        %6347 = vmatpush1.bf16.msra.mxu0 0
        %6348 = vmatprep.subr.bf16.mxu0 0
        %6349 = vmatpush1.bf16.msra.mxu0 0
        %6350 = vmatprep.subr.bf16.mxu0 0
        %6351 = vmatpush1.bf16.msra.mxu0 0
        %6352 = vmatprep.subr.bf16.mxu0 0
        %6353 = vmatpush1.bf16.msra.mxu0 0
        %6354 = vmatprep.subr.bf16.mxu0 0
        %6355 = vmatpush1.bf16.msra.mxu0 0
        %6356 = vmatprep.subr.bf16.mxu0 0
        %6357 = vmatpush1.bf16.msra.mxu0 0
        %6358 = vmatprep.subr.bf16.mxu0 0
        %6359 = vmatpush1.bf16.msra.mxu0 0
        %6360 = vmatprep.subr.bf16.mxu0 0
        %6361 = vmatpush1.bf16.msra.mxu0 0
        %6362 = vmatprep.mubr.bf16.mxu0 0
        %6363 = vmatmul.mubr.bf16.gmra.mrb[0].mxu0 %v6319
        %v6364 = vpop.f32.mrb[0].mxu0
        %v6365 = vadd.f32 0.0, %v6364
        %v6366 = vpop.f32.mrb[0].mxu0
        %v6367 = vadd.f32 0.0, %v6366
        %v6368 = vpop.f32.mrb[0].mxu0
        %v6369 = vadd.f32 0.0, %v6368
        %v6370 = vpop.f32.mrb[0].mxu0
        %v6371 = vadd.f32 0.0, %v6370
        %6372 = vmatprep.mubr.bf16.mxu0 0
        %6373 = vmatmul.mubr.bf16.gmra.mrb[0].mxu0 %v6322
        %v6374 = vpop.f32.mrb[0].mxu0
        %v6375 = vadd.f32 0.0, %v6374
        %v6376 = vpop.f32.mrb[0].mxu0
        %v6377 = vadd.f32 0.0, %v6376
        %v6378 = vpop.f32.mrb[0].mxu0
        %v6379 = vadd.f32 0.0, %v6378
        %v6380 = vpop.f32.mrb[0].mxu0
        %v6381 = vadd.f32 0.0, %v6380
        %6382 = vmatprep.mubr.bf16.mxu0 0
        %6383 = vmatmul.mubr.bf16.gmra.mrb[0].mxu0 %v6325
        %v6384 = vpop.f32.mrb[0].mxu0
        %v6385 = vadd.f32 0.0, %v6384
        %v6386 = vpop.f32.mrb[0].mxu0
        %v6387 = vadd.f32 0.0, %v6386
        %v6388 = vpop.f32.mrb[0].mxu0
        %v6389 = vadd.f32 0.0, %v6388
        %v6390 = vpop.f32.mrb[0].mxu0
        %v6391 = vadd.f32 0.0, %v6390
        %6392 = vmatprep.mubr.bf16.mxu0 0
        %6393 = vmatmul.mubr.bf16.gmra.mrb[0].mxu0 %v6328
        %v6394 = vpop.f32.mrb[0].mxu0
        %v6395 = vadd.f32 0.0, %v6394
        %v6396 = vpop.f32.mrb[0].mxu0
        %v6397 = vadd.f32 0.0, %v6396
        %v6398 = vpop.f32.mrb[0].mxu0
        %v6399 = vadd.f32 0.0, %v6398
        %v6400 = vpop.f32.mrb[0].mxu0
        %v6401 = vadd.f32 0.0, %v6400
        %6402 = vdwg.mxu0
        %6403 = vmatprep.subr.bf16.mxu0 0
        %6404 = vmatpush1.bf16.msra.mxu0 %v5793
        %6405 = vmatprep.subr.bf16.mxu0 0
        %6406 = vmatpush1.bf16.msra.mxu0 %v5799
        %6407 = vmatprep.subr.bf16.mxu0 0
        %6408 = vmatpush1.bf16.msra.mxu0 %v5805
        %6409 = vmatprep.subr.bf16.mxu0 0
        %6410 = vmatpush1.bf16.msra.mxu0 %v5811
        %6411 = vmatprep.subr.bf16.mxu0 0
        %6412 = vmatpush1.bf16.msra.mxu0 0
        %6413 = vmatprep.subr.bf16.mxu0 0
        %6414 = vmatpush1.bf16.msra.mxu0 0
        %6415 = vmatprep.subr.bf16.mxu0 0
        %6416 = vmatpush1.bf16.msra.mxu0 0
        %6417 = vmatprep.subr.bf16.mxu0 0
        %6418 = vmatpush1.bf16.msra.mxu0 0
        %6419 = vmatprep.subr.bf16.mxu0 0
        %6420 = vmatpush1.bf16.msra.mxu0 0
        %6421 = vmatprep.subr.bf16.mxu0 0
        %6422 = vmatpush1.bf16.msra.mxu0 0
        %6423 = vmatprep.subr.bf16.mxu0 0
        %6424 = vmatpush1.bf16.msra.mxu0 0
        %6425 = vmatprep.subr.bf16.mxu0 0
        %6426 = vmatpush1.bf16.msra.mxu0 0
        %6427 = vmatprep.subr.bf16.mxu0 0
        %6428 = vmatpush1.bf16.msra.mxu0 0
        %6429 = vmatprep.subr.bf16.mxu0 0
        %6430 = vmatpush1.bf16.msra.mxu0 0
        %6431 = vmatprep.subr.bf16.mxu0 0
        %6432 = vmatpush1.bf16.msra.mxu0 0
        %6433 = vmatprep.subr.bf16.mxu0 0
        %6434 = vmatpush1.bf16.msra.mxu0 0
        %6435 = vmatprep.mubr.bf16.mxu0 0
        %6436 = vmatmul.mubr.bf16.gmra.mrb[0].mxu0 %v6319
        %v6437 = vpop.f32.mrb[0].mxu0
        %v6438 = vadd.f32 0.0, %v6437
        %v6439 = vpop.f32.mrb[0].mxu0
        %v6440 = vpop.f32.mrb[0].mxu0
        %v6441 = vadd.f32 0.0, %v6440
        %v6442 = vpop.f32.mrb[0].mxu0
        %6443 = vmatprep.mubr.bf16.mxu0 0
        %6444 = vmatmul.mubr.bf16.gmra.mrb[0].mxu0 %v6322
        %v6445 = vpop.f32.mrb[0].mxu0
        %v6446 = vadd.f32 0.0, %v6445
        %v6447 = vpop.f32.mrb[0].mxu0
        %v6448 = vpop.f32.mrb[0].mxu0
        %v6449 = vadd.f32 0.0, %v6448
        %v6450 = vpop.f32.mrb[0].mxu0
        %6451 = vmatprep.mubr.bf16.mxu0 0
        %6452 = vmatmul.mubr.bf16.gmra.mrb[0].mxu0 %v6325
        %v6453 = vpop.f32.mrb[0].mxu0
        %v6454 = vadd.f32 0.0, %v6453
        %v6455 = vpop.f32.mrb[0].mxu0
        %v6456 = vpop.f32.mrb[0].mxu0
        %v6457 = vadd.f32 0.0, %v6456
        %v6458 = vpop.f32.mrb[0].mxu0
        %6459 = vmatprep.mubr.bf16.mxu0 0
        %6460 = vmatmul.mubr.bf16.gmra.mrb[0].mxu0 %v6328
        %v6461 = vpop.f32.mrb[0].mxu0
        %v6462 = vadd.f32 0.0, %v6461
        %v6463 = vpop.f32.mrb[0].mxu0
        %v6464 = vpop.f32.mrb[0].mxu0
        %v6465 = vadd.f32 0.0, %v6464
        %v6466 = vpop.f32.mrb[0].mxu0
        %6467 = vdwg.mxu0
        %v6468 = vrcp.pop %v6114
        %v6469 = vrcp.pop %v6117
        %v6470 = vrcp.pop %v6120
        %v6471 = vrcp.pop %v6123
        %v6472 = vrcp.pop %v6126
        %v6473 = vrcp.pop %v6129
        %v6474 = vrcp.pop %v6132
        %v6475 = vrcp.pop %v6135
        %v6476 = vrcp.pop %v6138
        %v6477 = vrcp.pop %v6141
        %v6478 = vrcp.pop %v6144
        %v6479 = vrcp.pop %v6147
        %v6480 = vrcp.pop %v6150
        %v6481 = vrcp.pop %v6153
        %v6482 = vrcp.pop %v6156
        %v6483 = vrcp.pop %v6159
        %v6484 = vmul.f32 %v6215, %v6468
        %v6485 = vmul.f32 %v6217, %v6468
        %v6486 = vmul.f32 %v6288, %v6468
        %v6487 = vmul.f32 %v6219, %v6469
        %v6488 = vmul.f32 %v6221, %v6469
        %v6489 = vmul.f32 %v6291, %v6469
        %v6490 = vmul.f32 %v6225, %v6470
        %v6491 = vmul.f32 %v6227, %v6470
        %v6492 = vmul.f32 %v6296, %v6470
        %v6493 = vmul.f32 %v6229, %v6471
        %v6494 = vmul.f32 %v6231, %v6471
        %v6495 = vmul.f32 %v6299, %v6471
        %v6496 = vmul.f32 %v6235, %v6472
        %v6497 = vmul.f32 %v6237, %v6472
        %v6498 = vmul.f32 %v6304, %v6472
        %v6499 = vmul.f32 %v6239, %v6473
        %v6500 = vmul.f32 %v6241, %v6473
        %v6501 = vmul.f32 %v6307, %v6473
        %v6502 = vmul.f32 %v6245, %v6474
        %v6503 = vmul.f32 %v6247, %v6474
        %v6504 = vmul.f32 %v6312, %v6474
        %v6505 = vmul.f32 %v6249, %v6475
        %v6506 = vmul.f32 %v6251, %v6475
        %v6507 = vmul.f32 %v6315, %v6475
        %v6508 = vmul.f32 %v6365, %v6476
        %v6509 = vmul.f32 %v6367, %v6476
        %v6510 = vmul.f32 %v6438, %v6476
        %v6511 = vmul.f32 %v6369, %v6477
        %v6512 = vmul.f32 %v6371, %v6477
        %v6513 = vmul.f32 %v6441, %v6477
        %v6514 = vmul.f32 %v6375, %v6478
        %v6515 = vmul.f32 %v6377, %v6478
        %v6516 = vmul.f32 %v6446, %v6478
        %v6517 = vmul.f32 %v6379, %v6479
        %v6518 = vmul.f32 %v6381, %v6479
        %v6519 = vmul.f32 %v6449, %v6479
        %v6520 = vmul.f32 %v6385, %v6480
        %v6521 = vmul.f32 %v6387, %v6480
        %v6522 = vmul.f32 %v6454, %v6480
        %v6523 = vmul.f32 %v6389, %v6481
        %v6524 = vmul.f32 %v6391, %v6481
        %v6525 = vmul.f32 %v6457, %v6481
        %v6526 = vmul.f32 %v6395, %v6482
        %v6527 = vmul.f32 %v6397, %v6482
        %v6528 = vmul.f32 %v6462, %v6482
        %v6529 = vmul.f32 %v6399, %v6483
        %v6530 = vmul.f32 %v6401, %v6483
        %v6531 = vmul.f32 %v6465, %v6483
        %v6532 = vpack.c.bf16 %v6487, %v6484
        %v6533 = vpack.c.bf16 %v6488, %v6485
        %v6534 = vpack.c.bf16 %v6489, %v6486
        %v6535 = vpack.c.bf16 %v6493, %v6490
        %v6536 = vpack.c.bf16 %v6494, %v6491
        %v6537 = vpack.c.bf16 %v6495, %v6492
        %v6538 = vpack.c.bf16 %v6499, %v6496
        %v6539 = vpack.c.bf16 %v6500, %v6497
        %v6540 = vpack.c.bf16 %v6501, %v6498
        %v6541 = vpack.c.bf16 %v6505, %v6502
        %v6542 = vpack.c.bf16 %v6506, %v6503
        %v6543 = vpack.c.bf16 %v6507, %v6504
        %v6544 = vpack.c.bf16 %v6511, %v6508
        %v6545 = vpack.c.bf16 %v6512, %v6509
        %v6546 = vpack.c.bf16 %v6513, %v6510
        %v6547 = vpack.c.bf16 %v6517, %v6514
        %v6548 = vpack.c.bf16 %v6518, %v6515
        %v6549 = vpack.c.bf16 %v6519, %v6516
        %v6550 = vpack.c.bf16 %v6523, %v6520
        %v6551 = vpack.c.bf16 %v6524, %v6521
        %v6552 = vpack.c.bf16 %v6525, %v6522
        %v6553 = vpack.c.bf16 %v6529, %v6526
        %v6554 = vpack.c.bf16 %v6530, %v6527
        %v6555 = vpack.c.bf16 %v6531, %v6528
        %v6556 = vld [vmem:[%s7] sm:$0xff]
        %v6557 = vld [vmem:[%s7 + $0x8] sm:$0xf]
        %v6558 = vld [vmem:[%s7 + $0xc] sm:$0xff]
        %v6559 = vld [vmem:[%s7 + $0x14] sm:$0xf]
        %v6560 = vld [vmem:[%s7 + $0x18] sm:$0xff]
        %v6561 = vld [vmem:[%s7 + $0x20] sm:$0xf]
        %v6562 = vld [vmem:[%s7 + $0x24] sm:$0xff]
        %v6563 = vld [vmem:[%s7 + $0x2c] sm:$0xf]
        %v6564 = vld [vmem:[%s7 + $0x30] sm:$0xff]
        %v6565 = vld [vmem:[%s7 + $0x38] sm:$0xf]
        %v6566 = vld [vmem:[%s7 + $0x3c] sm:$0xff]
        %v6567 = vld [vmem:[%s7 + $0x44] sm:$0xf]
        %v6568 = vld [vmem:[%s7 + $0x48] sm:$0xff]
        %v6569 = vld [vmem:[%s7 + $0x50] sm:$0xf]
        %v6570 = vld [vmem:[%s7 + $0x54] sm:$0xff]
        %v6571 = vld [vmem:[%s7 + $0x5c] sm:$0xf]
        %v6572 = vld [vmem:[%s7 + $0x60] sm:$0xff]
        %v6573 = vld [vmem:[%s7 + $0x68] sm:$0xf]
        %v6574 = vld [vmem:[%s7 + $0x6c] sm:$0xff]
        %v6575 = vld [vmem:[%s7 + $0x74] sm:$0xf]
        %v6576 = vld [vmem:[%s7 + $0x78] sm:$0xff]
        %v6577 = vld [vmem:[%s7 + $0x80] sm:$0xf]
        %v6578 = vld [vmem:[%s7 + $0x84] sm:$0xff]
        %v6579 = vld [vmem:[%s7 + $0x8c] sm:$0xf]
        %v6580 = vld [vmem:[%s7 + $0x90] sm:$0xff]
        %v6581 = vld [vmem:[%s7 + $0x98] sm:$0xf]
        %v6582 = vld [vmem:[%s7 + $0x9c] sm:$0xff]
        %v6583 = vld [vmem:[%s7 + $0xa4] sm:$0xf]
        %v6584 = vld [vmem:[%s7 + $0xa8] sm:$0xff]
        %v6585 = vld [vmem:[%s7 + $0xb0] sm:$0xf]
        %v6586 = vld [vmem:[%s7 + $0xb4] sm:$0xff]
        %v6587 = vld [vmem:[%s7 + $0xbc] sm:$0xf]
        %v6588 = vld [vmem:[%s7 + $0xc0] sm:$0xff]
        %v6589 = vld [vmem:[%s7 + $0xc8] sm:$0xf]
        %v6590 = vld [vmem:[%s7 + $0xcc] sm:$0xff]
        %v6591 = vld [vmem:[%s7 + $0xd4] sm:$0xf]
        %v6592 = vld [vmem:[%s7 + $0xd8] sm:$0xff]
        %v6593 = vld [vmem:[%s7 + $0xe0] sm:$0xf]
        %v6594 = vld [vmem:[%s7 + $0xe4] sm:$0xff]
        %v6595 = vld [vmem:[%s7 + $0xec] sm:$0xf]
        %v6596 = vld [vmem:[%s7 + $0xf0] sm:$0xff]
        %v6597 = vld [vmem:[%s7 + $0xf8] sm:$0xf]
        %v6598 = vld [vmem:[%s7 + $0xfc] sm:$0xff]
        %v6599 = vld [vmem:[%s7 + $0x104] sm:$0xf]
        %v6600 = vld [vmem:[%s7 + $0x108] sm:$0xff]
        %v6601 = vld [vmem:[%s7 + $0x110] sm:$0xf]
        %v6602 = vld [vmem:[%s7 + $0x114] sm:$0xff]
        %v6603 = vld [vmem:[%s7 + $0x11c] sm:$0xf]
        %v6604 = vld [vmem:[%s7 + $0x120] sm:$0xff]
        %v6605 = vld [vmem:[%s7 + $0x128] sm:$0xf]
        %v6606 = vld [vmem:[%s7 + $0x12c] sm:$0xff]
        %v6607 = vld [vmem:[%s7 + $0x134] sm:$0xf]
        %v6608 = vld [vmem:[%s7 + $0x138] sm:$0xff]
        %v6609 = vld [vmem:[%s7 + $0x140] sm:$0xf]
        %v6610 = vld [vmem:[%s7 + $0x144] sm:$0xff]
        %v6611 = vld [vmem:[%s7 + $0x14c] sm:$0xf]
        %v6612 = vld [vmem:[%s7 + $0x150] sm:$0xff]
        %v6613 = vld [vmem:[%s7 + $0x158] sm:$0xf]
        %v6614 = vld [vmem:[%s7 + $0x15c] sm:$0xff]
        %v6615 = vld [vmem:[%s7 + $0x164] sm:$0xf]
        %v6616 = vld [vmem:[%s7 + $0x168] sm:$0xff]
        %v6617 = vld [vmem:[%s7 + $0x170] sm:$0xf]
        %v6618 = vld [vmem:[%s7 + $0x174] sm:$0xff]
        %v6619 = vld [vmem:[%s7 + $0x17c] sm:$0xf]
        %v6620 = vld [vmem:[%s7 + $0x180] sm:$0xff]
        %v6621 = vld [vmem:[%s7 + $0x188] sm:$0xf]
        %v6622 = vld [vmem:[%s7 + $0x18c] sm:$0xff]
        %v6623 = vld [vmem:[%s7 + $0x194] sm:$0xf]
        %v6624 = vld [vmem:[%s7 + $0x198] sm:$0xff]
        %v6625 = vld [vmem:[%s7 + $0x1a0] sm:$0xf]
        %v6626 = vld [vmem:[%s7 + $0x1a4] sm:$0xff]
        %v6627 = vld [vmem:[%s7 + $0x1ac] sm:$0xf]
        %v6628 = vld [vmem:[%s7 + $0x1b0] sm:$0xff]
        %v6629 = vld [vmem:[%s7 + $0x1b8] sm:$0xf]
        %v6630 = vld [vmem:[%s7 + $0x1bc] sm:$0xff]
        %v6631 = vld [vmem:[%s7 + $0x1c4] sm:$0xf]
        %v6632 = vld [vmem:[%s7 + $0x1c8] sm:$0xff]
        %v6633 = vld [vmem:[%s7 + $0x1d0] sm:$0xf]
        %v6634 = vld [vmem:[%s7 + $0x1d4] sm:$0xff]
        %v6635 = vld [vmem:[%s7 + $0x1dc] sm:$0xf]
        %v6636 = vld [vmem:[%s7 + $0x1e0] sm:$0xff]
        %v6637 = vld [vmem:[%s7 + $0x1e8] sm:$0xf]
        %v6638 = vld [vmem:[%s7 + $0x1ec] sm:$0xff]
        %v6639 = vld [vmem:[%s7 + $0x1f4] sm:$0xf]
        %v6640 = vld [vmem:[%s7 + $0x1f8] sm:$0xff]
        %v6641 = vld [vmem:[%s7 + $0x200] sm:$0xf]
        %v6642 = vld [vmem:[%s7 + $0x204] sm:$0xff]
        %v6643 = vld [vmem:[%s7 + $0x20c] sm:$0xf]
        %v6644 = vld [vmem:[%s7 + $0x210] sm:$0xff]
        %v6645 = vld [vmem:[%s7 + $0x218] sm:$0xf]
        %v6646 = vld [vmem:[%s7 + $0x21c] sm:$0xff]
        %v6647 = vld [vmem:[%s7 + $0x224] sm:$0xf]
        %v6648 = vld [vmem:[%s7 + $0x228] sm:$0xff]
        %v6649 = vld [vmem:[%s7 + $0x230] sm:$0xf]
        %v6650 = vld [vmem:[%s7 + $0x234] sm:$0xff]
        %v6651 = vld [vmem:[%s7 + $0x23c] sm:$0xf]
        %v6652 = vld [vmem:[%s8] sm:$0xff]
        %v6653 = vld [vmem:[%s8 + $0x8] sm:$0xf]
        %v6654 = vld [vmem:[%s8 + $0xc] sm:$0xff]
        %v6655 = vld [vmem:[%s8 + $0x14] sm:$0xf]
        %v6656 = vld [vmem:[%s8 + $0x18] sm:$0xff]
        %v6657 = vld [vmem:[%s8 + $0x20] sm:$0xf]
        %v6658 = vld [vmem:[%s8 + $0x24] sm:$0xff]
        %v6659 = vld [vmem:[%s8 + $0x2c] sm:$0xf]
        %v6660 = vld [vmem:[%s8 + $0x30] sm:$0xff]
        %v6661 = vld [vmem:[%s8 + $0x38] sm:$0xf]
        %v6662 = vld [vmem:[%s8 + $0x3c] sm:$0xff]
        %v6663 = vld [vmem:[%s8 + $0x44] sm:$0xf]
        %v6664 = vld [vmem:[%s8 + $0x48] sm:$0xff]
        %v6665 = vld [vmem:[%s8 + $0x50] sm:$0xf]
        %v6666 = vld [vmem:[%s8 + $0x54] sm:$0xff]
        %v6667 = vld [vmem:[%s8 + $0x5c] sm:$0xf]
        %v6668 = vld [vmem:[%s8 + $0x60] sm:$0xff]
        %v6669 = vld [vmem:[%s8 + $0x68] sm:$0xf]
        %v6670 = vld [vmem:[%s8 + $0x6c] sm:$0xff]
        %v6671 = vld [vmem:[%s8 + $0x74] sm:$0xf]
        %v6672 = vld [vmem:[%s8 + $0x78] sm:$0xff]
        %v6673 = vld [vmem:[%s8 + $0x80] sm:$0xf]
        %v6674 = vld [vmem:[%s8 + $0x84] sm:$0xff]
        %v6675 = vld [vmem:[%s8 + $0x8c] sm:$0xf]
        %v6676 = vld [vmem:[%s8 + $0x90] sm:$0xff]
        %v6677 = vld [vmem:[%s8 + $0x98] sm:$0xf]
        %v6678 = vld [vmem:[%s8 + $0x9c] sm:$0xff]
        %v6679 = vld [vmem:[%s8 + $0xa4] sm:$0xf]
        %v6680 = vld [vmem:[%s8 + $0xa8] sm:$0xff]
        %v6681 = vld [vmem:[%s8 + $0xb0] sm:$0xf]
        %v6682 = vld [vmem:[%s8 + $0xb4] sm:$0xff]
        %v6683 = vld [vmem:[%s8 + $0xbc] sm:$0xf]
        %v6684 = vld [vmem:[%s8 + $0xc0] sm:$0xff]
        %v6685 = vld [vmem:[%s8 + $0xc8] sm:$0xf]
        %v6686 = vld [vmem:[%s8 + $0xcc] sm:$0xff]
        %v6687 = vld [vmem:[%s8 + $0xd4] sm:$0xf]
        %v6688 = vld [vmem:[%s8 + $0xd8] sm:$0xff]
        %v6689 = vld [vmem:[%s8 + $0xe0] sm:$0xf]
        %v6690 = vld [vmem:[%s8 + $0xe4] sm:$0xff]
        %v6691 = vld [vmem:[%s8 + $0xec] sm:$0xf]
        %v6692 = vld [vmem:[%s8 + $0xf0] sm:$0xff]
        %v6693 = vld [vmem:[%s8 + $0xf8] sm:$0xf]
        %v6694 = vld [vmem:[%s8 + $0xfc] sm:$0xff]
        %v6695 = vld [vmem:[%s8 + $0x104] sm:$0xf]
        %v6696 = vld [vmem:[%s8 + $0x108] sm:$0xff]
        %v6697 = vld [vmem:[%s8 + $0x110] sm:$0xf]
        %v6698 = vld [vmem:[%s8 + $0x114] sm:$0xff]
        %v6699 = vld [vmem:[%s8 + $0x11c] sm:$0xf]
        %v6700 = vld [vmem:[%s8 + $0x120] sm:$0xff]
        %v6701 = vld [vmem:[%s8 + $0x128] sm:$0xf]
        %v6702 = vld [vmem:[%s8 + $0x12c] sm:$0xff]
        %v6703 = vld [vmem:[%s8 + $0x134] sm:$0xf]
        %v6704 = vld [vmem:[%s8 + $0x138] sm:$0xff]
        %v6705 = vld [vmem:[%s8 + $0x140] sm:$0xf]
        %v6706 = vld [vmem:[%s8 + $0x144] sm:$0xff]
        %v6707 = vld [vmem:[%s8 + $0x14c] sm:$0xf]
        %v6708 = vld [vmem:[%s8 + $0x150] sm:$0xff]
        %v6709 = vld [vmem:[%s8 + $0x158] sm:$0xf]
        %v6710 = vld [vmem:[%s8 + $0x15c] sm:$0xff]
        %v6711 = vld [vmem:[%s8 + $0x164] sm:$0xf]
        %v6712 = vld [vmem:[%s8 + $0x168] sm:$0xff]
        %v6713 = vld [vmem:[%s8 + $0x170] sm:$0xf]
        %v6714 = vld [vmem:[%s8 + $0x174] sm:$0xff]
        %v6715 = vld [vmem:[%s8 + $0x17c] sm:$0xf]
        %v6716 = vld [vmem:[%s8 + $0x180] sm:$0xff]
        %v6717 = vld [vmem:[%s8 + $0x188] sm:$0xf]
        %v6718 = vld [vmem:[%s8 + $0x18c] sm:$0xff]
        %v6719 = vld [vmem:[%s8 + $0x194] sm:$0xf]
        %v6720 = vld [vmem:[%s8 + $0x198] sm:$0xff]
        %v6721 = vld [vmem:[%s8 + $0x1a0] sm:$0xf]
        %v6722 = vld [vmem:[%s8 + $0x1a4] sm:$0xff]
        %v6723 = vld [vmem:[%s8 + $0x1ac] sm:$0xf]
        %v6724 = vld [vmem:[%s8 + $0x1b0] sm:$0xff]
        %v6725 = vld [vmem:[%s8 + $0x1b8] sm:$0xf]
        %v6726 = vld [vmem:[%s8 + $0x1bc] sm:$0xff]
        %v6727 = vld [vmem:[%s8 + $0x1c4] sm:$0xf]
        %v6728 = vld [vmem:[%s8 + $0x1c8] sm:$0xff]
        %v6729 = vld [vmem:[%s8 + $0x1d0] sm:$0xf]
        %v6730 = vld [vmem:[%s8 + $0x1d4] sm:$0xff]
        %v6731 = vld [vmem:[%s8 + $0x1dc] sm:$0xf]
        %v6732 = vld [vmem:[%s8 + $0x1e0] sm:$0xff]
        %v6733 = vld [vmem:[%s8 + $0x1e8] sm:$0xf]
        %v6734 = vld [vmem:[%s8 + $0x1ec] sm:$0xff]
        %v6735 = vld [vmem:[%s8 + $0x1f4] sm:$0xf]
        %v6736 = vld [vmem:[%s8 + $0x1f8] sm:$0xff]
        %v6737 = vld [vmem:[%s8 + $0x200] sm:$0xf]
        %v6738 = vld [vmem:[%s8 + $0x204] sm:$0xff]
        %v6739 = vld [vmem:[%s8 + $0x20c] sm:$0xf]
        %v6740 = vld [vmem:[%s8 + $0x210] sm:$0xff]
        %v6741 = vld [vmem:[%s8 + $0x218] sm:$0xf]
        %v6742 = vld [vmem:[%s8 + $0x21c] sm:$0xff]
        %v6743 = vld [vmem:[%s8 + $0x224] sm:$0xf]
        %v6744 = vld [vmem:[%s8 + $0x228] sm:$0xff]
        %v6745 = vld [vmem:[%s8 + $0x230] sm:$0xf]
        %v6746 = vld [vmem:[%s8 + $0x234] sm:$0xff]
        %v6747 = vld [vmem:[%s8 + $0x23c] sm:$0xf]
        %v6844 = vunpack.c.l.b16 %v6652
        %v6845 = vunpack.c.h.b16 %v6652
        %v6846 = vunpack.c.l.b16 %v6653
        %v6847 = vunpack.c.l.b16 %v6654
        %v6848 = vunpack.c.h.b16 %v6654
        %v6849 = vunpack.c.l.b16 %v6655
        %v6850 = vunpack.c.l.b16 %v6656
        %v6851 = vunpack.c.h.b16 %v6656
        %v6852 = vunpack.c.l.b16 %v6657
        %v6853 = vunpack.c.l.b16 %v6658
        %v6854 = vunpack.c.h.b16 %v6658
        %v6855 = vunpack.c.l.b16 %v6659
        %v6856 = vunpack.c.l.b16 %v6660
        %v6857 = vunpack.c.h.b16 %v6660
        %v6858 = vunpack.c.l.b16 %v6661
        %v6859 = vunpack.c.l.b16 %v6662
        %v6860 = vunpack.c.h.b16 %v6662
        %v6861 = vunpack.c.l.b16 %v6663
        %v6862 = vunpack.c.l.b16 %v6664
        %v6863 = vunpack.c.h.b16 %v6664
        %v6864 = vunpack.c.l.b16 %v6665
        %v6865 = vunpack.c.l.b16 %v6666
        %v6866 = vunpack.c.h.b16 %v6666
        %v6867 = vunpack.c.l.b16 %v6667
        %v6868 = vunpack.c.l.b16 %v6668
        %v6869 = vunpack.c.h.b16 %v6668
        %v6870 = vunpack.c.l.b16 %v6669
        %v6871 = vunpack.c.l.b16 %v6670
        %v6872 = vunpack.c.h.b16 %v6670
        %v6873 = vunpack.c.l.b16 %v6671
        %v6874 = vunpack.c.l.b16 %v6672
        %v6875 = vunpack.c.h.b16 %v6672
        %v6876 = vunpack.c.l.b16 %v6673
        %v6877 = vunpack.c.l.b16 %v6674
        %v6878 = vunpack.c.h.b16 %v6674
        %v6879 = vunpack.c.l.b16 %v6675
        %v6880 = vunpack.c.l.b16 %v6676
        %v6881 = vunpack.c.h.b16 %v6676
        %v6882 = vunpack.c.l.b16 %v6677
        %v6883 = vunpack.c.l.b16 %v6678
        %v6884 = vunpack.c.h.b16 %v6678
        %v6885 = vunpack.c.l.b16 %v6679
        %v6886 = vunpack.c.l.b16 %v6680
        %v6887 = vunpack.c.h.b16 %v6680
        %v6888 = vunpack.c.l.b16 %v6681
        %v6889 = vunpack.c.l.b16 %v6682
        %v6890 = vunpack.c.h.b16 %v6682
        %v6891 = vunpack.c.l.b16 %v6683
        %v6892 = vunpack.c.l.b16 %v6684
        %v6893 = vunpack.c.h.b16 %v6684
        %v6894 = vunpack.c.l.b16 %v6685
        %v6895 = vunpack.c.l.b16 %v6686
        %v6896 = vunpack.c.h.b16 %v6686
        %v6897 = vunpack.c.l.b16 %v6687
        %v6898 = vunpack.c.l.b16 %v6688
        %v6899 = vunpack.c.h.b16 %v6688
        %v6900 = vunpack.c.l.b16 %v6689
        %v6901 = vunpack.c.l.b16 %v6690
        %v6902 = vunpack.c.h.b16 %v6690
        %v6903 = vunpack.c.l.b16 %v6691
        %v6904 = vunpack.c.l.b16 %v6692
        %v6905 = vunpack.c.h.b16 %v6692
        %v6906 = vunpack.c.l.b16 %v6693
        %v6907 = vunpack.c.l.b16 %v6694
        %v6908 = vunpack.c.h.b16 %v6694
        %v6909 = vunpack.c.l.b16 %v6695
        %v6910 = vunpack.c.l.b16 %v6696
        %v6911 = vunpack.c.h.b16 %v6696
        %v6912 = vunpack.c.l.b16 %v6697
        %v6913 = vunpack.c.l.b16 %v6698
        %v6914 = vunpack.c.h.b16 %v6698
        %v6915 = vunpack.c.l.b16 %v6699
        %v6916 = vunpack.c.l.b16 %v6700
        %v6917 = vunpack.c.h.b16 %v6700
        %v6918 = vunpack.c.l.b16 %v6701
        %v6919 = vunpack.c.l.b16 %v6702
        %v6920 = vunpack.c.h.b16 %v6702
        %v6921 = vunpack.c.l.b16 %v6703
        %v6922 = vunpack.c.l.b16 %v6704
        %v6923 = vunpack.c.h.b16 %v6704
        %v6924 = vunpack.c.l.b16 %v6705
        %v6925 = vunpack.c.l.b16 %v6706
        %v6926 = vunpack.c.h.b16 %v6706
        %v6927 = vunpack.c.l.b16 %v6707
        %v6928 = vunpack.c.l.b16 %v6708
        %v6929 = vunpack.c.h.b16 %v6708
        %v6930 = vunpack.c.l.b16 %v6709
        %v6931 = vunpack.c.l.b16 %v6710
        %v6932 = vunpack.c.h.b16 %v6710
        %v6933 = vunpack.c.l.b16 %v6711
        %v6934 = vunpack.c.l.b16 %v6712
        %v6935 = vunpack.c.h.b16 %v6712
        %v6936 = vunpack.c.l.b16 %v6713
        %v6937 = vunpack.c.l.b16 %v6714
        %v6938 = vunpack.c.h.b16 %v6714
        %v6939 = vunpack.c.l.b16 %v6715
        %v6940 = vunpack.c.l.b16 %v6716
        %v6941 = vunpack.c.h.b16 %v6716
        %v6942 = vunpack.c.l.b16 %v6717
        %v6943 = vunpack.c.l.b16 %v6718
        %v6944 = vunpack.c.h.b16 %v6718
        %v6945 = vunpack.c.l.b16 %v6719
        %v6946 = vunpack.c.l.b16 %v6720
        %v6947 = vunpack.c.h.b16 %v6720
        %v6948 = vunpack.c.l.b16 %v6721
        %v6949 = vunpack.c.l.b16 %v6722
        %v6950 = vunpack.c.h.b16 %v6722
        %v6951 = vunpack.c.l.b16 %v6723
        %v6952 = vunpack.c.l.b16 %v6724
        %v6953 = vunpack.c.h.b16 %v6724
        %v6954 = vunpack.c.l.b16 %v6725
        %v6955 = vunpack.c.l.b16 %v6726
        %v6956 = vunpack.c.h.b16 %v6726
        %v6957 = vunpack.c.l.b16 %v6727
        %v6958 = vunpack.c.l.b16 %v6728
        %v6959 = vunpack.c.h.b16 %v6728
        %v6960 = vunpack.c.l.b16 %v6729
        %v6961 = vunpack.c.l.b16 %v6730
        %v6962 = vunpack.c.h.b16 %v6730
        %v6963 = vunpack.c.l.b16 %v6731
        %v6964 = vunpack.c.l.b16 %v6732
        %v6965 = vunpack.c.h.b16 %v6732
        %v6966 = vunpack.c.l.b16 %v6733
        %v6967 = vunpack.c.l.b16 %v6734
        %v6968 = vunpack.c.h.b16 %v6734
        %v6969 = vunpack.c.l.b16 %v6735
        %v6970 = vunpack.c.l.b16 %v6736
        %v6971 = vunpack.c.h.b16 %v6736
        %v6972 = vunpack.c.l.b16 %v6737
        %v6973 = vunpack.c.l.b16 %v6738
        %v6974 = vunpack.c.h.b16 %v6738
        %v6975 = vunpack.c.l.b16 %v6739
        %v6976 = vunpack.c.l.b16 %v6740
        %v6977 = vunpack.c.h.b16 %v6740
        %v6978 = vunpack.c.l.b16 %v6741
        %v6979 = vunpack.c.l.b16 %v6742
        %v6980 = vunpack.c.h.b16 %v6742
        %v6981 = vunpack.c.l.b16 %v6743
        %v6982 = vunpack.c.l.b16 %v6744
        %v6983 = vunpack.c.h.b16 %v6744
        %v6984 = vunpack.c.l.b16 %v6745
        %v6985 = vunpack.c.l.b16 %v6746
        %v6986 = vunpack.c.h.b16 %v6746
        %v6987 = vunpack.c.l.b16 %v6747
        %v6988 = vpack.c.b16 %v6847, %v6844
        %v6989 = vpack.c.b16 %v6848, %v6845
        %v6990 = vpack.c.b16 %v6849, %v6846
        %v6991 = vpack.c.b16 %v6853, %v6850
        %v6992 = vpack.c.b16 %v6854, %v6851
        %v6993 = vpack.c.b16 %v6855, %v6852
        %v6994 = vpack.c.b16 %v6859, %v6856
        %v6995 = vpack.c.b16 %v6860, %v6857
        %v6996 = vpack.c.b16 %v6861, %v6858
        %v6997 = vpack.c.b16 %v6865, %v6862
        %v6998 = vpack.c.b16 %v6866, %v6863
        %v6999 = vpack.c.b16 %v6867, %v6864
        %v7000 = vpack.c.b16 %v6871, %v6868
        %v7001 = vpack.c.b16 %v6872, %v6869
        %v7002 = vpack.c.b16 %v6873, %v6870
        %v7003 = vpack.c.b16 %v6877, %v6874
        %v7004 = vpack.c.b16 %v6878, %v6875
        %v7005 = vpack.c.b16 %v6879, %v6876
        %v7006 = vpack.c.b16 %v6883, %v6880
        %v7007 = vpack.c.b16 %v6884, %v6881
        %v7008 = vpack.c.b16 %v6885, %v6882
        %v7009 = vpack.c.b16 %v6889, %v6886
        %v7010 = vpack.c.b16 %v6890, %v6887
        %v7011 = vpack.c.b16 %v6891, %v6888
        %v7012 = vpack.c.b16 %v6895, %v6892
        %v7013 = vpack.c.b16 %v6896, %v6893
        %v7014 = vpack.c.b16 %v6897, %v6894
        %v7015 = vpack.c.b16 %v6901, %v6898
        %v7016 = vpack.c.b16 %v6902, %v6899
        %v7017 = vpack.c.b16 %v6903, %v6900
        %v7018 = vpack.c.b16 %v6907, %v6904
        %v7019 = vpack.c.b16 %v6908, %v6905
        %v7020 = vpack.c.b16 %v6909, %v6906
        %v7021 = vpack.c.b16 %v6913, %v6910
        %v7022 = vpack.c.b16 %v6914, %v6911
        %v7023 = vpack.c.b16 %v6915, %v6912
        %v7024 = vpack.c.b16 %v6919, %v6916
        %v7025 = vpack.c.b16 %v6920, %v6917
        %v7026 = vpack.c.b16 %v6921, %v6918
        %v7027 = vpack.c.b16 %v6925, %v6922
        %v7028 = vpack.c.b16 %v6926, %v6923
        %v7029 = vpack.c.b16 %v6927, %v6924
        %v7030 = vpack.c.b16 %v6931, %v6928
        %v7031 = vpack.c.b16 %v6932, %v6929
        %v7032 = vpack.c.b16 %v6933, %v6930
        %v7033 = vpack.c.b16 %v6937, %v6934
        %v7034 = vpack.c.b16 %v6938, %v6935
        %v7035 = vpack.c.b16 %v6939, %v6936
        %v7036 = vpack.c.b16 %v6943, %v6940
        %v7037 = vpack.c.b16 %v6944, %v6941
        %v7038 = vpack.c.b16 %v6945, %v6942
        %v7039 = vpack.c.b16 %v6949, %v6946
        %v7040 = vpack.c.b16 %v6950, %v6947
        %v7041 = vpack.c.b16 %v6951, %v6948
        %v7042 = vpack.c.b16 %v6955, %v6952
        %v7043 = vpack.c.b16 %v6956, %v6953
        %v7044 = vpack.c.b16 %v6957, %v6954
        %v7045 = vpack.c.b16 %v6961, %v6958
        %v7046 = vpack.c.b16 %v6962, %v6959
        %v7047 = vpack.c.b16 %v6963, %v6960
        %v7048 = vpack.c.b16 %v6967, %v6964
        %v7049 = vpack.c.b16 %v6968, %v6965
        %v7050 = vpack.c.b16 %v6969, %v6966
        %v7051 = vpack.c.b16 %v6973, %v6970
        %v7052 = vpack.c.b16 %v6974, %v6971
        %v7053 = vpack.c.b16 %v6975, %v6972
        %v7054 = vpack.c.b16 %v6979, %v6976
        %v7055 = vpack.c.b16 %v6980, %v6977
        %v7056 = vpack.c.b16 %v6981, %v6978
        %v7057 = vpack.c.b16 %v6985, %v6982
        %v7058 = vpack.c.b16 %v6986, %v6983
        %v7059 = vpack.c.b16 %v6987, %v6984
        %7132 = vmatprep.subr.bf16.mxu0 %v6989
        %7133 = vmatpush1.bf16.msra.mxu0 %v6988
        %7134 = vmatprep.subr.bf16.mxu0 %v6992
        %7135 = vmatpush1.bf16.msra.mxu0 %v6991
        %7136 = vmatprep.subr.bf16.mxu0 %v6995
        %7137 = vmatpush1.bf16.msra.mxu0 %v6994
        %7138 = vmatprep.subr.bf16.mxu0 %v6998
        %7139 = vmatpush1.bf16.msra.mxu0 %v6997
        %7140 = vmatprep.subr.bf16.mxu0 %v7001
        %7141 = vmatpush1.bf16.msra.mxu0 %v7000
        %7142 = vmatprep.subr.bf16.mxu0 %v7004
        %7143 = vmatpush1.bf16.msra.mxu0 %v7003
        %7144 = vmatprep.subr.bf16.mxu0 %v7007
        %7145 = vmatpush1.bf16.msra.mxu0 %v7006
        %7146 = vmatprep.subr.bf16.mxu0 %v7010
        %7147 = vmatpush1.bf16.msra.mxu0 %v7009
        %7148 = vmatprep.subr.bf16.mxu0 %v7013
        %7149 = vmatpush1.bf16.msra.mxu0 %v7012
        %7150 = vmatprep.subr.bf16.mxu0 %v7016
        %7151 = vmatpush1.bf16.msra.mxu0 %v7015
        %7152 = vmatprep.subr.bf16.mxu0 %v7019
        %7153 = vmatpush1.bf16.msra.mxu0 %v7018
        %7154 = vmatprep.subr.bf16.mxu0 %v7022
        %7155 = vmatpush1.bf16.msra.mxu0 %v7021
        %7156 = vmatprep.subr.bf16.mxu0 %v7025
        %7157 = vmatpush1.bf16.msra.mxu0 %v7024
        %7158 = vmatprep.subr.bf16.mxu0 %v7028
        %7159 = vmatpush1.bf16.msra.mxu0 %v7027
        %7160 = vmatprep.subr.bf16.mxu0 %v7031
        %7161 = vmatpush1.bf16.msra.mxu0 %v7030
        %7162 = vmatprep.subr.bf16.mxu0 %v7034
        %7163 = vmatpush1.bf16.msra.mxu0 %v7033
        %7164 = vmatprep.mubr.bf16.mxu0 %v6533
        %7165 = vmatmul.mubr.bf16.gmra.mrb[0].mxu0 %v6532
        %v7166 = vpop.f32.mrb[0].mxu0
        %v7167 = vadd.f32 0.0, %v7166
        %v7168 = vpop.f32.mrb[0].mxu0
        %v7169 = vadd.f32 0.0, %v7168
        %v7170 = vpop.f32.mrb[0].mxu0
        %v7171 = vadd.f32 0.0, %v7170
        %v7172 = vpop.f32.mrb[0].mxu0
        %v7173 = vadd.f32 0.0, %v7172
        %7174 = vmatprep.mubr.bf16.mxu0 %v6536
        %7175 = vmatmul.mubr.bf16.gmra.mrb[0].mxu0 %v6535
        %v7176 = vpop.f32.mrb[0].mxu0
        %v7177 = vadd.f32 0.0, %v7176
        %v7178 = vpop.f32.mrb[0].mxu0
        %v7179 = vadd.f32 0.0, %v7178
        %v7180 = vpop.f32.mrb[0].mxu0
        %v7181 = vadd.f32 0.0, %v7180
        %v7182 = vpop.f32.mrb[0].mxu0
        %v7183 = vadd.f32 0.0, %v7182
        %7184 = vmatprep.mubr.bf16.mxu0 %v6539
        %7185 = vmatmul.mubr.bf16.gmra.mrb[0].mxu0 %v6538
        %v7186 = vpop.f32.mrb[0].mxu0
        %v7187 = vadd.f32 0.0, %v7186
        %v7188 = vpop.f32.mrb[0].mxu0
        %v7189 = vadd.f32 0.0, %v7188
        %v7190 = vpop.f32.mrb[0].mxu0
        %v7191 = vadd.f32 0.0, %v7190
        %v7192 = vpop.f32.mrb[0].mxu0
        %v7193 = vadd.f32 0.0, %v7192
        %7194 = vmatprep.mubr.bf16.mxu0 %v6542
        %7195 = vmatmul.mubr.bf16.gmra.mrb[0].mxu0 %v6541
        %v7196 = vpop.f32.mrb[0].mxu0
        %v7197 = vadd.f32 0.0, %v7196
        %v7198 = vpop.f32.mrb[0].mxu0
        %v7199 = vadd.f32 0.0, %v7198
        %v7200 = vpop.f32.mrb[0].mxu0
        %v7201 = vadd.f32 0.0, %v7200
        %v7202 = vpop.f32.mrb[0].mxu0
        %v7203 = vadd.f32 0.0, %v7202
        %7204 = vmatprep.mubr.bf16.mxu0 %v6545
        %7205 = vmatmul.mubr.bf16.gmra.mrb[0].mxu0 %v6544
        %v7206 = vpop.f32.mrb[0].mxu0
        %v7207 = vadd.f32 0.0, %v7206
        %v7208 = vpop.f32.mrb[0].mxu0
        %v7209 = vadd.f32 0.0, %v7208
        %v7210 = vpop.f32.mrb[0].mxu0
        %v7211 = vadd.f32 0.0, %v7210
        %v7212 = vpop.f32.mrb[0].mxu0
        %v7213 = vadd.f32 0.0, %v7212
        %7214 = vmatprep.mubr.bf16.mxu0 %v6548
        %7215 = vmatmul.mubr.bf16.gmra.mrb[0].mxu0 %v6547
        %v7216 = vpop.f32.mrb[0].mxu0
        %v7217 = vadd.f32 0.0, %v7216
        %v7218 = vpop.f32.mrb[0].mxu0
        %v7219 = vadd.f32 0.0, %v7218
        %v7220 = vpop.f32.mrb[0].mxu0
        %v7221 = vadd.f32 0.0, %v7220
        %v7222 = vpop.f32.mrb[0].mxu0
        %v7223 = vadd.f32 0.0, %v7222
        %7224 = vmatprep.mubr.bf16.mxu0 %v6551
        %7225 = vmatmul.mubr.bf16.gmra.mrb[0].mxu0 %v6550
        %v7226 = vpop.f32.mrb[0].mxu0
        %v7227 = vadd.f32 0.0, %v7226
        %v7228 = vpop.f32.mrb[0].mxu0
        %v7229 = vadd.f32 0.0, %v7228
        %v7230 = vpop.f32.mrb[0].mxu0
        %v7231 = vadd.f32 0.0, %v7230
        %v7232 = vpop.f32.mrb[0].mxu0
        %v7233 = vadd.f32 0.0, %v7232
        %7234 = vmatprep.mubr.bf16.mxu0 %v6554
        %7235 = vmatmul.mubr.bf16.gmra.mrb[0].mxu0 %v6553
        %v7236 = vpop.f32.mrb[0].mxu0
        %v7237 = vadd.f32 0.0, %v7236
        %v7238 = vpop.f32.mrb[0].mxu0
        %v7239 = vadd.f32 0.0, %v7238
        %v7240 = vpop.f32.mrb[0].mxu0
        %v7241 = vadd.f32 0.0, %v7240
        %v7242 = vpop.f32.mrb[0].mxu0
        %v7243 = vadd.f32 0.0, %v7242
        %7244 = vdwg.mxu0
        %7245 = vmatprep.subr.bf16.mxu0 %v7037
        %7246 = vmatpush1.bf16.msra.mxu0 %v7036
        %7247 = vmatprep.subr.bf16.mxu0 %v7040
        %7248 = vmatpush1.bf16.msra.mxu0 %v7039
        %7249 = vmatprep.subr.bf16.mxu0 %v7043
        %7250 = vmatpush1.bf16.msra.mxu0 %v7042
        %7251 = vmatprep.subr.bf16.mxu0 %v7046
        %7252 = vmatpush1.bf16.msra.mxu0 %v7045
        %7253 = vmatprep.subr.bf16.mxu0 %v7049
        %7254 = vmatpush1.bf16.msra.mxu0 %v7048
        %7255 = vmatprep.subr.bf16.mxu0 %v7052
        %7256 = vmatpush1.bf16.msra.mxu0 %v7051
        %7257 = vmatprep.subr.bf16.mxu0 %v7055
        %7258 = vmatpush1.bf16.msra.mxu0 %v7054
        %7259 = vmatprep.subr.bf16.mxu0 %v7058
        %7260 = vmatpush1.bf16.msra.mxu0 %v7057
        %7261 = vmatprep.subr.bf16.mxu0 0
        %7262 = vmatpush1.bf16.msra.mxu0 0
        %7263 = vmatprep.subr.bf16.mxu0 0
        %7264 = vmatpush1.bf16.msra.mxu0 0
        %7265 = vmatprep.subr.bf16.mxu0 0
        %7266 = vmatpush1.bf16.msra.mxu0 0
        %7267 = vmatprep.subr.bf16.mxu0 0
        %7268 = vmatpush1.bf16.msra.mxu0 0
        %7269 = vmatprep.subr.bf16.mxu0 0
        %7270 = vmatpush1.bf16.msra.mxu0 0
        %7271 = vmatprep.subr.bf16.mxu0 0
        %7272 = vmatpush1.bf16.msra.mxu0 0
        %7273 = vmatprep.subr.bf16.mxu0 0
        %7274 = vmatpush1.bf16.msra.mxu0 0
        %7275 = vmatprep.subr.bf16.mxu0 0
        %7276 = vmatpush1.bf16.msra.mxu0 0
        %7277 = vmatprep.mubr.bf16.mxu0 0
        %7278 = vmatmul.mubr.bf16.gmra.mrb[0].mxu0 %v6534
        %v7279 = vpop.f32.mrb[0].mxu0
        %v7280 = vadd.f32 %v7167, %v7279
        %v7281 = vpop.f32.mrb[0].mxu0
        %v7282 = vadd.f32 %v7169, %v7281
        %v7283 = vpop.f32.mrb[0].mxu0
        %v7284 = vadd.f32 %v7171, %v7283
        %v7285 = vpop.f32.mrb[0].mxu0
        %v7286 = vadd.f32 %v7173, %v7285
        %7287 = vmatprep.mubr.bf16.mxu0 0
        %7288 = vmatmul.mubr.bf16.gmra.mrb[0].mxu0 %v6537
        %v7289 = vpop.f32.mrb[0].mxu0
        %v7290 = vadd.f32 %v7177, %v7289
        %v7291 = vpop.f32.mrb[0].mxu0
        %v7292 = vadd.f32 %v7179, %v7291
        %v7293 = vpop.f32.mrb[0].mxu0
        %v7294 = vadd.f32 %v7181, %v7293
        %v7295 = vpop.f32.mrb[0].mxu0
        %v7296 = vadd.f32 %v7183, %v7295
        %7297 = vmatprep.mubr.bf16.mxu0 0
        %7298 = vmatmul.mubr.bf16.gmra.mrb[0].mxu0 %v6540
        %v7299 = vpop.f32.mrb[0].mxu0
        %v7300 = vadd.f32 %v7187, %v7299
        %v7301 = vpop.f32.mrb[0].mxu0
        %v7302 = vadd.f32 %v7189, %v7301
        %v7303 = vpop.f32.mrb[0].mxu0
        %v7304 = vadd.f32 %v7191, %v7303
        %v7305 = vpop.f32.mrb[0].mxu0
        %v7306 = vadd.f32 %v7193, %v7305
        %7307 = vmatprep.mubr.bf16.mxu0 0
        %7308 = vmatmul.mubr.bf16.gmra.mrb[0].mxu0 %v6543
        %v7309 = vpop.f32.mrb[0].mxu0
        %v7310 = vadd.f32 %v7197, %v7309
        %v7311 = vpop.f32.mrb[0].mxu0
        %v7312 = vadd.f32 %v7199, %v7311
        %v7313 = vpop.f32.mrb[0].mxu0
        %v7314 = vadd.f32 %v7201, %v7313
        %v7315 = vpop.f32.mrb[0].mxu0
        %v7316 = vadd.f32 %v7203, %v7315
        %7317 = vmatprep.mubr.bf16.mxu0 0
        %7318 = vmatmul.mubr.bf16.gmra.mrb[0].mxu0 %v6546
        %v7319 = vpop.f32.mrb[0].mxu0
        %v7320 = vadd.f32 %v7207, %v7319
        %v7321 = vpop.f32.mrb[0].mxu0
        %v7322 = vadd.f32 %v7209, %v7321
        %v7323 = vpop.f32.mrb[0].mxu0
        %v7324 = vadd.f32 %v7211, %v7323
        %v7325 = vpop.f32.mrb[0].mxu0
        %v7326 = vadd.f32 %v7213, %v7325
        %7327 = vmatprep.mubr.bf16.mxu0 0
        %7328 = vmatmul.mubr.bf16.gmra.mrb[0].mxu0 %v6549
        %v7329 = vpop.f32.mrb[0].mxu0
        %v7330 = vadd.f32 %v7217, %v7329
        %v7331 = vpop.f32.mrb[0].mxu0
        %v7332 = vadd.f32 %v7219, %v7331
        %v7333 = vpop.f32.mrb[0].mxu0
        %v7334 = vadd.f32 %v7221, %v7333
        %v7335 = vpop.f32.mrb[0].mxu0
        %v7336 = vadd.f32 %v7223, %v7335
        %7337 = vmatprep.mubr.bf16.mxu0 0
        %7338 = vmatmul.mubr.bf16.gmra.mrb[0].mxu0 %v6552
        %v7339 = vpop.f32.mrb[0].mxu0
        %v7340 = vadd.f32 %v7227, %v7339
        %v7341 = vpop.f32.mrb[0].mxu0
        %v7342 = vadd.f32 %v7229, %v7341
        %v7343 = vpop.f32.mrb[0].mxu0
        %v7344 = vadd.f32 %v7231, %v7343
        %v7345 = vpop.f32.mrb[0].mxu0
        %v7346 = vadd.f32 %v7233, %v7345
        %7347 = vmatprep.mubr.bf16.mxu0 0
        %7348 = vmatmul.mubr.bf16.gmra.mrb[0].mxu0 %v6555
        %v7349 = vpop.f32.mrb[0].mxu0
        %v7350 = vadd.f32 %v7237, %v7349
        %v7351 = vpop.f32.mrb[0].mxu0
        %v7352 = vadd.f32 %v7239, %v7351
        %v7353 = vpop.f32.mrb[0].mxu0
        %v7354 = vadd.f32 %v7241, %v7353
        %v7355 = vpop.f32.mrb[0].mxu0
        %v7356 = vadd.f32 %v7243, %v7355
        %7357 = vdwg.mxu0
        %7358 = vmatprep.subr.bf16.mxu0 0
        %7359 = vmatpush1.bf16.msra.mxu0 %v6990
        %7360 = vmatprep.subr.bf16.mxu0 0
        %7361 = vmatpush1.bf16.msra.mxu0 %v6993
        %7362 = vmatprep.subr.bf16.mxu0 0
        %7363 = vmatpush1.bf16.msra.mxu0 %v6996
        %7364 = vmatprep.subr.bf16.mxu0 0
        %7365 = vmatpush1.bf16.msra.mxu0 %v6999
        %7366 = vmatprep.subr.bf16.mxu0 0
        %7367 = vmatpush1.bf16.msra.mxu0 %v7002
        %7368 = vmatprep.subr.bf16.mxu0 0
        %7369 = vmatpush1.bf16.msra.mxu0 %v7005
        %7370 = vmatprep.subr.bf16.mxu0 0
        %7371 = vmatpush1.bf16.msra.mxu0 %v7008
        %7372 = vmatprep.subr.bf16.mxu0 0
        %7373 = vmatpush1.bf16.msra.mxu0 %v7011
        %7374 = vmatprep.subr.bf16.mxu0 0
        %7375 = vmatpush1.bf16.msra.mxu0 %v7014
        %7376 = vmatprep.subr.bf16.mxu0 0
        %7377 = vmatpush1.bf16.msra.mxu0 %v7017
        %7378 = vmatprep.subr.bf16.mxu0 0
        %7379 = vmatpush1.bf16.msra.mxu0 %v7020
        %7380 = vmatprep.subr.bf16.mxu0 0
        %7381 = vmatpush1.bf16.msra.mxu0 %v7023
        %7382 = vmatprep.subr.bf16.mxu0 0
        %7383 = vmatpush1.bf16.msra.mxu0 %v7026
        %7384 = vmatprep.subr.bf16.mxu0 0
        %7385 = vmatpush1.bf16.msra.mxu0 %v7029
        %7386 = vmatprep.subr.bf16.mxu0 0
        %7387 = vmatpush1.bf16.msra.mxu0 %v7032
        %7388 = vmatprep.subr.bf16.mxu0 0
        %7389 = vmatpush1.bf16.msra.mxu0 %v7035
        %7390 = vmatprep.mubr.bf16.mxu0 %v6533
        %7391 = vmatmul.mubr.bf16.gmra.mrb[0].mxu0 %v6532
        %v7392 = vpop.f32.mrb[0].mxu0
        %v7393 = vadd.f32 0.0, %v7392
        %v7394 = vpop.f32.mrb[0].mxu0
        %v7395 = vpop.f32.mrb[0].mxu0
        %v7396 = vadd.f32 0.0, %v7395
        %v7397 = vpop.f32.mrb[0].mxu0
        %7398 = vmatprep.mubr.bf16.mxu0 %v6536
        %7399 = vmatmul.mubr.bf16.gmra.mrb[0].mxu0 %v6535
        %v7400 = vpop.f32.mrb[0].mxu0
        %v7401 = vadd.f32 0.0, %v7400
        %v7402 = vpop.f32.mrb[0].mxu0
        %v7403 = vpop.f32.mrb[0].mxu0
        %v7404 = vadd.f32 0.0, %v7403
        %v7405 = vpop.f32.mrb[0].mxu0
        %7406 = vmatprep.mubr.bf16.mxu0 %v6539
        %7407 = vmatmul.mubr.bf16.gmra.mrb[0].mxu0 %v6538
        %v7408 = vpop.f32.mrb[0].mxu0
        %v7409 = vadd.f32 0.0, %v7408
        %v7410 = vpop.f32.mrb[0].mxu0
        %v7411 = vpop.f32.mrb[0].mxu0
        %v7412 = vadd.f32 0.0, %v7411
        %v7413 = vpop.f32.mrb[0].mxu0
        %7414 = vmatprep.mubr.bf16.mxu0 %v6542
        %7415 = vmatmul.mubr.bf16.gmra.mrb[0].mxu0 %v6541
        %v7416 = vpop.f32.mrb[0].mxu0
        %v7417 = vadd.f32 0.0, %v7416
        %v7418 = vpop.f32.mrb[0].mxu0
        %v7419 = vpop.f32.mrb[0].mxu0
        %v7420 = vadd.f32 0.0, %v7419
        %v7421 = vpop.f32.mrb[0].mxu0
        %7422 = vmatprep.mubr.bf16.mxu0 %v6545
        %7423 = vmatmul.mubr.bf16.gmra.mrb[0].mxu0 %v6544
        %v7424 = vpop.f32.mrb[0].mxu0
        %v7425 = vadd.f32 0.0, %v7424
        %v7426 = vpop.f32.mrb[0].mxu0
        %v7427 = vpop.f32.mrb[0].mxu0
        %v7428 = vadd.f32 0.0, %v7427
        %v7429 = vpop.f32.mrb[0].mxu0
        %7430 = vmatprep.mubr.bf16.mxu0 %v6548
        %7431 = vmatmul.mubr.bf16.gmra.mrb[0].mxu0 %v6547
        %v7432 = vpop.f32.mrb[0].mxu0
        %v7433 = vadd.f32 0.0, %v7432
        %v7434 = vpop.f32.mrb[0].mxu0
        %v7435 = vpop.f32.mrb[0].mxu0
        %v7436 = vadd.f32 0.0, %v7435
        %v7437 = vpop.f32.mrb[0].mxu0
        %7438 = vmatprep.mubr.bf16.mxu0 %v6551
        %7439 = vmatmul.mubr.bf16.gmra.mrb[0].mxu0 %v6550
        %v7440 = vpop.f32.mrb[0].mxu0
        %v7441 = vadd.f32 0.0, %v7440
        %v7442 = vpop.f32.mrb[0].mxu0
        %v7443 = vpop.f32.mrb[0].mxu0
        %v7444 = vadd.f32 0.0, %v7443
        %v7445 = vpop.f32.mrb[0].mxu0
        %7446 = vmatprep.mubr.bf16.mxu0 %v6554
        %7447 = vmatmul.mubr.bf16.gmra.mrb[0].mxu0 %v6553
        %v7448 = vpop.f32.mrb[0].mxu0
        %v7449 = vadd.f32 0.0, %v7448
        %v7450 = vpop.f32.mrb[0].mxu0
        %v7451 = vpop.f32.mrb[0].mxu0
        %v7452 = vadd.f32 0.0, %v7451
        %v7453 = vpop.f32.mrb[0].mxu0
        %7454 = vdwg.mxu0
        %7455 = vmatprep.subr.bf16.mxu0 0
        %7456 = vmatpush1.bf16.msra.mxu0 %v7038
        %7457 = vmatprep.subr.bf16.mxu0 0
        %7458 = vmatpush1.bf16.msra.mxu0 %v7041
        %7459 = vmatprep.subr.bf16.mxu0 0
        %7460 = vmatpush1.bf16.msra.mxu0 %v7044
        %7461 = vmatprep.subr.bf16.mxu0 0
        %7462 = vmatpush1.bf16.msra.mxu0 %v7047
        %7463 = vmatprep.subr.bf16.mxu0 0
        %7464 = vmatpush1.bf16.msra.mxu0 %v7050
        %7465 = vmatprep.subr.bf16.mxu0 0
        %7466 = vmatpush1.bf16.msra.mxu0 %v7053
        %7467 = vmatprep.subr.bf16.mxu0 0
        %7468 = vmatpush1.bf16.msra.mxu0 %v7056
        %7469 = vmatprep.subr.bf16.mxu0 0
        %7470 = vmatpush1.bf16.msra.mxu0 %v7059
        %7471 = vmatprep.subr.bf16.mxu0 0
        %7472 = vmatpush1.bf16.msra.mxu0 0
        %7473 = vmatprep.subr.bf16.mxu0 0
        %7474 = vmatpush1.bf16.msra.mxu0 0
        %7475 = vmatprep.subr.bf16.mxu0 0
        %7476 = vmatpush1.bf16.msra.mxu0 0
        %7477 = vmatprep.subr.bf16.mxu0 0
        %7478 = vmatpush1.bf16.msra.mxu0 0
        %7479 = vmatprep.subr.bf16.mxu0 0
        %7480 = vmatpush1.bf16.msra.mxu0 0
        %7481 = vmatprep.subr.bf16.mxu0 0
        %7482 = vmatpush1.bf16.msra.mxu0 0
        %7483 = vmatprep.subr.bf16.mxu0 0
        %7484 = vmatpush1.bf16.msra.mxu0 0
        %7485 = vmatprep.subr.bf16.mxu0 0
        %7486 = vmatpush1.bf16.msra.mxu0 0
        %7487 = vmatprep.mubr.bf16.mxu0 0
        %7488 = vmatmul.mubr.bf16.gmra.mrb[0].mxu0 %v6534
        %v7489 = vpop.f32.mrb[0].mxu0
        %v7490 = vadd.f32 %v7393, %v7489
        %v7491 = vpop.f32.mrb[0].mxu0
        %v7492 = vpop.f32.mrb[0].mxu0
        %v7493 = vadd.f32 %v7396, %v7492
        %v7494 = vpop.f32.mrb[0].mxu0
        %7495 = vmatprep.mubr.bf16.mxu0 0
        %7496 = vmatmul.mubr.bf16.gmra.mrb[0].mxu0 %v6537
        %v7497 = vpop.f32.mrb[0].mxu0
        %v7498 = vadd.f32 %v7401, %v7497
        %v7499 = vpop.f32.mrb[0].mxu0
        %v7500 = vpop.f32.mrb[0].mxu0
        %v7501 = vadd.f32 %v7404, %v7500
        %v7502 = vpop.f32.mrb[0].mxu0
        %7503 = vmatprep.mubr.bf16.mxu0 0
        %7504 = vmatmul.mubr.bf16.gmra.mrb[0].mxu0 %v6540
        %v7505 = vpop.f32.mrb[0].mxu0
        %v7506 = vadd.f32 %v7409, %v7505
        %v7507 = vpop.f32.mrb[0].mxu0
        %v7508 = vpop.f32.mrb[0].mxu0
        %v7509 = vadd.f32 %v7412, %v7508
        %v7510 = vpop.f32.mrb[0].mxu0
        %7511 = vmatprep.mubr.bf16.mxu0 0
        %7512 = vmatmul.mubr.bf16.gmra.mrb[0].mxu0 %v6543
        %v7513 = vpop.f32.mrb[0].mxu0
        %v7514 = vadd.f32 %v7417, %v7513
        %v7515 = vpop.f32.mrb[0].mxu0
        %v7516 = vpop.f32.mrb[0].mxu0
        %v7517 = vadd.f32 %v7420, %v7516
        %v7518 = vpop.f32.mrb[0].mxu0
        %7519 = vmatprep.mubr.bf16.mxu0 0
        %7520 = vmatmul.mubr.bf16.gmra.mrb[0].mxu0 %v6546
        %v7521 = vpop.f32.mrb[0].mxu0
        %v7522 = vadd.f32 %v7425, %v7521
        %v7523 = vpop.f32.mrb[0].mxu0
        %v7524 = vpop.f32.mrb[0].mxu0
        %v7525 = vadd.f32 %v7428, %v7524
        %v7526 = vpop.f32.mrb[0].mxu0
        %7527 = vmatprep.mubr.bf16.mxu0 0
        %7528 = vmatmul.mubr.bf16.gmra.mrb[0].mxu0 %v6549
        %v7529 = vpop.f32.mrb[0].mxu0
        %v7530 = vadd.f32 %v7433, %v7529
        %v7531 = vpop.f32.mrb[0].mxu0
        %v7532 = vpop.f32.mrb[0].mxu0
        %v7533 = vadd.f32 %v7436, %v7532
        %v7534 = vpop.f32.mrb[0].mxu0
        %7535 = vmatprep.mubr.bf16.mxu0 0
        %7536 = vmatmul.mubr.bf16.gmra.mrb[0].mxu0 %v6552
        %v7537 = vpop.f32.mrb[0].mxu0
        %v7538 = vadd.f32 %v7441, %v7537
        %v7539 = vpop.f32.mrb[0].mxu0
        %v7540 = vpop.f32.mrb[0].mxu0
        %v7541 = vadd.f32 %v7444, %v7540
        %v7542 = vpop.f32.mrb[0].mxu0
        %7543 = vmatprep.mubr.bf16.mxu0 0
        %7544 = vmatmul.mubr.bf16.gmra.mrb[0].mxu0 %v6555
        %v7545 = vpop.f32.mrb[0].mxu0
        %v7546 = vadd.f32 %v7449, %v7545
        %v7547 = vpop.f32.mrb[0].mxu0
        %v7548 = vpop.f32.mrb[0].mxu0
        %v7549 = vadd.f32 %v7452, %v7548
        %v7550 = vpop.f32.mrb[0].mxu0
        %7551 = vdwg.mxu0
        %v7648 = vunpack.c.l.b16 %v6556
        %v7649 = vunpack.c.h.b16 %v6556
        %v7650 = vunpack.c.l.b16 %v6557
        %v7651 = vunpack.c.l.b16 %v6558
        %v7652 = vunpack.c.h.b16 %v6558
        %v7653 = vunpack.c.l.b16 %v6559
        %v7654 = vunpack.c.l.b16 %v6560
        %v7655 = vunpack.c.h.b16 %v6560
        %v7656 = vunpack.c.l.b16 %v6561
        %v7657 = vunpack.c.l.b16 %v6562
        %v7658 = vunpack.c.h.b16 %v6562
        %v7659 = vunpack.c.l.b16 %v6563
        %v7660 = vunpack.c.l.b16 %v6564
        %v7661 = vunpack.c.h.b16 %v6564
        %v7662 = vunpack.c.l.b16 %v6565
        %v7663 = vunpack.c.l.b16 %v6566
        %v7664 = vunpack.c.h.b16 %v6566
        %v7665 = vunpack.c.l.b16 %v6567
        %v7666 = vunpack.c.l.b16 %v6568
        %v7667 = vunpack.c.h.b16 %v6568
        %v7668 = vunpack.c.l.b16 %v6569
        %v7669 = vunpack.c.l.b16 %v6570
        %v7670 = vunpack.c.h.b16 %v6570
        %v7671 = vunpack.c.l.b16 %v6571
        %v7672 = vunpack.c.l.b16 %v6572
        %v7673 = vunpack.c.h.b16 %v6572
        %v7674 = vunpack.c.l.b16 %v6573
        %v7675 = vunpack.c.l.b16 %v6574
        %v7676 = vunpack.c.h.b16 %v6574
        %v7677 = vunpack.c.l.b16 %v6575
        %v7678 = vunpack.c.l.b16 %v6576
        %v7679 = vunpack.c.h.b16 %v6576
        %v7680 = vunpack.c.l.b16 %v6577
        %v7681 = vunpack.c.l.b16 %v6578
        %v7682 = vunpack.c.h.b16 %v6578
        %v7683 = vunpack.c.l.b16 %v6579
        %v7684 = vunpack.c.l.b16 %v6580
        %v7685 = vunpack.c.h.b16 %v6580
        %v7686 = vunpack.c.l.b16 %v6581
        %v7687 = vunpack.c.l.b16 %v6582
        %v7688 = vunpack.c.h.b16 %v6582
        %v7689 = vunpack.c.l.b16 %v6583
        %v7690 = vunpack.c.l.b16 %v6584
        %v7691 = vunpack.c.h.b16 %v6584
        %v7692 = vunpack.c.l.b16 %v6585
        %v7693 = vunpack.c.l.b16 %v6586
        %v7694 = vunpack.c.h.b16 %v6586
        %v7695 = vunpack.c.l.b16 %v6587
        %v7696 = vunpack.c.l.b16 %v6588
        %v7697 = vunpack.c.h.b16 %v6588
        %v7698 = vunpack.c.l.b16 %v6589
        %v7699 = vunpack.c.l.b16 %v6590
        %v7700 = vunpack.c.h.b16 %v6590
        %v7701 = vunpack.c.l.b16 %v6591
        %v7702 = vunpack.c.l.b16 %v6592
        %v7703 = vunpack.c.h.b16 %v6592
        %v7704 = vunpack.c.l.b16 %v6593
        %v7705 = vunpack.c.l.b16 %v6594
        %v7706 = vunpack.c.h.b16 %v6594
        %v7707 = vunpack.c.l.b16 %v6595
        %v7708 = vunpack.c.l.b16 %v6596
        %v7709 = vunpack.c.h.b16 %v6596
        %v7710 = vunpack.c.l.b16 %v6597
        %v7711 = vunpack.c.l.b16 %v6598
        %v7712 = vunpack.c.h.b16 %v6598
        %v7713 = vunpack.c.l.b16 %v6599
        %v7714 = vunpack.c.l.b16 %v6600
        %v7715 = vunpack.c.h.b16 %v6600
        %v7716 = vunpack.c.l.b16 %v6601
        %v7717 = vunpack.c.l.b16 %v6602
        %v7718 = vunpack.c.h.b16 %v6602
        %v7719 = vunpack.c.l.b16 %v6603
        %v7720 = vunpack.c.l.b16 %v6604
        %v7721 = vunpack.c.h.b16 %v6604
        %v7722 = vunpack.c.l.b16 %v6605
        %v7723 = vunpack.c.l.b16 %v6606
        %v7724 = vunpack.c.h.b16 %v6606
        %v7725 = vunpack.c.l.b16 %v6607
        %v7726 = vunpack.c.l.b16 %v6608
        %v7727 = vunpack.c.h.b16 %v6608
        %v7728 = vunpack.c.l.b16 %v6609
        %v7729 = vunpack.c.l.b16 %v6610
        %v7730 = vunpack.c.h.b16 %v6610
        %v7731 = vunpack.c.l.b16 %v6611
        %v7732 = vunpack.c.l.b16 %v6612
        %v7733 = vunpack.c.h.b16 %v6612
        %v7734 = vunpack.c.l.b16 %v6613
        %v7735 = vunpack.c.l.b16 %v6614
        %v7736 = vunpack.c.h.b16 %v6614
        %v7737 = vunpack.c.l.b16 %v6615
        %v7738 = vunpack.c.l.b16 %v6616
        %v7739 = vunpack.c.h.b16 %v6616
        %v7740 = vunpack.c.l.b16 %v6617
        %v7741 = vunpack.c.l.b16 %v6618
        %v7742 = vunpack.c.h.b16 %v6618
        %v7743 = vunpack.c.l.b16 %v6619
        %v7744 = vunpack.c.l.b16 %v6620
        %v7745 = vunpack.c.h.b16 %v6620
        %v7746 = vunpack.c.l.b16 %v6621
        %v7747 = vunpack.c.l.b16 %v6622
        %v7748 = vunpack.c.h.b16 %v6622
        %v7749 = vunpack.c.l.b16 %v6623
        %v7750 = vunpack.c.l.b16 %v6624
        %v7751 = vunpack.c.h.b16 %v6624
        %v7752 = vunpack.c.l.b16 %v6625
        %v7753 = vunpack.c.l.b16 %v6626
        %v7754 = vunpack.c.h.b16 %v6626
        %v7755 = vunpack.c.l.b16 %v6627
        %v7756 = vunpack.c.l.b16 %v6628
        %v7757 = vunpack.c.h.b16 %v6628
        %v7758 = vunpack.c.l.b16 %v6629
        %v7759 = vunpack.c.l.b16 %v6630
        %v7760 = vunpack.c.h.b16 %v6630
        %v7761 = vunpack.c.l.b16 %v6631
        %v7762 = vunpack.c.l.b16 %v6632
        %v7763 = vunpack.c.h.b16 %v6632
        %v7764 = vunpack.c.l.b16 %v6633
        %v7765 = vunpack.c.l.b16 %v6634
        %v7766 = vunpack.c.h.b16 %v6634
        %v7767 = vunpack.c.l.b16 %v6635
        %v7768 = vunpack.c.l.b16 %v6636
        %v7769 = vunpack.c.h.b16 %v6636
        %v7770 = vunpack.c.l.b16 %v6637
        %v7771 = vunpack.c.l.b16 %v6638
        %v7772 = vunpack.c.h.b16 %v6638
        %v7773 = vunpack.c.l.b16 %v6639
        %v7774 = vunpack.c.l.b16 %v6640
        %v7775 = vunpack.c.h.b16 %v6640
        %v7776 = vunpack.c.l.b16 %v6641
        %v7777 = vunpack.c.l.b16 %v6642
        %v7778 = vunpack.c.h.b16 %v6642
        %v7779 = vunpack.c.l.b16 %v6643
        %v7780 = vunpack.c.l.b16 %v6644
        %v7781 = vunpack.c.h.b16 %v6644
        %v7782 = vunpack.c.l.b16 %v6645
        %v7783 = vunpack.c.l.b16 %v6646
        %v7784 = vunpack.c.h.b16 %v6646
        %v7785 = vunpack.c.l.b16 %v6647
        %v7786 = vunpack.c.l.b16 %v6648
        %v7787 = vunpack.c.h.b16 %v6648
        %v7788 = vunpack.c.l.b16 %v6649
        %v7789 = vunpack.c.l.b16 %v6650
        %v7790 = vunpack.c.h.b16 %v6650
        %v7791 = vunpack.c.l.b16 %v6651
        %v7792 = vpack.c.b16 %v7651, %v7648
        %v7793 = vpack.c.b16 %v7652, %v7649
        %v7794 = vpack.c.b16 %v7653, %v7650
        %v7795 = vpack.c.b16 %v7657, %v7654
        %v7796 = vpack.c.b16 %v7658, %v7655
        %v7797 = vpack.c.b16 %v7659, %v7656
        %v7798 = vpack.c.b16 %v7663, %v7660
        %v7799 = vpack.c.b16 %v7664, %v7661
        %v7800 = vpack.c.b16 %v7665, %v7662
        %v7801 = vpack.c.b16 %v7669, %v7666
        %v7802 = vpack.c.b16 %v7670, %v7667
        %v7803 = vpack.c.b16 %v7671, %v7668
        %v7804 = vpack.c.b16 %v7675, %v7672
        %v7805 = vpack.c.b16 %v7676, %v7673
        %v7806 = vpack.c.b16 %v7677, %v7674
        %v7807 = vpack.c.b16 %v7681, %v7678
        %v7808 = vpack.c.b16 %v7682, %v7679
        %v7809 = vpack.c.b16 %v7683, %v7680
        %v7810 = vpack.c.b16 %v7687, %v7684
        %v7811 = vpack.c.b16 %v7688, %v7685
        %v7812 = vpack.c.b16 %v7689, %v7686
        %v7813 = vpack.c.b16 %v7693, %v7690
        %v7814 = vpack.c.b16 %v7694, %v7691
        %v7815 = vpack.c.b16 %v7695, %v7692
        %v7816 = vpack.c.b16 %v7699, %v7696
        %v7817 = vpack.c.b16 %v7700, %v7697
        %v7818 = vpack.c.b16 %v7701, %v7698
        %v7819 = vpack.c.b16 %v7705, %v7702
        %v7820 = vpack.c.b16 %v7706, %v7703
        %v7821 = vpack.c.b16 %v7707, %v7704
        %v7822 = vpack.c.b16 %v7711, %v7708
        %v7823 = vpack.c.b16 %v7712, %v7709
        %v7824 = vpack.c.b16 %v7713, %v7710
        %v7825 = vpack.c.b16 %v7717, %v7714
        %v7826 = vpack.c.b16 %v7718, %v7715
        %v7827 = vpack.c.b16 %v7719, %v7716
        %v7828 = vpack.c.b16 %v7723, %v7720
        %v7829 = vpack.c.b16 %v7724, %v7721
        %v7830 = vpack.c.b16 %v7725, %v7722
        %v7831 = vpack.c.b16 %v7729, %v7726
        %v7832 = vpack.c.b16 %v7730, %v7727
        %v7833 = vpack.c.b16 %v7731, %v7728
        %v7834 = vpack.c.b16 %v7735, %v7732
        %v7835 = vpack.c.b16 %v7736, %v7733
        %v7836 = vpack.c.b16 %v7737, %v7734
        %v7837 = vpack.c.b16 %v7741, %v7738
        %v7838 = vpack.c.b16 %v7742, %v7739
        %v7839 = vpack.c.b16 %v7743, %v7740
        %v7840 = vpack.c.b16 %v7747, %v7744
        %v7841 = vpack.c.b16 %v7748, %v7745
        %v7842 = vpack.c.b16 %v7749, %v7746
        %v7843 = vpack.c.b16 %v7753, %v7750
        %v7844 = vpack.c.b16 %v7754, %v7751
        %v7845 = vpack.c.b16 %v7755, %v7752
        %v7846 = vpack.c.b16 %v7759, %v7756
        %v7847 = vpack.c.b16 %v7760, %v7757
        %v7848 = vpack.c.b16 %v7761, %v7758
        %v7849 = vpack.c.b16 %v7765, %v7762
        %v7850 = vpack.c.b16 %v7766, %v7763
        %v7851 = vpack.c.b16 %v7767, %v7764
        %v7852 = vpack.c.b16 %v7771, %v7768
        %v7853 = vpack.c.b16 %v7772, %v7769
        %v7854 = vpack.c.b16 %v7773, %v7770
        %v7855 = vpack.c.b16 %v7777, %v7774
        %v7856 = vpack.c.b16 %v7778, %v7775
        %v7857 = vpack.c.b16 %v7779, %v7776
        %v7858 = vpack.c.b16 %v7783, %v7780
        %v7859 = vpack.c.b16 %v7784, %v7781
        %v7860 = vpack.c.b16 %v7785, %v7782
        %v7861 = vpack.c.b16 %v7789, %v7786
        %v7862 = vpack.c.b16 %v7790, %v7787
        %v7863 = vpack.c.b16 %v7791, %v7788
        %7936 = vmatprep.subr.bf16.mxu0 %v7793
        %7937 = vmatpush1.bf16.msra.mxu0 %v7792
        %7938 = vmatprep.subr.bf16.mxu0 %v7796
        %7939 = vmatpush1.bf16.msra.mxu0 %v7795
        %7940 = vmatprep.subr.bf16.mxu0 %v7799
        %7941 = vmatpush1.bf16.msra.mxu0 %v7798
        %7942 = vmatprep.subr.bf16.mxu0 %v7802
        %7943 = vmatpush1.bf16.msra.mxu0 %v7801
        %7944 = vmatprep.subr.bf16.mxu0 %v7805
        %7945 = vmatpush1.bf16.msra.mxu0 %v7804
        %7946 = vmatprep.subr.bf16.mxu0 %v7808
        %7947 = vmatpush1.bf16.msra.mxu0 %v7807
        %7948 = vmatprep.subr.bf16.mxu0 %v7811
        %7949 = vmatpush1.bf16.msra.mxu0 %v7810
        %7950 = vmatprep.subr.bf16.mxu0 %v7814
        %7951 = vmatpush1.bf16.msra.mxu0 %v7813
        %7952 = vmatprep.subr.bf16.mxu0 %v7817
        %7953 = vmatpush1.bf16.msra.mxu0 %v7816
        %7954 = vmatprep.subr.bf16.mxu0 %v7820
        %7955 = vmatpush1.bf16.msra.mxu0 %v7819
        %7956 = vmatprep.subr.bf16.mxu0 %v7823
        %7957 = vmatpush1.bf16.msra.mxu0 %v7822
        %7958 = vmatprep.subr.bf16.mxu0 %v7826
        %7959 = vmatpush1.bf16.msra.mxu0 %v7825
        %7960 = vmatprep.subr.bf16.mxu0 %v7829
        %7961 = vmatpush1.bf16.msra.mxu0 %v7828
        %7962 = vmatprep.subr.bf16.mxu0 %v7832
        %7963 = vmatpush1.bf16.msra.mxu0 %v7831
        %7964 = vmatprep.subr.bf16.mxu0 %v7835
        %7965 = vmatpush1.bf16.msra.mxu0 %v7834
        %7966 = vmatprep.subr.bf16.mxu0 %v7838
        %7967 = vmatpush1.bf16.msra.mxu0 %v7837
        %7968 = vmatprep.mubr.bf16.mxu0 %v5765
        %7969 = vmatmul.mubr.bf16.gmra.mrb[0].mxu0 %v5764
        %v7970 = vpop.f32.mrb[0].mxu0
        %v7971 = vadd.f32 %v7280, %v7970
        %v7972 = vpop.f32.mrb[0].mxu0
        %v7973 = vadd.f32 %v7282, %v7972
        %v7974 = vpop.f32.mrb[0].mxu0
        %v7975 = vadd.f32 %v7284, %v7974
        %v7976 = vpop.f32.mrb[0].mxu0
        %v7977 = vadd.f32 %v7286, %v7976
        %7978 = vmatprep.mubr.bf16.mxu0 %v5771
        %7979 = vmatmul.mubr.bf16.gmra.mrb[0].mxu0 %v5770
        %v7980 = vpop.f32.mrb[0].mxu0
        %v7981 = vadd.f32 %v7290, %v7980
        %v7982 = vpop.f32.mrb[0].mxu0
        %v7983 = vadd.f32 %v7292, %v7982
        %v7984 = vpop.f32.mrb[0].mxu0
        %v7985 = vadd.f32 %v7294, %v7984
        %v7986 = vpop.f32.mrb[0].mxu0
        %v7987 = vadd.f32 %v7296, %v7986
        %7988 = vmatprep.mubr.bf16.mxu0 %v5777
        %7989 = vmatmul.mubr.bf16.gmra.mrb[0].mxu0 %v5776
        %v7990 = vpop.f32.mrb[0].mxu0
        %v7991 = vadd.f32 %v7300, %v7990
        %v7992 = vpop.f32.mrb[0].mxu0
        %v7993 = vadd.f32 %v7302, %v7992
        %v7994 = vpop.f32.mrb[0].mxu0
        %v7995 = vadd.f32 %v7304, %v7994
        %v7996 = vpop.f32.mrb[0].mxu0
        %v7997 = vadd.f32 %v7306, %v7996
        %7998 = vmatprep.mubr.bf16.mxu0 %v5783
        %7999 = vmatmul.mubr.bf16.gmra.mrb[0].mxu0 %v5782
        %v8000 = vpop.f32.mrb[0].mxu0
        %v8001 = vadd.f32 %v7310, %v8000
        %v8002 = vpop.f32.mrb[0].mxu0
        %v8003 = vadd.f32 %v7312, %v8002
        %v8004 = vpop.f32.mrb[0].mxu0
        %v8005 = vadd.f32 %v7314, %v8004
        %v8006 = vpop.f32.mrb[0].mxu0
        %v8007 = vadd.f32 %v7316, %v8006
        %8008 = vmatprep.mubr.bf16.mxu0 %v5789
        %8009 = vmatmul.mubr.bf16.gmra.mrb[0].mxu0 %v5788
        %v8010 = vpop.f32.mrb[0].mxu0
        %v8011 = vadd.f32 %v7320, %v8010
        %v8012 = vpop.f32.mrb[0].mxu0
        %v8013 = vadd.f32 %v7322, %v8012
        %v8014 = vpop.f32.mrb[0].mxu0
        %v8015 = vadd.f32 %v7324, %v8014
        %v8016 = vpop.f32.mrb[0].mxu0
        %v8017 = vadd.f32 %v7326, %v8016
        %8018 = vmatprep.mubr.bf16.mxu0 %v5795
        %8019 = vmatmul.mubr.bf16.gmra.mrb[0].mxu0 %v5794
        %v8020 = vpop.f32.mrb[0].mxu0
        %v8021 = vadd.f32 %v7330, %v8020
        %v8022 = vpop.f32.mrb[0].mxu0
        %v8023 = vadd.f32 %v7332, %v8022
        %v8024 = vpop.f32.mrb[0].mxu0
        %v8025 = vadd.f32 %v7334, %v8024
        %v8026 = vpop.f32.mrb[0].mxu0
        %v8027 = vadd.f32 %v7336, %v8026
        %8028 = vmatprep.mubr.bf16.mxu0 %v5801
        %8029 = vmatmul.mubr.bf16.gmra.mrb[0].mxu0 %v5800
        %v8030 = vpop.f32.mrb[0].mxu0
        %v8031 = vadd.f32 %v7340, %v8030
        %v8032 = vpop.f32.mrb[0].mxu0
        %v8033 = vadd.f32 %v7342, %v8032
        %v8034 = vpop.f32.mrb[0].mxu0
        %v8035 = vadd.f32 %v7344, %v8034
        %v8036 = vpop.f32.mrb[0].mxu0
        %v8037 = vadd.f32 %v7346, %v8036
        %8038 = vmatprep.mubr.bf16.mxu0 %v5807
        %8039 = vmatmul.mubr.bf16.gmra.mrb[0].mxu0 %v5806
        %v8040 = vpop.f32.mrb[0].mxu0
        %v8041 = vadd.f32 %v7350, %v8040
        %v8042 = vpop.f32.mrb[0].mxu0
        %v8043 = vadd.f32 %v7352, %v8042
        %v8044 = vpop.f32.mrb[0].mxu0
        %v8045 = vadd.f32 %v7354, %v8044
        %v8046 = vpop.f32.mrb[0].mxu0
        %v8047 = vadd.f32 %v7356, %v8046
        %8048 = vdwg.mxu0
        %8049 = vmatprep.subr.bf16.mxu0 %v7841
        %8050 = vmatpush1.bf16.msra.mxu0 %v7840
        %8051 = vmatprep.subr.bf16.mxu0 %v7844
        %8052 = vmatpush1.bf16.msra.mxu0 %v7843
        %8053 = vmatprep.subr.bf16.mxu0 %v7847
        %8054 = vmatpush1.bf16.msra.mxu0 %v7846
        %8055 = vmatprep.subr.bf16.mxu0 %v7850
        %8056 = vmatpush1.bf16.msra.mxu0 %v7849
        %8057 = vmatprep.subr.bf16.mxu0 %v7853
        %8058 = vmatpush1.bf16.msra.mxu0 %v7852
        %8059 = vmatprep.subr.bf16.mxu0 %v7856
        %8060 = vmatpush1.bf16.msra.mxu0 %v7855
        %8061 = vmatprep.subr.bf16.mxu0 %v7859
        %8062 = vmatpush1.bf16.msra.mxu0 %v7858
        %8063 = vmatprep.subr.bf16.mxu0 %v7862
        %8064 = vmatpush1.bf16.msra.mxu0 %v7861
        %8065 = vmatprep.subr.bf16.mxu0 0
        %8066 = vmatpush1.bf16.msra.mxu0 0
        %8067 = vmatprep.subr.bf16.mxu0 0
        %8068 = vmatpush1.bf16.msra.mxu0 0
        %8069 = vmatprep.subr.bf16.mxu0 0
        %8070 = vmatpush1.bf16.msra.mxu0 0
        %8071 = vmatprep.subr.bf16.mxu0 0
        %8072 = vmatpush1.bf16.msra.mxu0 0
        %8073 = vmatprep.subr.bf16.mxu0 0
        %8074 = vmatpush1.bf16.msra.mxu0 0
        %8075 = vmatprep.subr.bf16.mxu0 0
        %8076 = vmatpush1.bf16.msra.mxu0 0
        %8077 = vmatprep.subr.bf16.mxu0 0
        %8078 = vmatpush1.bf16.msra.mxu0 0
        %8079 = vmatprep.subr.bf16.mxu0 0
        %8080 = vmatpush1.bf16.msra.mxu0 0
        %8081 = vmatprep.mubr.bf16.mxu0 0
        %8082 = vmatmul.mubr.bf16.gmra.mrb[0].mxu0 %v5766
        %v8083 = vpop.f32.mrb[0].mxu0
        %v8084 = vadd.f32 %v7971, %v8083
        %v8085 = vpop.f32.mrb[0].mxu0
        %v8086 = vadd.f32 %v7973, %v8085
        %v8087 = vpop.f32.mrb[0].mxu0
        %v8088 = vadd.f32 %v7975, %v8087
        %v8089 = vpop.f32.mrb[0].mxu0
        %v8090 = vadd.f32 %v7977, %v8089
        %8091 = vmatprep.mubr.bf16.mxu0 0
        %8092 = vmatmul.mubr.bf16.gmra.mrb[0].mxu0 %v5772
        %v8093 = vpop.f32.mrb[0].mxu0
        %v8094 = vadd.f32 %v7981, %v8093
        %v8095 = vpop.f32.mrb[0].mxu0
        %v8096 = vadd.f32 %v7983, %v8095
        %v8097 = vpop.f32.mrb[0].mxu0
        %v8098 = vadd.f32 %v7985, %v8097
        %v8099 = vpop.f32.mrb[0].mxu0
        %v8100 = vadd.f32 %v7987, %v8099
        %8101 = vmatprep.mubr.bf16.mxu0 0
        %8102 = vmatmul.mubr.bf16.gmra.mrb[0].mxu0 %v5778
        %v8103 = vpop.f32.mrb[0].mxu0
        %v8104 = vadd.f32 %v7991, %v8103
        %v8105 = vpop.f32.mrb[0].mxu0
        %v8106 = vadd.f32 %v7993, %v8105
        %v8107 = vpop.f32.mrb[0].mxu0
        %v8108 = vadd.f32 %v7995, %v8107
        %v8109 = vpop.f32.mrb[0].mxu0
        %v8110 = vadd.f32 %v7997, %v8109
        %8111 = vmatprep.mubr.bf16.mxu0 0
        %8112 = vmatmul.mubr.bf16.gmra.mrb[0].mxu0 %v5784
        %v8113 = vpop.f32.mrb[0].mxu0
        %v8114 = vadd.f32 %v8001, %v8113
        %v8115 = vpop.f32.mrb[0].mxu0
        %v8116 = vadd.f32 %v8003, %v8115
        %v8117 = vpop.f32.mrb[0].mxu0
        %v8118 = vadd.f32 %v8005, %v8117
        %v8119 = vpop.f32.mrb[0].mxu0
        %v8120 = vadd.f32 %v8007, %v8119
        %8121 = vmatprep.mubr.bf16.mxu0 0
        %8122 = vmatmul.mubr.bf16.gmra.mrb[0].mxu0 %v5790
        %v8123 = vpop.f32.mrb[0].mxu0
        %v8124 = vadd.f32 %v8011, %v8123
        %v8125 = vpop.f32.mrb[0].mxu0
        %v8126 = vadd.f32 %v8013, %v8125
        %v8127 = vpop.f32.mrb[0].mxu0
        %v8128 = vadd.f32 %v8015, %v8127
        %v8129 = vpop.f32.mrb[0].mxu0
        %v8130 = vadd.f32 %v8017, %v8129
        %8131 = vmatprep.mubr.bf16.mxu0 0
        %8132 = vmatmul.mubr.bf16.gmra.mrb[0].mxu0 %v5796
        %v8133 = vpop.f32.mrb[0].mxu0
        %v8134 = vadd.f32 %v8021, %v8133
        %v8135 = vpop.f32.mrb[0].mxu0
        %v8136 = vadd.f32 %v8023, %v8135
        %v8137 = vpop.f32.mrb[0].mxu0
        %v8138 = vadd.f32 %v8025, %v8137
        %v8139 = vpop.f32.mrb[0].mxu0
        %v8140 = vadd.f32 %v8027, %v8139
        %8141 = vmatprep.mubr.bf16.mxu0 0
        %8142 = vmatmul.mubr.bf16.gmra.mrb[0].mxu0 %v5802
        %v8143 = vpop.f32.mrb[0].mxu0
        %v8144 = vadd.f32 %v8031, %v8143
        %v8145 = vpop.f32.mrb[0].mxu0
        %v8146 = vadd.f32 %v8033, %v8145
        %v8147 = vpop.f32.mrb[0].mxu0
        %v8148 = vadd.f32 %v8035, %v8147
        %v8149 = vpop.f32.mrb[0].mxu0
        %v8150 = vadd.f32 %v8037, %v8149
        %8151 = vmatprep.mubr.bf16.mxu0 0
        %8152 = vmatmul.mubr.bf16.gmra.mrb[0].mxu0 %v5808
        %v8153 = vpop.f32.mrb[0].mxu0
        %v8154 = vadd.f32 %v8041, %v8153
        %v8155 = vpop.f32.mrb[0].mxu0
        %v8156 = vadd.f32 %v8043, %v8155
        %v8157 = vpop.f32.mrb[0].mxu0
        %v8158 = vadd.f32 %v8045, %v8157
        %v8159 = vpop.f32.mrb[0].mxu0
        %v8160 = vadd.f32 %v8047, %v8159
        %8161 = vdwg.mxu0
        %8162 = vmatprep.subr.bf16.mxu0 0
        %8163 = vmatpush1.bf16.msra.mxu0 %v7794
        %8164 = vmatprep.subr.bf16.mxu0 0
        %8165 = vmatpush1.bf16.msra.mxu0 %v7797
        %8166 = vmatprep.subr.bf16.mxu0 0
        %8167 = vmatpush1.bf16.msra.mxu0 %v7800
        %8168 = vmatprep.subr.bf16.mxu0 0
        %8169 = vmatpush1.bf16.msra.mxu0 %v7803
        %8170 = vmatprep.subr.bf16.mxu0 0
        %8171 = vmatpush1.bf16.msra.mxu0 %v7806
        %8172 = vmatprep.subr.bf16.mxu0 0
        %8173 = vmatpush1.bf16.msra.mxu0 %v7809
        %8174 = vmatprep.subr.bf16.mxu0 0
        %8175 = vmatpush1.bf16.msra.mxu0 %v7812
        %8176 = vmatprep.subr.bf16.mxu0 0
        %8177 = vmatpush1.bf16.msra.mxu0 %v7815
        %8178 = vmatprep.subr.bf16.mxu0 0
        %8179 = vmatpush1.bf16.msra.mxu0 %v7818
        %8180 = vmatprep.subr.bf16.mxu0 0
        %8181 = vmatpush1.bf16.msra.mxu0 %v7821
        %8182 = vmatprep.subr.bf16.mxu0 0
        %8183 = vmatpush1.bf16.msra.mxu0 %v7824
        %8184 = vmatprep.subr.bf16.mxu0 0
        %8185 = vmatpush1.bf16.msra.mxu0 %v7827
        %8186 = vmatprep.subr.bf16.mxu0 0
        %8187 = vmatpush1.bf16.msra.mxu0 %v7830
        %8188 = vmatprep.subr.bf16.mxu0 0
        %8189 = vmatpush1.bf16.msra.mxu0 %v7833
        %8190 = vmatprep.subr.bf16.mxu0 0
        %8191 = vmatpush1.bf16.msra.mxu0 %v7836
        %8192 = vmatprep.subr.bf16.mxu0 0
        %8193 = vmatpush1.bf16.msra.mxu0 %v7839
        %8194 = vmatprep.mubr.bf16.mxu0 %v5765
        %8195 = vmatmul.mubr.bf16.gmra.mrb[0].mxu0 %v5764
        %v8196 = vpop.f32.mrb[0].mxu0
        %v8197 = vadd.f32 %v7490, %v8196
        %v8198 = vpop.f32.mrb[0].mxu0
        %v8199 = vpop.f32.mrb[0].mxu0
        %v8200 = vadd.f32 %v7493, %v8199
        %v8201 = vpop.f32.mrb[0].mxu0
        %8202 = vmatprep.mubr.bf16.mxu0 %v5771
        %8203 = vmatmul.mubr.bf16.gmra.mrb[0].mxu0 %v5770
        %v8204 = vpop.f32.mrb[0].mxu0
        %v8205 = vadd.f32 %v7498, %v8204
        %v8206 = vpop.f32.mrb[0].mxu0
        %v8207 = vpop.f32.mrb[0].mxu0
        %v8208 = vadd.f32 %v7501, %v8207
        %v8209 = vpop.f32.mrb[0].mxu0
        %8210 = vmatprep.mubr.bf16.mxu0 %v5777
        %8211 = vmatmul.mubr.bf16.gmra.mrb[0].mxu0 %v5776
        %v8212 = vpop.f32.mrb[0].mxu0
        %v8213 = vadd.f32 %v7506, %v8212
        %v8214 = vpop.f32.mrb[0].mxu0
        %v8215 = vpop.f32.mrb[0].mxu0
        %v8216 = vadd.f32 %v7509, %v8215
        %v8217 = vpop.f32.mrb[0].mxu0
        %8218 = vmatprep.mubr.bf16.mxu0 %v5783
        %8219 = vmatmul.mubr.bf16.gmra.mrb[0].mxu0 %v5782
        %v8220 = vpop.f32.mrb[0].mxu0
        %v8221 = vadd.f32 %v7514, %v8220
        %v8222 = vpop.f32.mrb[0].mxu0
        %v8223 = vpop.f32.mrb[0].mxu0
        %v8224 = vadd.f32 %v7517, %v8223
        %v8225 = vpop.f32.mrb[0].mxu0
        %8226 = vmatprep.mubr.bf16.mxu0 %v5789
        %8227 = vmatmul.mubr.bf16.gmra.mrb[0].mxu0 %v5788
        %v8228 = vpop.f32.mrb[0].mxu0
        %v8229 = vadd.f32 %v7522, %v8228
        %v8230 = vpop.f32.mrb[0].mxu0
        %v8231 = vpop.f32.mrb[0].mxu0
        %v8232 = vadd.f32 %v7525, %v8231
        %v8233 = vpop.f32.mrb[0].mxu0
        %8234 = vmatprep.mubr.bf16.mxu0 %v5795
        %8235 = vmatmul.mubr.bf16.gmra.mrb[0].mxu0 %v5794
        %v8236 = vpop.f32.mrb[0].mxu0
        %v8237 = vadd.f32 %v7530, %v8236
        %v8238 = vpop.f32.mrb[0].mxu0
        %v8239 = vpop.f32.mrb[0].mxu0
        %v8240 = vadd.f32 %v7533, %v8239
        %v8241 = vpop.f32.mrb[0].mxu0
        %8242 = vmatprep.mubr.bf16.mxu0 %v5801
        %8243 = vmatmul.mubr.bf16.gmra.mrb[0].mxu0 %v5800
        %v8244 = vpop.f32.mrb[0].mxu0
        %v8245 = vadd.f32 %v7538, %v8244
        %v8246 = vpop.f32.mrb[0].mxu0
        %v8247 = vpop.f32.mrb[0].mxu0
        %v8248 = vadd.f32 %v7541, %v8247
        %v8249 = vpop.f32.mrb[0].mxu0
        %8250 = vmatprep.mubr.bf16.mxu0 %v5807
        %8251 = vmatmul.mubr.bf16.gmra.mrb[0].mxu0 %v5806
        %v8252 = vpop.f32.mrb[0].mxu0
        %v8253 = vadd.f32 %v7546, %v8252
        %v8254 = vpop.f32.mrb[0].mxu0
        %v8255 = vpop.f32.mrb[0].mxu0
        %v8256 = vadd.f32 %v7549, %v8255
        %v8257 = vpop.f32.mrb[0].mxu0
        %8258 = vdwg.mxu0
        %8259 = vmatprep.subr.bf16.mxu0 0
        %8260 = vmatpush1.bf16.msra.mxu0 %v7842
        %8261 = vmatprep.subr.bf16.mxu0 0
        %8262 = vmatpush1.bf16.msra.mxu0 %v7845
        %8263 = vmatprep.subr.bf16.mxu0 0
        %8264 = vmatpush1.bf16.msra.mxu0 %v7848
        %8265 = vmatprep.subr.bf16.mxu0 0
        %8266 = vmatpush1.bf16.msra.mxu0 %v7851
        %8267 = vmatprep.subr.bf16.mxu0 0
        %8268 = vmatpush1.bf16.msra.mxu0 %v7854
        %8269 = vmatprep.subr.bf16.mxu0 0
        %8270 = vmatpush1.bf16.msra.mxu0 %v7857
        %8271 = vmatprep.subr.bf16.mxu0 0
        %8272 = vmatpush1.bf16.msra.mxu0 %v7860
        %8273 = vmatprep.subr.bf16.mxu0 0
        %8274 = vmatpush1.bf16.msra.mxu0 %v7863
        %8275 = vmatprep.subr.bf16.mxu0 0
        %8276 = vmatpush1.bf16.msra.mxu0 0
        %8277 = vmatprep.subr.bf16.mxu0 0
        %8278 = vmatpush1.bf16.msra.mxu0 0
        %8279 = vmatprep.subr.bf16.mxu0 0
        %8280 = vmatpush1.bf16.msra.mxu0 0
        %8281 = vmatprep.subr.bf16.mxu0 0
        %8282 = vmatpush1.bf16.msra.mxu0 0
        %8283 = vmatprep.subr.bf16.mxu0 0
        %8284 = vmatpush1.bf16.msra.mxu0 0
        %8285 = vmatprep.subr.bf16.mxu0 0
        %8286 = vmatpush1.bf16.msra.mxu0 0
        %8287 = vmatprep.subr.bf16.mxu0 0
        %8288 = vmatpush1.bf16.msra.mxu0 0
        %8289 = vmatprep.subr.bf16.mxu0 0
        %8290 = vmatpush1.bf16.msra.mxu0 0
        %8291 = vmatprep.mubr.bf16.mxu0 0
        %8292 = vmatmul.mubr.bf16.gmra.mrb[0].mxu0 %v5766
        %v8293 = vpop.f32.mrb[0].mxu0
        %v8294 = vadd.f32 %v8197, %v8293
        %v8295 = vpop.f32.mrb[0].mxu0
        %v8296 = vpop.f32.mrb[0].mxu0
        %v8297 = vadd.f32 %v8200, %v8296
        %v8298 = vpop.f32.mrb[0].mxu0
        %8299 = vmatprep.mubr.bf16.mxu0 0
        %8300 = vmatmul.mubr.bf16.gmra.mrb[0].mxu0 %v5772
        %v8301 = vpop.f32.mrb[0].mxu0
        %v8302 = vadd.f32 %v8205, %v8301
        %v8303 = vpop.f32.mrb[0].mxu0
        %v8304 = vpop.f32.mrb[0].mxu0
        %v8305 = vadd.f32 %v8208, %v8304
        %v8306 = vpop.f32.mrb[0].mxu0
        %8307 = vmatprep.mubr.bf16.mxu0 0
        %8308 = vmatmul.mubr.bf16.gmra.mrb[0].mxu0 %v5778
        %v8309 = vpop.f32.mrb[0].mxu0
        %v8310 = vadd.f32 %v8213, %v8309
        %v8311 = vpop.f32.mrb[0].mxu0
        %v8312 = vpop.f32.mrb[0].mxu0
        %v8313 = vadd.f32 %v8216, %v8312
        %v8314 = vpop.f32.mrb[0].mxu0
        %8315 = vmatprep.mubr.bf16.mxu0 0
        %8316 = vmatmul.mubr.bf16.gmra.mrb[0].mxu0 %v5784
        %v8317 = vpop.f32.mrb[0].mxu0
        %v8318 = vadd.f32 %v8221, %v8317
        %v8319 = vpop.f32.mrb[0].mxu0
        %v8320 = vpop.f32.mrb[0].mxu0
        %v8321 = vadd.f32 %v8224, %v8320
        %v8322 = vpop.f32.mrb[0].mxu0
        %8323 = vmatprep.mubr.bf16.mxu0 0
        %8324 = vmatmul.mubr.bf16.gmra.mrb[0].mxu0 %v5790
        %v8325 = vpop.f32.mrb[0].mxu0
        %v8326 = vadd.f32 %v8229, %v8325
        %v8327 = vpop.f32.mrb[0].mxu0
        %v8328 = vpop.f32.mrb[0].mxu0
        %v8329 = vadd.f32 %v8232, %v8328
        %v8330 = vpop.f32.mrb[0].mxu0
        %8331 = vmatprep.mubr.bf16.mxu0 0
        %8332 = vmatmul.mubr.bf16.gmra.mrb[0].mxu0 %v5796
        %v8333 = vpop.f32.mrb[0].mxu0
        %v8334 = vadd.f32 %v8237, %v8333
        %v8335 = vpop.f32.mrb[0].mxu0
        %v8336 = vpop.f32.mrb[0].mxu0
        %v8337 = vadd.f32 %v8240, %v8336
        %v8338 = vpop.f32.mrb[0].mxu0
        %8339 = vmatprep.mubr.bf16.mxu0 0
        %8340 = vmatmul.mubr.bf16.gmra.mrb[0].mxu0 %v5802
        %v8341 = vpop.f32.mrb[0].mxu0
        %v8342 = vadd.f32 %v8245, %v8341
        %v8343 = vpop.f32.mrb[0].mxu0
        %v8344 = vpop.f32.mrb[0].mxu0
        %v8345 = vadd.f32 %v8248, %v8344
        %v8346 = vpop.f32.mrb[0].mxu0
        %8347 = vmatprep.mubr.bf16.mxu0 0
        %8348 = vmatmul.mubr.bf16.gmra.mrb[0].mxu0 %v5808
        %v8349 = vpop.f32.mrb[0].mxu0
        %v8350 = vadd.f32 %v8253, %v8349
        %v8351 = vpop.f32.mrb[0].mxu0
        %v8352 = vpop.f32.mrb[0].mxu0
        %v8353 = vadd.f32 %v8256, %v8352
        %v8354 = vpop.f32.mrb[0].mxu0
        %8355 = vdwg.mxu0
        %v8356 = vadd.f32 %v409, %v8084
        %v8357 = vadd.f32 %v410, %v8086
        %v8358 = vadd.f32 %v411, %v8294
        %v8359 = vadd.f32 %v412, %v8088
        %v8360 = vadd.f32 %v413, %v8090
        %v8361 = vadd.f32 %v414, %v8297
        %v8362 = vadd.f32 %v415, %v8094
        %v8363 = vadd.f32 %v416, %v8096
        %v8364 = vadd.f32 %v417, %v8302
        %v8365 = vadd.f32 %v418, %v8098
        %v8366 = vadd.f32 %v419, %v8100
        %v8367 = vadd.f32 %v420, %v8305
        %v8368 = vadd.f32 %v421, %v8104
        %v8369 = vadd.f32 %v422, %v8106
        %v8370 = vadd.f32 %v423, %v8310
        %v8371 = vadd.f32 %v424, %v8108
        %v8372 = vadd.f32 %v425, %v8110
        %v8373 = vadd.f32 %v426, %v8313
        %v8374 = vadd.f32 %v427, %v8114
        %v8375 = vadd.f32 %v428, %v8116
        %v8376 = vadd.f32 %v429, %v8318
        %v8377 = vadd.f32 %v430, %v8118
        %v8378 = vadd.f32 %v431, %v8120
        %v8379 = vadd.f32 %v432, %v8321
        %v8380 = vadd.f32 %v433, %v8124
        %v8381 = vadd.f32 %v434, %v8126
        %v8382 = vadd.f32 %v435, %v8326
        %v8383 = vadd.f32 %v436, %v8128
        %v8384 = vadd.f32 %v437, %v8130
        %v8385 = vadd.f32 %v438, %v8329
        %v8386 = vadd.f32 %v439, %v8134
        %v8387 = vadd.f32 %v440, %v8136
        %v8388 = vadd.f32 %v441, %v8334
        %v8389 = vadd.f32 %v442, %v8138
        %v8390 = vadd.f32 %v443, %v8140
        %v8391 = vadd.f32 %v444, %v8337
        %v8392 = vadd.f32 %v445, %v8144
        %v8393 = vadd.f32 %v446, %v8146
        %v8394 = vadd.f32 %v447, %v8342
        %v8395 = vadd.f32 %v448, %v8148
        %v8396 = vadd.f32 %v449, %v8150
        %v8397 = vadd.f32 %v450, %v8345
        %v8398 = vadd.f32 %v451, %v8154
        %v8399 = vadd.f32 %v452, %v8156
        %v8400 = vadd.f32 %v453, %v8350
        %v8401 = vadd.f32 %v454, %v8158
        %v8402 = vadd.f32 %v455, %v8160
        %v8403 = vadd.f32 %v456, %v8353
        %8404 = vst [vmem:[%s405] sm:$0xff] %v8356
        %8405 = vst [vmem:[%s405 + $0x8] sm:$0xff] %v8357
        %8406 = vst [vmem:[%s405 + $0x10] sm:$0xff] %v8358
        %8407 = vst [vmem:[%s405 + $0x18] sm:$0xff] %v8359
        %8408 = vst [vmem:[%s405 + $0x20] sm:$0xff] %v8360
        %8409 = vst [vmem:[%s405 + $0x28] sm:$0xff] %v8361
        %8410 = vst [vmem:[%s405 + $0x30] sm:$0xff] %v8362
        %8411 = vst [vmem:[%s405 + $0x38] sm:$0xff] %v8363
        %8412 = vst [vmem:[%s405 + $0x40] sm:$0xff] %v8364
        %8413 = vst [vmem:[%s405 + $0x48] sm:$0xff] %v8365
        %8414 = vst [vmem:[%s405 + $0x50] sm:$0xff] %v8366
        %8415 = vst [vmem:[%s405 + $0x58] sm:$0xff] %v8367
        %8416 = vst [vmem:[%s405 + $0x60] sm:$0xff] %v8368
        %8417 = vst [vmem:[%s405 + $0x68] sm:$0xff] %v8369
        %8418 = vst [vmem:[%s405 + $0x70] sm:$0xff] %v8370
        %8419 = vst [vmem:[%s405 + $0x78] sm:$0xff] %v8371
        %8420 = vst [vmem:[%s405 + $0x80] sm:$0xff] %v8372
        %8421 = vst [vmem:[%s405 + $0x88] sm:$0xff] %v8373
        %8422 = vst [vmem:[%s405 + $0x90] sm:$0xff] %v8374
        %8423 = vst [vmem:[%s405 + $0x98] sm:$0xff] %v8375
        %8424 = vst [vmem:[%s405 + $0xa0] sm:$0xff] %v8376
        %8425 = vst [vmem:[%s405 + $0xa8] sm:$0xff] %v8377
        %8426 = vst [vmem:[%s405 + $0xb0] sm:$0xff] %v8378
        %8427 = vst [vmem:[%s405 + $0xb8] sm:$0xff] %v8379
        %8428 = vst [vmem:[%s405 + $0xc0] sm:$0xff] %v8380
        %8429 = vst [vmem:[%s405 + $0xc8] sm:$0xff] %v8381
        %8430 = vst [vmem:[%s405 + $0xd0] sm:$0xff] %v8382
        %8431 = vst [vmem:[%s405 + $0xd8] sm:$0xff] %v8383
        %8432 = vst [vmem:[%s405 + $0xe0] sm:$0xff] %v8384
        %8433 = vst [vmem:[%s405 + $0xe8] sm:$0xff] %v8385
        %8434 = vst [vmem:[%s405 + $0xf0] sm:$0xff] %v8386
        %8435 = vst [vmem:[%s405 + $0xf8] sm:$0xff] %v8387
        %8436 = vst [vmem:[%s405 + $0x100] sm:$0xff] %v8388
        %8437 = vst [vmem:[%s405 + $0x108] sm:$0xff] %v8389
        %8438 = vst [vmem:[%s405 + $0x110] sm:$0xff] %v8390
        %8439 = vst [vmem:[%s405 + $0x118] sm:$0xff] %v8391
        %8440 = vst [vmem:[%s405 + $0x120] sm:$0xff] %v8392
        %8441 = vst [vmem:[%s405 + $0x128] sm:$0xff] %v8393
        %8442 = vst [vmem:[%s405 + $0x130] sm:$0xff] %v8394
        %8443 = vst [vmem:[%s405 + $0x138] sm:$0xff] %v8395
        %8444 = vst [vmem:[%s405 + $0x140] sm:$0xff] %v8396
        %8445 = vst [vmem:[%s405 + $0x148] sm:$0xff] %v8397
        %8446 = vst [vmem:[%s405 + $0x150] sm:$0xff] %v8398
        %8447 = vst [vmem:[%s405 + $0x158] sm:$0xff] %v8399
        %8448 = vst [vmem:[%s405 + $0x160] sm:$0xff] %v8400
        %8449 = vst [vmem:[%s405 + $0x168] sm:$0xff] %v8401
        %8450 = vst [vmem:[%s405 + $0x170] sm:$0xff] %v8402
        %8451 = vst [vmem:[%s405 + $0x178] sm:$0xff] %v8403
        %s8452 = sand.u32 %s230, 1
        %s8453 = scalar_lea.sflag [#allocation4], %s8452
        %s8454 = sand.u32 %s230, 1
        %s8455 = smul.addr %s8454, 384
        %s8456 = scalar_lea.vmem [#allocation11], %s8455
        // Predicated region
        $region77: #{tpu_custom_call.1} parent=55 // pred_check
          %p8457 = pneg %p240
        $region78: #{tpu_custom_call.1} parent=55 // pred_check_branch
          %8459 = sbr.rel (%p8457) target = $region80
        $region79: #{tpu_custom_call.1} parent=55 // pred_region
          %s8460 = smul.u32 2, %s28
          %s8462 = ssub.s32 6144, 6144
          %8463 = vsyncadd %s8453, %s8462
          %s8464 = smul.addr %s8460, 24
          %s8465 = smul.addr %s8464, 128
          %s8466 = scalar_lea.hbm %s9, %s8465
          %s8467 = sshll.u32 %s8456, 4
          %s8468 = int_to_ptr.vmem [resolvable:$true] %s8467
          %8473 = dma.vmem_to_hbm [thread:$0]  %s8468, 6144, %s8466, %s8453, 384, 384, 24
        $region80: #{tpu_custom_call.1} parent=55 // pred_fallthru
          _
      $region56: #{tpu_custom_call.1} parent=5 // pred_fallthru
        _
      %p8474 = scmp.le.s32.totalorder 2, %s23
      // Predicated region
      $region81: #{tpu_custom_call.1} parent=5 // pred_check
        %p8475 = pneg %p8474
      $region82: #{tpu_custom_call.1} parent=5 // pred_check_branch
        %8477 = sbr.rel (%p8475) target = $region84
      $region83: #{tpu_custom_call.1} parent=5 // pred_region
        %s8478 = ssub.s32 %s23, 2
        // Predicated region
        $region85: #{tpu_custom_call.1} parent=83 // pred_check
          %p8479 = pneg %p246
        $region86: #{tpu_custom_call.1} parent=83 // pred_check_branch
          %8481 = sbr.rel (%p8479) target = $region88
        $region87: #{tpu_custom_call.1} parent=83 // pred_region
          %s8482 = sand.u32 %s231, 1
          %s8483 = scalar_lea.sflag [#allocation4], %s8482
          %s8484 = sand.u32 %s231, 1
          %s8485 = smul.addr %s8484, 384
          %s8486 = scalar_lea.vmem [#allocation11], %s8485
          %8487 = dma.done %s8483, 6144
        $region88: #{tpu_custom_call.1} parent=83 // pred_fallthru
          _
      $region84: #{tpu_custom_call.1} parent=5 // pred_fallthru
        _
    $region6: #{tpu_custom_call.1} parent=1 // loop_footer
      %s27 = sadd.s32 1, %s23
    $region7: #{tpu_custom_call.1} parent=1 // loop_footer_branch
      %22 = sbr.rel target = $region3
    $region8: #{tpu_custom_call.1} parent=1 // loop_exit
      _
    %8488 = vsyncpa [#allocation3], 1
    %s8489 = scalar_lea.sflag [#allocation3], 1
    %8490 = vsyncpa %s8489, 1
    %8491 = vsyncpa [#allocation6], 1
    %s8492 = scalar_lea.sflag [#allocation6], 1
    %8493 = vsyncpa %s8492, 1
    %8494 = vsyncpa [#allocation9], 1
    %8495 = vsyncpa [#allocation4], 1
    %s8496 = scalar_lea.sflag [#allocation4], 1
    %8497 = vsyncpa %s8496, 1

</llo_original>
